<compile_context>
chip_gen: v7x
topology: tpu7x:2x2x1
jax: 0.10.0
libtpu: 0.0.40
codegen_flags: <defaults>
</compile_context>

<pallas_src>
import math

import jax
import jax.numpy as jnp
from jax.experimental import pallas as pl
from jax.experimental.pallas import tpu as pltpu


_PAD_CIN = 8                                    # 6 input channels zero-padded to 8
_TAIL = ("bn1w", "bn1b", "w2", "b2", "bn2w", "bn2b",
         "l1w", "l1b", "l2w", "l2b", "gbnw", "gbnb")
_BF16_TAIL = ("w2", "l1w", "l2w")               # matmul weights stored bf16


# ----------------------------- fused kernel ------------------------------------

def _make_fused_kernel(names, B, N):
    n_in = len(names)
    BN = B * N

    def kernel(*refs):
        ins = dict(zip(names, refs[:n_in]))
        out_ref = refs[n_in]

        def f32(name):
            return ins[name][...].astype(jnp.float32)

        def mmb(a, wname):
            # MXU-native bf16 x bf16 matmul with f32 accumulation.
            return jnp.dot(a.astype(jnp.bfloat16), ins[wname][...],
                           preferred_element_type=jnp.float32)

        inv_bn = 1.0 / float(BN)
        ones_sum = jnp.ones((8, BN), jnp.float32)    # MXU row-sum operand (M padded to 8)

        def bn(v, wname, bname, eps=1e-5):
            # nn.BatchNorm1d training semantics: per-channel batch stats over (B, N),
            # biased variance (clamped), scale/shift folded into one FMA.
            # sum / sum-of-squares computed on the (otherwise idle) MXU in f32.
            C = v.shape[-1]
            v2 = v.reshape(BN, C)
            s1 = jnp.dot(ones_sum, v2, preferred_element_type=jnp.float32)[0:1]
            s2 = jnp.dot(ones_sum, v2 * v2, preferred_element_type=jnp.float32)[0:1]
            m = s1 * inv_bn
            var = jnp.maximum(s2 * inv_bn - m * m, 0.0)
            scale = f32(wname) * jax.lax.rsqrt(var + eps)
            shift = f32(bname) - m * scale
            return v * scale[None] + shift[None]

        def tail(h0, sc, pfx):
            # Fused PointMLPBlock tail: BN -> ReLU -> Conv -> BN -> GeometryAffine
            # -> BN -> (+shortcut) -> ReLU.  Works on lane-packed fused channels.
            C = h0.shape[-1]
            h = jnp.maximum(bn(h0, pfx + "_bn1w", pfx + "_bn1b"), 0.0)
            h = mmb(h.reshape(BN, C), pfx + "_w2").reshape(B, N, C) \
                + f32(pfx + "_b2")[None]
            h = bn(h, pfx + "_bn2w", pfx + "_bn2b")
            gmean = jnp.mean(h, axis=1)                              # (B, C) mean over points
            pv = jnp.maximum(mmb(gmean, pfx + "_l1w") + f32(pfx + "_l1b"), 0.0)
            pv = mmb(pv, pfx + "_l2w") + f32(pfx + "_l2b")           # (B, 2C) = [gamma | beta]
            h = pv[:, :C][:, None, :] * h + pv[:, C:][:, None, :]
            h = bn(h, pfx + "_gbnw", pfx + "_gbnb")
            return jnp.maximum(h + sc, 0.0)

        # ---- stage 1: g1 | m1 | d1 fused into one 192-channel block -------------
        x = f32("x")                                                 # (B, N, 8)
        y0 = mmb(x.reshape(BN, x.shape[-1]), "t1_w0").reshape(B, N, 384) \
            + f32("t1_b0")[None]
        h1 = tail(y0[:, :, :192], y0[:, :, 192:], "t1")              # [g1 | m1 | d1]

        # ---- stage 2: g2 | m2 fused (256 lanes) ----------------------------------
        y1 = mmb(h1[:, :, :128].reshape(BN, 128), "t2_wf").reshape(B, N, 512) \
            + f32("t2_bf")[None]
        h2 = tail(y1[:, :, :256], y1[:, :, 256:], "t2")              # [g2 | m2]

        # ---- stage 3: g3 ----------------------------------------------------------
        y2 = mmb(h2[:, :, :128].reshape(BN, 128), "g3_wf").reshape(B, N, 512) \
            + f32("g3_bf")[None]
        h3 = tail(y2[:, :, :256], y2[:, :, 256:], "g3")              # (B, N, 256)

        # ---- epilogue: torch.max over points, one lane-dense packed store --------
        out_ref[...] = jnp.concatenate(
            [jnp.max(h3, axis=1),                   # global (256)
             jnp.max(h2[:, :, 128:], axis=1),       # meso   (128)
             jnp.max(h1[:, :, 128:], axis=1),       # detail (64)
             jnp.zeros((B, 64), jnp.float32)],      # lane pad to 512
            axis=-1)

    return kernel


# ----------------------------- weight packing -----------------------------------

def _block_diag(mats):
    r = sum(m.shape[0] for m in mats)
    c = sum(m.shape[1] for m in mats)
    out = jnp.zeros((r, c), jnp.float32)
    i = j = 0
    for m in mats:
        out = out.at[i:i + m.shape[0], j:j + m.shape[1]].set(m)
        i += m.shape[0]
        j += m.shape[1]
    return out


def _pad_w(w):
    # (6, cout) -> (8, cout); padded rows meet zero-padded inputs -> no-op.
    return jnp.pad(w, ((0, _PAD_CIN - w.shape[0]), (0, 0)))


def _tail_fused(blocks, params):
    """Lane-concatenate / block-diagonalize the per-block tail params."""
    ps = [params[b] for b in blocks]
    C = ps[0]["w2"].shape[0]
    n = len(ps)
    cat = lambda key: jnp.concatenate([p[key] for p in ps], axis=1)
    d = dict(
        bn1w=cat("bn1w"), bn1b=cat("bn1b"),
        w2=_block_diag([p["w2"] for p in ps]), b2=cat("b2"),
        bn2w=cat("bn2w"), bn2b=cat("bn2b"),
        l1w=_block_diag([p["l1w"] for p in ps]), l1b=cat("l1b"),
        gbnw=cat("gbnw"), gbnb=cat("gbnb"),
    )
    # l2: block-diagonal with output columns permuted so the fused result is
    # [gamma_blk0 | ... | gamma_blkN | beta_blk0 | ... | beta_blkN].
    l2 = jnp.zeros((2 * n * C, 2 * n * C), jnp.float32)
    for i, p in enumerate(ps):
        r = 2 * C * i
        l2 = l2.at[r:r + 2 * C, C * i:C * (i + 1)].set(p["l2w"][:, :C])
        l2 = l2.at[r:r + 2 * C, n * C + C * i:n * C + C * (i + 1)].set(p["l2w"][:, C:])
    d["l2w"] = l2
    d["l2b"] = jnp.concatenate([p["l2b"][:, :C] for p in ps]
                               + [p["l2b"][:, C:] for p in ps], axis=1)
    return d


def _cost_estimate(B, N, args, out_shape):
    BN = B * N
    mm = [
        (BN, 8, 384), (BN, 192, 192), (B, 192, 384), (B, 384, 384),     # stage 1
        (BN, 128, 512), (BN, 256, 256), (B, 256, 512), (B, 512, 512),   # stage 2
        (BN, 128, 512), (BN, 256, 256), (B, 256, 512), (B, 512, 512),   # stage 3
    ]
    for C in (192, 256, 256):                                            # BN stat matmuls
        mm += [(8, BN, C)] * 6
    flops = sum(2 * m * k * n for m, k, n in mm)
    transcendentals = 3 * (192 + 256 + 256)                              # rsqrt per BN channel
    bytes_acc = sum(int(a.size) * a.dtype.itemsize for a in args)
    bytes_acc += math.prod(out_shape.shape) * jnp.dtype(out_shape.dtype).itemsize
    return pl.CostEstimate(flops=int(flops), transcendentals=int(transcendentals),
                           bytes_accessed=int(bytes_acc))


# ----------------------------- wrapper -------------------------------------------

def multi_scale_feature(x_bcn, params):
    """Exact forward of MultiScaleFeature.  x_bcn: (B, 6, N) as in PyTorch."""
    B, Cin, N = x_bcn.shape
    assert Cin == 6
    # glue: NCW -> channels-last, zero-pad channel dim 6 -> 8 for clean lane tiling.
    x = jnp.transpose(x_bcn, (0, 2, 1)).astype(jnp.float32)              # (B, N, 6)
    x = jnp.pad(x, ((0, 0), (0, 0), (0, _PAD_CIN - Cin)))                # (B, N, 8)

    names, args = [], []

    def add(name, arr, bf16=False):
        names.append(name)
        args.append(arr.astype(jnp.bfloat16) if bf16 else arr.astype(jnp.float32))

    def add_tail(pfx, blocks):
        d = _tail_fused(blocks, params)
        for key in _TAIL:
            add(f"{pfx}_{key}", d[key], bf16=(key in _BF16_TAIL))

    add("x", x)

    # stage 1: fused g1|m1|d1 first layer: cols = [conv_g|conv_m|conv_d|sc_g|sc_m|sc_d]
    first = ("g1", "m1", "d1")
    add("t1_w0", jnp.concatenate(
        [_pad_w(params[b]["w1"]) for b in first]
        + [_pad_w(params[b]["sw"]) for b in first], axis=1), bf16=True)
    add("t1_b0", jnp.concatenate(
        [params[b]["b1"] for b in first] + [params[b]["sb"] for b in first], axis=1))
    add_tail("t1", first)

    # stage 2: fused g2|m2: cols = [conv_g2|conv_m2|sc_g2|sc_m2], block-diag rows.
    add("t2_wf", jnp.concatenate(
        [_block_diag([params["g2"]["w1"], params["m2"]["w1"]]),
         _block_diag([params["g2"]["sw"], params["m2"]["sw"]])], axis=1), bf16=True)
    add("t2_bf", jnp.concatenate(
        [params["g2"]["b1"], params["m2"]["b1"],
         params["g2"]["sb"], params["m2"]["sb"]], axis=1))
    add_tail("t2", ("g2", "m2"))

    # stage 3: g3 (conv1 and shortcut fused into one matmul).
    add("g3_wf", jnp.concatenate([params["g3"]["w1"], params["g3"]["sw"]], axis=1),
        bf16=True)
    add("g3_bf", jnp.concatenate([params["g3"]["b1"], params["g3"]["sb"]], axis=1))
    add_tail("g3", ("g3",))

    out_shape = jax.ShapeDtypeStruct((B, 512), jnp.float32)
    vmem = pl.BlockSpec(memory_space=pltpu.MemorySpace.VMEM)
    packed = pl.pallas_call(
        _make_fused_kernel(tuple(names), B, N),
        out_shape=out_shape,
        in_specs=[vmem] * len(args),
        out_specs=vmem,
        compiler_params=pltpu.CompilerParams(vmem_limit_bytes=32 * 1024 * 1024),
        cost_estimate=_cost_estimate(B, N, args, out_shape),
    )(*args)

    return packed[:, :256], packed[:, 256:384], packed[:, 384:448]


# ----------------------------- deterministic parameter init ----------------------

def init_block_params(key, cin, cout):
    ks = jax.random.split(key, 10)

    def u(k, shape, fan_in):
        bound = 1.0 / float(fan_in) ** 0.5
        return jax.random.uniform(k, shape, jnp.float32, -bound, bound)

    ones = lambda c: jnp.ones((1, c), jnp.float32)
    zeros = lambda c: jnp.zeros((1, c), jnp.float32)
    return dict(
        # mlp conv1 / bn1
        w1=u(ks[0], (cin, cout), cin), b1=u(ks[1], (1, cout), cin),
        bn1w=ones(cout), bn1b=zeros(cout),
        # mlp conv2 / bn2
        w2=u(ks[2], (cout, cout), cout), b2=u(ks[3], (1, cout), cout),
        bn2w=ones(cout), bn2b=zeros(cout),
        # GeometryAffine linears (stored as (in, out)) and its BN
        l1w=u(ks[4], (cout, 2 * cout), cout), l1b=u(ks[5], (1, 2 * cout), cout),
        l2w=u(ks[6], (2 * cout, 2 * cout), 2 * cout), l2b=u(ks[7], (1, 2 * cout), 2 * cout),
        gbnw=ones(cout), gbnb=zeros(cout),
        # shortcut conv
        sw=u(ks[8], (cin, cout), cin), sb=u(ks[9], (1, cout), cin),
    )


# ----------------------------- main -----------------------------------------------

if __name__ == "__main__":
    key = jax.random.PRNGKey(0)
    B, C_in, N = 2, 6, 128                     # point cloud: 6 input channels, 128 points

    x = jax.random.normal(jax.random.fold_in(key, 0), (B, C_in, N), jnp.float32)

    params = {
        "g1": init_block_params(jax.random.fold_in(key, 1), 6, 64),
        "g2": init_block_params(jax.random.fold_in(key, 2), 64, 128),
        "g3": init_block_params(jax.random.fold_in(key, 3), 128, 256),
        "m1": init_block_params(jax.random.fold_in(key, 4), 6, 64),
        "m2": init_block_params(jax.random.fold_in(key, 5), 64, 128),
        "d1": init_block_params(jax.random.fold_in(key, 6), 6, 64),
    }

    fwd = jax.jit(multi_scale_feature)
    global_feat, meso_feat, detail_feat = fwd(x, params)
    jax.block_until_ready((global_feat, meso_feat, detail_feat))

    assert global_feat.shape == (B, 256)
    assert meso_feat.shape == (B, 128)
    assert detail_feat.shape == (B, 64)
    assert jnp.all(jnp.isfinite(global_feat))
    assert jnp.all(jnp.isfinite(meso_feat))
    assert jnp.all(jnp.isfinite(detail_feat))
    print("KERNEL_OK")
</pallas_src>

<mosaic_0001>
module attributes {stable_mosaic.version = 11 : i64} {
  func.func @kernel(%arg0: memref<2x128x8xf32, #tpu.memory_space<vmem>>, %arg1: memref<8x384xbf16, #tpu.memory_space<vmem>>, %arg2: memref<1x384xf32, #tpu.memory_space<vmem>>, %arg3: memref<1x192xf32, #tpu.memory_space<vmem>>, %arg4: memref<1x192xf32, #tpu.memory_space<vmem>>, %arg5: memref<192x192xbf16, #tpu.memory_space<vmem>>, %arg6: memref<1x192xf32, #tpu.memory_space<vmem>>, %arg7: memref<1x192xf32, #tpu.memory_space<vmem>>, %arg8: memref<1x192xf32, #tpu.memory_space<vmem>>, %arg9: memref<192x384xbf16, #tpu.memory_space<vmem>>, %arg10: memref<1x384xf32, #tpu.memory_space<vmem>>, %arg11: memref<384x384xbf16, #tpu.memory_space<vmem>>, %arg12: memref<1x384xf32, #tpu.memory_space<vmem>>, %arg13: memref<1x192xf32, #tpu.memory_space<vmem>>, %arg14: memref<1x192xf32, #tpu.memory_space<vmem>>, %arg15: memref<128x512xbf16, #tpu.memory_space<vmem>>, %arg16: memref<1x512xf32, #tpu.memory_space<vmem>>, %arg17: memref<1x256xf32, #tpu.memory_space<vmem>>, %arg18: memref<1x256xf32, #tpu.memory_space<vmem>>, %arg19: memref<256x256xbf16, #tpu.memory_space<vmem>>, %arg20: memref<1x256xf32, #tpu.memory_space<vmem>>, %arg21: memref<1x256xf32, #tpu.memory_space<vmem>>, %arg22: memref<1x256xf32, #tpu.memory_space<vmem>>, %arg23: memref<256x512xbf16, #tpu.memory_space<vmem>>, %arg24: memref<1x512xf32, #tpu.memory_space<vmem>>, %arg25: memref<512x512xbf16, #tpu.memory_space<vmem>>, %arg26: memref<1x512xf32, #tpu.memory_space<vmem>>, %arg27: memref<1x256xf32, #tpu.memory_space<vmem>>, %arg28: memref<1x256xf32, #tpu.memory_space<vmem>>, %arg29: memref<128x512xbf16, #tpu.memory_space<vmem>>, %arg30: memref<1x512xf32, #tpu.memory_space<vmem>>, %arg31: memref<1x256xf32, #tpu.memory_space<vmem>>, %arg32: memref<1x256xf32, #tpu.memory_space<vmem>>, %arg33: memref<256x256xbf16, #tpu.memory_space<vmem>>, %arg34: memref<1x256xf32, #tpu.memory_space<vmem>>, %arg35: memref<1x256xf32, #tpu.memory_space<vmem>>, %arg36: memref<1x256xf32, #tpu.memory_space<vmem>>, %arg37: memref<256x512xbf16, #tpu.memory_space<vmem>>, %arg38: memref<1x512xf32, #tpu.memory_space<vmem>>, %arg39: memref<512x512xbf16, #tpu.memory_space<vmem>>, %arg40: memref<1x512xf32, #tpu.memory_space<vmem>>, %arg41: memref<1x256xf32, #tpu.memory_space<vmem>>, %arg42: memref<1x256xf32, #tpu.memory_space<vmem>>, %arg43: memref<2x512xf32, #tpu.memory_space<vmem>>) attributes {dimension_semantics = [], scalar_prefetch = 0 : i64, scratch_operands = 0 : i64, tpu.core_type = #tpu.core_type<tc>} {
    %cst = arith.constant 1.000000e+00 : f32
    %0 = vector.broadcast %cst : f32 to vector<8x256xf32>
    %c0 = arith.constant 0 : index
    %c0_0 = arith.constant 0 : index
    %c0_1 = arith.constant 0 : index
    %1 = vector.load %arg0[%c0, %c0_0, %c0_1] : memref<2x128x8xf32, #tpu.memory_space<vmem>>, vector<2x128x8xf32>
    %2 = vector.shape_cast %1 : vector<2x128x8xf32> to vector<256x8xf32>
    %3 = arith.truncf %2 : vector<256x8xf32> to vector<256x8xbf16>
    %c0_2 = arith.constant 0 : index
    %c0_3 = arith.constant 0 : index
    %4 = vector.load %arg1[%c0_2, %c0_3] : memref<8x384xbf16, #tpu.memory_space<vmem>>, vector<8x384xbf16>
    %cst_4 = arith.constant dense<0.000000e+00> : vector<256x384xf32>
    %5 = tpu.matmul %3, %4, %cst_4 {dimension_numbers = #tpu.dot_dimension_numbers<[1], [0], [0], [1], [0, 0, 1, 1], [], []>} : vector<256x8xbf16>, vector<8x384xbf16>, vector<256x384xf32> -> vector<256x384xf32>
    %6 = vector.shape_cast %5 : vector<256x384xf32> to vector<2x128x384xf32>
    %c0_5 = arith.constant 0 : index
    %c0_6 = arith.constant 0 : index
    %7 = vector.load %arg2[%c0_5, %c0_6] : memref<1x384xf32, #tpu.memory_space<vmem>>, vector<1x384xf32>
    %8 = vector.shape_cast %7 : vector<1x384xf32> to vector<1x1x384xf32>
    %9 = vector.broadcast %8 : vector<1x1x384xf32> to vector<2x128x384xf32>
    %10 = arith.addf %6, %9 : vector<2x128x384xf32>
    %11 = vector.extract_strided_slice %10 {offsets = [0, 0, 0], sizes = [2, 128, 192], strides = [1, 1, 1]} : vector<2x128x384xf32> to vector<2x128x192xf32>
    %12 = vector.extract_strided_slice %10 {offsets = [0, 0, 192], sizes = [2, 128, 192], strides = [1, 1, 1]} : vector<2x128x384xf32> to vector<2x128x192xf32>
    %13 = vector.shape_cast %11 : vector<2x128x192xf32> to vector<256x192xf32>
    %cst_7 = arith.constant dense<0.000000e+00> : vector<8x192xf32>
    %14 = tpu.matmul %0, %13, %cst_7 {dimension_numbers = #tpu.dot_dimension_numbers<[1], [0], [0], [1], [0, 0, 1, 1], [], []>} : vector<8x256xf32>, vector<256x192xf32>, vector<8x192xf32> -> vector<8x192xf32>
    %15 = vector.extract_strided_slice %14 {offsets = [0, 0], sizes = [1, 192], strides = [1, 1]} : vector<8x192xf32> to vector<1x192xf32>
    %16 = arith.mulf %13, %13 : vector<256x192xf32>
    %cst_8 = arith.constant dense<0.000000e+00> : vector<8x192xf32>
    %17 = tpu.matmul %0, %16, %cst_8 {dimension_numbers = #tpu.dot_dimension_numbers<[1], [0], [0], [1], [0, 0, 1, 1], [], []>} : vector<8x256xf32>, vector<256x192xf32>, vector<8x192xf32> -> vector<8x192xf32>
    %18 = vector.extract_strided_slice %17 {offsets = [0, 0], sizes = [1, 192], strides = [1, 1]} : vector<8x192xf32> to vector<1x192xf32>
    %cst_9 = arith.constant 3.906250e-03 : f32
    %19 = vector.broadcast %cst_9 : f32 to vector<1x192xf32>
    %20 = arith.mulf %15, %19 : vector<1x192xf32>
    %cst_10 = arith.constant 3.906250e-03 : f32
    %21 = vector.broadcast %cst_10 : f32 to vector<1x192xf32>
    %22 = arith.mulf %18, %21 : vector<1x192xf32>
    %23 = arith.mulf %20, %20 : vector<1x192xf32>
    %24 = arith.subf %22, %23 : vector<1x192xf32>
    %cst_11 = arith.constant 0.000000e+00 : f32
    %25 = vector.broadcast %cst_11 : f32 to vector<1x192xf32>
    %26 = arith.maximumf %24, %25 : vector<1x192xf32>
    %c0_12 = arith.constant 0 : index
    %c0_13 = arith.constant 0 : index
    %27 = vector.load %arg3[%c0_12, %c0_13] : memref<1x192xf32, #tpu.memory_space<vmem>>, vector<1x192xf32>
    %cst_14 = arith.constant 9.99999974E-6 : f32
    %28 = vector.broadcast %cst_14 : f32 to vector<1x192xf32>
    %29 = arith.addf %26, %28 : vector<1x192xf32>
    %30 = math.rsqrt %29 : vector<1x192xf32>
    %31 = arith.mulf %27, %30 : vector<1x192xf32>
    %c0_15 = arith.constant 0 : index
    %c0_16 = arith.constant 0 : index
    %32 = vector.load %arg4[%c0_15, %c0_16] : memref<1x192xf32, #tpu.memory_space<vmem>>, vector<1x192xf32>
    %33 = arith.mulf %20, %31 : vector<1x192xf32>
    %34 = arith.subf %32, %33 : vector<1x192xf32>
    %35 = vector.shape_cast %31 : vector<1x192xf32> to vector<1x1x192xf32>
    %36 = vector.broadcast %35 : vector<1x1x192xf32> to vector<2x128x192xf32>
    %37 = arith.mulf %11, %36 : vector<2x128x192xf32>
    %38 = vector.shape_cast %34 : vector<1x192xf32> to vector<1x1x192xf32>
    %39 = vector.broadcast %38 : vector<1x1x192xf32> to vector<2x128x192xf32>
    %40 = arith.addf %37, %39 : vector<2x128x192xf32>
    %cst_17 = arith.constant 0.000000e+00 : f32
    %41 = vector.broadcast %cst_17 : f32 to vector<2x128x192xf32>
    %42 = arith.maximumf %40, %41 : vector<2x128x192xf32>
    %43 = vector.shape_cast %42 : vector<2x128x192xf32> to vector<256x192xf32>
    %44 = arith.truncf %43 : vector<256x192xf32> to vector<256x192xbf16>
    %c0_18 = arith.constant 0 : index
    %c0_19 = arith.constant 0 : index
    %45 = vector.load %arg5[%c0_18, %c0_19] : memref<192x192xbf16, #tpu.memory_space<vmem>>, vector<192x192xbf16>
    %cst_20 = arith.constant dense<0.000000e+00> : vector<256x192xf32>
    %46 = tpu.matmul %44, %45, %cst_20 {dimension_numbers = #tpu.dot_dimension_numbers<[1], [0], [0], [1], [0, 0, 1, 1], [], []>} : vector<256x192xbf16>, vector<192x192xbf16>, vector<256x192xf32> -> vector<256x192xf32>
    %47 = vector.shape_cast %46 : vector<256x192xf32> to vector<2x128x192xf32>
    %c0_21 = arith.constant 0 : index
    %c0_22 = arith.constant 0 : index
    %48 = vector.load %arg6[%c0_21, %c0_22] : memref<1x192xf32, #tpu.memory_space<vmem>>, vector<1x192xf32>
    %49 = vector.shape_cast %48 : vector<1x192xf32> to vector<1x1x192xf32>
    %50 = vector.broadcast %49 : vector<1x1x192xf32> to vector<2x128x192xf32>
    %51 = arith.addf %47, %50 : vector<2x128x192xf32>
    %52 = vector.shape_cast %51 : vector<2x128x192xf32> to vector<256x192xf32>
    %cst_23 = arith.constant dense<0.000000e+00> : vector<8x192xf32>
    %53 = tpu.matmul %0, %52, %cst_23 {dimension_numbers = #tpu.dot_dimension_numbers<[1], [0], [0], [1], [0, 0, 1, 1], [], []>} : vector<8x256xf32>, vector<256x192xf32>, vector<8x192xf32> -> vector<8x192xf32>
    %54 = vector.extract_strided_slice %53 {offsets = [0, 0], sizes = [1, 192], strides = [1, 1]} : vector<8x192xf32> to vector<1x192xf32>
    %55 = arith.mulf %52, %52 : vector<256x192xf32>
    %cst_24 = arith.constant dense<0.000000e+00> : vector<8x192xf32>
    %56 = tpu.matmul %0, %55, %cst_24 {dimension_numbers = #tpu.dot_dimension_numbers<[1], [0], [0], [1], [0, 0, 1, 1], [], []>} : vector<8x256xf32>, vector<256x192xf32>, vector<8x192xf32> -> vector<8x192xf32>
    %57 = vector.extract_strided_slice %56 {offsets = [0, 0], sizes = [1, 192], strides = [1, 1]} : vector<8x192xf32> to vector<1x192xf32>
    %cst_25 = arith.constant 3.906250e-03 : f32
    %58 = vector.broadcast %cst_25 : f32 to vector<1x192xf32>
    %59 = arith.mulf %54, %58 : vector<1x192xf32>
    %cst_26 = arith.constant 3.906250e-03 : f32
    %60 = vector.broadcast %cst_26 : f32 to vector<1x192xf32>
    %61 = arith.mulf %57, %60 : vector<1x192xf32>
    %62 = arith.mulf %59, %59 : vector<1x192xf32>
    %63 = arith.subf %61, %62 : vector<1x192xf32>
    %cst_27 = arith.constant 0.000000e+00 : f32
    %64 = vector.broadcast %cst_27 : f32 to vector<1x192xf32>
    %65 = arith.maximumf %63, %64 : vector<1x192xf32>
    %c0_28 = arith.constant 0 : index
    %c0_29 = arith.constant 0 : index
    %66 = vector.load %arg7[%c0_28, %c0_29] : memref<1x192xf32, #tpu.memory_space<vmem>>, vector<1x192xf32>
    %cst_30 = arith.constant 9.99999974E-6 : f32
    %67 = vector.broadcast %cst_30 : f32 to vector<1x192xf32>
    %68 = arith.addf %65, %67 : vector<1x192xf32>
    %69 = math.rsqrt %68 : vector<1x192xf32>
    %70 = arith.mulf %66, %69 : vector<1x192xf32>
    %c0_31 = arith.constant 0 : index
    %c0_32 = arith.constant 0 : index
    %71 = vector.load %arg8[%c0_31, %c0_32] : memref<1x192xf32, #tpu.memory_space<vmem>>, vector<1x192xf32>
    %72 = arith.mulf %59, %70 : vector<1x192xf32>
    %73 = arith.subf %71, %72 : vector<1x192xf32>
    %74 = vector.shape_cast %70 : vector<1x192xf32> to vector<1x1x192xf32>
    %75 = vector.broadcast %74 : vector<1x1x192xf32> to vector<2x128x192xf32>
    %76 = arith.mulf %51, %75 : vector<2x128x192xf32>
    %77 = vector.shape_cast %73 : vector<1x192xf32> to vector<1x1x192xf32>
    %78 = vector.broadcast %77 : vector<1x1x192xf32> to vector<2x128x192xf32>
    %79 = arith.addf %76, %78 : vector<2x128x192xf32>
    %cst_33 = arith.constant dense<0.000000e+00> : vector<2x192xf32>
    %80 = vector.multi_reduction <add>, %79, %cst_33 [1] : vector<2x128x192xf32> to vector<2x192xf32>
    %cst_34 = arith.constant 1.280000e+02 : f32
    %81 = vector.broadcast %cst_34 : f32 to vector<2x192xf32>
    %82 = arith.divf %80, %81 : vector<2x192xf32>
    %83 = arith.truncf %82 : vector<2x192xf32> to vector<2x192xbf16>
    %c0_35 = arith.constant 0 : index
    %c0_36 = arith.constant 0 : index
    %84 = vector.load %arg9[%c0_35, %c0_36] : memref<192x384xbf16, #tpu.memory_space<vmem>>, vector<192x384xbf16>
    %cst_37 = arith.constant dense<0.000000e+00> : vector<2x384xf32>
    %85 = tpu.matmul %83, %84, %cst_37 {dimension_numbers = #tpu.dot_dimension_numbers<[1], [0], [0], [1], [0, 0, 1, 1], [], []>} : vector<2x192xbf16>, vector<192x384xbf16>, vector<2x384xf32> -> vector<2x384xf32>
    %c0_38 = arith.constant 0 : index
    %c0_39 = arith.constant 0 : index
    %86 = vector.load %arg10[%c0_38, %c0_39] : memref<1x384xf32, #tpu.memory_space<vmem>>, vector<1x384xf32>
    %87 = vector.broadcast %86 : vector<1x384xf32> to vector<2x384xf32>
    %88 = arith.addf %85, %87 : vector<2x384xf32>
    %cst_40 = arith.constant 0.000000e+00 : f32
    %89 = vector.broadcast %cst_40 : f32 to vector<2x384xf32>
    %90 = arith.maximumf %88, %89 : vector<2x384xf32>
    %91 = arith.truncf %90 : vector<2x384xf32> to vector<2x384xbf16>
    %c0_41 = arith.constant 0 : index
    %c0_42 = arith.constant 0 : index
    %92 = vector.load %arg11[%c0_41, %c0_42] : memref<384x384xbf16, #tpu.memory_space<vmem>>, vector<384x384xbf16>
    %cst_43 = arith.constant dense<0.000000e+00> : vector<2x384xf32>
    %93 = tpu.matmul %91, %92, %cst_43 {dimension_numbers = #tpu.dot_dimension_numbers<[1], [0], [0], [1], [0, 0, 1, 1], [], []>} : vector<2x384xbf16>, vector<384x384xbf16>, vector<2x384xf32> -> vector<2x384xf32>
    %c0_44 = arith.constant 0 : index
    %c0_45 = arith.constant 0 : index
    %94 = vector.load %arg12[%c0_44, %c0_45] : memref<1x384xf32, #tpu.memory_space<vmem>>, vector<1x384xf32>
    %95 = vector.broadcast %94 : vector<1x384xf32> to vector<2x384xf32>
    %96 = arith.addf %93, %95 : vector<2x384xf32>
    %97 = vector.extract_strided_slice %96 {offsets = [0, 0], sizes = [2, 192], strides = [1, 1]} : vector<2x384xf32> to vector<2x192xf32>
    %98 = vector.shape_cast %97 : vector<2x192xf32> to vector<2x1x192xf32>
    %99 = vector.broadcast %98 : vector<2x1x192xf32> to vector<2x128x192xf32>
    %100 = arith.mulf %99, %79 : vector<2x128x192xf32>
    %101 = vector.extract_strided_slice %96 {offsets = [0, 192], sizes = [2, 192], strides = [1, 1]} : vector<2x384xf32> to vector<2x192xf32>
    %102 = vector.shape_cast %101 : vector<2x192xf32> to vector<2x1x192xf32>
    %103 = vector.broadcast %102 : vector<2x1x192xf32> to vector<2x128x192xf32>
    %104 = arith.addf %100, %103 : vector<2x128x192xf32>
    %105 = vector.shape_cast %104 : vector<2x128x192xf32> to vector<256x192xf32>
    %cst_46 = arith.constant dense<0.000000e+00> : vector<8x192xf32>
    %106 = tpu.matmul %0, %105, %cst_46 {dimension_numbers = #tpu.dot_dimension_numbers<[1], [0], [0], [1], [0, 0, 1, 1], [], []>} : vector<8x256xf32>, vector<256x192xf32>, vector<8x192xf32> -> vector<8x192xf32>
    %107 = vector.extract_strided_slice %106 {offsets = [0, 0], sizes = [1, 192], strides = [1, 1]} : vector<8x192xf32> to vector<1x192xf32>
    %108 = arith.mulf %105, %105 : vector<256x192xf32>
    %cst_47 = arith.constant dense<0.000000e+00> : vector<8x192xf32>
    %109 = tpu.matmul %0, %108, %cst_47 {dimension_numbers = #tpu.dot_dimension_numbers<[1], [0], [0], [1], [0, 0, 1, 1], [], []>} : vector<8x256xf32>, vector<256x192xf32>, vector<8x192xf32> -> vector<8x192xf32>
    %110 = vector.extract_strided_slice %109 {offsets = [0, 0], sizes = [1, 192], strides = [1, 1]} : vector<8x192xf32> to vector<1x192xf32>
    %cst_48 = arith.constant 3.906250e-03 : f32
    %111 = vector.broadcast %cst_48 : f32 to vector<1x192xf32>
    %112 = arith.mulf %107, %111 : vector<1x192xf32>
    %cst_49 = arith.constant 3.906250e-03 : f32
    %113 = vector.broadcast %cst_49 : f32 to vector<1x192xf32>
    %114 = arith.mulf %110, %113 : vector<1x192xf32>
    %115 = arith.mulf %112, %112 : vector<1x192xf32>
    %116 = arith.subf %114, %115 : vector<1x192xf32>
    %cst_50 = arith.constant 0.000000e+00 : f32
    %117 = vector.broadcast %cst_50 : f32 to vector<1x192xf32>
    %118 = arith.maximumf %116, %117 : vector<1x192xf32>
    %c0_51 = arith.constant 0 : index
    %c0_52 = arith.constant 0 : index
    %119 = vector.load %arg13[%c0_51, %c0_52] : memref<1x192xf32, #tpu.memory_space<vmem>>, vector<1x192xf32>
    %cst_53 = arith.constant 9.99999974E-6 : f32
    %120 = vector.broadcast %cst_53 : f32 to vector<1x192xf32>
    %121 = arith.addf %118, %120 : vector<1x192xf32>
    %122 = math.rsqrt %121 : vector<1x192xf32>
    %123 = arith.mulf %119, %122 : vector<1x192xf32>
    %c0_54 = arith.constant 0 : index
    %c0_55 = arith.constant 0 : index
    %124 = vector.load %arg14[%c0_54, %c0_55] : memref<1x192xf32, #tpu.memory_space<vmem>>, vector<1x192xf32>
    %125 = arith.mulf %112, %123 : vector<1x192xf32>
    %126 = arith.subf %124, %125 : vector<1x192xf32>
    %127 = vector.shape_cast %123 : vector<1x192xf32> to vector<1x1x192xf32>
    %128 = vector.broadcast %127 : vector<1x1x192xf32> to vector<2x128x192xf32>
    %129 = arith.mulf %104, %128 : vector<2x128x192xf32>
    %130 = vector.shape_cast %126 : vector<1x192xf32> to vector<1x1x192xf32>
    %131 = vector.broadcast %130 : vector<1x1x192xf32> to vector<2x128x192xf32>
    %132 = arith.addf %129, %131 : vector<2x128x192xf32>
    %133 = arith.addf %132, %12 : vector<2x128x192xf32>
    %cst_56 = arith.constant 0.000000e+00 : f32
    %134 = vector.broadcast %cst_56 : f32 to vector<2x128x192xf32>
    %135 = arith.maximumf %133, %134 : vector<2x128x192xf32>
    %136 = vector.extract_strided_slice %135 {offsets = [0, 0, 0], sizes = [2, 128, 128], strides = [1, 1, 1]} : vector<2x128x192xf32> to vector<2x128x128xf32>
    %137 = vector.shape_cast %136 : vector<2x128x128xf32> to vector<256x128xf32>
    %138 = arith.truncf %137 : vector<256x128xf32> to vector<256x128xbf16>
    %c0_57 = arith.constant 0 : index
    %c0_58 = arith.constant 0 : index
    %139 = vector.load %arg15[%c0_57, %c0_58] : memref<128x512xbf16, #tpu.memory_space<vmem>>, vector<128x512xbf16>
    %cst_59 = arith.constant dense<0.000000e+00> : vector<256x512xf32>
    %140 = tpu.matmul %138, %139, %cst_59 {dimension_numbers = #tpu.dot_dimension_numbers<[1], [0], [0], [1], [0, 0, 1, 1], [], []>} : vector<256x128xbf16>, vector<128x512xbf16>, vector<256x512xf32> -> vector<256x512xf32>
    %141 = vector.shape_cast %140 : vector<256x512xf32> to vector<2x128x512xf32>
    %c0_60 = arith.constant 0 : index
    %c0_61 = arith.constant 0 : index
    %142 = vector.load %arg16[%c0_60, %c0_61] : memref<1x512xf32, #tpu.memory_space<vmem>>, vector<1x512xf32>
    %143 = vector.shape_cast %142 : vector<1x512xf32> to vector<1x1x512xf32>
    %144 = vector.broadcast %143 : vector<1x1x512xf32> to vector<2x128x512xf32>
    %145 = arith.addf %141, %144 : vector<2x128x512xf32>
    %146 = vector.extract_strided_slice %145 {offsets = [0, 0, 0], sizes = [2, 128, 256], strides = [1, 1, 1]} : vector<2x128x512xf32> to vector<2x128x256xf32>
    %147 = vector.extract_strided_slice %145 {offsets = [0, 0, 256], sizes = [2, 128, 256], strides = [1, 1, 1]} : vector<2x128x512xf32> to vector<2x128x256xf32>
    %148 = vector.shape_cast %146 : vector<2x128x256xf32> to vector<256x256xf32>
    %cst_62 = arith.constant dense<0.000000e+00> : vector<8x256xf32>
    %149 = tpu.matmul %0, %148, %cst_62 {dimension_numbers = #tpu.dot_dimension_numbers<[1], [0], [0], [1], [0, 0, 1, 1], [], []>} : vector<8x256xf32>, vector<256x256xf32>, vector<8x256xf32> -> vector<8x256xf32>
    %150 = vector.extract_strided_slice %149 {offsets = [0, 0], sizes = [1, 256], strides = [1, 1]} : vector<8x256xf32> to vector<1x256xf32>
    %151 = arith.mulf %148, %148 : vector<256x256xf32>
    %cst_63 = arith.constant dense<0.000000e+00> : vector<8x256xf32>
    %152 = tpu.matmul %0, %151, %cst_63 {dimension_numbers = #tpu.dot_dimension_numbers<[1], [0], [0], [1], [0, 0, 1, 1], [], []>} : vector<8x256xf32>, vector<256x256xf32>, vector<8x256xf32> -> vector<8x256xf32>
    %153 = vector.extract_strided_slice %152 {offsets = [0, 0], sizes = [1, 256], strides = [1, 1]} : vector<8x256xf32> to vector<1x256xf32>
    %cst_64 = arith.constant 3.906250e-03 : f32
    %154 = vector.broadcast %cst_64 : f32 to vector<1x256xf32>
    %155 = arith.mulf %150, %154 : vector<1x256xf32>
    %cst_65 = arith.constant 3.906250e-03 : f32
    %156 = vector.broadcast %cst_65 : f32 to vector<1x256xf32>
    %157 = arith.mulf %153, %156 : vector<1x256xf32>
    %158 = arith.mulf %155, %155 : vector<1x256xf32>
    %159 = arith.subf %157, %158 : vector<1x256xf32>
    %cst_66 = arith.constant 0.000000e+00 : f32
    %160 = vector.broadcast %cst_66 : f32 to vector<1x256xf32>
    %161 = arith.maximumf %159, %160 : vector<1x256xf32>
    %c0_67 = arith.constant 0 : index
    %c0_68 = arith.constant 0 : index
    %162 = vector.load %arg17[%c0_67, %c0_68] : memref<1x256xf32, #tpu.memory_space<vmem>>, vector<1x256xf32>
    %cst_69 = arith.constant 9.99999974E-6 : f32
    %163 = vector.broadcast %cst_69 : f32 to vector<1x256xf32>
    %164 = arith.addf %161, %163 : vector<1x256xf32>
    %165 = math.rsqrt %164 : vector<1x256xf32>
    %166 = arith.mulf %162, %165 : vector<1x256xf32>
    %c0_70 = arith.constant 0 : index
    %c0_71 = arith.constant 0 : index
    %167 = vector.load %arg18[%c0_70, %c0_71] : memref<1x256xf32, #tpu.memory_space<vmem>>, vector<1x256xf32>
    %168 = arith.mulf %155, %166 : vector<1x256xf32>
    %169 = arith.subf %167, %168 : vector<1x256xf32>
    %170 = vector.shape_cast %166 : vector<1x256xf32> to vector<1x1x256xf32>
    %171 = vector.broadcast %170 : vector<1x1x256xf32> to vector<2x128x256xf32>
    %172 = arith.mulf %146, %171 : vector<2x128x256xf32>
    %173 = vector.shape_cast %169 : vector<1x256xf32> to vector<1x1x256xf32>
    %174 = vector.broadcast %173 : vector<1x1x256xf32> to vector<2x128x256xf32>
    %175 = arith.addf %172, %174 : vector<2x128x256xf32>
    %cst_72 = arith.constant 0.000000e+00 : f32
    %176 = vector.broadcast %cst_72 : f32 to vector<2x128x256xf32>
    %177 = arith.maximumf %175, %176 : vector<2x128x256xf32>
    %178 = vector.shape_cast %177 : vector<2x128x256xf32> to vector<256x256xf32>
    %179 = arith.truncf %178 : vector<256x256xf32> to vector<256x256xbf16>
    %c0_73 = arith.constant 0 : index
    %c0_74 = arith.constant 0 : index
    %180 = vector.load %arg19[%c0_73, %c0_74] : memref<256x256xbf16, #tpu.memory_space<vmem>>, vector<256x256xbf16>
    %cst_75 = arith.constant dense<0.000000e+00> : vector<256x256xf32>
    %181 = tpu.matmul %179, %180, %cst_75 {dimension_numbers = #tpu.dot_dimension_numbers<[1], [0], [0], [1], [0, 0, 1, 1], [], []>} : vector<256x256xbf16>, vector<256x256xbf16>, vector<256x256xf32> -> vector<256x256xf32>
    %182 = vector.shape_cast %181 : vector<256x256xf32> to vector<2x128x256xf32>
    %c0_76 = arith.constant 0 : index
    %c0_77 = arith.constant 0 : index
    %183 = vector.load %arg20[%c0_76, %c0_77] : memref<1x256xf32, #tpu.memory_space<vmem>>, vector<1x256xf32>
    %184 = vector.shape_cast %183 : vector<1x256xf32> to vector<1x1x256xf32>
    %185 = vector.broadcast %184 : vector<1x1x256xf32> to vector<2x128x256xf32>
    %186 = arith.addf %182, %185 : vector<2x128x256xf32>
    %187 = vector.shape_cast %186 : vector<2x128x256xf32> to vector<256x256xf32>
    %cst_78 = arith.constant dense<0.000000e+00> : vector<8x256xf32>
    %188 = tpu.matmul %0, %187, %cst_78 {dimension_numbers = #tpu.dot_dimension_numbers<[1], [0], [0], [1], [0, 0, 1, 1], [], []>} : vector<8x256xf32>, vector<256x256xf32>, vector<8x256xf32> -> vector<8x256xf32>
    %189 = vector.extract_strided_slice %188 {offsets = [0, 0], sizes = [1, 256], strides = [1, 1]} : vector<8x256xf32> to vector<1x256xf32>
    %190 = arith.mulf %187, %187 : vector<256x256xf32>
    %cst_79 = arith.constant dense<0.000000e+00> : vector<8x256xf32>
    %191 = tpu.matmul %0, %190, %cst_79 {dimension_numbers = #tpu.dot_dimension_numbers<[1], [0], [0], [1], [0, 0, 1, 1], [], []>} : vector<8x256xf32>, vector<256x256xf32>, vector<8x256xf32> -> vector<8x256xf32>
    %192 = vector.extract_strided_slice %191 {offsets = [0, 0], sizes = [1, 256], strides = [1, 1]} : vector<8x256xf32> to vector<1x256xf32>
    %cst_80 = arith.constant 3.906250e-03 : f32
    %193 = vector.broadcast %cst_80 : f32 to vector<1x256xf32>
    %194 = arith.mulf %189, %193 : vector<1x256xf32>
    %cst_81 = arith.constant 3.906250e-03 : f32
    %195 = vector.broadcast %cst_81 : f32 to vector<1x256xf32>
    %196 = arith.mulf %192, %195 : vector<1x256xf32>
    %197 = arith.mulf %194, %194 : vector<1x256xf32>
    %198 = arith.subf %196, %197 : vector<1x256xf32>
    %cst_82 = arith.constant 0.000000e+00 : f32
    %199 = vector.broadcast %cst_82 : f32 to vector<1x256xf32>
    %200 = arith.maximumf %198, %199 : vector<1x256xf32>
    %c0_83 = arith.constant 0 : index
    %c0_84 = arith.constant 0 : index
    %201 = vector.load %arg21[%c0_83, %c0_84] : memref<1x256xf32, #tpu.memory_space<vmem>>, vector<1x256xf32>
    %cst_85 = arith.constant 9.99999974E-6 : f32
    %202 = vector.broadcast %cst_85 : f32 to vector<1x256xf32>
    %203 = arith.addf %200, %202 : vector<1x256xf32>
    %204 = math.rsqrt %203 : vector<1x256xf32>
    %205 = arith.mulf %201, %204 : vector<1x256xf32>
    %c0_86 = arith.constant 0 : index
    %c0_87 = arith.constant 0 : index
    %206 = vector.load %arg22[%c0_86, %c0_87] : memref<1x256xf32, #tpu.memory_space<vmem>>, vector<1x256xf32>
    %207 = arith.mulf %194, %205 : vector<1x256xf32>
    %208 = arith.subf %206, %207 : vector<1x256xf32>
    %209 = vector.shape_cast %205 : vector<1x256xf32> to vector<1x1x256xf32>
    %210 = vector.broadcast %209 : vector<1x1x256xf32> to vector<2x128x256xf32>
    %211 = arith.mulf %186, %210 : vector<2x128x256xf32>
    %212 = vector.shape_cast %208 : vector<1x256xf32> to vector<1x1x256xf32>
    %213 = vector.broadcast %212 : vector<1x1x256xf32> to vector<2x128x256xf32>
    %214 = arith.addf %211, %213 : vector<2x128x256xf32>
    %cst_88 = arith.constant dense<0.000000e+00> : vector<2x256xf32>
    %215 = vector.multi_reduction <add>, %214, %cst_88 [1] : vector<2x128x256xf32> to vector<2x256xf32>
    %cst_89 = arith.constant 1.280000e+02 : f32
    %216 = vector.broadcast %cst_89 : f32 to vector<2x256xf32>
    %217 = arith.divf %215, %216 : vector<2x256xf32>
    %218 = arith.truncf %217 : vector<2x256xf32> to vector<2x256xbf16>
    %c0_90 = arith.constant 0 : index
    %c0_91 = arith.constant 0 : index
    %219 = vector.load %arg23[%c0_90, %c0_91] : memref<256x512xbf16, #tpu.memory_space<vmem>>, vector<256x512xbf16>
    %cst_92 = arith.constant dense<0.000000e+00> : vector<2x512xf32>
    %220 = tpu.matmul %218, %219, %cst_92 {dimension_numbers = #tpu.dot_dimension_numbers<[1], [0], [0], [1], [0, 0, 1, 1], [], []>} : vector<2x256xbf16>, vector<256x512xbf16>, vector<2x512xf32> -> vector<2x512xf32>
    %c0_93 = arith.constant 0 : index
    %c0_94 = arith.constant 0 : index
    %221 = vector.load %arg24[%c0_93, %c0_94] : memref<1x512xf32, #tpu.memory_space<vmem>>, vector<1x512xf32>
    %222 = vector.broadcast %221 : vector<1x512xf32> to vector<2x512xf32>
    %223 = arith.addf %220, %222 : vector<2x512xf32>
    %cst_95 = arith.constant 0.000000e+00 : f32
    %224 = vector.broadcast %cst_95 : f32 to vector<2x512xf32>
    %225 = arith.maximumf %223, %224 : vector<2x512xf32>
    %226 = arith.truncf %225 : vector<2x512xf32> to vector<2x512xbf16>
    %c0_96 = arith.constant 0 : index
    %c0_97 = arith.constant 0 : index
    %227 = vector.load %arg25[%c0_96, %c0_97] : memref<512x512xbf16, #tpu.memory_space<vmem>>, vector<512x512xbf16>
    %cst_98 = arith.constant dense<0.000000e+00> : vector<2x512xf32>
    %228 = tpu.matmul %226, %227, %cst_98 {dimension_numbers = #tpu.dot_dimension_numbers<[1], [0], [0], [1], [0, 0, 1, 1], [], []>} : vector<2x512xbf16>, vector<512x512xbf16>, vector<2x512xf32> -> vector<2x512xf32>
    %c0_99 = arith.constant 0 : index
    %c0_100 = arith.constant 0 : index
    %229 = vector.load %arg26[%c0_99, %c0_100] : memref<1x512xf32, #tpu.memory_space<vmem>>, vector<1x512xf32>
    %230 = vector.broadcast %229 : vector<1x512xf32> to vector<2x512xf32>
    %231 = arith.addf %228, %230 : vector<2x512xf32>
    %232 = vector.extract_strided_slice %231 {offsets = [0, 0], sizes = [2, 256], strides = [1, 1]} : vector<2x512xf32> to vector<2x256xf32>
    %233 = vector.shape_cast %232 : vector<2x256xf32> to vector<2x1x256xf32>
    %234 = vector.broadcast %233 : vector<2x1x256xf32> to vector<2x128x256xf32>
    %235 = arith.mulf %234, %214 : vector<2x128x256xf32>
    %236 = vector.extract_strided_slice %231 {offsets = [0, 256], sizes = [2, 256], strides = [1, 1]} : vector<2x512xf32> to vector<2x256xf32>
    %237 = vector.shape_cast %236 : vector<2x256xf32> to vector<2x1x256xf32>
    %238 = vector.broadcast %237 : vector<2x1x256xf32> to vector<2x128x256xf32>
    %239 = arith.addf %235, %238 : vector<2x128x256xf32>
    %240 = vector.shape_cast %239 : vector<2x128x256xf32> to vector<256x256xf32>
    %cst_101 = arith.constant dense<0.000000e+00> : vector<8x256xf32>
    %241 = tpu.matmul %0, %240, %cst_101 {dimension_numbers = #tpu.dot_dimension_numbers<[1], [0], [0], [1], [0, 0, 1, 1], [], []>} : vector<8x256xf32>, vector<256x256xf32>, vector<8x256xf32> -> vector<8x256xf32>
    %242 = vector.extract_strided_slice %241 {offsets = [0, 0], sizes = [1, 256], strides = [1, 1]} : vector<8x256xf32> to vector<1x256xf32>
    %243 = arith.mulf %240, %240 : vector<256x256xf32>
    %cst_102 = arith.constant dense<0.000000e+00> : vector<8x256xf32>
    %244 = tpu.matmul %0, %243, %cst_102 {dimension_numbers = #tpu.dot_dimension_numbers<[1], [0], [0], [1], [0, 0, 1, 1], [], []>} : vector<8x256xf32>, vector<256x256xf32>, vector<8x256xf32> -> vector<8x256xf32>
    %245 = vector.extract_strided_slice %244 {offsets = [0, 0], sizes = [1, 256], strides = [1, 1]} : vector<8x256xf32> to vector<1x256xf32>
    %cst_103 = arith.constant 3.906250e-03 : f32
    %246 = vector.broadcast %cst_103 : f32 to vector<1x256xf32>
    %247 = arith.mulf %242, %246 : vector<1x256xf32>
    %cst_104 = arith.constant 3.906250e-03 : f32
    %248 = vector.broadcast %cst_104 : f32 to vector<1x256xf32>
    %249 = arith.mulf %245, %248 : vector<1x256xf32>
    %250 = arith.mulf %247, %247 : vector<1x256xf32>
    %251 = arith.subf %249, %250 : vector<1x256xf32>
    %cst_105 = arith.constant 0.000000e+00 : f32
    %252 = vector.broadcast %cst_105 : f32 to vector<1x256xf32>
    %253 = arith.maximumf %251, %252 : vector<1x256xf32>
    %c0_106 = arith.constant 0 : index
    %c0_107 = arith.constant 0 : index
    %254 = vector.load %arg27[%c0_106, %c0_107] : memref<1x256xf32, #tpu.memory_space<vmem>>, vector<1x256xf32>
    %cst_108 = arith.constant 9.99999974E-6 : f32
    %255 = vector.broadcast %cst_108 : f32 to vector<1x256xf32>
    %256 = arith.addf %253, %255 : vector<1x256xf32>
    %257 = math.rsqrt %256 : vector<1x256xf32>
    %258 = arith.mulf %254, %257 : vector<1x256xf32>
    %c0_109 = arith.constant 0 : index
    %c0_110 = arith.constant 0 : index
    %259 = vector.load %arg28[%c0_109, %c0_110] : memref<1x256xf32, #tpu.memory_space<vmem>>, vector<1x256xf32>
    %260 = arith.mulf %247, %258 : vector<1x256xf32>
    %261 = arith.subf %259, %260 : vector<1x256xf32>
    %262 = vector.shape_cast %258 : vector<1x256xf32> to vector<1x1x256xf32>
    %263 = vector.broadcast %262 : vector<1x1x256xf32> to vector<2x128x256xf32>
    %264 = arith.mulf %239, %263 : vector<2x128x256xf32>
    %265 = vector.shape_cast %261 : vector<1x256xf32> to vector<1x1x256xf32>
    %266 = vector.broadcast %265 : vector<1x1x256xf32> to vector<2x128x256xf32>
    %267 = arith.addf %264, %266 : vector<2x128x256xf32>
    %268 = arith.addf %267, %147 : vector<2x128x256xf32>
    %cst_111 = arith.constant 0.000000e+00 : f32
    %269 = vector.broadcast %cst_111 : f32 to vector<2x128x256xf32>
    %270 = arith.maximumf %268, %269 : vector<2x128x256xf32>
    %271 = vector.extract_strided_slice %270 {offsets = [0, 0, 0], sizes = [2, 128, 128], strides = [1, 1, 1]} : vector<2x128x256xf32> to vector<2x128x128xf32>
    %272 = vector.shape_cast %271 : vector<2x128x128xf32> to vector<256x128xf32>
    %273 = arith.truncf %272 : vector<256x128xf32> to vector<256x128xbf16>
    %c0_112 = arith.constant 0 : index
    %c0_113 = arith.constant 0 : index
    %274 = vector.load %arg29[%c0_112, %c0_113] : memref<128x512xbf16, #tpu.memory_space<vmem>>, vector<128x512xbf16>
    %cst_114 = arith.constant dense<0.000000e+00> : vector<256x512xf32>
    %275 = tpu.matmul %273, %274, %cst_114 {dimension_numbers = #tpu.dot_dimension_numbers<[1], [0], [0], [1], [0, 0, 1, 1], [], []>} : vector<256x128xbf16>, vector<128x512xbf16>, vector<256x512xf32> -> vector<256x512xf32>
    %276 = vector.shape_cast %275 : vector<256x512xf32> to vector<2x128x512xf32>
    %c0_115 = arith.constant 0 : index
    %c0_116 = arith.constant 0 : index
    %277 = vector.load %arg30[%c0_115, %c0_116] : memref<1x512xf32, #tpu.memory_space<vmem>>, vector<1x512xf32>
    %278 = vector.shape_cast %277 : vector<1x512xf32> to vector<1x1x512xf32>
    %279 = vector.broadcast %278 : vector<1x1x512xf32> to vector<2x128x512xf32>
    %280 = arith.addf %276, %279 : vector<2x128x512xf32>
    %281 = vector.extract_strided_slice %280 {offsets = [0, 0, 0], sizes = [2, 128, 256], strides = [1, 1, 1]} : vector<2x128x512xf32> to vector<2x128x256xf32>
    %282 = vector.extract_strided_slice %280 {offsets = [0, 0, 256], sizes = [2, 128, 256], strides = [1, 1, 1]} : vector<2x128x512xf32> to vector<2x128x256xf32>
    %283 = vector.shape_cast %281 : vector<2x128x256xf32> to vector<256x256xf32>
    %cst_117 = arith.constant dense<0.000000e+00> : vector<8x256xf32>
    %284 = tpu.matmul %0, %283, %cst_117 {dimension_numbers = #tpu.dot_dimension_numbers<[1], [0], [0], [1], [0, 0, 1, 1], [], []>} : vector<8x256xf32>, vector<256x256xf32>, vector<8x256xf32> -> vector<8x256xf32>
    %285 = vector.extract_strided_slice %284 {offsets = [0, 0], sizes = [1, 256], strides = [1, 1]} : vector<8x256xf32> to vector<1x256xf32>
    %286 = arith.mulf %283, %283 : vector<256x256xf32>
    %cst_118 = arith.constant dense<0.000000e+00> : vector<8x256xf32>
    %287 = tpu.matmul %0, %286, %cst_118 {dimension_numbers = #tpu.dot_dimension_numbers<[1], [0], [0], [1], [0, 0, 1, 1], [], []>} : vector<8x256xf32>, vector<256x256xf32>, vector<8x256xf32> -> vector<8x256xf32>
    %288 = vector.extract_strided_slice %287 {offsets = [0, 0], sizes = [1, 256], strides = [1, 1]} : vector<8x256xf32> to vector<1x256xf32>
    %cst_119 = arith.constant 3.906250e-03 : f32
    %289 = vector.broadcast %cst_119 : f32 to vector<1x256xf32>
    %290 = arith.mulf %285, %289 : vector<1x256xf32>
    %cst_120 = arith.constant 3.906250e-03 : f32
    %291 = vector.broadcast %cst_120 : f32 to vector<1x256xf32>
    %292 = arith.mulf %288, %291 : vector<1x256xf32>
    %293 = arith.mulf %290, %290 : vector<1x256xf32>
    %294 = arith.subf %292, %293 : vector<1x256xf32>
    %cst_121 = arith.constant 0.000000e+00 : f32
    %295 = vector.broadcast %cst_121 : f32 to vector<1x256xf32>
    %296 = arith.maximumf %294, %295 : vector<1x256xf32>
    %c0_122 = arith.constant 0 : index
    %c0_123 = arith.constant 0 : index
    %297 = vector.load %arg31[%c0_122, %c0_123] : memref<1x256xf32, #tpu.memory_space<vmem>>, vector<1x256xf32>
    %cst_124 = arith.constant 9.99999974E-6 : f32
    %298 = vector.broadcast %cst_124 : f32 to vector<1x256xf32>
    %299 = arith.addf %296, %298 : vector<1x256xf32>
    %300 = math.rsqrt %299 : vector<1x256xf32>
    %301 = arith.mulf %297, %300 : vector<1x256xf32>
    %c0_125 = arith.constant 0 : index
    %c0_126 = arith.constant 0 : index
    %302 = vector.load %arg32[%c0_125, %c0_126] : memref<1x256xf32, #tpu.memory_space<vmem>>, vector<1x256xf32>
    %303 = arith.mulf %290, %301 : vector<1x256xf32>
    %304 = arith.subf %302, %303 : vector<1x256xf32>
    %305 = vector.shape_cast %301 : vector<1x256xf32> to vector<1x1x256xf32>
    %306 = vector.broadcast %305 : vector<1x1x256xf32> to vector<2x128x256xf32>
    %307 = arith.mulf %281, %306 : vector<2x128x256xf32>
    %308 = vector.shape_cast %304 : vector<1x256xf32> to vector<1x1x256xf32>
    %309 = vector.broadcast %308 : vector<1x1x256xf32> to vector<2x128x256xf32>
    %310 = arith.addf %307, %309 : vector<2x128x256xf32>
    %cst_127 = arith.constant 0.000000e+00 : f32
    %311 = vector.broadcast %cst_127 : f32 to vector<2x128x256xf32>
    %312 = arith.maximumf %310, %311 : vector<2x128x256xf32>
    %313 = vector.shape_cast %312 : vector<2x128x256xf32> to vector<256x256xf32>
    %314 = arith.truncf %313 : vector<256x256xf32> to vector<256x256xbf16>
    %c0_128 = arith.constant 0 : index
    %c0_129 = arith.constant 0 : index
    %315 = vector.load %arg33[%c0_128, %c0_129] : memref<256x256xbf16, #tpu.memory_space<vmem>>, vector<256x256xbf16>
    %cst_130 = arith.constant dense<0.000000e+00> : vector<256x256xf32>
    %316 = tpu.matmul %314, %315, %cst_130 {dimension_numbers = #tpu.dot_dimension_numbers<[1], [0], [0], [1], [0, 0, 1, 1], [], []>} : vector<256x256xbf16>, vector<256x256xbf16>, vector<256x256xf32> -> vector<256x256xf32>
    %317 = vector.shape_cast %316 : vector<256x256xf32> to vector<2x128x256xf32>
    %c0_131 = arith.constant 0 : index
    %c0_132 = arith.constant 0 : index
    %318 = vector.load %arg34[%c0_131, %c0_132] : memref<1x256xf32, #tpu.memory_space<vmem>>, vector<1x256xf32>
    %319 = vector.shape_cast %318 : vector<1x256xf32> to vector<1x1x256xf32>
    %320 = vector.broadcast %319 : vector<1x1x256xf32> to vector<2x128x256xf32>
    %321 = arith.addf %317, %320 : vector<2x128x256xf32>
    %322 = vector.shape_cast %321 : vector<2x128x256xf32> to vector<256x256xf32>
    %cst_133 = arith.constant dense<0.000000e+00> : vector<8x256xf32>
    %323 = tpu.matmul %0, %322, %cst_133 {dimension_numbers = #tpu.dot_dimension_numbers<[1], [0], [0], [1], [0, 0, 1, 1], [], []>} : vector<8x256xf32>, vector<256x256xf32>, vector<8x256xf32> -> vector<8x256xf32>
    %324 = vector.extract_strided_slice %323 {offsets = [0, 0], sizes = [1, 256], strides = [1, 1]} : vector<8x256xf32> to vector<1x256xf32>
    %325 = arith.mulf %322, %322 : vector<256x256xf32>
    %cst_134 = arith.constant dense<0.000000e+00> : vector<8x256xf32>
    %326 = tpu.matmul %0, %325, %cst_134 {dimension_numbers = #tpu.dot_dimension_numbers<[1], [0], [0], [1], [0, 0, 1, 1], [], []>} : vector<8x256xf32>, vector<256x256xf32>, vector<8x256xf32> -> vector<8x256xf32>
    %327 = vector.extract_strided_slice %326 {offsets = [0, 0], sizes = [1, 256], strides = [1, 1]} : vector<8x256xf32> to vector<1x256xf32>
    %cst_135 = arith.constant 3.906250e-03 : f32
    %328 = vector.broadcast %cst_135 : f32 to vector<1x256xf32>
    %329 = arith.mulf %324, %328 : vector<1x256xf32>
    %cst_136 = arith.constant 3.906250e-03 : f32
    %330 = vector.broadcast %cst_136 : f32 to vector<1x256xf32>
    %331 = arith.mulf %327, %330 : vector<1x256xf32>
    %332 = arith.mulf %329, %329 : vector<1x256xf32>
    %333 = arith.subf %331, %332 : vector<1x256xf32>
    %cst_137 = arith.constant 0.000000e+00 : f32
    %334 = vector.broadcast %cst_137 : f32 to vector<1x256xf32>
    %335 = arith.maximumf %333, %334 : vector<1x256xf32>
    %c0_138 = arith.constant 0 : index
    %c0_139 = arith.constant 0 : index
    %336 = vector.load %arg35[%c0_138, %c0_139] : memref<1x256xf32, #tpu.memory_space<vmem>>, vector<1x256xf32>
    %cst_140 = arith.constant 9.99999974E-6 : f32
    %337 = vector.broadcast %cst_140 : f32 to vector<1x256xf32>
    %338 = arith.addf %335, %337 : vector<1x256xf32>
    %339 = math.rsqrt %338 : vector<1x256xf32>
    %340 = arith.mulf %336, %339 : vector<1x256xf32>
    %c0_141 = arith.constant 0 : index
    %c0_142 = arith.constant 0 : index
    %341 = vector.load %arg36[%c0_141, %c0_142] : memref<1x256xf32, #tpu.memory_space<vmem>>, vector<1x256xf32>
    %342 = arith.mulf %329, %340 : vector<1x256xf32>
    %343 = arith.subf %341, %342 : vector<1x256xf32>
    %344 = vector.shape_cast %340 : vector<1x256xf32> to vector<1x1x256xf32>
    %345 = vector.broadcast %344 : vector<1x1x256xf32> to vector<2x128x256xf32>
    %346 = arith.mulf %321, %345 : vector<2x128x256xf32>
    %347 = vector.shape_cast %343 : vector<1x256xf32> to vector<1x1x256xf32>
    %348 = vector.broadcast %347 : vector<1x1x256xf32> to vector<2x128x256xf32>
    %349 = arith.addf %346, %348 : vector<2x128x256xf32>
    %cst_143 = arith.constant dense<0.000000e+00> : vector<2x256xf32>
    %350 = vector.multi_reduction <add>, %349, %cst_143 [1] : vector<2x128x256xf32> to vector<2x256xf32>
    %cst_144 = arith.constant 1.280000e+02 : f32
    %351 = vector.broadcast %cst_144 : f32 to vector<2x256xf32>
    %352 = arith.divf %350, %351 : vector<2x256xf32>
    %353 = arith.truncf %352 : vector<2x256xf32> to vector<2x256xbf16>
    %c0_145 = arith.constant 0 : index
    %c0_146 = arith.constant 0 : index
    %354 = vector.load %arg37[%c0_145, %c0_146] : memref<256x512xbf16, #tpu.memory_space<vmem>>, vector<256x512xbf16>
    %cst_147 = arith.constant dense<0.000000e+00> : vector<2x512xf32>
    %355 = tpu.matmul %353, %354, %cst_147 {dimension_numbers = #tpu.dot_dimension_numbers<[1], [0], [0], [1], [0, 0, 1, 1], [], []>} : vector<2x256xbf16>, vector<256x512xbf16>, vector<2x512xf32> -> vector<2x512xf32>
    %c0_148 = arith.constant 0 : index
    %c0_149 = arith.constant 0 : index
    %356 = vector.load %arg38[%c0_148, %c0_149] : memref<1x512xf32, #tpu.memory_space<vmem>>, vector<1x512xf32>
    %357 = vector.broadcast %356 : vector<1x512xf32> to vector<2x512xf32>
    %358 = arith.addf %355, %357 : vector<2x512xf32>
    %cst_150 = arith.constant 0.000000e+00 : f32
    %359 = vector.broadcast %cst_150 : f32 to vector<2x512xf32>
    %360 = arith.maximumf %358, %359 : vector<2x512xf32>
    %361 = arith.truncf %360 : vector<2x512xf32> to vector<2x512xbf16>
    %c0_151 = arith.constant 0 : index
    %c0_152 = arith.constant 0 : index
    %362 = vector.load %arg39[%c0_151, %c0_152] : memref<512x512xbf16, #tpu.memory_space<vmem>>, vector<512x512xbf16>
    %cst_153 = arith.constant dense<0.000000e+00> : vector<2x512xf32>
    %363 = tpu.matmul %361, %362, %cst_153 {dimension_numbers = #tpu.dot_dimension_numbers<[1], [0], [0], [1], [0, 0, 1, 1], [], []>} : vector<2x512xbf16>, vector<512x512xbf16>, vector<2x512xf32> -> vector<2x512xf32>
    %c0_154 = arith.constant 0 : index
    %c0_155 = arith.constant 0 : index
    %364 = vector.load %arg40[%c0_154, %c0_155] : memref<1x512xf32, #tpu.memory_space<vmem>>, vector<1x512xf32>
    %365 = vector.broadcast %364 : vector<1x512xf32> to vector<2x512xf32>
    %366 = arith.addf %363, %365 : vector<2x512xf32>
    %367 = vector.extract_strided_slice %366 {offsets = [0, 0], sizes = [2, 256], strides = [1, 1]} : vector<2x512xf32> to vector<2x256xf32>
    %368 = vector.shape_cast %367 : vector<2x256xf32> to vector<2x1x256xf32>
    %369 = vector.broadcast %368 : vector<2x1x256xf32> to vector<2x128x256xf32>
    %370 = arith.mulf %369, %349 : vector<2x128x256xf32>
    %371 = vector.extract_strided_slice %366 {offsets = [0, 256], sizes = [2, 256], strides = [1, 1]} : vector<2x512xf32> to vector<2x256xf32>
    %372 = vector.shape_cast %371 : vector<2x256xf32> to vector<2x1x256xf32>
    %373 = vector.broadcast %372 : vector<2x1x256xf32> to vector<2x128x256xf32>
    %374 = arith.addf %370, %373 : vector<2x128x256xf32>
    %375 = vector.shape_cast %374 : vector<2x128x256xf32> to vector<256x256xf32>
    %cst_156 = arith.constant dense<0.000000e+00> : vector<8x256xf32>
    %376 = tpu.matmul %0, %375, %cst_156 {dimension_numbers = #tpu.dot_dimension_numbers<[1], [0], [0], [1], [0, 0, 1, 1], [], []>} : vector<8x256xf32>, vector<256x256xf32>, vector<8x256xf32> -> vector<8x256xf32>
    %377 = vector.extract_strided_slice %376 {offsets = [0, 0], sizes = [1, 256], strides = [1, 1]} : vector<8x256xf32> to vector<1x256xf32>
    %378 = arith.mulf %375, %375 : vector<256x256xf32>
    %cst_157 = arith.constant dense<0.000000e+00> : vector<8x256xf32>
    %379 = tpu.matmul %0, %378, %cst_157 {dimension_numbers = #tpu.dot_dimension_numbers<[1], [0], [0], [1], [0, 0, 1, 1], [], []>} : vector<8x256xf32>, vector<256x256xf32>, vector<8x256xf32> -> vector<8x256xf32>
    %380 = vector.extract_strided_slice %379 {offsets = [0, 0], sizes = [1, 256], strides = [1, 1]} : vector<8x256xf32> to vector<1x256xf32>
    %cst_158 = arith.constant 3.906250e-03 : f32
    %381 = vector.broadcast %cst_158 : f32 to vector<1x256xf32>
    %382 = arith.mulf %377, %381 : vector<1x256xf32>
    %cst_159 = arith.constant 3.906250e-03 : f32
    %383 = vector.broadcast %cst_159 : f32 to vector<1x256xf32>
    %384 = arith.mulf %380, %383 : vector<1x256xf32>
    %385 = arith.mulf %382, %382 : vector<1x256xf32>
    %386 = arith.subf %384, %385 : vector<1x256xf32>
    %cst_160 = arith.constant 0.000000e+00 : f32
    %387 = vector.broadcast %cst_160 : f32 to vector<1x256xf32>
    %388 = arith.maximumf %386, %387 : vector<1x256xf32>
    %c0_161 = arith.constant 0 : index
    %c0_162 = arith.constant 0 : index
    %389 = vector.load %arg41[%c0_161, %c0_162] : memref<1x256xf32, #tpu.memory_space<vmem>>, vector<1x256xf32>
    %cst_163 = arith.constant 9.99999974E-6 : f32
    %390 = vector.broadcast %cst_163 : f32 to vector<1x256xf32>
    %391 = arith.addf %388, %390 : vector<1x256xf32>
    %392 = math.rsqrt %391 : vector<1x256xf32>
    %393 = arith.mulf %389, %392 : vector<1x256xf32>
    %c0_164 = arith.constant 0 : index
    %c0_165 = arith.constant 0 : index
    %394 = vector.load %arg42[%c0_164, %c0_165] : memref<1x256xf32, #tpu.memory_space<vmem>>, vector<1x256xf32>
    %395 = arith.mulf %382, %393 : vector<1x256xf32>
    %396 = arith.subf %394, %395 : vector<1x256xf32>
    %397 = vector.shape_cast %393 : vector<1x256xf32> to vector<1x1x256xf32>
    %398 = vector.broadcast %397 : vector<1x1x256xf32> to vector<2x128x256xf32>
    %399 = arith.mulf %374, %398 : vector<2x128x256xf32>
    %400 = vector.shape_cast %396 : vector<1x256xf32> to vector<1x1x256xf32>
    %401 = vector.broadcast %400 : vector<1x1x256xf32> to vector<2x128x256xf32>
    %402 = arith.addf %399, %401 : vector<2x128x256xf32>
    %403 = arith.addf %402, %282 : vector<2x128x256xf32>
    %cst_166 = arith.constant 0.000000e+00 : f32
    %404 = vector.broadcast %cst_166 : f32 to vector<2x128x256xf32>
    %405 = arith.maximumf %403, %404 : vector<2x128x256xf32>
    %cst_167 = arith.constant dense<0xFF800000> : vector<2x256xf32>
    %406 = vector.multi_reduction <maximumf>, %405, %cst_167 [1] : vector<2x128x256xf32> to vector<2x256xf32>
    %407 = vector.extract_strided_slice %270 {offsets = [0, 0, 128], sizes = [2, 128, 128], strides = [1, 1, 1]} : vector<2x128x256xf32> to vector<2x128x128xf32>
    %cst_168 = arith.constant dense<0xFF800000> : vector<2x128xf32>
    %408 = vector.multi_reduction <maximumf>, %407, %cst_168 [1] : vector<2x128x128xf32> to vector<2x128xf32>
    %409 = vector.extract_strided_slice %135 {offsets = [0, 0, 128], sizes = [2, 128, 64], strides = [1, 1, 1]} : vector<2x128x192xf32> to vector<2x128x64xf32>
    %cst_169 = arith.constant dense<0xFF800000> : vector<2x64xf32>
    %410 = vector.multi_reduction <maximumf>, %409, %cst_169 [1] : vector<2x128x64xf32> to vector<2x64xf32>
    %cst_170 = arith.constant 0.000000e+00 : f32
    %411 = vector.broadcast %cst_170 : f32 to vector<2x64xf32>
    %412 = tpu.concatenate %406, %408, %410, %411 in 1 : vector<2x256xf32>, vector<2x128xf32>, vector<2x64xf32>, vector<2x64xf32> -> vector<2x512xf32>
    %c0_171 = arith.constant 0 : index
    %c0_172 = arith.constant 0 : index
    %413 = vector.load %arg43[%c0_171, %c0_172] : memref<2x512xf32, #tpu.memory_space<vmem>>, vector<2x512xf32>
    tpu.vector_store %arg43[%c0_171, %c0_172], %412 {strides = array<i32>} : memref<2x512xf32, #tpu.memory_space<vmem>>, vector<2x512xf32>,
    return
  }
}

</mosaic_0001>

<llo_original>
// kernel: multi_scale_feature.1
$region0: #{multi_scale_feature.1}
  #allocation0 [shape = 'u32[]', space=smem, size = 0x4, offset = 0x4, fixed_abs, tag = 'smem constant byte address 0x4 - core index']
  #allocation1 [shape = 'u32[144,128]{1,0:T(1,128)}', space=vmem, size = 0x12000, scoped, tag = 'internal scratch']
  %s0 = inlined_call_operand.smem [shape: u32[44], index: -1, kind: input, shape index: {}]
  %s1 = sld [smem:[%s0]]
  %s2 = scalar_lea.smem %s0, 1
  %s3 = sld [smem:[%s2]]
  %s4 = scalar_lea.smem %s0, 2
  %s5 = sld [smem:[%s4]]
  %s6 = scalar_lea.smem %s0, 3
  %s7 = sld [smem:[%s6]]
  %s8 = scalar_lea.smem %s0, 4
  %s9 = sld [smem:[%s8]]
  %s10 = scalar_lea.smem %s0, 5
  %s11 = sld [smem:[%s10]]
  %s12 = scalar_lea.smem %s0, 6
  %s13 = sld [smem:[%s12]]
  %s14 = scalar_lea.smem %s0, 7
  %s15 = sld [smem:[%s14]]
  %s16 = scalar_lea.smem %s0, 8
  %s17 = sld [smem:[%s16]]
  %s18 = scalar_lea.smem %s0, 9
  %s19 = sld [smem:[%s18]]
  %s20 = scalar_lea.smem %s0, 10
  %s21 = sld [smem:[%s20]]
  %s22 = scalar_lea.smem %s0, 11
  %s23 = sld [smem:[%s22]]
  %s24 = scalar_lea.smem %s0, 12
  %s25 = sld [smem:[%s24]]
  %s26 = scalar_lea.smem %s0, 13
  %s27 = sld [smem:[%s26]]
  %s28 = scalar_lea.smem %s0, 14
  %s29 = sld [smem:[%s28]]
  %s30 = scalar_lea.smem %s0, 15
  %s31 = sld [smem:[%s30]]
  %s32 = scalar_lea.smem %s0, 16
  %s33 = sld [smem:[%s32]]
  %s34 = scalar_lea.smem %s0, 17
  %s35 = sld [smem:[%s34]]
  %s36 = scalar_lea.smem %s0, 18
  %s37 = sld [smem:[%s36]]
  %s38 = scalar_lea.smem %s0, 19
  %s39 = sld [smem:[%s38]]
  %s40 = scalar_lea.smem %s0, 20
  %s41 = sld [smem:[%s40]]
  %s42 = scalar_lea.smem %s0, 21
  %s43 = sld [smem:[%s42]]
  %s44 = scalar_lea.smem %s0, 22
  %s45 = sld [smem:[%s44]]
  %s46 = scalar_lea.smem %s0, 23
  %s47 = sld [smem:[%s46]]
  %s48 = scalar_lea.smem %s0, 24
  %s49 = sld [smem:[%s48]]
  %s50 = scalar_lea.smem %s0, 25
  %s51 = sld [smem:[%s50]]
  %s52 = scalar_lea.smem %s0, 26
  %s53 = sld [smem:[%s52]]
  %s54 = scalar_lea.smem %s0, 27
  %s55 = sld [smem:[%s54]]
  %s56 = scalar_lea.smem %s0, 28
  %s57 = sld [smem:[%s56]]
  %s58 = scalar_lea.smem %s0, 29
  %s59 = sld [smem:[%s58]]
  %s60 = scalar_lea.smem %s0, 30
  %s61 = sld [smem:[%s60]]
  %s62 = scalar_lea.smem %s0, 31
  %s63 = sld [smem:[%s62]]
  %s64 = scalar_lea.smem %s0, 32
  %s65 = sld [smem:[%s64]]
  %s66 = scalar_lea.smem %s0, 33
  %s67 = sld [smem:[%s66]]
  %s68 = scalar_lea.smem %s0, 34
  %s69 = sld [smem:[%s68]]
  %s70 = scalar_lea.smem %s0, 35
  %s71 = sld [smem:[%s70]]
  %s72 = scalar_lea.smem %s0, 36
  %s73 = sld [smem:[%s72]]
  %s74 = scalar_lea.smem %s0, 37
  %s75 = sld [smem:[%s74]]
  %s76 = scalar_lea.smem %s0, 38
  %s77 = sld [smem:[%s76]]
  %s78 = scalar_lea.smem %s0, 39
  %s79 = sld [smem:[%s78]]
  %s80 = scalar_lea.smem %s0, 40
  %s81 = sld [smem:[%s80]]
  %s82 = scalar_lea.smem %s0, 41
  %s83 = sld [smem:[%s82]]
  %s84 = scalar_lea.smem %s0, 42
  %s85 = sld [smem:[%s84]]
  %s86 = scalar_lea.smem %s0, 43
  %s87 = sld [smem:[%s86]]
  %s88 = sld [smem:[#allocation0]]
  $region182: #{multi_scale_feature.1} parent=0
    _
  %s90 = ssub.s32 1, %s88
  %s91 = scalar_select 0, %s90, %s88
  // Predicated region
  $region2: #{multi_scale_feature.1} parent=0 // pred_check
    _
  $region3: #{multi_scale_feature.1} parent=0 // pred_check_branch
    %93 = sbr.rel (0) target = $region5
  $region4: #{multi_scale_feature.1} parent=0 // pred_region
    _
  $region5: #{multi_scale_feature.1} parent=0 // pred_fallthru
    _
  // Predicated region
  $region6: #{multi_scale_feature.1} parent=0 // pred_check
    _
  $region7: #{multi_scale_feature.1} parent=0 // pred_check_branch
    %95 = sbr.rel (0) target = $region9
  $region8: #{multi_scale_feature.1} parent=0 // pred_region
    _
  $region9: #{multi_scale_feature.1} parent=0 // pred_fallthru
    _
  // Predicated region
  $region10: #{multi_scale_feature.1} parent=0 // pred_check
    _
  $region11: #{multi_scale_feature.1} parent=0 // pred_check_branch
    %97 = sbr.rel (0) target = $region13
  $region12: #{multi_scale_feature.1} parent=0 // pred_region
    _
  $region13: #{multi_scale_feature.1} parent=0 // pred_fallthru
    _
  // Predicated region
  $region14: #{multi_scale_feature.1} parent=0 // pred_check
    _
  $region15: #{multi_scale_feature.1} parent=0 // pred_check_branch
    %99 = sbr.rel (0) target = $region17
  $region16: #{multi_scale_feature.1} parent=0 // pred_region
    _
  $region17: #{multi_scale_feature.1} parent=0 // pred_fallthru
    _
  // Predicated region
  $region18: #{multi_scale_feature.1} parent=0 // pred_check
    _
  $region19: #{multi_scale_feature.1} parent=0 // pred_check_branch
    %101 = sbr.rel (0) target = $region21
  $region20: #{multi_scale_feature.1} parent=0 // pred_region
    _
  $region21: #{multi_scale_feature.1} parent=0 // pred_fallthru
    _
  // Predicated region
  $region22: #{multi_scale_feature.1} parent=0 // pred_check
    _
  $region23: #{multi_scale_feature.1} parent=0 // pred_check_branch
    %103 = sbr.rel (0) target = $region25
  $region24: #{multi_scale_feature.1} parent=0 // pred_region
    _
  $region25: #{multi_scale_feature.1} parent=0 // pred_fallthru
    _
  // Predicated region
  $region26: #{multi_scale_feature.1} parent=0 // pred_check
    _
  $region27: #{multi_scale_feature.1} parent=0 // pred_check_branch
    %105 = sbr.rel (0) target = $region29
  $region28: #{multi_scale_feature.1} parent=0 // pred_region
    _
  $region29: #{multi_scale_feature.1} parent=0 // pred_fallthru
    _
  // Predicated region
  $region30: #{multi_scale_feature.1} parent=0 // pred_check
    _
  $region31: #{multi_scale_feature.1} parent=0 // pred_check_branch
    %107 = sbr.rel (0) target = $region33
  $region32: #{multi_scale_feature.1} parent=0 // pred_region
    _
  $region33: #{multi_scale_feature.1} parent=0 // pred_fallthru
    _
  // Predicated region
  $region34: #{multi_scale_feature.1} parent=0 // pred_check
    _
  $region35: #{multi_scale_feature.1} parent=0 // pred_check_branch
    %109 = sbr.rel (0) target = $region37
  $region36: #{multi_scale_feature.1} parent=0 // pred_region
    _
  $region37: #{multi_scale_feature.1} parent=0 // pred_fallthru
    _
  // Predicated region
  $region38: #{multi_scale_feature.1} parent=0 // pred_check
    _
  $region39: #{multi_scale_feature.1} parent=0 // pred_check_branch
    %111 = sbr.rel (0) target = $region41
  $region40: #{multi_scale_feature.1} parent=0 // pred_region
    _
  $region41: #{multi_scale_feature.1} parent=0 // pred_fallthru
    _
  // Predicated region
  $region42: #{multi_scale_feature.1} parent=0 // pred_check
    _
  $region43: #{multi_scale_feature.1} parent=0 // pred_check_branch
    %113 = sbr.rel (0) target = $region45
  $region44: #{multi_scale_feature.1} parent=0 // pred_region
    _
  $region45: #{multi_scale_feature.1} parent=0 // pred_fallthru
    _
  // Predicated region
  $region46: #{multi_scale_feature.1} parent=0 // pred_check
    _
  $region47: #{multi_scale_feature.1} parent=0 // pred_check_branch
    %115 = sbr.rel (0) target = $region49
  $region48: #{multi_scale_feature.1} parent=0 // pred_region
    _
  $region49: #{multi_scale_feature.1} parent=0 // pred_fallthru
    _
  // Predicated region
  $region50: #{multi_scale_feature.1} parent=0 // pred_check
    _
  $region51: #{multi_scale_feature.1} parent=0 // pred_check_branch
    %117 = sbr.rel (0) target = $region53
  $region52: #{multi_scale_feature.1} parent=0 // pred_region
    _
  $region53: #{multi_scale_feature.1} parent=0 // pred_fallthru
    _
  // Predicated region
  $region54: #{multi_scale_feature.1} parent=0 // pred_check
    _
  $region55: #{multi_scale_feature.1} parent=0 // pred_check_branch
    %119 = sbr.rel (0) target = $region57
  $region56: #{multi_scale_feature.1} parent=0 // pred_region
    _
  $region57: #{multi_scale_feature.1} parent=0 // pred_fallthru
    _
  // Predicated region
  $region58: #{multi_scale_feature.1} parent=0 // pred_check
    _
  $region59: #{multi_scale_feature.1} parent=0 // pred_check_branch
    %121 = sbr.rel (0) target = $region61
  $region60: #{multi_scale_feature.1} parent=0 // pred_region
    _
  $region61: #{multi_scale_feature.1} parent=0 // pred_fallthru
    _
  // Predicated region
  $region62: #{multi_scale_feature.1} parent=0 // pred_check
    _
  $region63: #{multi_scale_feature.1} parent=0 // pred_check_branch
    %123 = sbr.rel (0) target = $region65
  $region64: #{multi_scale_feature.1} parent=0 // pred_region
    _
  $region65: #{multi_scale_feature.1} parent=0 // pred_fallthru
    _
  // Predicated region
  $region66: #{multi_scale_feature.1} parent=0 // pred_check
    _
  $region67: #{multi_scale_feature.1} parent=0 // pred_check_branch
    %125 = sbr.rel (0) target = $region69
  $region68: #{multi_scale_feature.1} parent=0 // pred_region
    _
  $region69: #{multi_scale_feature.1} parent=0 // pred_fallthru
    _
  // Predicated region
  $region70: #{multi_scale_feature.1} parent=0 // pred_check
    _
  $region71: #{multi_scale_feature.1} parent=0 // pred_check_branch
    %127 = sbr.rel (0) target = $region73
  $region72: #{multi_scale_feature.1} parent=0 // pred_region
    _
  $region73: #{multi_scale_feature.1} parent=0 // pred_fallthru
    _
  // Predicated region
  $region74: #{multi_scale_feature.1} parent=0 // pred_check
    _
  $region75: #{multi_scale_feature.1} parent=0 // pred_check_branch
    %129 = sbr.rel (0) target = $region77
  $region76: #{multi_scale_feature.1} parent=0 // pred_region
    _
  $region77: #{multi_scale_feature.1} parent=0 // pred_fallthru
    _
  // Predicated region
  $region78: #{multi_scale_feature.1} parent=0 // pred_check
    _
  $region79: #{multi_scale_feature.1} parent=0 // pred_check_branch
    %131 = sbr.rel (0) target = $region81
  $region80: #{multi_scale_feature.1} parent=0 // pred_region
    _
  $region81: #{multi_scale_feature.1} parent=0 // pred_fallthru
    _
  // Predicated region
  $region82: #{multi_scale_feature.1} parent=0 // pred_check
    _
  $region83: #{multi_scale_feature.1} parent=0 // pred_check_branch
    %133 = sbr.rel (0) target = $region85
  $region84: #{multi_scale_feature.1} parent=0 // pred_region
    _
  $region85: #{multi_scale_feature.1} parent=0 // pred_fallthru
    _
  // Predicated region
  $region86: #{multi_scale_feature.1} parent=0 // pred_check
    _
  $region87: #{multi_scale_feature.1} parent=0 // pred_check_branch
    %135 = sbr.rel (0) target = $region89
  $region88: #{multi_scale_feature.1} parent=0 // pred_region
    _
  $region89: #{multi_scale_feature.1} parent=0 // pred_fallthru
    _
  // Predicated region
  $region90: #{multi_scale_feature.1} parent=0 // pred_check
    _
  $region91: #{multi_scale_feature.1} parent=0 // pred_check_branch
    %137 = sbr.rel (0) target = $region93
  $region92: #{multi_scale_feature.1} parent=0 // pred_region
    _
  $region93: #{multi_scale_feature.1} parent=0 // pred_fallthru
    _
  // Predicated region
  $region94: #{multi_scale_feature.1} parent=0 // pred_check
    _
  $region95: #{multi_scale_feature.1} parent=0 // pred_check_branch
    %139 = sbr.rel (0) target = $region97
  $region96: #{multi_scale_feature.1} parent=0 // pred_region
    _
  $region97: #{multi_scale_feature.1} parent=0 // pred_fallthru
    _
  // Predicated region
  $region98: #{multi_scale_feature.1} parent=0 // pred_check
    _
  $region99: #{multi_scale_feature.1} parent=0 // pred_check_branch
    %141 = sbr.rel (0) target = $region101
  $region100: #{multi_scale_feature.1} parent=0 // pred_region
    _
  $region101: #{multi_scale_feature.1} parent=0 // pred_fallthru
    _
  // Predicated region
  $region102: #{multi_scale_feature.1} parent=0 // pred_check
    _
  $region103: #{multi_scale_feature.1} parent=0 // pred_check_branch
    %143 = sbr.rel (0) target = $region105
  $region104: #{multi_scale_feature.1} parent=0 // pred_region
    _
  $region105: #{multi_scale_feature.1} parent=0 // pred_fallthru
    _
  // Predicated region
  $region106: #{multi_scale_feature.1} parent=0 // pred_check
    _
  $region107: #{multi_scale_feature.1} parent=0 // pred_check_branch
    %145 = sbr.rel (0) target = $region109
  $region108: #{multi_scale_feature.1} parent=0 // pred_region
    _
  $region109: #{multi_scale_feature.1} parent=0 // pred_fallthru
    _
  // Predicated region
  $region110: #{multi_scale_feature.1} parent=0 // pred_check
    _
  $region111: #{multi_scale_feature.1} parent=0 // pred_check_branch
    %147 = sbr.rel (0) target = $region113
  $region112: #{multi_scale_feature.1} parent=0 // pred_region
    _
  $region113: #{multi_scale_feature.1} parent=0 // pred_fallthru
    _
  // Predicated region
  $region114: #{multi_scale_feature.1} parent=0 // pred_check
    _
  $region115: #{multi_scale_feature.1} parent=0 // pred_check_branch
    %149 = sbr.rel (0) target = $region117
  $region116: #{multi_scale_feature.1} parent=0 // pred_region
    _
  $region117: #{multi_scale_feature.1} parent=0 // pred_fallthru
    _
  // Predicated region
  $region118: #{multi_scale_feature.1} parent=0 // pred_check
    _
  $region119: #{multi_scale_feature.1} parent=0 // pred_check_branch
    %151 = sbr.rel (0) target = $region121
  $region120: #{multi_scale_feature.1} parent=0 // pred_region
    _
  $region121: #{multi_scale_feature.1} parent=0 // pred_fallthru
    _
  // Predicated region
  $region122: #{multi_scale_feature.1} parent=0 // pred_check
    _
  $region123: #{multi_scale_feature.1} parent=0 // pred_check_branch
    %153 = sbr.rel (0) target = $region125
  $region124: #{multi_scale_feature.1} parent=0 // pred_region
    _
  $region125: #{multi_scale_feature.1} parent=0 // pred_fallthru
    _
  // Predicated region
  $region126: #{multi_scale_feature.1} parent=0 // pred_check
    _
  $region127: #{multi_scale_feature.1} parent=0 // pred_check_branch
    %155 = sbr.rel (0) target = $region129
  $region128: #{multi_scale_feature.1} parent=0 // pred_region
    _
  $region129: #{multi_scale_feature.1} parent=0 // pred_fallthru
    _
  // Predicated region
  $region130: #{multi_scale_feature.1} parent=0 // pred_check
    _
  $region131: #{multi_scale_feature.1} parent=0 // pred_check_branch
    %157 = sbr.rel (0) target = $region133
  $region132: #{multi_scale_feature.1} parent=0 // pred_region
    _
  $region133: #{multi_scale_feature.1} parent=0 // pred_fallthru
    _
  // Predicated region
  $region134: #{multi_scale_feature.1} parent=0 // pred_check
    _
  $region135: #{multi_scale_feature.1} parent=0 // pred_check_branch
    %159 = sbr.rel (0) target = $region137
  $region136: #{multi_scale_feature.1} parent=0 // pred_region
    _
  $region137: #{multi_scale_feature.1} parent=0 // pred_fallthru
    _
  // Predicated region
  $region138: #{multi_scale_feature.1} parent=0 // pred_check
    _
  $region139: #{multi_scale_feature.1} parent=0 // pred_check_branch
    %161 = sbr.rel (0) target = $region141
  $region140: #{multi_scale_feature.1} parent=0 // pred_region
    _
  $region141: #{multi_scale_feature.1} parent=0 // pred_fallthru
    _
  // Predicated region
  $region142: #{multi_scale_feature.1} parent=0 // pred_check
    _
  $region143: #{multi_scale_feature.1} parent=0 // pred_check_branch
    %163 = sbr.rel (0) target = $region145
  $region144: #{multi_scale_feature.1} parent=0 // pred_region
    _
  $region145: #{multi_scale_feature.1} parent=0 // pred_fallthru
    _
  // Predicated region
  $region146: #{multi_scale_feature.1} parent=0 // pred_check
    _
  $region147: #{multi_scale_feature.1} parent=0 // pred_check_branch
    %165 = sbr.rel (0) target = $region149
  $region148: #{multi_scale_feature.1} parent=0 // pred_region
    _
  $region149: #{multi_scale_feature.1} parent=0 // pred_fallthru
    _
  // Predicated region
  $region150: #{multi_scale_feature.1} parent=0 // pred_check
    _
  $region151: #{multi_scale_feature.1} parent=0 // pred_check_branch
    %167 = sbr.rel (0) target = $region153
  $region152: #{multi_scale_feature.1} parent=0 // pred_region
    _
  $region153: #{multi_scale_feature.1} parent=0 // pred_fallthru
    _
  // Predicated region
  $region154: #{multi_scale_feature.1} parent=0 // pred_check
    _
  $region155: #{multi_scale_feature.1} parent=0 // pred_check_branch
    %169 = sbr.rel (0) target = $region157
  $region156: #{multi_scale_feature.1} parent=0 // pred_region
    _
  $region157: #{multi_scale_feature.1} parent=0 // pred_fallthru
    _
  // Predicated region
  $region158: #{multi_scale_feature.1} parent=0 // pred_check
    _
  $region159: #{multi_scale_feature.1} parent=0 // pred_check_branch
    %171 = sbr.rel (0) target = $region161
  $region160: #{multi_scale_feature.1} parent=0 // pred_region
    _
  $region161: #{multi_scale_feature.1} parent=0 // pred_fallthru
    _
  // Predicated region
  $region162: #{multi_scale_feature.1} parent=0 // pred_check
    _
  $region163: #{multi_scale_feature.1} parent=0 // pred_check_branch
    %173 = sbr.rel (0) target = $region165
  $region164: #{multi_scale_feature.1} parent=0 // pred_region
    _
  $region165: #{multi_scale_feature.1} parent=0 // pred_fallthru
    _
  // Predicated region
  $region166: #{multi_scale_feature.1} parent=0 // pred_check
    _
  $region167: #{multi_scale_feature.1} parent=0 // pred_check_branch
    %175 = sbr.rel (0) target = $region169
  $region168: #{multi_scale_feature.1} parent=0 // pred_region
    _
  $region169: #{multi_scale_feature.1} parent=0 // pred_fallthru
    _
  // Predicated region
  $region170: #{multi_scale_feature.1} parent=0 // pred_check
    _
  $region171: #{multi_scale_feature.1} parent=0 // pred_check_branch
    %177 = sbr.rel (0) target = $region173
  $region172: #{multi_scale_feature.1} parent=0 // pred_region
    _
  $region173: #{multi_scale_feature.1} parent=0 // pred_fallthru
    _
  %v179 = vld [vmem:[%s1] sm:$0xff]
  %v180 = vld [vmem:[%s1 + $0x8] sm:$0xff]
  %v181 = vld [vmem:[%s1 + $0x10] sm:$0xff]
  %v182 = vld [vmem:[%s1 + $0x18] sm:$0xff]
  %v183 = vld [vmem:[%s1 + $0x20] sm:$0xff]
  %v184 = vld [vmem:[%s1 + $0x28] sm:$0xff]
  %v185 = vld [vmem:[%s1 + $0x30] sm:$0xff]
  %v186 = vld [vmem:[%s1 + $0x38] sm:$0xff]
  %v187 = vld [vmem:[%s1 + $0x40] sm:$0xff]
  %v188 = vld [vmem:[%s1 + $0x48] sm:$0xff]
  %v189 = vld [vmem:[%s1 + $0x50] sm:$0xff]
  %v190 = vld [vmem:[%s1 + $0x58] sm:$0xff]
  %v191 = vld [vmem:[%s1 + $0x60] sm:$0xff]
  %v192 = vld [vmem:[%s1 + $0x68] sm:$0xff]
  %v193 = vld [vmem:[%s1 + $0x70] sm:$0xff]
  %v194 = vld [vmem:[%s1 + $0x78] sm:$0xff]
  %v195 = vld [vmem:[%s1 + $0x80] sm:$0xff]
  %v196 = vld [vmem:[%s1 + $0x88] sm:$0xff]
  %v197 = vld [vmem:[%s1 + $0x90] sm:$0xff]
  %v198 = vld [vmem:[%s1 + $0x98] sm:$0xff]
  %v199 = vld [vmem:[%s1 + $0xa0] sm:$0xff]
  %v200 = vld [vmem:[%s1 + $0xa8] sm:$0xff]
  %v201 = vld [vmem:[%s1 + $0xb0] sm:$0xff]
  %v202 = vld [vmem:[%s1 + $0xb8] sm:$0xff]
  %v203 = vld [vmem:[%s1 + $0xc0] sm:$0xff]
  %v204 = vld [vmem:[%s1 + $0xc8] sm:$0xff]
  %v205 = vld [vmem:[%s1 + $0xd0] sm:$0xff]
  %v206 = vld [vmem:[%s1 + $0xd8] sm:$0xff]
  %v207 = vld [vmem:[%s1 + $0xe0] sm:$0xff]
  %v208 = vld [vmem:[%s1 + $0xe8] sm:$0xff]
  %v209 = vld [vmem:[%s1 + $0xf0] sm:$0xff]
  %v210 = vld [vmem:[%s1 + $0xf8] sm:$0xff]
  %v211 = vpack.c.bf16 %v180, %v179
  %v212 = vpack.c.bf16 %v182, %v181
  %v213 = vpack.c.bf16 %v184, %v183
  %v214 = vpack.c.bf16 %v186, %v185
  %v215 = vpack.c.bf16 %v188, %v187
  %v216 = vpack.c.bf16 %v190, %v189
  %v217 = vpack.c.bf16 %v192, %v191
  %v218 = vpack.c.bf16 %v194, %v193
  %v219 = vpack.c.bf16 %v196, %v195
  %v220 = vpack.c.bf16 %v198, %v197
  %v221 = vpack.c.bf16 %v200, %v199
  %v222 = vpack.c.bf16 %v202, %v201
  %v223 = vpack.c.bf16 %v204, %v203
  %v224 = vpack.c.bf16 %v206, %v205
  %v225 = vpack.c.bf16 %v208, %v207
  %v226 = vpack.c.bf16 %v210, %v209
  %v227 = vld [vmem:[%s3] sm:$0xff]
  %v228 = vld [vmem:[%s3 + $0x8] sm:$0xf]
  %v231 = vunpack.c.l.b16 %v227
  %v232 = vunpack.c.h.b16 %v227
  %v233 = vunpack.c.l.b16 %v228
  %v234 = vpack.c.b16 %v231, %v231
  %v235 = vpack.c.b16 %v232, %v232
  %v236 = vpack.c.b16 %v233, %v233
  %vm237 = vcmask 64512
  %v239 = vsel %vm237, %v211, 0
  %v242 = vsel %vm237, %v212, 0
  %v245 = vsel %vm237, %v213, 0
  %v248 = vsel %vm237, %v214, 0
  %v251 = vsel %vm237, %v215, 0
  %v254 = vsel %vm237, %v216, 0
  %v257 = vsel %vm237, %v217, 0
  %v260 = vsel %vm237, %v218, 0
  %v263 = vsel %vm237, %v219, 0
  %v266 = vsel %vm237, %v220, 0
  %v269 = vsel %vm237, %v221, 0
  %v272 = vsel %vm237, %v222, 0
  %v275 = vsel %vm237, %v223, 0
  %v278 = vsel %vm237, %v224, 0
  %v281 = vsel %vm237, %v225, 0
  %v284 = vsel %vm237, %v226, 0
  %vm286 = vcmask 1043456
  %v288 = vsel %vm286, %v234, 0
  %v291 = vsel %vm286, %v235, 0
  %v294 = vsel %vm286, %v236, 0
  %296 = vmatprep.subr.bf16.mxu0 %v291
  %297 = vmatpush1.bf16.msra.mxu0 %v288
  %298 = vmatprep.subr.bf16.mxu0 0
  %299 = vmatpush1.bf16.msra.mxu0 0
  %300 = vmatprep.subr.bf16.mxu0 0
  %301 = vmatpush1.bf16.msra.mxu0 0
  %302 = vmatprep.subr.bf16.mxu0 0
  %303 = vmatpush1.bf16.msra.mxu0 0
  %304 = vmatprep.subr.bf16.mxu0 0
  %305 = vmatpush1.bf16.msra.mxu0 0
  %306 = vmatprep.subr.bf16.mxu0 0
  %307 = vmatpush1.bf16.msra.mxu0 0
  %308 = vmatprep.subr.bf16.mxu0 0
  %309 = vmatpush1.bf16.msra.mxu0 0
  %310 = vmatprep.subr.bf16.mxu0 0
  %311 = vmatpush1.bf16.msra.mxu0 0
  %312 = vmatprep.subr.bf16.mxu0 0
  %313 = vmatpush1.bf16.msra.mxu0 0
  %314 = vmatprep.subr.bf16.mxu0 0
  %315 = vmatpush1.bf16.msra.mxu0 0
  %316 = vmatprep.subr.bf16.mxu0 0
  %317 = vmatpush1.bf16.msra.mxu0 0
  %318 = vmatprep.subr.bf16.mxu0 0
  %319 = vmatpush1.bf16.msra.mxu0 0
  %320 = vmatprep.subr.bf16.mxu0 0
  %321 = vmatpush1.bf16.msra.mxu0 0
  %322 = vmatprep.subr.bf16.mxu0 0
  %323 = vmatpush1.bf16.msra.mxu0 0
  %324 = vmatprep.subr.bf16.mxu0 0
  %325 = vmatpush1.bf16.msra.mxu0 0
  %326 = vmatprep.subr.bf16.mxu0 0
  %327 = vmatpush1.bf16.msra.mxu0 0
  %328 = vmatprep.mubr.bf16.mxu0 0
  %329 = vmatmul.mubr.bf16.gmra.mrb[0].mxu0 %v239
  %v330 = vpop.f32.mrb[0].mxu0
  %v331 = vadd.f32 0.0, %v330
  %v332 = vpop.f32.mrb[0].mxu0
  %v333 = vadd.f32 0.0, %v332
  %v334 = vpop.f32.mrb[0].mxu0
  %v335 = vadd.f32 0.0, %v334
  %v336 = vpop.f32.mrb[0].mxu0
  %v337 = vadd.f32 0.0, %v336
  %338 = vmatprep.mubr.bf16.mxu0 0
  %339 = vmatmul.mubr.bf16.gmra.mrb[0].mxu0 %v242
  %v340 = vpop.f32.mrb[0].mxu0
  %v341 = vadd.f32 0.0, %v340
  %v342 = vpop.f32.mrb[0].mxu0
  %v343 = vadd.f32 0.0, %v342
  %v344 = vpop.f32.mrb[0].mxu0
  %v345 = vadd.f32 0.0, %v344
  %v346 = vpop.f32.mrb[0].mxu0
  %v347 = vadd.f32 0.0, %v346
  %348 = vmatprep.mubr.bf16.mxu0 0
  %349 = vmatmul.mubr.bf16.gmra.mrb[0].mxu0 %v245
  %v350 = vpop.f32.mrb[0].mxu0
  %v351 = vadd.f32 0.0, %v350
  %v352 = vpop.f32.mrb[0].mxu0
  %v353 = vadd.f32 0.0, %v352
  %v354 = vpop.f32.mrb[0].mxu0
  %v355 = vadd.f32 0.0, %v354
  %v356 = vpop.f32.mrb[0].mxu0
  %v357 = vadd.f32 0.0, %v356
  %358 = vmatprep.mubr.bf16.mxu0 0
  %359 = vmatmul.mubr.bf16.gmra.mrb[0].mxu0 %v248
  %v360 = vpop.f32.mrb[0].mxu0
  %v361 = vadd.f32 0.0, %v360
  %v362 = vpop.f32.mrb[0].mxu0
  %v363 = vadd.f32 0.0, %v362
  %v364 = vpop.f32.mrb[0].mxu0
  %v365 = vadd.f32 0.0, %v364
  %v366 = vpop.f32.mrb[0].mxu0
  %v367 = vadd.f32 0.0, %v366
  %368 = vmatprep.mubr.bf16.mxu0 0
  %369 = vmatmul.mubr.bf16.gmra.mrb[0].mxu0 %v251
  %v370 = vpop.f32.mrb[0].mxu0
  %v371 = vadd.f32 0.0, %v370
  %v372 = vpop.f32.mrb[0].mxu0
  %v373 = vadd.f32 0.0, %v372
  %v374 = vpop.f32.mrb[0].mxu0
  %v375 = vadd.f32 0.0, %v374
  %v376 = vpop.f32.mrb[0].mxu0
  %v377 = vadd.f32 0.0, %v376
  %378 = vmatprep.mubr.bf16.mxu0 0
  %379 = vmatmul.mubr.bf16.gmra.mrb[0].mxu0 %v254
  %v380 = vpop.f32.mrb[0].mxu0
  %v381 = vadd.f32 0.0, %v380
  %v382 = vpop.f32.mrb[0].mxu0
  %v383 = vadd.f32 0.0, %v382
  %v384 = vpop.f32.mrb[0].mxu0
  %v385 = vadd.f32 0.0, %v384
  %v386 = vpop.f32.mrb[0].mxu0
  %v387 = vadd.f32 0.0, %v386
  %388 = vmatprep.mubr.bf16.mxu0 0
  %389 = vmatmul.mubr.bf16.gmra.mrb[0].mxu0 %v257
  %v390 = vpop.f32.mrb[0].mxu0
  %v391 = vadd.f32 0.0, %v390
  %v392 = vpop.f32.mrb[0].mxu0
  %v393 = vadd.f32 0.0, %v392
  %v394 = vpop.f32.mrb[0].mxu0
  %v395 = vadd.f32 0.0, %v394
  %v396 = vpop.f32.mrb[0].mxu0
  %v397 = vadd.f32 0.0, %v396
  %398 = vmatprep.mubr.bf16.mxu0 0
  %399 = vmatmul.mubr.bf16.gmra.mrb[0].mxu0 %v260
  %v400 = vpop.f32.mrb[0].mxu0
  %v401 = vadd.f32 0.0, %v400
  %v402 = vpop.f32.mrb[0].mxu0
  %v403 = vadd.f32 0.0, %v402
  %v404 = vpop.f32.mrb[0].mxu0
  %v405 = vadd.f32 0.0, %v404
  %v406 = vpop.f32.mrb[0].mxu0
  %v407 = vadd.f32 0.0, %v406
  %408 = vmatprep.mubr.bf16.mxu0 0
  %409 = vmatmul.mubr.bf16.gmra.mrb[0].mxu0 %v263
  %v410 = vpop.f32.mrb[0].mxu0
  %v411 = vadd.f32 0.0, %v410
  %v412 = vpop.f32.mrb[0].mxu0
  %v413 = vadd.f32 0.0, %v412
  %v414 = vpop.f32.mrb[0].mxu0
  %v415 = vadd.f32 0.0, %v414
  %v416 = vpop.f32.mrb[0].mxu0
  %v417 = vadd.f32 0.0, %v416
  %418 = vmatprep.mubr.bf16.mxu0 0
  %419 = vmatmul.mubr.bf16.gmra.mrb[0].mxu0 %v266
  %v420 = vpop.f32.mrb[0].mxu0
  %v421 = vadd.f32 0.0, %v420
  %v422 = vpop.f32.mrb[0].mxu0
  %v423 = vadd.f32 0.0, %v422
  %v424 = vpop.f32.mrb[0].mxu0
  %v425 = vadd.f32 0.0, %v424
  %v426 = vpop.f32.mrb[0].mxu0
  %v427 = vadd.f32 0.0, %v426
  %428 = vmatprep.mubr.bf16.mxu0 0
  %429 = vmatmul.mubr.bf16.gmra.mrb[0].mxu0 %v269
  %v430 = vpop.f32.mrb[0].mxu0
  %v431 = vadd.f32 0.0, %v430
  %v432 = vpop.f32.mrb[0].mxu0
  %v433 = vadd.f32 0.0, %v432
  %v434 = vpop.f32.mrb[0].mxu0
  %v435 = vadd.f32 0.0, %v434
  %v436 = vpop.f32.mrb[0].mxu0
  %v437 = vadd.f32 0.0, %v436
  %438 = vmatprep.mubr.bf16.mxu0 0
  %439 = vmatmul.mubr.bf16.gmra.mrb[0].mxu0 %v272
  %v440 = vpop.f32.mrb[0].mxu0
  %v441 = vadd.f32 0.0, %v440
  %v442 = vpop.f32.mrb[0].mxu0
  %v443 = vadd.f32 0.0, %v442
  %v444 = vpop.f32.mrb[0].mxu0
  %v445 = vadd.f32 0.0, %v444
  %v446 = vpop.f32.mrb[0].mxu0
  %v447 = vadd.f32 0.0, %v446
  %448 = vmatprep.mubr.bf16.mxu0 0
  %449 = vmatmul.mubr.bf16.gmra.mrb[0].mxu0 %v275
  %v450 = vpop.f32.mrb[0].mxu0
  %v451 = vadd.f32 0.0, %v450
  %v452 = vpop.f32.mrb[0].mxu0
  %v453 = vadd.f32 0.0, %v452
  %v454 = vpop.f32.mrb[0].mxu0
  %v455 = vadd.f32 0.0, %v454
  %v456 = vpop.f32.mrb[0].mxu0
  %v457 = vadd.f32 0.0, %v456
  %458 = vmatprep.mubr.bf16.mxu0 0
  %459 = vmatmul.mubr.bf16.gmra.mrb[0].mxu0 %v278
  %v460 = vpop.f32.mrb[0].mxu0
  %v461 = vadd.f32 0.0, %v460
  %v462 = vpop.f32.mrb[0].mxu0
  %v463 = vadd.f32 0.0, %v462
  %v464 = vpop.f32.mrb[0].mxu0
  %v465 = vadd.f32 0.0, %v464
  %v466 = vpop.f32.mrb[0].mxu0
  %v467 = vadd.f32 0.0, %v466
  %468 = vmatprep.mubr.bf16.mxu0 0
  %469 = vmatmul.mubr.bf16.gmra.mrb[0].mxu0 %v281
  %v470 = vpop.f32.mrb[0].mxu0
  %v471 = vadd.f32 0.0, %v470
  %v472 = vpop.f32.mrb[0].mxu0
  %v473 = vadd.f32 0.0, %v472
  %v474 = vpop.f32.mrb[0].mxu0
  %v475 = vadd.f32 0.0, %v474
  %v476 = vpop.f32.mrb[0].mxu0
  %v477 = vadd.f32 0.0, %v476
  %478 = vmatprep.mubr.bf16.mxu0 0
  %479 = vmatmul.mubr.bf16.gmra.mrb[0].mxu0 %v284
  %v480 = vpop.f32.mrb[0].mxu0
  %v481 = vadd.f32 0.0, %v480
  %v482 = vpop.f32.mrb[0].mxu0
  %v483 = vadd.f32 0.0, %v482
  %v484 = vpop.f32.mrb[0].mxu0
  %v485 = vadd.f32 0.0, %v484
  %v486 = vpop.f32.mrb[0].mxu0
  %v487 = vadd.f32 0.0, %v486
  %488 = vdwg.mxu0
  %489 = vmatprep.subr.bf16.mxu0 0
  %490 = vmatpush1.bf16.msra.mxu0 %v294
  %491 = vmatprep.subr.bf16.mxu0 0
  %492 = vmatpush1.bf16.msra.mxu0 0
  %493 = vmatprep.subr.bf16.mxu0 0
  %494 = vmatpush1.bf16.msra.mxu0 0
  %495 = vmatprep.subr.bf16.mxu0 0
  %496 = vmatpush1.bf16.msra.mxu0 0
  %497 = vmatprep.subr.bf16.mxu0 0
  %498 = vmatpush1.bf16.msra.mxu0 0
  %499 = vmatprep.subr.bf16.mxu0 0
  %500 = vmatpush1.bf16.msra.mxu0 0
  %501 = vmatprep.subr.bf16.mxu0 0
  %502 = vmatpush1.bf16.msra.mxu0 0
  %503 = vmatprep.subr.bf16.mxu0 0
  %504 = vmatpush1.bf16.msra.mxu0 0
  %505 = vmatprep.subr.bf16.mxu0 0
  %506 = vmatpush1.bf16.msra.mxu0 0
  %507 = vmatprep.subr.bf16.mxu0 0
  %508 = vmatpush1.bf16.msra.mxu0 0
  %509 = vmatprep.subr.bf16.mxu0 0
  %510 = vmatpush1.bf16.msra.mxu0 0
  %511 = vmatprep.subr.bf16.mxu0 0
  %512 = vmatpush1.bf16.msra.mxu0 0
  %513 = vmatprep.subr.bf16.mxu0 0
  %514 = vmatpush1.bf16.msra.mxu0 0
  %515 = vmatprep.subr.bf16.mxu0 0
  %516 = vmatpush1.bf16.msra.mxu0 0
  %517 = vmatprep.subr.bf16.mxu0 0
  %518 = vmatpush1.bf16.msra.mxu0 0
  %519 = vmatprep.subr.bf16.mxu0 0
  %520 = vmatpush1.bf16.msra.mxu0 0
  %521 = vmatprep.mubr.bf16.mxu0 0
  %522 = vmatmul.mubr.bf16.gmra.mrb[0].mxu0 %v239
  %v523 = vpop.f32.mrb[0].mxu0
  %v524 = vadd.f32 0.0, %v523
  %v525 = vpop.f32.mrb[0].mxu0
  %v526 = vpop.f32.mrb[0].mxu0
  %v527 = vadd.f32 0.0, %v526
  %v528 = vpop.f32.mrb[0].mxu0
  %529 = vmatprep.mubr.bf16.mxu0 0
  %530 = vmatmul.mubr.bf16.gmra.mrb[0].mxu0 %v242
  %v531 = vpop.f32.mrb[0].mxu0
  %v532 = vadd.f32 0.0, %v531
  %v533 = vpop.f32.mrb[0].mxu0
  %v534 = vpop.f32.mrb[0].mxu0
  %v535 = vadd.f32 0.0, %v534
  %v536 = vpop.f32.mrb[0].mxu0
  %537 = vmatprep.mubr.bf16.mxu0 0
  %538 = vmatmul.mubr.bf16.gmra.mrb[0].mxu0 %v245
  %v539 = vpop.f32.mrb[0].mxu0
  %v540 = vadd.f32 0.0, %v539
  %v541 = vpop.f32.mrb[0].mxu0
  %v542 = vpop.f32.mrb[0].mxu0
  %v543 = vadd.f32 0.0, %v542
  %v544 = vpop.f32.mrb[0].mxu0
  %545 = vmatprep.mubr.bf16.mxu0 0
  %546 = vmatmul.mubr.bf16.gmra.mrb[0].mxu0 %v248
  %v547 = vpop.f32.mrb[0].mxu0
  %v548 = vadd.f32 0.0, %v547
  %v549 = vpop.f32.mrb[0].mxu0
  %v550 = vpop.f32.mrb[0].mxu0
  %v551 = vadd.f32 0.0, %v550
  %v552 = vpop.f32.mrb[0].mxu0
  %553 = vmatprep.mubr.bf16.mxu0 0
  %554 = vmatmul.mubr.bf16.gmra.mrb[0].mxu0 %v251
  %v555 = vpop.f32.mrb[0].mxu0
  %v556 = vadd.f32 0.0, %v555
  %v557 = vpop.f32.mrb[0].mxu0
  %v558 = vpop.f32.mrb[0].mxu0
  %v559 = vadd.f32 0.0, %v558
  %v560 = vpop.f32.mrb[0].mxu0
  %561 = vmatprep.mubr.bf16.mxu0 0
  %562 = vmatmul.mubr.bf16.gmra.mrb[0].mxu0 %v254
  %v563 = vpop.f32.mrb[0].mxu0
  %v564 = vadd.f32 0.0, %v563
  %v565 = vpop.f32.mrb[0].mxu0
  %v566 = vpop.f32.mrb[0].mxu0
  %v567 = vadd.f32 0.0, %v566
  %v568 = vpop.f32.mrb[0].mxu0
  %569 = vmatprep.mubr.bf16.mxu0 0
  %570 = vmatmul.mubr.bf16.gmra.mrb[0].mxu0 %v257
  %v571 = vpop.f32.mrb[0].mxu0
  %v572 = vadd.f32 0.0, %v571
  %v573 = vpop.f32.mrb[0].mxu0
  %v574 = vpop.f32.mrb[0].mxu0
  %v575 = vadd.f32 0.0, %v574
  %v576 = vpop.f32.mrb[0].mxu0
  %577 = vmatprep.mubr.bf16.mxu0 0
  %578 = vmatmul.mubr.bf16.gmra.mrb[0].mxu0 %v260
  %v579 = vpop.f32.mrb[0].mxu0
  %v580 = vadd.f32 0.0, %v579
  %v581 = vpop.f32.mrb[0].mxu0
  %v582 = vpop.f32.mrb[0].mxu0
  %v583 = vadd.f32 0.0, %v582
  %v584 = vpop.f32.mrb[0].mxu0
  %585 = vmatprep.mubr.bf16.mxu0 0
  %586 = vmatmul.mubr.bf16.gmra.mrb[0].mxu0 %v263
  %v587 = vpop.f32.mrb[0].mxu0
  %v588 = vadd.f32 0.0, %v587
  %v589 = vpop.f32.mrb[0].mxu0
  %v590 = vpop.f32.mrb[0].mxu0
  %v591 = vadd.f32 0.0, %v590
  %v592 = vpop.f32.mrb[0].mxu0
  %593 = vmatprep.mubr.bf16.mxu0 0
  %594 = vmatmul.mubr.bf16.gmra.mrb[0].mxu0 %v266
  %v595 = vpop.f32.mrb[0].mxu0
  %v596 = vadd.f32 0.0, %v595
  %v597 = vpop.f32.mrb[0].mxu0
  %v598 = vpop.f32.mrb[0].mxu0
  %v599 = vadd.f32 0.0, %v598
  %v600 = vpop.f32.mrb[0].mxu0
  %601 = vmatprep.mubr.bf16.mxu0 0
  %602 = vmatmul.mubr.bf16.gmra.mrb[0].mxu0 %v269
  %v603 = vpop.f32.mrb[0].mxu0
  %v604 = vadd.f32 0.0, %v603
  %v605 = vpop.f32.mrb[0].mxu0
  %v606 = vpop.f32.mrb[0].mxu0
  %v607 = vadd.f32 0.0, %v606
  %v608 = vpop.f32.mrb[0].mxu0
  %609 = vmatprep.mubr.bf16.mxu0 0
  %610 = vmatmul.mubr.bf16.gmra.mrb[0].mxu0 %v272
  %v611 = vpop.f32.mrb[0].mxu0
  %v612 = vadd.f32 0.0, %v611
  %v613 = vpop.f32.mrb[0].mxu0
  %v614 = vpop.f32.mrb[0].mxu0
  %v615 = vadd.f32 0.0, %v614
  %v616 = vpop.f32.mrb[0].mxu0
  %617 = vmatprep.mubr.bf16.mxu0 0
  %618 = vmatmul.mubr.bf16.gmra.mrb[0].mxu0 %v275
  %v619 = vpop.f32.mrb[0].mxu0
  %v620 = vadd.f32 0.0, %v619
  %v621 = vpop.f32.mrb[0].mxu0
  %v622 = vpop.f32.mrb[0].mxu0
  %v623 = vadd.f32 0.0, %v622
  %v624 = vpop.f32.mrb[0].mxu0
  %625 = vmatprep.mubr.bf16.mxu0 0
  %626 = vmatmul.mubr.bf16.gmra.mrb[0].mxu0 %v278
  %v627 = vpop.f32.mrb[0].mxu0
  %v628 = vadd.f32 0.0, %v627
  %v629 = vpop.f32.mrb[0].mxu0
  %v630 = vpop.f32.mrb[0].mxu0
  %v631 = vadd.f32 0.0, %v630
  %v632 = vpop.f32.mrb[0].mxu0
  %633 = vmatprep.mubr.bf16.mxu0 0
  %634 = vmatmul.mubr.bf16.gmra.mrb[0].mxu0 %v281
  %v635 = vpop.f32.mrb[0].mxu0
  %v636 = vadd.f32 0.0, %v635
  %v637 = vpop.f32.mrb[0].mxu0
  %v638 = vpop.f32.mrb[0].mxu0
  %v639 = vadd.f32 0.0, %v638
  %v640 = vpop.f32.mrb[0].mxu0
  %641 = vmatprep.mubr.bf16.mxu0 0
  %642 = vmatmul.mubr.bf16.gmra.mrb[0].mxu0 %v284
  %v643 = vpop.f32.mrb[0].mxu0
  %v644 = vadd.f32 0.0, %v643
  %v645 = vpop.f32.mrb[0].mxu0
  %v646 = vpop.f32.mrb[0].mxu0
  %v647 = vadd.f32 0.0, %v646
  %v648 = vpop.f32.mrb[0].mxu0
  %649 = vdwg.mxu0
  %v650 = vld [vmem:[%s5] sm:$0x7]
  %v652 = vlaneseq
  %v653 = vshrl.u32 %v652, 7
  %v654 = vsub.s32 0, %v653
  %v655 = vrot.slane %v650, %v654
  %v656 = vlaneseq
  %v657 = vshrl.u32 %v656, 7
  %v658 = vsub.s32 1, %v657
  %v659 = vrot.slane %v650, %v658
  %v660 = vlaneseq
  %v661 = vshrl.u32 %v660, 7
  %v662 = vsub.s32 2, %v661
  %v663 = vrot.slane %v650, %v662
  %v667 = vadd.f32 %v331, %v655
  %v668 = vadd.f32 %v333, %v659
  %v669 = vadd.f32 %v524, %v663
  %v670 = vadd.f32 %v335, %v655
  %v671 = vadd.f32 %v337, %v659
  %v672 = vadd.f32 %v527, %v663
  %v673 = vadd.f32 %v341, %v655
  %v674 = vadd.f32 %v343, %v659
  %v675 = vadd.f32 %v532, %v663
  %v676 = vadd.f32 %v345, %v655
  %v677 = vadd.f32 %v347, %v659
  %v678 = vadd.f32 %v535, %v663
  %v679 = vadd.f32 %v351, %v655
  %v680 = vadd.f32 %v353, %v659
  %v681 = vadd.f32 %v540, %v663
  %v682 = vadd.f32 %v355, %v655
  %v683 = vadd.f32 %v357, %v659
  %v684 = vadd.f32 %v543, %v663
  %v685 = vadd.f32 %v361, %v655
  %v686 = vadd.f32 %v363, %v659
  %v687 = vadd.f32 %v548, %v663
  %v688 = vadd.f32 %v365, %v655
  %v689 = vadd.f32 %v367, %v659
  %v690 = vadd.f32 %v551, %v663
  %v691 = vadd.f32 %v371, %v655
  %v692 = vadd.f32 %v373, %v659
  %v693 = vadd.f32 %v556, %v663
  %v694 = vadd.f32 %v375, %v655
  %v695 = vadd.f32 %v377, %v659
  %v696 = vadd.f32 %v559, %v663
  %v697 = vadd.f32 %v381, %v655
  %v698 = vadd.f32 %v383, %v659
  %v699 = vadd.f32 %v564, %v663
  %v700 = vadd.f32 %v385, %v655
  %v701 = vadd.f32 %v387, %v659
  %v702 = vadd.f32 %v567, %v663
  %v703 = vadd.f32 %v391, %v655
  %v704 = vadd.f32 %v393, %v659
  %v705 = vadd.f32 %v572, %v663
  %v706 = vadd.f32 %v395, %v655
  %v707 = vadd.f32 %v397, %v659
  %v708 = vadd.f32 %v575, %v663
  %v709 = vadd.f32 %v401, %v655
  %v710 = vadd.f32 %v403, %v659
  %v711 = vadd.f32 %v580, %v663
  %v712 = vadd.f32 %v405, %v655
  %v713 = vadd.f32 %v407, %v659
  %v714 = vadd.f32 %v583, %v663
  %v715 = vadd.f32 %v411, %v655
  %v716 = vadd.f32 %v413, %v659
  %v717 = vadd.f32 %v588, %v663
  %v718 = vadd.f32 %v415, %v655
  %v719 = vadd.f32 %v417, %v659
  %v720 = vadd.f32 %v591, %v663
  %v721 = vadd.f32 %v421, %v655
  %v722 = vadd.f32 %v423, %v659
  %v723 = vadd.f32 %v596, %v663
  %v724 = vadd.f32 %v425, %v655
  %v725 = vadd.f32 %v427, %v659
  %v726 = vadd.f32 %v599, %v663
  %v727 = vadd.f32 %v431, %v655
  %v728 = vadd.f32 %v433, %v659
  %v729 = vadd.f32 %v604, %v663
  %v730 = vadd.f32 %v435, %v655
  %v731 = vadd.f32 %v437, %v659
  %v732 = vadd.f32 %v607, %v663
  %v733 = vadd.f32 %v441, %v655
  %v734 = vadd.f32 %v443, %v659
  %v735 = vadd.f32 %v612, %v663
  %v736 = vadd.f32 %v445, %v655
  %v737 = vadd.f32 %v447, %v659
  %v738 = vadd.f32 %v615, %v663
  %v739 = vadd.f32 %v451, %v655
  %v740 = vadd.f32 %v453, %v659
  %v741 = vadd.f32 %v620, %v663
  %v742 = vadd.f32 %v455, %v655
  %v743 = vadd.f32 %v457, %v659
  %v744 = vadd.f32 %v623, %v663
  %v745 = vadd.f32 %v461, %v655
  %v746 = vadd.f32 %v463, %v659
  %v747 = vadd.f32 %v628, %v663
  %v748 = vadd.f32 %v465, %v655
  %v749 = vadd.f32 %v467, %v659
  %v750 = vadd.f32 %v631, %v663
  %v751 = vadd.f32 %v471, %v655
  %v752 = vadd.f32 %v473, %v659
  %v753 = vadd.f32 %v636, %v663
  %v754 = vadd.f32 %v475, %v655
  %v755 = vadd.f32 %v477, %v659
  %v756 = vadd.f32 %v639, %v663
  %v757 = vadd.f32 %v481, %v655
  %v758 = vadd.f32 %v483, %v659
  %v759 = vadd.f32 %v644, %v663
  %v760 = vadd.f32 %v485, %v655
  %v761 = vadd.f32 %v487, %v659
  %v762 = vadd.f32 %v647, %v663
  %763 = vmatprep.subr.mxu0 %v668
  %764 = vmatpush1.msra.mxu0 %v667
  %765 = vmatprep.subr.mxu0 %v671
  %766 = vmatpush1.msra.mxu0 %v670
  %767 = vmatprep.subr.mxu0 %v674
  %768 = vmatpush1.msra.mxu0 %v673
  %769 = vmatprep.subr.mxu0 %v677
  %770 = vmatpush1.msra.mxu0 %v676
  %771 = vmatprep.subr.mxu0 %v680
  %772 = vmatpush1.msra.mxu0 %v679
  %773 = vmatprep.subr.mxu0 %v683
  %774 = vmatpush1.msra.mxu0 %v682
  %775 = vmatprep.subr.mxu0 %v686
  %776 = vmatpush1.msra.mxu0 %v685
  %777 = vmatprep.subr.mxu0 %v689
  %778 = vmatpush1.msra.mxu0 %v688
  %779 = vmatprep.subr.mxu0 %v692
  %780 = vmatpush1.msra.mxu0 %v691
  %781 = vmatprep.subr.mxu0 %v695
  %782 = vmatpush1.msra.mxu0 %v694
  %783 = vmatprep.subr.mxu0 %v698
  %784 = vmatpush1.msra.mxu0 %v697
  %785 = vmatprep.subr.mxu0 %v701
  %786 = vmatpush1.msra.mxu0 %v700
  %787 = vmatprep.subr.mxu0 %v704
  %788 = vmatpush1.msra.mxu0 %v703
  %789 = vmatprep.subr.mxu0 %v707
  %790 = vmatpush1.msra.mxu0 %v706
  %791 = vmatprep.subr.mxu0 %v710
  %792 = vmatpush1.msra.mxu0 %v709
  %793 = vmatprep.subr.mxu0 %v713
  %794 = vmatpush1.msra.mxu0 %v712
  %795 = vmatprep.subr.mxu0 %v716
  %796 = vmatpush1.msra.mxu0 %v715
  %797 = vmatprep.subr.mxu0 %v719
  %798 = vmatpush1.msra.mxu0 %v718
  %799 = vmatprep.subr.mxu0 %v722
  %800 = vmatpush1.msra.mxu0 %v721
  %801 = vmatprep.subr.mxu0 %v725
  %802 = vmatpush1.msra.mxu0 %v724
  %803 = vmatprep.subr.mxu0 %v728
  %804 = vmatpush1.msra.mxu0 %v727
  %805 = vmatprep.subr.mxu0 %v731
  %806 = vmatpush1.msra.mxu0 %v730
  %807 = vmatprep.subr.mxu0 %v734
  %808 = vmatpush1.msra.mxu0 %v733
  %809 = vmatprep.subr.mxu0 %v737
  %810 = vmatpush1.msra.mxu0 %v736
  %811 = vmatprep.subr.mxu0 %v740
  %812 = vmatpush1.msra.mxu0 %v739
  %813 = vmatprep.subr.mxu0 %v743
  %814 = vmatpush1.msra.mxu0 %v742
  %815 = vmatprep.subr.mxu0 %v746
  %816 = vmatpush1.msra.mxu0 %v745
  %817 = vmatprep.subr.mxu0 %v749
  %818 = vmatpush1.msra.mxu0 %v748
  %819 = vmatprep.subr.mxu0 %v752
  %820 = vmatpush1.msra.mxu0 %v751
  %821 = vmatprep.subr.mxu0 %v755
  %822 = vmatpush1.msra.mxu0 %v754
  %823 = vmatprep.subr.mxu0 %v758
  %824 = vmatpush1.msra.mxu0 %v757
  %825 = vmatprep.subr.mxu0 %v761
  %826 = vmatpush1.msra.mxu0 %v760
  %827 = vmatprep.mubr.f32.mxu0 1.0
  %828 = vmatmul.mubr.f32.gmra.mrb[0].mxu0 1.0
  %v829 = vpop.f32.mrb[0].mxu0
  %v830 = vadd.f32 0.0, %v829
  %v831 = vpop.f32.mrb[0].mxu0
  %v832 = vadd.f32 0.0, %v831
  %833 = vdwg.mxu0
  %v834 = vmul.f32 %v667, %v667
  %v835 = vmul.f32 %v668, %v668
  %v836 = vmul.f32 %v670, %v670
  %v837 = vmul.f32 %v671, %v671
  %v838 = vmul.f32 %v673, %v673
  %v839 = vmul.f32 %v674, %v674
  %v840 = vmul.f32 %v676, %v676
  %v841 = vmul.f32 %v677, %v677
  %v842 = vmul.f32 %v679, %v679
  %v843 = vmul.f32 %v680, %v680
  %v844 = vmul.f32 %v682, %v682
  %v845 = vmul.f32 %v683, %v683
  %v846 = vmul.f32 %v685, %v685
  %v847 = vmul.f32 %v686, %v686
  %v848 = vmul.f32 %v688, %v688
  %v849 = vmul.f32 %v689, %v689
  %v850 = vmul.f32 %v691, %v691
  %v851 = vmul.f32 %v692, %v692
  %v852 = vmul.f32 %v694, %v694
  %v853 = vmul.f32 %v695, %v695
  %v854 = vmul.f32 %v697, %v697
  %v855 = vmul.f32 %v698, %v698
  %v856 = vmul.f32 %v700, %v700
  %v857 = vmul.f32 %v701, %v701
  %v858 = vmul.f32 %v703, %v703
  %v859 = vmul.f32 %v704, %v704
  %v860 = vmul.f32 %v706, %v706
  %v861 = vmul.f32 %v707, %v707
  %v862 = vmul.f32 %v709, %v709
  %v863 = vmul.f32 %v710, %v710
  %v864 = vmul.f32 %v712, %v712
  %v865 = vmul.f32 %v713, %v713
  %v866 = vmul.f32 %v715, %v715
  %v867 = vmul.f32 %v716, %v716
  %v868 = vmul.f32 %v718, %v718
  %v869 = vmul.f32 %v719, %v719
  %v870 = vmul.f32 %v721, %v721
  %v871 = vmul.f32 %v722, %v722
  %v872 = vmul.f32 %v724, %v724
  %v873 = vmul.f32 %v725, %v725
  %v874 = vmul.f32 %v727, %v727
  %v875 = vmul.f32 %v728, %v728
  %v876 = vmul.f32 %v730, %v730
  %v877 = vmul.f32 %v731, %v731
  %v878 = vmul.f32 %v733, %v733
  %v879 = vmul.f32 %v734, %v734
  %v880 = vmul.f32 %v736, %v736
  %v881 = vmul.f32 %v737, %v737
  %v882 = vmul.f32 %v739, %v739
  %v883 = vmul.f32 %v740, %v740
  %v884 = vmul.f32 %v742, %v742
  %v885 = vmul.f32 %v743, %v743
  %v886 = vmul.f32 %v745, %v745
  %v887 = vmul.f32 %v746, %v746
  %v888 = vmul.f32 %v748, %v748
  %v889 = vmul.f32 %v749, %v749
  %v890 = vmul.f32 %v751, %v751
  %v891 = vmul.f32 %v752, %v752
  %v892 = vmul.f32 %v754, %v754
  %v893 = vmul.f32 %v755, %v755
  %v894 = vmul.f32 %v757, %v757
  %v895 = vmul.f32 %v758, %v758
  %v896 = vmul.f32 %v760, %v760
  %v897 = vmul.f32 %v761, %v761
  %898 = vmatprep.subr.mxu0 %v835
  %899 = vmatpush1.msra.mxu0 %v834
  %900 = vmatprep.subr.mxu0 %v837
  %901 = vmatpush1.msra.mxu0 %v836
  %902 = vmatprep.subr.mxu0 %v839
  %903 = vmatpush1.msra.mxu0 %v838
  %904 = vmatprep.subr.mxu0 %v841
  %905 = vmatpush1.msra.mxu0 %v840
  %906 = vmatprep.subr.mxu0 %v843
  %907 = vmatpush1.msra.mxu0 %v842
  %908 = vmatprep.subr.mxu0 %v845
  %909 = vmatpush1.msra.mxu0 %v844
  %910 = vmatprep.subr.mxu0 %v847
  %911 = vmatpush1.msra.mxu0 %v846
  %912 = vmatprep.subr.mxu0 %v849
  %913 = vmatpush1.msra.mxu0 %v848
  %914 = vmatprep.subr.mxu0 %v851
  %915 = vmatpush1.msra.mxu0 %v850
  %916 = vmatprep.subr.mxu0 %v853
  %917 = vmatpush1.msra.mxu0 %v852
  %918 = vmatprep.subr.mxu0 %v855
  %919 = vmatpush1.msra.mxu0 %v854
  %920 = vmatprep.subr.mxu0 %v857
  %921 = vmatpush1.msra.mxu0 %v856
  %922 = vmatprep.subr.mxu0 %v859
  %923 = vmatpush1.msra.mxu0 %v858
  %924 = vmatprep.subr.mxu0 %v861
  %925 = vmatpush1.msra.mxu0 %v860
  %926 = vmatprep.subr.mxu0 %v863
  %927 = vmatpush1.msra.mxu0 %v862
  %928 = vmatprep.subr.mxu0 %v865
  %929 = vmatpush1.msra.mxu0 %v864
  %930 = vmatprep.subr.mxu0 %v867
  %931 = vmatpush1.msra.mxu0 %v866
  %932 = vmatprep.subr.mxu0 %v869
  %933 = vmatpush1.msra.mxu0 %v868
  %934 = vmatprep.subr.mxu0 %v871
  %935 = vmatpush1.msra.mxu0 %v870
  %936 = vmatprep.subr.mxu0 %v873
  %937 = vmatpush1.msra.mxu0 %v872
  %938 = vmatprep.subr.mxu0 %v875
  %939 = vmatpush1.msra.mxu0 %v874
  %940 = vmatprep.subr.mxu0 %v877
  %941 = vmatpush1.msra.mxu0 %v876
  %942 = vmatprep.subr.mxu0 %v879
  %943 = vmatpush1.msra.mxu0 %v878
  %944 = vmatprep.subr.mxu0 %v881
  %945 = vmatpush1.msra.mxu0 %v880
  %946 = vmatprep.subr.mxu0 %v883
  %947 = vmatpush1.msra.mxu0 %v882
  %948 = vmatprep.subr.mxu0 %v885
  %949 = vmatpush1.msra.mxu0 %v884
  %950 = vmatprep.subr.mxu0 %v887
  %951 = vmatpush1.msra.mxu0 %v886
  %952 = vmatprep.subr.mxu0 %v889
  %953 = vmatpush1.msra.mxu0 %v888
  %954 = vmatprep.subr.mxu0 %v891
  %955 = vmatpush1.msra.mxu0 %v890
  %956 = vmatprep.subr.mxu0 %v893
  %957 = vmatpush1.msra.mxu0 %v892
  %958 = vmatprep.subr.mxu0 %v895
  %959 = vmatpush1.msra.mxu0 %v894
  %960 = vmatprep.subr.mxu0 %v897
  %961 = vmatpush1.msra.mxu0 %v896
  %962 = vmatprep.mubr.f32.mxu0 1.0
  %963 = vmatmul.mubr.f32.gmra.mrb[0].mxu0 1.0
  %v964 = vpop.f32.mrb[0].mxu0
  %v965 = vadd.f32 0.0, %v964
  %v966 = vpop.f32.mrb[0].mxu0
  %v967 = vadd.f32 0.0, %v966
  %968 = vdwg.mxu0
  %v969 = vmul.f32 %v830, 0.00390625
  %v970 = vmul.f32 %v832, 0.00390625
  %v971 = vmul.f32 %v965, 0.00390625
  %v972 = vmul.f32 %v967, 0.00390625
  %v973 = vmul.f32 %v969, %v969
  %v974 = vmul.f32 %v970, %v970
  %v975 = vsub.f32 %v971, %v973
  %v976 = vsub.f32 %v972, %v974
  %v977 = vmax.f32 %v975, 0.0
  %v978 = vmax.f32 %v976, 0.0
  %v979 = vld [vmem:[%s7] sm:$0x3]
  %v980 = vadd.f32 %v977, 1e-05
  %v981 = vadd.f32 %v978, 1e-05
  %v982 = vrsqrt.pop %v980
  %v983 = vrsqrt.pop %v981
  %v986 = vcombine.low %v982, %v983
  %v988 = vunpack.c.l.s4 1966171168
  %v989 = vunpack.c.0.s8 %v988
  %v990 = vlaneseq
  %v991 = vshrl.u32 %v990, 7
  %v992 = vsub.s32 %v989, %v991
  %v993 = vrot.slane %v986, %v992
  %v995 = vunpack.c.l.s4 1966171168
  %v996 = vunpack.c.0.s8 %v995
  %v997 = vlaneseq
  %v998 = vshrl.u32 %v997, 7
  %v999 = vsub.s32 %v996, %v998
  %v1000 = vrot.slane %v993, %v999
  %v1002 = vmul.f32 %v979, %v1000
  %v1003 = vld [vmem:[%s9] sm:$0x3]
  %v1005 = vlaneseq
  %v1006 = vshrl.u32 %v1005, 7
  %v1007 = vsub.s32 0, %v1006
  %v1008 = vrot.slane %v1002, %v1007
  %v1009 = vlaneseq
  %v1010 = vshrl.u32 %v1009, 7
  %v1011 = vsub.s32 1, %v1010
  %v1012 = vrot.slane %v1002, %v1011
  %v1015 = vmul.f32 %v969, %v1008
  %v1016 = vmul.f32 %v970, %v1012
  %v1019 = vcombine.low %v1015, %v1016
  %v1021 = vunpack.c.l.s4 1966171168
  %v1022 = vunpack.c.0.s8 %v1021
  %v1023 = vlaneseq
  %v1024 = vshrl.u32 %v1023, 7
  %v1025 = vsub.s32 %v1022, %v1024
  %v1026 = vrot.slane %v1019, %v1025
  %v1028 = vunpack.c.l.s4 1966171168
  %v1029 = vunpack.c.0.s8 %v1028
  %v1030 = vlaneseq
  %v1031 = vshrl.u32 %v1030, 7
  %v1032 = vsub.s32 %v1029, %v1031
  %v1033 = vrot.slane %v1026, %v1032
  %v1035 = vsub.f32 %v1003, %v1033
  %v1036 = vmul.f32 %v667, %v1008
  %v1037 = vmul.f32 %v668, %v1012
  %v1038 = vmul.f32 %v670, %v1008
  %v1039 = vmul.f32 %v671, %v1012
  %v1040 = vmul.f32 %v673, %v1008
  %v1041 = vmul.f32 %v674, %v1012
  %v1042 = vmul.f32 %v676, %v1008
  %v1043 = vmul.f32 %v677, %v1012
  %v1044 = vmul.f32 %v679, %v1008
  %v1045 = vmul.f32 %v680, %v1012
  %v1046 = vmul.f32 %v682, %v1008
  %v1047 = vmul.f32 %v683, %v1012
  %v1048 = vmul.f32 %v685, %v1008
  %v1049 = vmul.f32 %v686, %v1012
  %v1050 = vmul.f32 %v688, %v1008
  %v1051 = vmul.f32 %v689, %v1012
  %v1052 = vmul.f32 %v691, %v1008
  %v1053 = vmul.f32 %v692, %v1012
  %v1054 = vmul.f32 %v694, %v1008
  %v1055 = vmul.f32 %v695, %v1012
  %v1056 = vmul.f32 %v697, %v1008
  %v1057 = vmul.f32 %v698, %v1012
  %v1058 = vmul.f32 %v700, %v1008
  %v1059 = vmul.f32 %v701, %v1012
  %v1060 = vmul.f32 %v703, %v1008
  %v1061 = vmul.f32 %v704, %v1012
  %v1062 = vmul.f32 %v706, %v1008
  %v1063 = vmul.f32 %v707, %v1012
  %v1064 = vmul.f32 %v709, %v1008
  %v1065 = vmul.f32 %v710, %v1012
  %v1066 = vmul.f32 %v712, %v1008
  %v1067 = vmul.f32 %v713, %v1012
  %v1068 = vmul.f32 %v715, %v1008
  %v1069 = vmul.f32 %v716, %v1012
  %v1070 = vmul.f32 %v718, %v1008
  %v1071 = vmul.f32 %v719, %v1012
  %v1072 = vmul.f32 %v721, %v1008
  %v1073 = vmul.f32 %v722, %v1012
  %v1074 = vmul.f32 %v724, %v1008
  %v1075 = vmul.f32 %v725, %v1012
  %v1076 = vmul.f32 %v727, %v1008
  %v1077 = vmul.f32 %v728, %v1012
  %v1078 = vmul.f32 %v730, %v1008
  %v1079 = vmul.f32 %v731, %v1012
  %v1080 = vmul.f32 %v733, %v1008
  %v1081 = vmul.f32 %v734, %v1012
  %v1082 = vmul.f32 %v736, %v1008
  %v1083 = vmul.f32 %v737, %v1012
  %v1084 = vmul.f32 %v739, %v1008
  %v1085 = vmul.f32 %v740, %v1012
  %v1086 = vmul.f32 %v742, %v1008
  %v1087 = vmul.f32 %v743, %v1012
  %v1088 = vmul.f32 %v745, %v1008
  %v1089 = vmul.f32 %v746, %v1012
  %v1090 = vmul.f32 %v748, %v1008
  %v1091 = vmul.f32 %v749, %v1012
  %v1092 = vmul.f32 %v751, %v1008
  %v1093 = vmul.f32 %v752, %v1012
  %v1094 = vmul.f32 %v754, %v1008
  %v1095 = vmul.f32 %v755, %v1012
  %v1096 = vmul.f32 %v757, %v1008
  %v1097 = vmul.f32 %v758, %v1012
  %v1098 = vmul.f32 %v760, %v1008
  %v1099 = vmul.f32 %v761, %v1012
  %v1101 = vlaneseq
  %v1102 = vshrl.u32 %v1101, 7
  %v1103 = vsub.s32 0, %v1102
  %v1104 = vrot.slane %v1035, %v1103
  %v1105 = vlaneseq
  %v1106 = vshrl.u32 %v1105, 7
  %v1107 = vsub.s32 1, %v1106
  %v1108 = vrot.slane %v1035, %v1107
  %v1111 = vadd.f32 %v1036, %v1104
  %v1112 = vadd.f32 %v1037, %v1108
  %v1113 = vadd.f32 %v1038, %v1104
  %v1114 = vadd.f32 %v1039, %v1108
  %v1115 = vadd.f32 %v1040, %v1104
  %v1116 = vadd.f32 %v1041, %v1108
  %v1117 = vadd.f32 %v1042, %v1104
  %v1118 = vadd.f32 %v1043, %v1108
  %v1119 = vadd.f32 %v1044, %v1104
  %v1120 = vadd.f32 %v1045, %v1108
  %v1121 = vadd.f32 %v1046, %v1104
  %v1122 = vadd.f32 %v1047, %v1108
  %v1123 = vadd.f32 %v1048, %v1104
  %v1124 = vadd.f32 %v1049, %v1108
  %v1125 = vadd.f32 %v1050, %v1104
  %v1126 = vadd.f32 %v1051, %v1108
  %v1127 = vadd.f32 %v1052, %v1104
  %v1128 = vadd.f32 %v1053, %v1108
  %v1129 = vadd.f32 %v1054, %v1104
  %v1130 = vadd.f32 %v1055, %v1108
  %v1131 = vadd.f32 %v1056, %v1104
  %v1132 = vadd.f32 %v1057, %v1108
  %v1133 = vadd.f32 %v1058, %v1104
  %v1134 = vadd.f32 %v1059, %v1108
  %v1135 = vadd.f32 %v1060, %v1104
  %v1136 = vadd.f32 %v1061, %v1108
  %v1137 = vadd.f32 %v1062, %v1104
  %v1138 = vadd.f32 %v1063, %v1108
  %v1139 = vadd.f32 %v1064, %v1104
  %v1140 = vadd.f32 %v1065, %v1108
  %v1141 = vadd.f32 %v1066, %v1104
  %v1142 = vadd.f32 %v1067, %v1108
  %v1143 = vadd.f32 %v1068, %v1104
  %v1144 = vadd.f32 %v1069, %v1108
  %v1145 = vadd.f32 %v1070, %v1104
  %v1146 = vadd.f32 %v1071, %v1108
  %v1147 = vadd.f32 %v1072, %v1104
  %v1148 = vadd.f32 %v1073, %v1108
  %v1149 = vadd.f32 %v1074, %v1104
  %v1150 = vadd.f32 %v1075, %v1108
  %v1151 = vadd.f32 %v1076, %v1104
  %v1152 = vadd.f32 %v1077, %v1108
  %v1153 = vadd.f32 %v1078, %v1104
  %v1154 = vadd.f32 %v1079, %v1108
  %v1155 = vadd.f32 %v1080, %v1104
  %v1156 = vadd.f32 %v1081, %v1108
  %v1157 = vadd.f32 %v1082, %v1104
  %v1158 = vadd.f32 %v1083, %v1108
  %v1159 = vadd.f32 %v1084, %v1104
  %v1160 = vadd.f32 %v1085, %v1108
  %v1161 = vadd.f32 %v1086, %v1104
  %v1162 = vadd.f32 %v1087, %v1108
  %v1163 = vadd.f32 %v1088, %v1104
  %v1164 = vadd.f32 %v1089, %v1108
  %v1165 = vadd.f32 %v1090, %v1104
  %v1166 = vadd.f32 %v1091, %v1108
  %v1167 = vadd.f32 %v1092, %v1104
  %v1168 = vadd.f32 %v1093, %v1108
  %v1169 = vadd.f32 %v1094, %v1104
  %v1170 = vadd.f32 %v1095, %v1108
  %v1171 = vadd.f32 %v1096, %v1104
  %v1172 = vadd.f32 %v1097, %v1108
  %v1173 = vadd.f32 %v1098, %v1104
  %v1174 = vadd.f32 %v1099, %v1108
  %v1175 = vmax.f32 %v1111, 0.0
  %v1176 = vmax.f32 %v1112, 0.0
  %v1177 = vmax.f32 %v1113, 0.0
  %v1178 = vmax.f32 %v1114, 0.0
  %v1179 = vmax.f32 %v1115, 0.0
  %v1180 = vmax.f32 %v1116, 0.0
  %v1181 = vmax.f32 %v1117, 0.0
  %v1182 = vmax.f32 %v1118, 0.0
  %v1183 = vmax.f32 %v1119, 0.0
  %v1184 = vmax.f32 %v1120, 0.0
  %v1185 = vmax.f32 %v1121, 0.0
  %v1186 = vmax.f32 %v1122, 0.0
  %v1187 = vmax.f32 %v1123, 0.0
  %v1188 = vmax.f32 %v1124, 0.0
  %v1189 = vmax.f32 %v1125, 0.0
  %v1190 = vmax.f32 %v1126, 0.0
  %v1191 = vmax.f32 %v1127, 0.0
  %v1192 = vmax.f32 %v1128, 0.0
  %v1193 = vmax.f32 %v1129, 0.0
  %v1194 = vmax.f32 %v1130, 0.0
  %v1195 = vmax.f32 %v1131, 0.0
  %v1196 = vmax.f32 %v1132, 0.0
  %v1197 = vmax.f32 %v1133, 0.0
  %v1198 = vmax.f32 %v1134, 0.0
  %v1199 = vmax.f32 %v1135, 0.0
  %v1200 = vmax.f32 %v1136, 0.0
  %v1201 = vmax.f32 %v1137, 0.0
  %v1202 = vmax.f32 %v1138, 0.0
  %v1203 = vmax.f32 %v1139, 0.0
  %v1204 = vmax.f32 %v1140, 0.0
  %v1205 = vmax.f32 %v1141, 0.0
  %v1206 = vmax.f32 %v1142, 0.0
  %v1207 = vmax.f32 %v1143, 0.0
  %v1208 = vmax.f32 %v1144, 0.0
  %v1209 = vmax.f32 %v1145, 0.0
  %v1210 = vmax.f32 %v1146, 0.0
  %v1211 = vmax.f32 %v1147, 0.0
  %v1212 = vmax.f32 %v1148, 0.0
  %v1213 = vmax.f32 %v1149, 0.0
  %v1214 = vmax.f32 %v1150, 0.0
  %v1215 = vmax.f32 %v1151, 0.0
  %v1216 = vmax.f32 %v1152, 0.0
  %v1217 = vmax.f32 %v1153, 0.0
  %v1218 = vmax.f32 %v1154, 0.0
  %v1219 = vmax.f32 %v1155, 0.0
  %v1220 = vmax.f32 %v1156, 0.0
  %v1221 = vmax.f32 %v1157, 0.0
  %v1222 = vmax.f32 %v1158, 0.0
  %v1223 = vmax.f32 %v1159, 0.0
  %v1224 = vmax.f32 %v1160, 0.0
  %v1225 = vmax.f32 %v1161, 0.0
  %v1226 = vmax.f32 %v1162, 0.0
  %v1227 = vmax.f32 %v1163, 0.0
  %v1228 = vmax.f32 %v1164, 0.0
  %v1229 = vmax.f32 %v1165, 0.0
  %v1230 = vmax.f32 %v1166, 0.0
  %v1231 = vmax.f32 %v1167, 0.0
  %v1232 = vmax.f32 %v1168, 0.0
  %v1233 = vmax.f32 %v1169, 0.0
  %v1234 = vmax.f32 %v1170, 0.0
  %v1235 = vmax.f32 %v1171, 0.0
  %v1236 = vmax.f32 %v1172, 0.0
  %v1237 = vmax.f32 %v1173, 0.0
  %v1238 = vmax.f32 %v1174, 0.0
  %v1239 = vpack.c.bf16 %v1177, %v1175
  %v1240 = vpack.c.bf16 %v1178, %v1176
  %v1241 = vpack.c.bf16 %v1181, %v1179
  %v1242 = vpack.c.bf16 %v1182, %v1180
  %v1243 = vpack.c.bf16 %v1185, %v1183
  %v1244 = vpack.c.bf16 %v1186, %v1184
  %v1245 = vpack.c.bf16 %v1189, %v1187
  %v1246 = vpack.c.bf16 %v1190, %v1188
  %v1247 = vpack.c.bf16 %v1193, %v1191
  %v1248 = vpack.c.bf16 %v1194, %v1192
  %v1249 = vpack.c.bf16 %v1197, %v1195
  %v1250 = vpack.c.bf16 %v1198, %v1196
  %v1251 = vpack.c.bf16 %v1201, %v1199
  %v1252 = vpack.c.bf16 %v1202, %v1200
  %v1253 = vpack.c.bf16 %v1205, %v1203
  %v1254 = vpack.c.bf16 %v1206, %v1204
  %v1255 = vpack.c.bf16 %v1209, %v1207
  %v1256 = vpack.c.bf16 %v1210, %v1208
  %v1257 = vpack.c.bf16 %v1213, %v1211
  %v1258 = vpack.c.bf16 %v1214, %v1212
  %v1259 = vpack.c.bf16 %v1217, %v1215
  %v1260 = vpack.c.bf16 %v1218, %v1216
  %v1261 = vpack.c.bf16 %v1221, %v1219
  %v1262 = vpack.c.bf16 %v1222, %v1220
  %v1263 = vpack.c.bf16 %v1225, %v1223
  %v1264 = vpack.c.bf16 %v1226, %v1224
  %v1265 = vpack.c.bf16 %v1229, %v1227
  %v1266 = vpack.c.bf16 %v1230, %v1228
  %v1267 = vpack.c.bf16 %v1233, %v1231
  %v1268 = vpack.c.bf16 %v1234, %v1232
  %v1269 = vpack.c.bf16 %v1237, %v1235
  %v1270 = vpack.c.bf16 %v1238, %v1236
  %v1271 = vld [vmem:[%s11] sm:$0xff]
  %v1272 = vld [vmem:[%s11 + $0x8] sm:$0xff]
  %v1273 = vld [vmem:[%s11 + $0x10] sm:$0xff]
  %v1274 = vld [vmem:[%s11 + $0x18] sm:$0xff]
  %v1275 = vld [vmem:[%s11 + $0x20] sm:$0xff]
  %v1276 = vld [vmem:[%s11 + $0x28] sm:$0xff]
  %v1277 = vld [vmem:[%s11 + $0x30] sm:$0xff]
  %v1278 = vld [vmem:[%s11 + $0x38] sm:$0xff]
  %v1279 = vld [vmem:[%s11 + $0x40] sm:$0xff]
  %v1280 = vld [vmem:[%s11 + $0x48] sm:$0xff]
  %v1281 = vld [vmem:[%s11 + $0x50] sm:$0xff]
  %v1282 = vld [vmem:[%s11 + $0x58] sm:$0xff]
  %v1283 = vld [vmem:[%s11 + $0x60] sm:$0xff]
  %v1284 = vld [vmem:[%s11 + $0x68] sm:$0xff]
  %v1285 = vld [vmem:[%s11 + $0x70] sm:$0xff]
  %v1286 = vld [vmem:[%s11 + $0x78] sm:$0xff]
  %v1287 = vld [vmem:[%s11 + $0x80] sm:$0xff]
  %v1288 = vld [vmem:[%s11 + $0x88] sm:$0xff]
  %v1289 = vld [vmem:[%s11 + $0x90] sm:$0xff]
  %v1290 = vld [vmem:[%s11 + $0x98] sm:$0xff]
  %v1291 = vld [vmem:[%s11 + $0xa0] sm:$0xff]
  %v1292 = vld [vmem:[%s11 + $0xa8] sm:$0xff]
  %v1293 = vld [vmem:[%s11 + $0xb0] sm:$0xff]
  %v1294 = vld [vmem:[%s11 + $0xb8] sm:$0xff]
  %v1319 = vunpack.c.l.b16 %v1271
  %v1320 = vunpack.c.h.b16 %v1271
  %v1321 = vunpack.c.l.b16 %v1272
  %v1322 = vunpack.c.h.b16 %v1272
  %v1323 = vunpack.c.l.b16 %v1273
  %v1324 = vunpack.c.h.b16 %v1273
  %v1325 = vunpack.c.l.b16 %v1274
  %v1326 = vunpack.c.h.b16 %v1274
  %v1327 = vunpack.c.l.b16 %v1275
  %v1328 = vunpack.c.h.b16 %v1275
  %v1329 = vunpack.c.l.b16 %v1276
  %v1330 = vunpack.c.h.b16 %v1276
  %v1331 = vunpack.c.l.b16 %v1277
  %v1332 = vunpack.c.h.b16 %v1277
  %v1333 = vunpack.c.l.b16 %v1278
  %v1334 = vunpack.c.h.b16 %v1278
  %v1335 = vunpack.c.l.b16 %v1279
  %v1336 = vunpack.c.h.b16 %v1279
  %v1337 = vunpack.c.l.b16 %v1280
  %v1338 = vunpack.c.h.b16 %v1280
  %v1339 = vunpack.c.l.b16 %v1281
  %v1340 = vunpack.c.h.b16 %v1281
  %v1341 = vunpack.c.l.b16 %v1282
  %v1342 = vunpack.c.h.b16 %v1282
  %v1343 = vunpack.c.l.b16 %v1283
  %v1344 = vunpack.c.h.b16 %v1283
  %v1345 = vunpack.c.l.b16 %v1284
  %v1346 = vunpack.c.h.b16 %v1284
  %v1347 = vunpack.c.l.b16 %v1285
  %v1348 = vunpack.c.h.b16 %v1285
  %v1349 = vunpack.c.l.b16 %v1286
  %v1350 = vunpack.c.h.b16 %v1286
  %v1351 = vunpack.c.l.b16 %v1287
  %v1352 = vunpack.c.h.b16 %v1287
  %v1353 = vunpack.c.l.b16 %v1288
  %v1354 = vunpack.c.h.b16 %v1288
  %v1355 = vunpack.c.l.b16 %v1289
  %v1356 = vunpack.c.h.b16 %v1289
  %v1357 = vunpack.c.l.b16 %v1290
  %v1358 = vunpack.c.h.b16 %v1290
  %v1359 = vunpack.c.l.b16 %v1291
  %v1360 = vunpack.c.h.b16 %v1291
  %v1361 = vunpack.c.l.b16 %v1292
  %v1362 = vunpack.c.h.b16 %v1292
  %v1363 = vunpack.c.l.b16 %v1293
  %v1364 = vunpack.c.h.b16 %v1293
  %v1365 = vunpack.c.l.b16 %v1294
  %v1366 = vunpack.c.h.b16 %v1294
  %v1367 = vpack.c.b16 %v1321, %v1319
  %v1368 = vpack.c.b16 %v1322, %v1320
  %v1369 = vpack.c.b16 %v1325, %v1323
  %v1370 = vpack.c.b16 %v1326, %v1324
  %v1371 = vpack.c.b16 %v1329, %v1327
  %v1372 = vpack.c.b16 %v1330, %v1328
  %v1373 = vpack.c.b16 %v1333, %v1331
  %v1374 = vpack.c.b16 %v1334, %v1332
  %v1375 = vpack.c.b16 %v1337, %v1335
  %v1376 = vpack.c.b16 %v1338, %v1336
  %v1377 = vpack.c.b16 %v1341, %v1339
  %v1378 = vpack.c.b16 %v1342, %v1340
  %v1379 = vpack.c.b16 %v1345, %v1343
  %v1380 = vpack.c.b16 %v1346, %v1344
  %v1381 = vpack.c.b16 %v1349, %v1347
  %v1382 = vpack.c.b16 %v1350, %v1348
  %v1383 = vpack.c.b16 %v1353, %v1351
  %v1384 = vpack.c.b16 %v1354, %v1352
  %v1385 = vpack.c.b16 %v1357, %v1355
  %v1386 = vpack.c.b16 %v1358, %v1356
  %v1387 = vpack.c.b16 %v1361, %v1359
  %v1388 = vpack.c.b16 %v1362, %v1360
  %v1389 = vpack.c.b16 %v1365, %v1363
  %v1390 = vpack.c.b16 %v1366, %v1364
  %vm1415 = vcmask 523264
  %v1417 = vsel %vm1415, %v1240, 0
  %v1420 = vsel %vm1415, %v1242, 0
  %v1423 = vsel %vm1415, %v1244, 0
  %v1426 = vsel %vm1415, %v1246, 0
  %v1429 = vsel %vm1415, %v1248, 0
  %v1432 = vsel %vm1415, %v1250, 0
  %v1435 = vsel %vm1415, %v1252, 0
  %v1438 = vsel %vm1415, %v1254, 0
  %v1441 = vsel %vm1415, %v1256, 0
  %v1444 = vsel %vm1415, %v1258, 0
  %v1447 = vsel %vm1415, %v1260, 0
  %v1450 = vsel %vm1415, %v1262, 0
  %v1453 = vsel %vm1415, %v1264, 0
  %v1456 = vsel %vm1415, %v1266, 0
  %v1459 = vsel %vm1415, %v1268, 0
  %v1462 = vsel %vm1415, %v1270, 0
  %1464 = vmatprep.subr.bf16.mxu0 %v1368
  %1465 = vmatpush1.bf16.msra.mxu0 %v1367
  %1466 = vmatprep.subr.bf16.mxu0 %v1370
  %1467 = vmatpush1.bf16.msra.mxu0 %v1369
  %1468 = vmatprep.subr.bf16.mxu0 %v1372
  %1469 = vmatpush1.bf16.msra.mxu0 %v1371
  %1470 = vmatprep.subr.bf16.mxu0 %v1374
  %1471 = vmatpush1.bf16.msra.mxu0 %v1373
  %1472 = vmatprep.subr.bf16.mxu0 %v1376
  %1473 = vmatpush1.bf16.msra.mxu0 %v1375
  %1474 = vmatprep.subr.bf16.mxu0 %v1378
  %1475 = vmatpush1.bf16.msra.mxu0 %v1377
  %1476 = vmatprep.subr.bf16.mxu0 %v1380
  %1477 = vmatpush1.bf16.msra.mxu0 %v1379
  %1478 = vmatprep.subr.bf16.mxu0 %v1382
  %1479 = vmatpush1.bf16.msra.mxu0 %v1381
  %1480 = vmatprep.subr.bf16.mxu0 %v1384
  %1481 = vmatpush1.bf16.msra.mxu0 %v1383
  %1482 = vmatprep.subr.bf16.mxu0 %v1386
  %1483 = vmatpush1.bf16.msra.mxu0 %v1385
  %1484 = vmatprep.subr.bf16.mxu0 %v1388
  %1485 = vmatpush1.bf16.msra.mxu0 %v1387
  %1486 = vmatprep.subr.bf16.mxu0 %v1390
  %1487 = vmatpush1.bf16.msra.mxu0 %v1389
  %1488 = vmatprep.subr.bf16.mxu0 0
  %1489 = vmatpush1.bf16.msra.mxu0 0
  %1490 = vmatprep.subr.bf16.mxu0 0
  %1491 = vmatpush1.bf16.msra.mxu0 0
  %1492 = vmatprep.subr.bf16.mxu0 0
  %1493 = vmatpush1.bf16.msra.mxu0 0
  %1494 = vmatprep.subr.bf16.mxu0 0
  %1495 = vmatpush1.bf16.msra.mxu0 0
  %1496 = vmatprep.mubr.bf16.mxu0 %v1417
  %1497 = vmatmul.mubr.bf16.gmra.mrb[0].mxu0 %v1239
  %v1498 = vpop.f32.mrb[0].mxu0
  %v1499 = vadd.f32 0.0, %v1498
  %v1500 = vpop.f32.mrb[0].mxu0
  %v1501 = vadd.f32 0.0, %v1500
  %v1502 = vpop.f32.mrb[0].mxu0
  %v1503 = vadd.f32 0.0, %v1502
  %v1504 = vpop.f32.mrb[0].mxu0
  %v1505 = vadd.f32 0.0, %v1504
  %1506 = vmatprep.mubr.bf16.mxu0 %v1420
  %1507 = vmatmul.mubr.bf16.gmra.mrb[0].mxu0 %v1241
  %v1508 = vpop.f32.mrb[0].mxu0
  %v1509 = vadd.f32 0.0, %v1508
  %v1510 = vpop.f32.mrb[0].mxu0
  %v1511 = vadd.f32 0.0, %v1510
  %v1512 = vpop.f32.mrb[0].mxu0
  %v1513 = vadd.f32 0.0, %v1512
  %v1514 = vpop.f32.mrb[0].mxu0
  %v1515 = vadd.f32 0.0, %v1514
  %1516 = vmatprep.mubr.bf16.mxu0 %v1423
  %1517 = vmatmul.mubr.bf16.gmra.mrb[0].mxu0 %v1243
  %v1518 = vpop.f32.mrb[0].mxu0
  %v1519 = vadd.f32 0.0, %v1518
  %v1520 = vpop.f32.mrb[0].mxu0
  %v1521 = vadd.f32 0.0, %v1520
  %v1522 = vpop.f32.mrb[0].mxu0
  %v1523 = vadd.f32 0.0, %v1522
  %v1524 = vpop.f32.mrb[0].mxu0
  %v1525 = vadd.f32 0.0, %v1524
  %1526 = vmatprep.mubr.bf16.mxu0 %v1426
  %1527 = vmatmul.mubr.bf16.gmra.mrb[0].mxu0 %v1245
  %v1528 = vpop.f32.mrb[0].mxu0
  %v1529 = vadd.f32 0.0, %v1528
  %v1530 = vpop.f32.mrb[0].mxu0
  %v1531 = vadd.f32 0.0, %v1530
  %v1532 = vpop.f32.mrb[0].mxu0
  %v1533 = vadd.f32 0.0, %v1532
  %v1534 = vpop.f32.mrb[0].mxu0
  %v1535 = vadd.f32 0.0, %v1534
  %1536 = vmatprep.mubr.bf16.mxu0 %v1429
  %1537 = vmatmul.mubr.bf16.gmra.mrb[0].mxu0 %v1247
  %v1538 = vpop.f32.mrb[0].mxu0
  %v1539 = vadd.f32 0.0, %v1538
  %v1540 = vpop.f32.mrb[0].mxu0
  %v1541 = vadd.f32 0.0, %v1540
  %v1542 = vpop.f32.mrb[0].mxu0
  %v1543 = vadd.f32 0.0, %v1542
  %v1544 = vpop.f32.mrb[0].mxu0
  %v1545 = vadd.f32 0.0, %v1544
  %1546 = vmatprep.mubr.bf16.mxu0 %v1432
  %1547 = vmatmul.mubr.bf16.gmra.mrb[0].mxu0 %v1249
  %v1548 = vpop.f32.mrb[0].mxu0
  %v1549 = vadd.f32 0.0, %v1548
  %v1550 = vpop.f32.mrb[0].mxu0
  %v1551 = vadd.f32 0.0, %v1550
  %v1552 = vpop.f32.mrb[0].mxu0
  %v1553 = vadd.f32 0.0, %v1552
  %v1554 = vpop.f32.mrb[0].mxu0
  %v1555 = vadd.f32 0.0, %v1554
  %1556 = vmatprep.mubr.bf16.mxu0 %v1435
  %1557 = vmatmul.mubr.bf16.gmra.mrb[0].mxu0 %v1251
  %v1558 = vpop.f32.mrb[0].mxu0
  %v1559 = vadd.f32 0.0, %v1558
  %v1560 = vpop.f32.mrb[0].mxu0
  %v1561 = vadd.f32 0.0, %v1560
  %v1562 = vpop.f32.mrb[0].mxu0
  %v1563 = vadd.f32 0.0, %v1562
  %v1564 = vpop.f32.mrb[0].mxu0
  %v1565 = vadd.f32 0.0, %v1564
  %1566 = vmatprep.mubr.bf16.mxu0 %v1438
  %1567 = vmatmul.mubr.bf16.gmra.mrb[0].mxu0 %v1253
  %v1568 = vpop.f32.mrb[0].mxu0
  %v1569 = vadd.f32 0.0, %v1568
  %v1570 = vpop.f32.mrb[0].mxu0
  %v1571 = vadd.f32 0.0, %v1570
  %v1572 = vpop.f32.mrb[0].mxu0
  %v1573 = vadd.f32 0.0, %v1572
  %v1574 = vpop.f32.mrb[0].mxu0
  %v1575 = vadd.f32 0.0, %v1574
  %1576 = vmatprep.mubr.bf16.mxu0 %v1441
  %1577 = vmatmul.mubr.bf16.gmra.mrb[0].mxu0 %v1255
  %v1578 = vpop.f32.mrb[0].mxu0
  %v1579 = vadd.f32 0.0, %v1578
  %v1580 = vpop.f32.mrb[0].mxu0
  %v1581 = vadd.f32 0.0, %v1580
  %v1582 = vpop.f32.mrb[0].mxu0
  %v1583 = vadd.f32 0.0, %v1582
  %v1584 = vpop.f32.mrb[0].mxu0
  %v1585 = vadd.f32 0.0, %v1584
  %1586 = vmatprep.mubr.bf16.mxu0 %v1444
  %1587 = vmatmul.mubr.bf16.gmra.mrb[0].mxu0 %v1257
  %v1588 = vpop.f32.mrb[0].mxu0
  %v1589 = vadd.f32 0.0, %v1588
  %v1590 = vpop.f32.mrb[0].mxu0
  %v1591 = vadd.f32 0.0, %v1590
  %v1592 = vpop.f32.mrb[0].mxu0
  %v1593 = vadd.f32 0.0, %v1592
  %v1594 = vpop.f32.mrb[0].mxu0
  %v1595 = vadd.f32 0.0, %v1594
  %1596 = vmatprep.mubr.bf16.mxu0 %v1447
  %1597 = vmatmul.mubr.bf16.gmra.mrb[0].mxu0 %v1259
  %v1598 = vpop.f32.mrb[0].mxu0
  %v1599 = vadd.f32 0.0, %v1598
  %v1600 = vpop.f32.mrb[0].mxu0
  %v1601 = vadd.f32 0.0, %v1600
  %v1602 = vpop.f32.mrb[0].mxu0
  %v1603 = vadd.f32 0.0, %v1602
  %v1604 = vpop.f32.mrb[0].mxu0
  %v1605 = vadd.f32 0.0, %v1604
  %1606 = vmatprep.mubr.bf16.mxu0 %v1450
  %1607 = vmatmul.mubr.bf16.gmra.mrb[0].mxu0 %v1261
  %v1608 = vpop.f32.mrb[0].mxu0
  %v1609 = vadd.f32 0.0, %v1608
  %v1610 = vpop.f32.mrb[0].mxu0
  %v1611 = vadd.f32 0.0, %v1610
  %v1612 = vpop.f32.mrb[0].mxu0
  %v1613 = vadd.f32 0.0, %v1612
  %v1614 = vpop.f32.mrb[0].mxu0
  %v1615 = vadd.f32 0.0, %v1614
  %1616 = vmatprep.mubr.bf16.mxu0 %v1453
  %1617 = vmatmul.mubr.bf16.gmra.mrb[0].mxu0 %v1263
  %v1618 = vpop.f32.mrb[0].mxu0
  %v1619 = vadd.f32 0.0, %v1618
  %v1620 = vpop.f32.mrb[0].mxu0
  %v1621 = vadd.f32 0.0, %v1620
  %v1622 = vpop.f32.mrb[0].mxu0
  %v1623 = vadd.f32 0.0, %v1622
  %v1624 = vpop.f32.mrb[0].mxu0
  %v1625 = vadd.f32 0.0, %v1624
  %1626 = vmatprep.mubr.bf16.mxu0 %v1456
  %1627 = vmatmul.mubr.bf16.gmra.mrb[0].mxu0 %v1265
  %v1628 = vpop.f32.mrb[0].mxu0
  %v1629 = vadd.f32 0.0, %v1628
  %v1630 = vpop.f32.mrb[0].mxu0
  %v1631 = vadd.f32 0.0, %v1630
  %v1632 = vpop.f32.mrb[0].mxu0
  %v1633 = vadd.f32 0.0, %v1632
  %v1634 = vpop.f32.mrb[0].mxu0
  %v1635 = vadd.f32 0.0, %v1634
  %1636 = vmatprep.mubr.bf16.mxu0 %v1459
  %1637 = vmatmul.mubr.bf16.gmra.mrb[0].mxu0 %v1267
  %v1638 = vpop.f32.mrb[0].mxu0
  %v1639 = vadd.f32 0.0, %v1638
  %v1640 = vpop.f32.mrb[0].mxu0
  %v1641 = vadd.f32 0.0, %v1640
  %v1642 = vpop.f32.mrb[0].mxu0
  %v1643 = vadd.f32 0.0, %v1642
  %v1644 = vpop.f32.mrb[0].mxu0
  %v1645 = vadd.f32 0.0, %v1644
  %1646 = vmatprep.mubr.bf16.mxu0 %v1462
  %1647 = vmatmul.mubr.bf16.gmra.mrb[0].mxu0 %v1269
  %v1648 = vpop.f32.mrb[0].mxu0
  %v1649 = vadd.f32 0.0, %v1648
  %v1650 = vpop.f32.mrb[0].mxu0
  %v1651 = vadd.f32 0.0, %v1650
  %v1652 = vpop.f32.mrb[0].mxu0
  %v1653 = vadd.f32 0.0, %v1652
  %v1654 = vpop.f32.mrb[0].mxu0
  %v1655 = vadd.f32 0.0, %v1654
  %1656 = vdwg.mxu0
  %v1657 = vld [vmem:[%s13] sm:$0x3]
  %v1659 = vlaneseq
  %v1660 = vshrl.u32 %v1659, 7
  %v1661 = vsub.s32 0, %v1660
  %v1662 = vrot.slane %v1657, %v1661
  %v1663 = vlaneseq
  %v1664 = vshrl.u32 %v1663, 7
  %v1665 = vsub.s32 1, %v1664
  %v1666 = vrot.slane %v1657, %v1665
  %v1669 = vadd.f32 %v1499, %v1662
  %v1670 = vadd.f32 %v1501, %v1666
  %v1671 = vadd.f32 %v1503, %v1662
  %v1672 = vadd.f32 %v1505, %v1666
  %v1673 = vadd.f32 %v1509, %v1662
  %v1674 = vadd.f32 %v1511, %v1666
  %v1675 = vadd.f32 %v1513, %v1662
  %v1676 = vadd.f32 %v1515, %v1666
  %v1677 = vadd.f32 %v1519, %v1662
  %v1678 = vadd.f32 %v1521, %v1666
  %v1679 = vadd.f32 %v1523, %v1662
  %v1680 = vadd.f32 %v1525, %v1666
  %v1681 = vadd.f32 %v1529, %v1662
  %v1682 = vadd.f32 %v1531, %v1666
  %v1683 = vadd.f32 %v1533, %v1662
  %v1684 = vadd.f32 %v1535, %v1666
  %v1685 = vadd.f32 %v1539, %v1662
  %v1686 = vadd.f32 %v1541, %v1666
  %v1687 = vadd.f32 %v1543, %v1662
  %v1688 = vadd.f32 %v1545, %v1666
  %v1689 = vadd.f32 %v1549, %v1662
  %v1690 = vadd.f32 %v1551, %v1666
  %v1691 = vadd.f32 %v1553, %v1662
  %v1692 = vadd.f32 %v1555, %v1666
  %v1693 = vadd.f32 %v1559, %v1662
  %v1694 = vadd.f32 %v1561, %v1666
  %v1695 = vadd.f32 %v1563, %v1662
  %v1696 = vadd.f32 %v1565, %v1666
  %v1697 = vadd.f32 %v1569, %v1662
  %v1698 = vadd.f32 %v1571, %v1666
  %v1699 = vadd.f32 %v1573, %v1662
  %v1700 = vadd.f32 %v1575, %v1666
  %v1701 = vadd.f32 %v1579, %v1662
  %v1702 = vadd.f32 %v1581, %v1666
  %v1703 = vadd.f32 %v1583, %v1662
  %v1704 = vadd.f32 %v1585, %v1666
  %v1705 = vadd.f32 %v1589, %v1662
  %v1706 = vadd.f32 %v1591, %v1666
  %v1707 = vadd.f32 %v1593, %v1662
  %v1708 = vadd.f32 %v1595, %v1666
  %v1709 = vadd.f32 %v1599, %v1662
  %v1710 = vadd.f32 %v1601, %v1666
  %v1711 = vadd.f32 %v1603, %v1662
  %v1712 = vadd.f32 %v1605, %v1666
  %v1713 = vadd.f32 %v1609, %v1662
  %v1714 = vadd.f32 %v1611, %v1666
  %v1715 = vadd.f32 %v1613, %v1662
  %v1716 = vadd.f32 %v1615, %v1666
  %v1717 = vadd.f32 %v1619, %v1662
  %v1718 = vadd.f32 %v1621, %v1666
  %v1719 = vadd.f32 %v1623, %v1662
  %v1720 = vadd.f32 %v1625, %v1666
  %v1721 = vadd.f32 %v1629, %v1662
  %v1722 = vadd.f32 %v1631, %v1666
  %v1723 = vadd.f32 %v1633, %v1662
  %v1724 = vadd.f32 %v1635, %v1666
  %v1725 = vadd.f32 %v1639, %v1662
  %v1726 = vadd.f32 %v1641, %v1666
  %v1727 = vadd.f32 %v1643, %v1662
  %v1728 = vadd.f32 %v1645, %v1666
  %v1729 = vadd.f32 %v1649, %v1662
  %v1730 = vadd.f32 %v1651, %v1666
  %v1731 = vadd.f32 %v1653, %v1662
  %v1732 = vadd.f32 %v1655, %v1666
  %1733 = vmatprep.subr.mxu0 %v1670
  %1734 = vmatpush1.msra.mxu0 %v1669
  %1735 = vmatprep.subr.mxu0 %v1672
  %1736 = vmatpush1.msra.mxu0 %v1671
  %1737 = vmatprep.subr.mxu0 %v1674
  %1738 = vmatpush1.msra.mxu0 %v1673
  %1739 = vmatprep.subr.mxu0 %v1676
  %1740 = vmatpush1.msra.mxu0 %v1675
  %1741 = vmatprep.subr.mxu0 %v1678
  %1742 = vmatpush1.msra.mxu0 %v1677
  %1743 = vmatprep.subr.mxu0 %v1680
  %1744 = vmatpush1.msra.mxu0 %v1679
  %1745 = vmatprep.subr.mxu0 %v1682
  %1746 = vmatpush1.msra.mxu0 %v1681
  %1747 = vmatprep.subr.mxu0 %v1684
  %1748 = vmatpush1.msra.mxu0 %v1683
  %1749 = vmatprep.subr.mxu0 %v1686
  %1750 = vmatpush1.msra.mxu0 %v1685
  %1751 = vmatprep.subr.mxu0 %v1688
  %1752 = vmatpush1.msra.mxu0 %v1687
  %1753 = vmatprep.subr.mxu0 %v1690
  %1754 = vmatpush1.msra.mxu0 %v1689
  %1755 = vmatprep.subr.mxu0 %v1692
  %1756 = vmatpush1.msra.mxu0 %v1691
  %1757 = vmatprep.subr.mxu0 %v1694
  %1758 = vmatpush1.msra.mxu0 %v1693
  %1759 = vmatprep.subr.mxu0 %v1696
  %1760 = vmatpush1.msra.mxu0 %v1695
  %1761 = vmatprep.subr.mxu0 %v1698
  %1762 = vmatpush1.msra.mxu0 %v1697
  %1763 = vmatprep.subr.mxu0 %v1700
  %1764 = vmatpush1.msra.mxu0 %v1699
  %1765 = vmatprep.subr.mxu0 %v1702
  %1766 = vmatpush1.msra.mxu0 %v1701
  %1767 = vmatprep.subr.mxu0 %v1704
  %1768 = vmatpush1.msra.mxu0 %v1703
  %1769 = vmatprep.subr.mxu0 %v1706
  %1770 = vmatpush1.msra.mxu0 %v1705
  %1771 = vmatprep.subr.mxu0 %v1708
  %1772 = vmatpush1.msra.mxu0 %v1707
  %1773 = vmatprep.subr.mxu0 %v1710
  %1774 = vmatpush1.msra.mxu0 %v1709
  %1775 = vmatprep.subr.mxu0 %v1712
  %1776 = vmatpush1.msra.mxu0 %v1711
  %1777 = vmatprep.subr.mxu0 %v1714
  %1778 = vmatpush1.msra.mxu0 %v1713
  %1779 = vmatprep.subr.mxu0 %v1716
  %1780 = vmatpush1.msra.mxu0 %v1715
  %1781 = vmatprep.subr.mxu0 %v1718
  %1782 = vmatpush1.msra.mxu0 %v1717
  %1783 = vmatprep.subr.mxu0 %v1720
  %1784 = vmatpush1.msra.mxu0 %v1719
  %1785 = vmatprep.subr.mxu0 %v1722
  %1786 = vmatpush1.msra.mxu0 %v1721
  %1787 = vmatprep.subr.mxu0 %v1724
  %1788 = vmatpush1.msra.mxu0 %v1723
  %1789 = vmatprep.subr.mxu0 %v1726
  %1790 = vmatpush1.msra.mxu0 %v1725
  %1791 = vmatprep.subr.mxu0 %v1728
  %1792 = vmatpush1.msra.mxu0 %v1727
  %1793 = vmatprep.subr.mxu0 %v1730
  %1794 = vmatpush1.msra.mxu0 %v1729
  %1795 = vmatprep.subr.mxu0 %v1732
  %1796 = vmatpush1.msra.mxu0 %v1731
  %1797 = vmatprep.mubr.f32.mxu0 1.0
  %1798 = vmatmul.mubr.f32.gmra.mrb[0].mxu0 1.0
  %v1799 = vpop.f32.mrb[0].mxu0
  %v1800 = vadd.f32 0.0, %v1799
  %v1801 = vpop.f32.mrb[0].mxu0
  %v1802 = vadd.f32 0.0, %v1801
  %1803 = vdwg.mxu0
  %v1804 = vmul.f32 %v1669, %v1669
  %v1805 = vmul.f32 %v1670, %v1670
  %v1806 = vmul.f32 %v1671, %v1671
  %v1807 = vmul.f32 %v1672, %v1672
  %v1808 = vmul.f32 %v1673, %v1673
  %v1809 = vmul.f32 %v1674, %v1674
  %v1810 = vmul.f32 %v1675, %v1675
  %v1811 = vmul.f32 %v1676, %v1676
  %v1812 = vmul.f32 %v1677, %v1677
  %v1813 = vmul.f32 %v1678, %v1678
  %v1814 = vmul.f32 %v1679, %v1679
  %v1815 = vmul.f32 %v1680, %v1680
  %v1816 = vmul.f32 %v1681, %v1681
  %v1817 = vmul.f32 %v1682, %v1682
  %v1818 = vmul.f32 %v1683, %v1683
  %v1819 = vmul.f32 %v1684, %v1684
  %v1820 = vmul.f32 %v1685, %v1685
  %v1821 = vmul.f32 %v1686, %v1686
  %v1822 = vmul.f32 %v1687, %v1687
  %v1823 = vmul.f32 %v1688, %v1688
  %v1824 = vmul.f32 %v1689, %v1689
  %v1825 = vmul.f32 %v1690, %v1690
  %v1826 = vmul.f32 %v1691, %v1691
  %v1827 = vmul.f32 %v1692, %v1692
  %v1828 = vmul.f32 %v1693, %v1693
  %v1829 = vmul.f32 %v1694, %v1694
  %v1830 = vmul.f32 %v1695, %v1695
  %v1831 = vmul.f32 %v1696, %v1696
  %v1832 = vmul.f32 %v1697, %v1697
  %v1833 = vmul.f32 %v1698, %v1698
  %v1834 = vmul.f32 %v1699, %v1699
  %v1835 = vmul.f32 %v1700, %v1700
  %v1836 = vmul.f32 %v1701, %v1701
  %v1837 = vmul.f32 %v1702, %v1702
  %v1838 = vmul.f32 %v1703, %v1703
  %v1839 = vmul.f32 %v1704, %v1704
  %v1840 = vmul.f32 %v1705, %v1705
  %v1841 = vmul.f32 %v1706, %v1706
  %v1842 = vmul.f32 %v1707, %v1707
  %v1843 = vmul.f32 %v1708, %v1708
  %v1844 = vmul.f32 %v1709, %v1709
  %v1845 = vmul.f32 %v1710, %v1710
  %v1846 = vmul.f32 %v1711, %v1711
  %v1847 = vmul.f32 %v1712, %v1712
  %v1848 = vmul.f32 %v1713, %v1713
  %v1849 = vmul.f32 %v1714, %v1714
  %v1850 = vmul.f32 %v1715, %v1715
  %v1851 = vmul.f32 %v1716, %v1716
  %v1852 = vmul.f32 %v1717, %v1717
  %v1853 = vmul.f32 %v1718, %v1718
  %v1854 = vmul.f32 %v1719, %v1719
  %v1855 = vmul.f32 %v1720, %v1720
  %v1856 = vmul.f32 %v1721, %v1721
  %v1857 = vmul.f32 %v1722, %v1722
  %v1858 = vmul.f32 %v1723, %v1723
  %v1859 = vmul.f32 %v1724, %v1724
  %v1860 = vmul.f32 %v1725, %v1725
  %v1861 = vmul.f32 %v1726, %v1726
  %v1862 = vmul.f32 %v1727, %v1727
  %v1863 = vmul.f32 %v1728, %v1728
  %v1864 = vmul.f32 %v1729, %v1729
  %v1865 = vmul.f32 %v1730, %v1730
  %v1866 = vmul.f32 %v1731, %v1731
  %v1867 = vmul.f32 %v1732, %v1732
  %1868 = vmatprep.subr.mxu0 %v1805
  %1869 = vmatpush1.msra.mxu0 %v1804
  %1870 = vmatprep.subr.mxu0 %v1807
  %1871 = vmatpush1.msra.mxu0 %v1806
  %1872 = vmatprep.subr.mxu0 %v1809
  %1873 = vmatpush1.msra.mxu0 %v1808
  %1874 = vmatprep.subr.mxu0 %v1811
  %1875 = vmatpush1.msra.mxu0 %v1810
  %1876 = vmatprep.subr.mxu0 %v1813
  %1877 = vmatpush1.msra.mxu0 %v1812
  %1878 = vmatprep.subr.mxu0 %v1815
  %1879 = vmatpush1.msra.mxu0 %v1814
  %1880 = vmatprep.subr.mxu0 %v1817
  %1881 = vmatpush1.msra.mxu0 %v1816
  %1882 = vmatprep.subr.mxu0 %v1819
  %1883 = vmatpush1.msra.mxu0 %v1818
  %1884 = vmatprep.subr.mxu0 %v1821
  %1885 = vmatpush1.msra.mxu0 %v1820
  %1886 = vmatprep.subr.mxu0 %v1823
  %1887 = vmatpush1.msra.mxu0 %v1822
  %1888 = vmatprep.subr.mxu0 %v1825
  %1889 = vmatpush1.msra.mxu0 %v1824
  %1890 = vmatprep.subr.mxu0 %v1827
  %1891 = vmatpush1.msra.mxu0 %v1826
  %1892 = vmatprep.subr.mxu0 %v1829
  %1893 = vmatpush1.msra.mxu0 %v1828
  %1894 = vmatprep.subr.mxu0 %v1831
  %1895 = vmatpush1.msra.mxu0 %v1830
  %1896 = vmatprep.subr.mxu0 %v1833
  %1897 = vmatpush1.msra.mxu0 %v1832
  %1898 = vmatprep.subr.mxu0 %v1835
  %1899 = vmatpush1.msra.mxu0 %v1834
  %1900 = vmatprep.subr.mxu0 %v1837
  %1901 = vmatpush1.msra.mxu0 %v1836
  %1902 = vmatprep.subr.mxu0 %v1839
  %1903 = vmatpush1.msra.mxu0 %v1838
  %1904 = vmatprep.subr.mxu0 %v1841
  %1905 = vmatpush1.msra.mxu0 %v1840
  %1906 = vmatprep.subr.mxu0 %v1843
  %1907 = vmatpush1.msra.mxu0 %v1842
  %1908 = vmatprep.subr.mxu0 %v1845
  %1909 = vmatpush1.msra.mxu0 %v1844
  %1910 = vmatprep.subr.mxu0 %v1847
  %1911 = vmatpush1.msra.mxu0 %v1846
  %1912 = vmatprep.subr.mxu0 %v1849
  %1913 = vmatpush1.msra.mxu0 %v1848
  %1914 = vmatprep.subr.mxu0 %v1851
  %1915 = vmatpush1.msra.mxu0 %v1850
  %1916 = vmatprep.subr.mxu0 %v1853
  %1917 = vmatpush1.msra.mxu0 %v1852
  %1918 = vmatprep.subr.mxu0 %v1855
  %1919 = vmatpush1.msra.mxu0 %v1854
  %1920 = vmatprep.subr.mxu0 %v1857
  %1921 = vmatpush1.msra.mxu0 %v1856
  %1922 = vmatprep.subr.mxu0 %v1859
  %1923 = vmatpush1.msra.mxu0 %v1858
  %1924 = vmatprep.subr.mxu0 %v1861
  %1925 = vmatpush1.msra.mxu0 %v1860
  %1926 = vmatprep.subr.mxu0 %v1863
  %1927 = vmatpush1.msra.mxu0 %v1862
  %1928 = vmatprep.subr.mxu0 %v1865
  %1929 = vmatpush1.msra.mxu0 %v1864
  %1930 = vmatprep.subr.mxu0 %v1867
  %1931 = vmatpush1.msra.mxu0 %v1866
  %1932 = vmatprep.mubr.f32.mxu0 1.0
  %1933 = vmatmul.mubr.f32.gmra.mrb[0].mxu0 1.0
  %v1934 = vpop.f32.mrb[0].mxu0
  %v1935 = vadd.f32 0.0, %v1934
  %v1936 = vpop.f32.mrb[0].mxu0
  %v1937 = vadd.f32 0.0, %v1936
  %1938 = vdwg.mxu0
  %v1939 = vmul.f32 %v1800, 0.00390625
  %v1940 = vmul.f32 %v1802, 0.00390625
  %v1941 = vmul.f32 %v1935, 0.00390625
  %v1942 = vmul.f32 %v1937, 0.00390625
  %v1943 = vmul.f32 %v1939, %v1939
  %v1944 = vmul.f32 %v1940, %v1940
  %v1945 = vsub.f32 %v1941, %v1943
  %v1946 = vsub.f32 %v1942, %v1944
  %v1947 = vmax.f32 %v1945, 0.0
  %v1948 = vmax.f32 %v1946, 0.0
  %v1949 = vld [vmem:[%s15] sm:$0x3]
  %v1950 = vadd.f32 %v1947, 1e-05
  %v1951 = vadd.f32 %v1948, 1e-05
  %v1952 = vrsqrt.pop %v1950
  %v1953 = vrsqrt.pop %v1951
  %v1956 = vcombine.low %v1952, %v1953
  %v1958 = vunpack.c.l.s4 1966171168
  %v1959 = vunpack.c.0.s8 %v1958
  %v1960 = vlaneseq
  %v1961 = vshrl.u32 %v1960, 7
  %v1962 = vsub.s32 %v1959, %v1961
  %v1963 = vrot.slane %v1956, %v1962
  %v1965 = vunpack.c.l.s4 1966171168
  %v1966 = vunpack.c.0.s8 %v1965
  %v1967 = vlaneseq
  %v1968 = vshrl.u32 %v1967, 7
  %v1969 = vsub.s32 %v1966, %v1968
  %v1970 = vrot.slane %v1963, %v1969
  %v1972 = vmul.f32 %v1949, %v1970
  %v1973 = vld [vmem:[%s17] sm:$0x3]
  %v1975 = vlaneseq
  %v1976 = vshrl.u32 %v1975, 7
  %v1977 = vsub.s32 0, %v1976
  %v1978 = vrot.slane %v1972, %v1977
  %v1979 = vlaneseq
  %v1980 = vshrl.u32 %v1979, 7
  %v1981 = vsub.s32 1, %v1980
  %v1982 = vrot.slane %v1972, %v1981
  %v1985 = vmul.f32 %v1939, %v1978
  %v1986 = vmul.f32 %v1940, %v1982
  %v1989 = vcombine.low %v1985, %v1986
  %v1991 = vunpack.c.l.s4 1966171168
  %v1992 = vunpack.c.0.s8 %v1991
  %v1993 = vlaneseq
  %v1994 = vshrl.u32 %v1993, 7
  %v1995 = vsub.s32 %v1992, %v1994
  %v1996 = vrot.slane %v1989, %v1995
  %v1998 = vunpack.c.l.s4 1966171168
  %v1999 = vunpack.c.0.s8 %v1998
  %v2000 = vlaneseq
  %v2001 = vshrl.u32 %v2000, 7
  %v2002 = vsub.s32 %v1999, %v2001
  %v2003 = vrot.slane %v1996, %v2002
  %v2005 = vsub.f32 %v1973, %v2003
  %v2006 = vmul.f32 %v1669, %v1978
  %v2007 = vmul.f32 %v1670, %v1982
  %v2008 = vmul.f32 %v1671, %v1978
  %v2009 = vmul.f32 %v1672, %v1982
  %v2010 = vmul.f32 %v1673, %v1978
  %v2011 = vmul.f32 %v1674, %v1982
  %v2012 = vmul.f32 %v1675, %v1978
  %v2013 = vmul.f32 %v1676, %v1982
  %v2014 = vmul.f32 %v1677, %v1978
  %v2015 = vmul.f32 %v1678, %v1982
  %v2016 = vmul.f32 %v1679, %v1978
  %v2017 = vmul.f32 %v1680, %v1982
  %v2018 = vmul.f32 %v1681, %v1978
  %v2019 = vmul.f32 %v1682, %v1982
  %v2020 = vmul.f32 %v1683, %v1978
  %v2021 = vmul.f32 %v1684, %v1982
  %v2022 = vmul.f32 %v1685, %v1978
  %v2023 = vmul.f32 %v1686, %v1982
  %v2024 = vmul.f32 %v1687, %v1978
  %v2025 = vmul.f32 %v1688, %v1982
  %v2026 = vmul.f32 %v1689, %v1978
  %v2027 = vmul.f32 %v1690, %v1982
  %v2028 = vmul.f32 %v1691, %v1978
  %v2029 = vmul.f32 %v1692, %v1982
  %v2030 = vmul.f32 %v1693, %v1978
  %v2031 = vmul.f32 %v1694, %v1982
  %v2032 = vmul.f32 %v1695, %v1978
  %v2033 = vmul.f32 %v1696, %v1982
  %v2034 = vmul.f32 %v1697, %v1978
  %v2035 = vmul.f32 %v1698, %v1982
  %v2036 = vmul.f32 %v1699, %v1978
  %v2037 = vmul.f32 %v1700, %v1982
  %v2038 = vmul.f32 %v1701, %v1978
  %v2039 = vmul.f32 %v1702, %v1982
  %v2040 = vmul.f32 %v1703, %v1978
  %v2041 = vmul.f32 %v1704, %v1982
  %v2042 = vmul.f32 %v1705, %v1978
  %v2043 = vmul.f32 %v1706, %v1982
  %v2044 = vmul.f32 %v1707, %v1978
  %v2045 = vmul.f32 %v1708, %v1982
  %v2046 = vmul.f32 %v1709, %v1978
  %v2047 = vmul.f32 %v1710, %v1982
  %v2048 = vmul.f32 %v1711, %v1978
  %v2049 = vmul.f32 %v1712, %v1982
  %v2050 = vmul.f32 %v1713, %v1978
  %v2051 = vmul.f32 %v1714, %v1982
  %v2052 = vmul.f32 %v1715, %v1978
  %v2053 = vmul.f32 %v1716, %v1982
  %v2054 = vmul.f32 %v1717, %v1978
  %v2055 = vmul.f32 %v1718, %v1982
  %v2056 = vmul.f32 %v1719, %v1978
  %v2057 = vmul.f32 %v1720, %v1982
  %v2058 = vmul.f32 %v1721, %v1978
  %v2059 = vmul.f32 %v1722, %v1982
  %v2060 = vmul.f32 %v1723, %v1978
  %v2061 = vmul.f32 %v1724, %v1982
  %v2062 = vmul.f32 %v1725, %v1978
  %v2063 = vmul.f32 %v1726, %v1982
  %v2064 = vmul.f32 %v1727, %v1978
  %v2065 = vmul.f32 %v1728, %v1982
  %v2066 = vmul.f32 %v1729, %v1978
  %v2067 = vmul.f32 %v1730, %v1982
  %v2068 = vmul.f32 %v1731, %v1978
  %v2069 = vmul.f32 %v1732, %v1982
  %v2071 = vlaneseq
  %v2072 = vshrl.u32 %v2071, 7
  %v2073 = vsub.s32 0, %v2072
  %v2074 = vrot.slane %v2005, %v2073
  %v2075 = vlaneseq
  %v2076 = vshrl.u32 %v2075, 7
  %v2077 = vsub.s32 1, %v2076
  %v2078 = vrot.slane %v2005, %v2077
  %v2081 = vadd.f32 %v2006, %v2074
  %v2082 = vadd.f32 %v2007, %v2078
  %v2083 = vadd.f32 %v2008, %v2074
  %v2084 = vadd.f32 %v2009, %v2078
  %v2085 = vadd.f32 %v2010, %v2074
  %v2086 = vadd.f32 %v2011, %v2078
  %v2087 = vadd.f32 %v2012, %v2074
  %v2088 = vadd.f32 %v2013, %v2078
  %v2089 = vadd.f32 %v2014, %v2074
  %v2090 = vadd.f32 %v2015, %v2078
  %v2091 = vadd.f32 %v2016, %v2074
  %v2092 = vadd.f32 %v2017, %v2078
  %v2093 = vadd.f32 %v2018, %v2074
  %v2094 = vadd.f32 %v2019, %v2078
  %v2095 = vadd.f32 %v2020, %v2074
  %v2096 = vadd.f32 %v2021, %v2078
  %v2097 = vadd.f32 %v2022, %v2074
  %v2098 = vadd.f32 %v2023, %v2078
  %v2099 = vadd.f32 %v2024, %v2074
  %v2100 = vadd.f32 %v2025, %v2078
  %v2101 = vadd.f32 %v2026, %v2074
  %v2102 = vadd.f32 %v2027, %v2078
  %v2103 = vadd.f32 %v2028, %v2074
  %v2104 = vadd.f32 %v2029, %v2078
  %v2105 = vadd.f32 %v2030, %v2074
  %v2106 = vadd.f32 %v2031, %v2078
  %v2107 = vadd.f32 %v2032, %v2074
  %v2108 = vadd.f32 %v2033, %v2078
  %v2109 = vadd.f32 %v2034, %v2074
  %v2110 = vadd.f32 %v2035, %v2078
  %v2111 = vadd.f32 %v2036, %v2074
  %v2112 = vadd.f32 %v2037, %v2078
  %v2113 = vadd.f32 %v2038, %v2074
  %v2114 = vadd.f32 %v2039, %v2078
  %v2115 = vadd.f32 %v2040, %v2074
  %v2116 = vadd.f32 %v2041, %v2078
  %v2117 = vadd.f32 %v2042, %v2074
  %v2118 = vadd.f32 %v2043, %v2078
  %v2119 = vadd.f32 %v2044, %v2074
  %v2120 = vadd.f32 %v2045, %v2078
  %v2121 = vadd.f32 %v2046, %v2074
  %v2122 = vadd.f32 %v2047, %v2078
  %v2123 = vadd.f32 %v2048, %v2074
  %v2124 = vadd.f32 %v2049, %v2078
  %v2125 = vadd.f32 %v2050, %v2074
  %v2126 = vadd.f32 %v2051, %v2078
  %v2127 = vadd.f32 %v2052, %v2074
  %v2128 = vadd.f32 %v2053, %v2078
  %v2129 = vadd.f32 %v2054, %v2074
  %v2130 = vadd.f32 %v2055, %v2078
  %v2131 = vadd.f32 %v2056, %v2074
  %v2132 = vadd.f32 %v2057, %v2078
  %v2133 = vadd.f32 %v2058, %v2074
  %v2134 = vadd.f32 %v2059, %v2078
  %v2135 = vadd.f32 %v2060, %v2074
  %v2136 = vadd.f32 %v2061, %v2078
  %v2137 = vadd.f32 %v2062, %v2074
  %v2138 = vadd.f32 %v2063, %v2078
  %v2139 = vadd.f32 %v2064, %v2074
  %v2140 = vadd.f32 %v2065, %v2078
  %v2141 = vadd.f32 %v2066, %v2074
  %v2142 = vadd.f32 %v2067, %v2078
  %v2143 = vadd.f32 %v2068, %v2074
  %v2144 = vadd.f32 %v2069, %v2078
  %v2145 = vadd.f32 %v2081, %v2083
  %v2146 = vadd.f32 %v2145, %v2085
  %v2147 = vadd.f32 %v2146, %v2087
  %v2148 = vadd.f32 %v2147, %v2089
  %v2149 = vadd.f32 %v2148, %v2091
  %v2150 = vadd.f32 %v2149, %v2093
  %v2151 = vadd.f32 %v2150, %v2095
  %v2152 = vadd.f32 %v2151, %v2097
  %v2153 = vadd.f32 %v2152, %v2099
  %v2154 = vadd.f32 %v2153, %v2101
  %v2155 = vadd.f32 %v2154, %v2103
  %v2156 = vadd.f32 %v2155, %v2105
  %v2157 = vadd.f32 %v2156, %v2107
  %v2158 = vadd.f32 %v2157, %v2109
  %v2159 = vadd.f32 %v2158, %v2111
  %v2160 = vrot.slane %v2159, 4
  %v2161 = vadd.f32 %v2159, %v2160
  %v2162 = vrot.slane %v2161, 2
  %v2163 = vadd.f32 %v2161, %v2162
  %v2164 = vrot.slane %v2163, 1
  %v2165 = vadd.f32 %v2163, %v2164
  %v2166 = vsel %vm1415, %v2082, 0.0
  %v2167 = vsel %vm1415, %v2084, 0.0
  %v2168 = vadd.f32 %v2166, %v2167
  %v2169 = vsel %vm1415, %v2086, 0.0
  %v2170 = vadd.f32 %v2168, %v2169
  %v2171 = vsel %vm1415, %v2088, 0.0
  %v2172 = vadd.f32 %v2170, %v2171
  %v2173 = vsel %vm1415, %v2090, 0.0
  %v2174 = vadd.f32 %v2172, %v2173
  %v2175 = vsel %vm1415, %v2092, 0.0
  %v2176 = vadd.f32 %v2174, %v2175
  %v2177 = vsel %vm1415, %v2094, 0.0
  %v2178 = vadd.f32 %v2176, %v2177
  %v2179 = vsel %vm1415, %v2096, 0.0
  %v2180 = vadd.f32 %v2178, %v2179
  %v2181 = vsel %vm1415, %v2098, 0.0
  %v2182 = vadd.f32 %v2180, %v2181
  %v2183 = vsel %vm1415, %v2100, 0.0
  %v2184 = vadd.f32 %v2182, %v2183
  %v2185 = vsel %vm1415, %v2102, 0.0
  %v2186 = vadd.f32 %v2184, %v2185
  %v2187 = vsel %vm1415, %v2104, 0.0
  %v2188 = vadd.f32 %v2186, %v2187
  %v2189 = vsel %vm1415, %v2106, 0.0
  %v2190 = vadd.f32 %v2188, %v2189
  %v2191 = vsel %vm1415, %v2108, 0.0
  %v2192 = vadd.f32 %v2190, %v2191
  %v2193 = vsel %vm1415, %v2110, 0.0
  %v2194 = vadd.f32 %v2192, %v2193
  %v2195 = vsel %vm1415, %v2112, 0.0
  %v2196 = vadd.f32 %v2194, %v2195
  %v2197 = vrot.slane %v2196, 4
  %v2198 = vadd.f32 %v2196, %v2197
  %v2199 = vrot.slane %v2198, 2
  %v2200 = vadd.f32 %v2198, %v2199
  %v2201 = vrot.slane %v2200, 1
  %v2202 = vadd.f32 %v2200, %v2201
  %v2203 = vadd.f32 %v2113, %v2115
  %v2204 = vadd.f32 %v2203, %v2117
  %v2205 = vadd.f32 %v2204, %v2119
  %v2206 = vadd.f32 %v2205, %v2121
  %v2207 = vadd.f32 %v2206, %v2123
  %v2208 = vadd.f32 %v2207, %v2125
  %v2209 = vadd.f32 %v2208, %v2127
  %v2210 = vadd.f32 %v2209, %v2129
  %v2211 = vadd.f32 %v2210, %v2131
  %v2212 = vadd.f32 %v2211, %v2133
  %v2213 = vadd.f32 %v2212, %v2135
  %v2214 = vadd.f32 %v2213, %v2137
  %v2215 = vadd.f32 %v2214, %v2139
  %v2216 = vadd.f32 %v2215, %v2141
  %v2217 = vadd.f32 %v2216, %v2143
  %v2218 = vrot.slane %v2217, 4
  %v2219 = vadd.f32 %v2217, %v2218
  %v2220 = vrot.slane %v2219, 2
  %v2221 = vadd.f32 %v2219, %v2220
  %v2222 = vrot.slane %v2221, 1
  %v2223 = vadd.f32 %v2221, %v2222
  %v2224 = vsel %vm1415, %v2114, 0.0
  %v2225 = vsel %vm1415, %v2116, 0.0
  %v2226 = vadd.f32 %v2224, %v2225
  %v2227 = vsel %vm1415, %v2118, 0.0
  %v2228 = vadd.f32 %v2226, %v2227
  %v2229 = vsel %vm1415, %v2120, 0.0
  %v2230 = vadd.f32 %v2228, %v2229
  %v2231 = vsel %vm1415, %v2122, 0.0
  %v2232 = vadd.f32 %v2230, %v2231
  %v2233 = vsel %vm1415, %v2124, 0.0
  %v2234 = vadd.f32 %v2232, %v2233
  %v2235 = vsel %vm1415, %v2126, 0.0
  %v2236 = vadd.f32 %v2234, %v2235
  %v2237 = vsel %vm1415, %v2128, 0.0
  %v2238 = vadd.f32 %v2236, %v2237
  %v2239 = vsel %vm1415, %v2130, 0.0
  %v2240 = vadd.f32 %v2238, %v2239
  %v2241 = vsel %vm1415, %v2132, 0.0
  %v2242 = vadd.f32 %v2240, %v2241
  %v2243 = vsel %vm1415, %v2134, 0.0
  %v2244 = vadd.f32 %v2242, %v2243
  %v2245 = vsel %vm1415, %v2136, 0.0
  %v2246 = vadd.f32 %v2244, %v2245
  %v2247 = vsel %vm1415, %v2138, 0.0
  %v2248 = vadd.f32 %v2246, %v2247
  %v2249 = vsel %vm1415, %v2140, 0.0
  %v2250 = vadd.f32 %v2248, %v2249
  %v2251 = vsel %vm1415, %v2142, 0.0
  %v2252 = vadd.f32 %v2250, %v2251
  %v2253 = vsel %vm1415, %v2144, 0.0
  %v2254 = vadd.f32 %v2252, %v2253
  %v2255 = vrot.slane %v2254, 4
  %v2256 = vadd.f32 %v2254, %v2255
  %v2257 = vrot.slane %v2256, 2
  %v2258 = vadd.f32 %v2256, %v2257
  %v2259 = vrot.slane %v2258, 1
  %v2260 = vadd.f32 %v2258, %v2259
  %v2261 = vrcp.pop 128.0
  %v2262 = vmul.f32 %v2165, %v2261
  %v2263 = vmul.f32 %v2202, %v2261
  %v2264 = vmul.f32 %v2223, %v2261
  %v2265 = vmul.f32 %v2260, %v2261
  %v2266 = vpack.c.bf16 %v2262, %v2262
  %v2267 = vpack.c.bf16 %v2263, %v2263
  %v2268 = vpack.c.bf16 %v2264, %v2264
  %v2269 = vpack.c.bf16 %v2265, %v2265
  %v2270 = vld [vmem:[%s19] sm:$0xff]
  %v2271 = vld [vmem:[%s19 + $0x8] sm:$0xf]
  %v2272 = vld [vmem:[%s19 + $0xc] sm:$0xff]
  %v2273 = vld [vmem:[%s19 + $0x14] sm:$0xf]
  %v2274 = vld [vmem:[%s19 + $0x18] sm:$0xff]
  %v2275 = vld [vmem:[%s19 + $0x20] sm:$0xf]
  %v2276 = vld [vmem:[%s19 + $0x24] sm:$0xff]
  %v2277 = vld [vmem:[%s19 + $0x2c] sm:$0xf]
  %v2278 = vld [vmem:[%s19 + $0x30] sm:$0xff]
  %v2279 = vld [vmem:[%s19 + $0x38] sm:$0xf]
  %v2280 = vld [vmem:[%s19 + $0x3c] sm:$0xff]
  %v2281 = vld [vmem:[%s19 + $0x44] sm:$0xf]
  %v2282 = vld [vmem:[%s19 + $0x48] sm:$0xff]
  %v2283 = vld [vmem:[%s19 + $0x50] sm:$0xf]
  %v2284 = vld [vmem:[%s19 + $0x54] sm:$0xff]
  %v2285 = vld [vmem:[%s19 + $0x5c] sm:$0xf]
  %v2286 = vld [vmem:[%s19 + $0x60] sm:$0xff]
  %v2287 = vld [vmem:[%s19 + $0x68] sm:$0xf]
  %v2288 = vld [vmem:[%s19 + $0x6c] sm:$0xff]
  %v2289 = vld [vmem:[%s19 + $0x74] sm:$0xf]
  %v2290 = vld [vmem:[%s19 + $0x78] sm:$0xff]
  %v2291 = vld [vmem:[%s19 + $0x80] sm:$0xf]
  %v2292 = vld [vmem:[%s19 + $0x84] sm:$0xff]
  %v2293 = vld [vmem:[%s19 + $0x8c] sm:$0xf]
  %v2294 = vld [vmem:[%s19 + $0x90] sm:$0xff]
  %v2295 = vld [vmem:[%s19 + $0x98] sm:$0xf]
  %v2296 = vld [vmem:[%s19 + $0x9c] sm:$0xff]
  %v2297 = vld [vmem:[%s19 + $0xa4] sm:$0xf]
  %v2298 = vld [vmem:[%s19 + $0xa8] sm:$0xff]
  %v2299 = vld [vmem:[%s19 + $0xb0] sm:$0xf]
  %v2300 = vld [vmem:[%s19 + $0xb4] sm:$0xff]
  %v2301 = vld [vmem:[%s19 + $0xbc] sm:$0xf]
  %v2302 = vld [vmem:[%s19 + $0xc0] sm:$0xff]
  %v2303 = vld [vmem:[%s19 + $0xc8] sm:$0xf]
  %v2304 = vld [vmem:[%s19 + $0xcc] sm:$0xff]
  %v2305 = vld [vmem:[%s19 + $0xd4] sm:$0xf]
  %v2306 = vld [vmem:[%s19 + $0xd8] sm:$0xff]
  %v2307 = vld [vmem:[%s19 + $0xe0] sm:$0xf]
  %v2308 = vld [vmem:[%s19 + $0xe4] sm:$0xff]
  %v2309 = vld [vmem:[%s19 + $0xec] sm:$0xf]
  %v2310 = vld [vmem:[%s19 + $0xf0] sm:$0xff]
  %v2311 = vld [vmem:[%s19 + $0xf8] sm:$0xf]
  %v2312 = vld [vmem:[%s19 + $0xfc] sm:$0xff]
  %v2313 = vld [vmem:[%s19 + $0x104] sm:$0xf]
  %v2314 = vld [vmem:[%s19 + $0x108] sm:$0xff]
  %v2315 = vld [vmem:[%s19 + $0x110] sm:$0xf]
  %v2316 = vld [vmem:[%s19 + $0x114] sm:$0xff]
  %v2317 = vld [vmem:[%s19 + $0x11c] sm:$0xf]
  %v2318 = vld [vmem:[%s21] sm:$0x7]
  %v2320 = vlaneseq
  %v2321 = vshrl.u32 %v2320, 7
  %v2322 = vsub.s32 0, %v2321
  %v2323 = vrot.slane %v2318, %v2322
  %v2324 = vlaneseq
  %v2325 = vshrl.u32 %v2324, 7
  %v2326 = vsub.s32 1, %v2325
  %v2327 = vrot.slane %v2318, %v2326
  %v2328 = vlaneseq
  %v2329 = vshrl.u32 %v2328, 7
  %v2330 = vsub.s32 2, %v2329
  %v2331 = vrot.slane %v2318, %v2330
  %v2339 = vunpack.c.l.b16 %v2266
  %v2340 = vunpack.c.l.b16 %v2267
  %v2341 = vunpack.c.l.b16 %v2268
  %v2342 = vunpack.c.l.b16 %v2269
  %vm2343 = vcmask 1041409
  %v2344 = vsel %vm2343, %v2341, %v2339
  %v2345 = vsel %vm2343, %v2342, %v2340
  %v2346 = vpack.c.b16 %v2344, %v2344
  %v2347 = vpack.c.b16 %v2345, %v2345
  %v2397 = vunpack.c.l.b16 %v2270
  %v2398 = vunpack.c.h.b16 %v2270
  %v2399 = vunpack.c.l.b16 %v2271
  %v2400 = vunpack.c.l.b16 %v2272
  %v2401 = vunpack.c.h.b16 %v2272
  %v2402 = vunpack.c.l.b16 %v2273
  %v2403 = vunpack.c.l.b16 %v2274
  %v2404 = vunpack.c.h.b16 %v2274
  %v2405 = vunpack.c.l.b16 %v2275
  %v2406 = vunpack.c.l.b16 %v2276
  %v2407 = vunpack.c.h.b16 %v2276
  %v2408 = vunpack.c.l.b16 %v2277
  %v2409 = vunpack.c.l.b16 %v2278
  %v2410 = vunpack.c.h.b16 %v2278
  %v2411 = vunpack.c.l.b16 %v2279
  %v2412 = vunpack.c.l.b16 %v2280
  %v2413 = vunpack.c.h.b16 %v2280
  %v2414 = vunpack.c.l.b16 %v2281
  %v2415 = vunpack.c.l.b16 %v2282
  %v2416 = vunpack.c.h.b16 %v2282
  %v2417 = vunpack.c.l.b16 %v2283
  %v2418 = vunpack.c.l.b16 %v2284
  %v2419 = vunpack.c.h.b16 %v2284
  %v2420 = vunpack.c.l.b16 %v2285
  %v2421 = vunpack.c.l.b16 %v2286
  %v2422 = vunpack.c.h.b16 %v2286
  %v2423 = vunpack.c.l.b16 %v2287
  %v2424 = vunpack.c.l.b16 %v2288
  %v2425 = vunpack.c.h.b16 %v2288
  %v2426 = vunpack.c.l.b16 %v2289
  %v2427 = vunpack.c.l.b16 %v2290
  %v2428 = vunpack.c.h.b16 %v2290
  %v2429 = vunpack.c.l.b16 %v2291
  %v2430 = vunpack.c.l.b16 %v2292
  %v2431 = vunpack.c.h.b16 %v2292
  %v2432 = vunpack.c.l.b16 %v2293
  %v2433 = vunpack.c.l.b16 %v2294
  %v2434 = vunpack.c.h.b16 %v2294
  %v2435 = vunpack.c.l.b16 %v2295
  %v2436 = vunpack.c.l.b16 %v2296
  %v2437 = vunpack.c.h.b16 %v2296
  %v2438 = vunpack.c.l.b16 %v2297
  %v2439 = vunpack.c.l.b16 %v2298
  %v2440 = vunpack.c.h.b16 %v2298
  %v2441 = vunpack.c.l.b16 %v2299
  %v2442 = vunpack.c.l.b16 %v2300
  %v2443 = vunpack.c.h.b16 %v2300
  %v2444 = vunpack.c.l.b16 %v2301
  %v2445 = vunpack.c.l.b16 %v2302
  %v2446 = vunpack.c.h.b16 %v2302
  %v2447 = vunpack.c.l.b16 %v2303
  %v2448 = vunpack.c.l.b16 %v2304
  %v2449 = vunpack.c.h.b16 %v2304
  %v2450 = vunpack.c.l.b16 %v2305
  %v2451 = vunpack.c.l.b16 %v2306
  %v2452 = vunpack.c.h.b16 %v2306
  %v2453 = vunpack.c.l.b16 %v2307
  %v2454 = vunpack.c.l.b16 %v2308
  %v2455 = vunpack.c.h.b16 %v2308
  %v2456 = vunpack.c.l.b16 %v2309
  %v2457 = vunpack.c.l.b16 %v2310
  %v2458 = vunpack.c.h.b16 %v2310
  %v2459 = vunpack.c.l.b16 %v2311
  %v2460 = vunpack.c.l.b16 %v2312
  %v2461 = vunpack.c.h.b16 %v2312
  %v2462 = vunpack.c.l.b16 %v2313
  %v2463 = vunpack.c.l.b16 %v2314
  %v2464 = vunpack.c.h.b16 %v2314
  %v2465 = vunpack.c.l.b16 %v2315
  %v2466 = vunpack.c.l.b16 %v2316
  %v2467 = vunpack.c.h.b16 %v2316
  %v2468 = vunpack.c.l.b16 %v2317
  %v2469 = vpack.c.b16 %v2400, %v2397
  %v2470 = vpack.c.b16 %v2401, %v2398
  %v2471 = vpack.c.b16 %v2402, %v2399
  %v2472 = vpack.c.b16 %v2406, %v2403
  %v2473 = vpack.c.b16 %v2407, %v2404
  %v2474 = vpack.c.b16 %v2408, %v2405
  %v2475 = vpack.c.b16 %v2412, %v2409
  %v2476 = vpack.c.b16 %v2413, %v2410
  %v2477 = vpack.c.b16 %v2414, %v2411
  %v2478 = vpack.c.b16 %v2418, %v2415
  %v2479 = vpack.c.b16 %v2419, %v2416
  %v2480 = vpack.c.b16 %v2420, %v2417
  %v2481 = vpack.c.b16 %v2424, %v2421
  %v2482 = vpack.c.b16 %v2425, %v2422
  %v2483 = vpack.c.b16 %v2426, %v2423
  %v2484 = vpack.c.b16 %v2430, %v2427
  %v2485 = vpack.c.b16 %v2431, %v2428
  %v2486 = vpack.c.b16 %v2432, %v2429
  %v2487 = vpack.c.b16 %v2436, %v2433
  %v2488 = vpack.c.b16 %v2437, %v2434
  %v2489 = vpack.c.b16 %v2438, %v2435
  %v2490 = vpack.c.b16 %v2442, %v2439
  %v2491 = vpack.c.b16 %v2443, %v2440
  %v2492 = vpack.c.b16 %v2444, %v2441
  %v2493 = vpack.c.b16 %v2448, %v2445
  %v2494 = vpack.c.b16 %v2449, %v2446
  %v2495 = vpack.c.b16 %v2450, %v2447
  %v2496 = vpack.c.b16 %v2454, %v2451
  %v2497 = vpack.c.b16 %v2455, %v2452
  %v2498 = vpack.c.b16 %v2456, %v2453
  %v2499 = vpack.c.b16 %v2460, %v2457
  %v2500 = vpack.c.b16 %v2461, %v2458
  %v2501 = vpack.c.b16 %v2462, %v2459
  %v2502 = vpack.c.b16 %v2466, %v2463
  %v2503 = vpack.c.b16 %v2467, %v2464
  %v2504 = vpack.c.b16 %v2468, %v2465
  %v2542 = vsel %vm1415, %v2347, 0
  %2544 = vmatprep.subr.bf16.mxu0 %v2470
  %2545 = vmatpush1.bf16.msra.mxu0 %v2469
  %2546 = vmatprep.subr.bf16.mxu0 %v2473
  %2547 = vmatpush1.bf16.msra.mxu0 %v2472
  %2548 = vmatprep.subr.bf16.mxu0 %v2476
  %2549 = vmatpush1.bf16.msra.mxu0 %v2475
  %2550 = vmatprep.subr.bf16.mxu0 %v2479
  %2551 = vmatpush1.bf16.msra.mxu0 %v2478
  %2552 = vmatprep.subr.bf16.mxu0 %v2482
  %2553 = vmatpush1.bf16.msra.mxu0 %v2481
  %2554 = vmatprep.subr.bf16.mxu0 %v2485
  %2555 = vmatpush1.bf16.msra.mxu0 %v2484
  %2556 = vmatprep.subr.bf16.mxu0 %v2488
  %2557 = vmatpush1.bf16.msra.mxu0 %v2487
  %2558 = vmatprep.subr.bf16.mxu0 %v2491
  %2559 = vmatpush1.bf16.msra.mxu0 %v2490
  %2560 = vmatprep.subr.bf16.mxu0 %v2494
  %2561 = vmatpush1.bf16.msra.mxu0 %v2493
  %2562 = vmatprep.subr.bf16.mxu0 %v2497
  %2563 = vmatpush1.bf16.msra.mxu0 %v2496
  %2564 = vmatprep.subr.bf16.mxu0 %v2500
  %2565 = vmatpush1.bf16.msra.mxu0 %v2499
  %2566 = vmatprep.subr.bf16.mxu0 %v2503
  %2567 = vmatpush1.bf16.msra.mxu0 %v2502
  %2568 = vmatprep.subr.bf16.mxu0 0
  %2569 = vmatpush1.bf16.msra.mxu0 0
  %2570 = vmatprep.subr.bf16.mxu0 0
  %2571 = vmatpush1.bf16.msra.mxu0 0
  %2572 = vmatprep.subr.bf16.mxu0 0
  %2573 = vmatpush1.bf16.msra.mxu0 0
  %2574 = vmatprep.subr.bf16.mxu0 0
  %2575 = vmatpush1.bf16.msra.mxu0 0
  %2576 = vmatprep.mubr.bf16.mxu0 %v2542
  %2577 = vmatmul.mubr.bf16.gmra.mrb[0].mxu0 %v2346
  %v2578 = vpop.f32.mrb[0].mxu0
  %v2579 = vadd.f32 %v2323, %v2578
  %v2580 = vpop.f32.mrb[0].mxu0
  %v2581 = vadd.f32 %v2327, %v2580
  %v2582 = vpop.f32.mrb[0].mxu0
  %v2583 = vpop.f32.mrb[0].mxu0
  %2584 = vdwg.mxu0
  %2585 = vmatprep.subr.bf16.mxu0 0
  %2586 = vmatpush1.bf16.msra.mxu0 %v2471
  %2587 = vmatprep.subr.bf16.mxu0 0
  %2588 = vmatpush1.bf16.msra.mxu0 %v2474
  %2589 = vmatprep.subr.bf16.mxu0 0
  %2590 = vmatpush1.bf16.msra.mxu0 %v2477
  %2591 = vmatprep.subr.bf16.mxu0 0
  %2592 = vmatpush1.bf16.msra.mxu0 %v2480
  %2593 = vmatprep.subr.bf16.mxu0 0
  %2594 = vmatpush1.bf16.msra.mxu0 %v2483
  %2595 = vmatprep.subr.bf16.mxu0 0
  %2596 = vmatpush1.bf16.msra.mxu0 %v2486
  %2597 = vmatprep.subr.bf16.mxu0 0
  %2598 = vmatpush1.bf16.msra.mxu0 %v2489
  %2599 = vmatprep.subr.bf16.mxu0 0
  %2600 = vmatpush1.bf16.msra.mxu0 %v2492
  %2601 = vmatprep.subr.bf16.mxu0 0
  %2602 = vmatpush1.bf16.msra.mxu0 %v2495
  %2603 = vmatprep.subr.bf16.mxu0 0
  %2604 = vmatpush1.bf16.msra.mxu0 %v2498
  %2605 = vmatprep.subr.bf16.mxu0 0
  %2606 = vmatpush1.bf16.msra.mxu0 %v2501
  %2607 = vmatprep.subr.bf16.mxu0 0
  %2608 = vmatpush1.bf16.msra.mxu0 %v2504
  %2609 = vmatprep.subr.bf16.mxu0 0
  %2610 = vmatpush1.bf16.msra.mxu0 0
  %2611 = vmatprep.subr.bf16.mxu0 0
  %2612 = vmatpush1.bf16.msra.mxu0 0
  %2613 = vmatprep.subr.bf16.mxu0 0
  %2614 = vmatpush1.bf16.msra.mxu0 0
  %2615 = vmatprep.subr.bf16.mxu0 0
  %2616 = vmatpush1.bf16.msra.mxu0 0
  %2617 = vmatprep.mubr.bf16.mxu0 %v2542
  %2618 = vmatmul.mubr.bf16.gmra.mrb[0].mxu0 %v2346
  %v2619 = vpop.f32.mrb[0].mxu0
  %v2620 = vadd.f32 %v2331, %v2619
  %v2621 = vpop.f32.mrb[0].mxu0
  %v2622 = vpop.f32.mrb[0].mxu0
  %v2623 = vpop.f32.mrb[0].mxu0
  %2624 = vdwg.mxu0
  %v2625 = vmax.f32 %v2579, 0.0
  %v2626 = vmax.f32 %v2581, 0.0
  %v2627 = vmax.f32 %v2620, 0.0
  %v2628 = vpack.c.bf16 %v2625, %v2625
  %v2629 = vpack.c.bf16 %v2626, %v2626
  %v2630 = vpack.c.bf16 %v2627, %v2627
  %v2631 = vld [vmem:[%s23] sm:$0xff]
  %v2632 = vld [vmem:[%s23 + $0x8] sm:$0xf]
  %v2633 = vld [vmem:[%s23 + $0xc] sm:$0xff]
  %v2634 = vld [vmem:[%s23 + $0x14] sm:$0xf]
  %v2635 = vld [vmem:[%s23 + $0x18] sm:$0xff]
  %v2636 = vld [vmem:[%s23 + $0x20] sm:$0xf]
  %v2637 = vld [vmem:[%s23 + $0x24] sm:$0xff]
  %v2638 = vld [vmem:[%s23 + $0x2c] sm:$0xf]
  %v2639 = vld [vmem:[%s23 + $0x30] sm:$0xff]
  %v2640 = vld [vmem:[%s23 + $0x38] sm:$0xf]
  %v2641 = vld [vmem:[%s23 + $0x3c] sm:$0xff]
  %v2642 = vld [vmem:[%s23 + $0x44] sm:$0xf]
  %v2643 = vld [vmem:[%s23 + $0x48] sm:$0xff]
  %v2644 = vld [vmem:[%s23 + $0x50] sm:$0xf]
  %v2645 = vld [vmem:[%s23 + $0x54] sm:$0xff]
  %v2646 = vld [vmem:[%s23 + $0x5c] sm:$0xf]
  %v2647 = vld [vmem:[%s23 + $0x60] sm:$0xff]
  %v2648 = vld [vmem:[%s23 + $0x68] sm:$0xf]
  %v2649 = vld [vmem:[%s23 + $0x6c] sm:$0xff]
  %v2650 = vld [vmem:[%s23 + $0x74] sm:$0xf]
  %v2651 = vld [vmem:[%s23 + $0x78] sm:$0xff]
  %v2652 = vld [vmem:[%s23 + $0x80] sm:$0xf]
  %v2653 = vld [vmem:[%s23 + $0x84] sm:$0xff]
  %v2654 = vld [vmem:[%s23 + $0x8c] sm:$0xf]
  %v2655 = vld [vmem:[%s23 + $0x90] sm:$0xff]
  %v2656 = vld [vmem:[%s23 + $0x98] sm:$0xf]
  %v2657 = vld [vmem:[%s23 + $0x9c] sm:$0xff]
  %v2658 = vld [vmem:[%s23 + $0xa4] sm:$0xf]
  %v2659 = vld [vmem:[%s23 + $0xa8] sm:$0xff]
  %v2660 = vld [vmem:[%s23 + $0xb0] sm:$0xf]
  %v2661 = vld [vmem:[%s23 + $0xb4] sm:$0xff]
  %v2662 = vld [vmem:[%s23 + $0xbc] sm:$0xf]
  %v2663 = vld [vmem:[%s23 + $0xc0] sm:$0xff]
  %v2664 = vld [vmem:[%s23 + $0xc8] sm:$0xf]
  %v2665 = vld [vmem:[%s23 + $0xcc] sm:$0xff]
  %v2666 = vld [vmem:[%s23 + $0xd4] sm:$0xf]
  %v2667 = vld [vmem:[%s23 + $0xd8] sm:$0xff]
  %v2668 = vld [vmem:[%s23 + $0xe0] sm:$0xf]
  %v2669 = vld [vmem:[%s23 + $0xe4] sm:$0xff]
  %v2670 = vld [vmem:[%s23 + $0xec] sm:$0xf]
  %v2671 = vld [vmem:[%s23 + $0xf0] sm:$0xff]
  %v2672 = vld [vmem:[%s23 + $0xf8] sm:$0xf]
  %v2673 = vld [vmem:[%s23 + $0xfc] sm:$0xff]
  %v2674 = vld [vmem:[%s23 + $0x104] sm:$0xf]
  %v2675 = vld [vmem:[%s23 + $0x108] sm:$0xff]
  %v2676 = vld [vmem:[%s23 + $0x110] sm:$0xf]
  %v2677 = vld [vmem:[%s23 + $0x114] sm:$0xff]
  %v2678 = vld [vmem:[%s23 + $0x11c] sm:$0xf]
  %v2679 = vld [vmem:[%s23 + $0x120] sm:$0xff]
  %v2680 = vld [vmem:[%s23 + $0x128] sm:$0xf]
  %v2681 = vld [vmem:[%s23 + $0x12c] sm:$0xff]
  %v2682 = vld [vmem:[%s23 + $0x134] sm:$0xf]
  %v2683 = vld [vmem:[%s23 + $0x138] sm:$0xff]
  %v2684 = vld [vmem:[%s23 + $0x140] sm:$0xf]
  %v2685 = vld [vmem:[%s23 + $0x144] sm:$0xff]
  %v2686 = vld [vmem:[%s23 + $0x14c] sm:$0xf]
  %v2687 = vld [vmem:[%s23 + $0x150] sm:$0xff]
  %v2688 = vld [vmem:[%s23 + $0x158] sm:$0xf]
  %v2689 = vld [vmem:[%s23 + $0x15c] sm:$0xff]
  %v2690 = vld [vmem:[%s23 + $0x164] sm:$0xf]
  %v2691 = vld [vmem:[%s23 + $0x168] sm:$0xff]
  %v2692 = vld [vmem:[%s23 + $0x170] sm:$0xf]
  %v2693 = vld [vmem:[%s23 + $0x174] sm:$0xff]
  %v2694 = vld [vmem:[%s23 + $0x17c] sm:$0xf]
  %v2695 = vld [vmem:[%s23 + $0x180] sm:$0xff]
  %v2696 = vld [vmem:[%s23 + $0x188] sm:$0xf]
  %v2697 = vld [vmem:[%s23 + $0x18c] sm:$0xff]
  %v2698 = vld [vmem:[%s23 + $0x194] sm:$0xf]
  %v2699 = vld [vmem:[%s23 + $0x198] sm:$0xff]
  %v2700 = vld [vmem:[%s23 + $0x1a0] sm:$0xf]
  %v2701 = vld [vmem:[%s23 + $0x1a4] sm:$0xff]
  %v2702 = vld [vmem:[%s23 + $0x1ac] sm:$0xf]
  %v2703 = vld [vmem:[%s23 + $0x1b0] sm:$0xff]
  %v2704 = vld [vmem:[%s23 + $0x1b8] sm:$0xf]
  %v2705 = vld [vmem:[%s23 + $0x1bc] sm:$0xff]
  %v2706 = vld [vmem:[%s23 + $0x1c4] sm:$0xf]
  %v2707 = vld [vmem:[%s23 + $0x1c8] sm:$0xff]
  %v2708 = vld [vmem:[%s23 + $0x1d0] sm:$0xf]
  %v2709 = vld [vmem:[%s23 + $0x1d4] sm:$0xff]
  %v2710 = vld [vmem:[%s23 + $0x1dc] sm:$0xf]
  %v2711 = vld [vmem:[%s23 + $0x1e0] sm:$0xff]
  %v2712 = vld [vmem:[%s23 + $0x1e8] sm:$0xf]
  %v2713 = vld [vmem:[%s23 + $0x1ec] sm:$0xff]
  %v2714 = vld [vmem:[%s23 + $0x1f4] sm:$0xf]
  %v2715 = vld [vmem:[%s23 + $0x1f8] sm:$0xff]
  %v2716 = vld [vmem:[%s23 + $0x200] sm:$0xf]
  %v2717 = vld [vmem:[%s23 + $0x204] sm:$0xff]
  %v2718 = vld [vmem:[%s23 + $0x20c] sm:$0xf]
  %v2719 = vld [vmem:[%s23 + $0x210] sm:$0xff]
  %v2720 = vld [vmem:[%s23 + $0x218] sm:$0xf]
  %v2721 = vld [vmem:[%s23 + $0x21c] sm:$0xff]
  %v2722 = vld [vmem:[%s23 + $0x224] sm:$0xf]
  %v2723 = vld [vmem:[%s23 + $0x228] sm:$0xff]
  %v2724 = vld [vmem:[%s23 + $0x230] sm:$0xf]
  %v2725 = vld [vmem:[%s23 + $0x234] sm:$0xff]
  %v2726 = vld [vmem:[%s23 + $0x23c] sm:$0xf]
  %v2727 = vld [vmem:[%s25] sm:$0x7]
  %v2729 = vlaneseq
  %v2730 = vshrl.u32 %v2729, 7
  %v2731 = vsub.s32 0, %v2730
  %v2732 = vrot.slane %v2727, %v2731
  %v2733 = vlaneseq
  %v2734 = vshrl.u32 %v2733, 7
  %v2735 = vsub.s32 1, %v2734
  %v2736 = vrot.slane %v2727, %v2735
  %v2737 = vlaneseq
  %v2738 = vshrl.u32 %v2737, 7
  %v2739 = vsub.s32 2, %v2738
  %v2740 = vrot.slane %v2727, %v2739
  %v2840 = vunpack.c.l.b16 %v2631
  %v2841 = vunpack.c.h.b16 %v2631
  %v2842 = vunpack.c.l.b16 %v2632
  %v2843 = vunpack.c.l.b16 %v2633
  %v2844 = vunpack.c.h.b16 %v2633
  %v2845 = vunpack.c.l.b16 %v2634
  %v2846 = vunpack.c.l.b16 %v2635
  %v2847 = vunpack.c.h.b16 %v2635
  %v2848 = vunpack.c.l.b16 %v2636
  %v2849 = vunpack.c.l.b16 %v2637
  %v2850 = vunpack.c.h.b16 %v2637
  %v2851 = vunpack.c.l.b16 %v2638
  %v2852 = vunpack.c.l.b16 %v2639
  %v2853 = vunpack.c.h.b16 %v2639
  %v2854 = vunpack.c.l.b16 %v2640
  %v2855 = vunpack.c.l.b16 %v2641
  %v2856 = vunpack.c.h.b16 %v2641
  %v2857 = vunpack.c.l.b16 %v2642
  %v2858 = vunpack.c.l.b16 %v2643
  %v2859 = vunpack.c.h.b16 %v2643
  %v2860 = vunpack.c.l.b16 %v2644
  %v2861 = vunpack.c.l.b16 %v2645
  %v2862 = vunpack.c.h.b16 %v2645
  %v2863 = vunpack.c.l.b16 %v2646
  %v2864 = vunpack.c.l.b16 %v2647
  %v2865 = vunpack.c.h.b16 %v2647
  %v2866 = vunpack.c.l.b16 %v2648
  %v2867 = vunpack.c.l.b16 %v2649
  %v2868 = vunpack.c.h.b16 %v2649
  %v2869 = vunpack.c.l.b16 %v2650
  %v2870 = vunpack.c.l.b16 %v2651
  %v2871 = vunpack.c.h.b16 %v2651
  %v2872 = vunpack.c.l.b16 %v2652
  %v2873 = vunpack.c.l.b16 %v2653
  %v2874 = vunpack.c.h.b16 %v2653
  %v2875 = vunpack.c.l.b16 %v2654
  %v2876 = vunpack.c.l.b16 %v2655
  %v2877 = vunpack.c.h.b16 %v2655
  %v2878 = vunpack.c.l.b16 %v2656
  %v2879 = vunpack.c.l.b16 %v2657
  %v2880 = vunpack.c.h.b16 %v2657
  %v2881 = vunpack.c.l.b16 %v2658
  %v2882 = vunpack.c.l.b16 %v2659
  %v2883 = vunpack.c.h.b16 %v2659
  %v2884 = vunpack.c.l.b16 %v2660
  %v2885 = vunpack.c.l.b16 %v2661
  %v2886 = vunpack.c.h.b16 %v2661
  %v2887 = vunpack.c.l.b16 %v2662
  %v2888 = vunpack.c.l.b16 %v2663
  %v2889 = vunpack.c.h.b16 %v2663
  %v2890 = vunpack.c.l.b16 %v2664
  %v2891 = vunpack.c.l.b16 %v2665
  %v2892 = vunpack.c.h.b16 %v2665
  %v2893 = vunpack.c.l.b16 %v2666
  %v2894 = vunpack.c.l.b16 %v2667
  %v2895 = vunpack.c.h.b16 %v2667
  %v2896 = vunpack.c.l.b16 %v2668
  %v2897 = vunpack.c.l.b16 %v2669
  %v2898 = vunpack.c.h.b16 %v2669
  %v2899 = vunpack.c.l.b16 %v2670
  %v2900 = vunpack.c.l.b16 %v2671
  %v2901 = vunpack.c.h.b16 %v2671
  %v2902 = vunpack.c.l.b16 %v2672
  %v2903 = vunpack.c.l.b16 %v2673
  %v2904 = vunpack.c.h.b16 %v2673
  %v2905 = vunpack.c.l.b16 %v2674
  %v2906 = vunpack.c.l.b16 %v2675
  %v2907 = vunpack.c.h.b16 %v2675
  %v2908 = vunpack.c.l.b16 %v2676
  %v2909 = vunpack.c.l.b16 %v2677
  %v2910 = vunpack.c.h.b16 %v2677
  %v2911 = vunpack.c.l.b16 %v2678
  %v2912 = vunpack.c.l.b16 %v2679
  %v2913 = vunpack.c.h.b16 %v2679
  %v2914 = vunpack.c.l.b16 %v2680
  %v2915 = vunpack.c.l.b16 %v2681
  %v2916 = vunpack.c.h.b16 %v2681
  %v2917 = vunpack.c.l.b16 %v2682
  %v2918 = vunpack.c.l.b16 %v2683
  %v2919 = vunpack.c.h.b16 %v2683
  %v2920 = vunpack.c.l.b16 %v2684
  %v2921 = vunpack.c.l.b16 %v2685
  %v2922 = vunpack.c.h.b16 %v2685
  %v2923 = vunpack.c.l.b16 %v2686
  %v2924 = vunpack.c.l.b16 %v2687
  %v2925 = vunpack.c.h.b16 %v2687
  %v2926 = vunpack.c.l.b16 %v2688
  %v2927 = vunpack.c.l.b16 %v2689
  %v2928 = vunpack.c.h.b16 %v2689
  %v2929 = vunpack.c.l.b16 %v2690
  %v2930 = vunpack.c.l.b16 %v2691
  %v2931 = vunpack.c.h.b16 %v2691
  %v2932 = vunpack.c.l.b16 %v2692
  %v2933 = vunpack.c.l.b16 %v2693
  %v2934 = vunpack.c.h.b16 %v2693
  %v2935 = vunpack.c.l.b16 %v2694
  %v2936 = vunpack.c.l.b16 %v2695
  %v2937 = vunpack.c.h.b16 %v2695
  %v2938 = vunpack.c.l.b16 %v2696
  %v2939 = vunpack.c.l.b16 %v2697
  %v2940 = vunpack.c.h.b16 %v2697
  %v2941 = vunpack.c.l.b16 %v2698
  %v2942 = vunpack.c.l.b16 %v2699
  %v2943 = vunpack.c.h.b16 %v2699
  %v2944 = vunpack.c.l.b16 %v2700
  %v2945 = vunpack.c.l.b16 %v2701
  %v2946 = vunpack.c.h.b16 %v2701
  %v2947 = vunpack.c.l.b16 %v2702
  %v2948 = vunpack.c.l.b16 %v2703
  %v2949 = vunpack.c.h.b16 %v2703
  %v2950 = vunpack.c.l.b16 %v2704
  %v2951 = vunpack.c.l.b16 %v2705
  %v2952 = vunpack.c.h.b16 %v2705
  %v2953 = vunpack.c.l.b16 %v2706
  %v2954 = vunpack.c.l.b16 %v2707
  %v2955 = vunpack.c.h.b16 %v2707
  %v2956 = vunpack.c.l.b16 %v2708
  %v2957 = vunpack.c.l.b16 %v2709
  %v2958 = vunpack.c.h.b16 %v2709
  %v2959 = vunpack.c.l.b16 %v2710
  %v2960 = vunpack.c.l.b16 %v2711
  %v2961 = vunpack.c.h.b16 %v2711
  %v2962 = vunpack.c.l.b16 %v2712
  %v2963 = vunpack.c.l.b16 %v2713
  %v2964 = vunpack.c.h.b16 %v2713
  %v2965 = vunpack.c.l.b16 %v2714
  %v2966 = vunpack.c.l.b16 %v2715
  %v2967 = vunpack.c.h.b16 %v2715
  %v2968 = vunpack.c.l.b16 %v2716
  %v2969 = vunpack.c.l.b16 %v2717
  %v2970 = vunpack.c.h.b16 %v2717
  %v2971 = vunpack.c.l.b16 %v2718
  %v2972 = vunpack.c.l.b16 %v2719
  %v2973 = vunpack.c.h.b16 %v2719
  %v2974 = vunpack.c.l.b16 %v2720
  %v2975 = vunpack.c.l.b16 %v2721
  %v2976 = vunpack.c.h.b16 %v2721
  %v2977 = vunpack.c.l.b16 %v2722
  %v2978 = vunpack.c.l.b16 %v2723
  %v2979 = vunpack.c.h.b16 %v2723
  %v2980 = vunpack.c.l.b16 %v2724
  %v2981 = vunpack.c.l.b16 %v2725
  %v2982 = vunpack.c.h.b16 %v2725
  %v2983 = vunpack.c.l.b16 %v2726
  %v2984 = vpack.c.b16 %v2843, %v2840
  %v2985 = vpack.c.b16 %v2844, %v2841
  %v2986 = vpack.c.b16 %v2845, %v2842
  %v2987 = vpack.c.b16 %v2849, %v2846
  %v2988 = vpack.c.b16 %v2850, %v2847
  %v2989 = vpack.c.b16 %v2851, %v2848
  %v2990 = vpack.c.b16 %v2855, %v2852
  %v2991 = vpack.c.b16 %v2856, %v2853
  %v2992 = vpack.c.b16 %v2857, %v2854
  %v2993 = vpack.c.b16 %v2861, %v2858
  %v2994 = vpack.c.b16 %v2862, %v2859
  %v2995 = vpack.c.b16 %v2863, %v2860
  %v2996 = vpack.c.b16 %v2867, %v2864
  %v2997 = vpack.c.b16 %v2868, %v2865
  %v2998 = vpack.c.b16 %v2869, %v2866
  %v2999 = vpack.c.b16 %v2873, %v2870
  %v3000 = vpack.c.b16 %v2874, %v2871
  %v3001 = vpack.c.b16 %v2875, %v2872
  %v3002 = vpack.c.b16 %v2879, %v2876
  %v3003 = vpack.c.b16 %v2880, %v2877
  %v3004 = vpack.c.b16 %v2881, %v2878
  %v3005 = vpack.c.b16 %v2885, %v2882
  %v3006 = vpack.c.b16 %v2886, %v2883
  %v3007 = vpack.c.b16 %v2887, %v2884
  %v3008 = vpack.c.b16 %v2891, %v2888
  %v3009 = vpack.c.b16 %v2892, %v2889
  %v3010 = vpack.c.b16 %v2893, %v2890
  %v3011 = vpack.c.b16 %v2897, %v2894
  %v3012 = vpack.c.b16 %v2898, %v2895
  %v3013 = vpack.c.b16 %v2899, %v2896
  %v3014 = vpack.c.b16 %v2903, %v2900
  %v3015 = vpack.c.b16 %v2904, %v2901
  %v3016 = vpack.c.b16 %v2905, %v2902
  %v3017 = vpack.c.b16 %v2909, %v2906
  %v3018 = vpack.c.b16 %v2910, %v2907
  %v3019 = vpack.c.b16 %v2911, %v2908
  %v3020 = vpack.c.b16 %v2915, %v2912
  %v3021 = vpack.c.b16 %v2916, %v2913
  %v3022 = vpack.c.b16 %v2917, %v2914
  %v3023 = vpack.c.b16 %v2921, %v2918
  %v3024 = vpack.c.b16 %v2922, %v2919
  %v3025 = vpack.c.b16 %v2923, %v2920
  %v3026 = vpack.c.b16 %v2927, %v2924
  %v3027 = vpack.c.b16 %v2928, %v2925
  %v3028 = vpack.c.b16 %v2929, %v2926
  %v3029 = vpack.c.b16 %v2933, %v2930
  %v3030 = vpack.c.b16 %v2934, %v2931
  %v3031 = vpack.c.b16 %v2935, %v2932
  %v3032 = vpack.c.b16 %v2939, %v2936
  %v3033 = vpack.c.b16 %v2940, %v2937
  %v3034 = vpack.c.b16 %v2941, %v2938
  %v3035 = vpack.c.b16 %v2945, %v2942
  %v3036 = vpack.c.b16 %v2946, %v2943
  %v3037 = vpack.c.b16 %v2947, %v2944
  %v3038 = vpack.c.b16 %v2951, %v2948
  %v3039 = vpack.c.b16 %v2952, %v2949
  %v3040 = vpack.c.b16 %v2953, %v2950
  %v3041 = vpack.c.b16 %v2957, %v2954
  %v3042 = vpack.c.b16 %v2958, %v2955
  %v3043 = vpack.c.b16 %v2959, %v2956
  %v3044 = vpack.c.b16 %v2963, %v2960
  %v3045 = vpack.c.b16 %v2964, %v2961
  %v3046 = vpack.c.b16 %v2965, %v2962
  %v3047 = vpack.c.b16 %v2969, %v2966
  %v3048 = vpack.c.b16 %v2970, %v2967
  %v3049 = vpack.c.b16 %v2971, %v2968
  %v3050 = vpack.c.b16 %v2975, %v2972
  %v3051 = vpack.c.b16 %v2976, %v2973
  %v3052 = vpack.c.b16 %v2977, %v2974
  %v3053 = vpack.c.b16 %v2981, %v2978
  %v3054 = vpack.c.b16 %v2982, %v2979
  %v3055 = vpack.c.b16 %v2983, %v2980
  %3128 = vmatprep.subr.bf16.mxu0 %v2985
  %3129 = vmatpush1.bf16.msra.mxu0 %v2984
  %3130 = vmatprep.subr.bf16.mxu0 %v2988
  %3131 = vmatpush1.bf16.msra.mxu0 %v2987
  %3132 = vmatprep.subr.bf16.mxu0 %v2991
  %3133 = vmatpush1.bf16.msra.mxu0 %v2990
  %3134 = vmatprep.subr.bf16.mxu0 %v2994
  %3135 = vmatpush1.bf16.msra.mxu0 %v2993
  %3136 = vmatprep.subr.bf16.mxu0 %v2997
  %3137 = vmatpush1.bf16.msra.mxu0 %v2996
  %3138 = vmatprep.subr.bf16.mxu0 %v3000
  %3139 = vmatpush1.bf16.msra.mxu0 %v2999
  %3140 = vmatprep.subr.bf16.mxu0 %v3003
  %3141 = vmatpush1.bf16.msra.mxu0 %v3002
  %3142 = vmatprep.subr.bf16.mxu0 %v3006
  %3143 = vmatpush1.bf16.msra.mxu0 %v3005
  %3144 = vmatprep.subr.bf16.mxu0 %v3009
  %3145 = vmatpush1.bf16.msra.mxu0 %v3008
  %3146 = vmatprep.subr.bf16.mxu0 %v3012
  %3147 = vmatpush1.bf16.msra.mxu0 %v3011
  %3148 = vmatprep.subr.bf16.mxu0 %v3015
  %3149 = vmatpush1.bf16.msra.mxu0 %v3014
  %3150 = vmatprep.subr.bf16.mxu0 %v3018
  %3151 = vmatpush1.bf16.msra.mxu0 %v3017
  %3152 = vmatprep.subr.bf16.mxu0 %v3021
  %3153 = vmatpush1.bf16.msra.mxu0 %v3020
  %3154 = vmatprep.subr.bf16.mxu0 %v3024
  %3155 = vmatpush1.bf16.msra.mxu0 %v3023
  %3156 = vmatprep.subr.bf16.mxu0 %v3027
  %3157 = vmatpush1.bf16.msra.mxu0 %v3026
  %3158 = vmatprep.subr.bf16.mxu0 %v3030
  %3159 = vmatpush1.bf16.msra.mxu0 %v3029
  %3160 = vmatprep.mubr.bf16.mxu0 %v2629
  %3161 = vmatmul.mubr.bf16.gmra.mrb[0].mxu0 %v2628
  %v3162 = vpop.f32.mrb[0].mxu0
  %v3163 = vadd.f32 %v2732, %v3162
  %v3164 = vpop.f32.mrb[0].mxu0
  %v3165 = vadd.f32 %v2736, %v3164
  %v3166 = vpop.f32.mrb[0].mxu0
  %v3167 = vpop.f32.mrb[0].mxu0
  %3168 = vdwg.mxu0
  %3169 = vmatprep.subr.bf16.mxu0 %v3033
  %3170 = vmatpush1.bf16.msra.mxu0 %v3032
  %3171 = vmatprep.subr.bf16.mxu0 %v3036
  %3172 = vmatpush1.bf16.msra.mxu0 %v3035
  %3173 = vmatprep.subr.bf16.mxu0 %v3039
  %3174 = vmatpush1.bf16.msra.mxu0 %v3038
  %3175 = vmatprep.subr.bf16.mxu0 %v3042
  %3176 = vmatpush1.bf16.msra.mxu0 %v3041
  %3177 = vmatprep.subr.bf16.mxu0 %v3045
  %3178 = vmatpush1.bf16.msra.mxu0 %v3044
  %3179 = vmatprep.subr.bf16.mxu0 %v3048
  %3180 = vmatpush1.bf16.msra.mxu0 %v3047
  %3181 = vmatprep.subr.bf16.mxu0 %v3051
  %3182 = vmatpush1.bf16.msra.mxu0 %v3050
  %3183 = vmatprep.subr.bf16.mxu0 %v3054
  %3184 = vmatpush1.bf16.msra.mxu0 %v3053
  %3185 = vmatprep.subr.bf16.mxu0 0
  %3186 = vmatpush1.bf16.msra.mxu0 0
  %3187 = vmatprep.subr.bf16.mxu0 0
  %3188 = vmatpush1.bf16.msra.mxu0 0
  %3189 = vmatprep.subr.bf16.mxu0 0
  %3190 = vmatpush1.bf16.msra.mxu0 0
  %3191 = vmatprep.subr.bf16.mxu0 0
  %3192 = vmatpush1.bf16.msra.mxu0 0
  %3193 = vmatprep.subr.bf16.mxu0 0
  %3194 = vmatpush1.bf16.msra.mxu0 0
  %3195 = vmatprep.subr.bf16.mxu0 0
  %3196 = vmatpush1.bf16.msra.mxu0 0
  %3197 = vmatprep.subr.bf16.mxu0 0
  %3198 = vmatpush1.bf16.msra.mxu0 0
  %3199 = vmatprep.subr.bf16.mxu0 0
  %3200 = vmatpush1.bf16.msra.mxu0 0
  %3201 = vmatprep.mubr.bf16.mxu0 0
  %3202 = vmatmul.mubr.bf16.gmra.mrb[0].mxu0 %v2630
  %v3203 = vpop.f32.mrb[0].mxu0
  %v3204 = vadd.f32 %v3163, %v3203
  %v3205 = vpop.f32.mrb[0].mxu0
  %v3206 = vadd.f32 %v3165, %v3205
  %v3207 = vpop.f32.mrb[0].mxu0
  %v3208 = vpop.f32.mrb[0].mxu0
  %3209 = vdwg.mxu0
  %3210 = vmatprep.subr.bf16.mxu0 0
  %3211 = vmatpush1.bf16.msra.mxu0 %v2986
  %3212 = vmatprep.subr.bf16.mxu0 0
  %3213 = vmatpush1.bf16.msra.mxu0 %v2989
  %3214 = vmatprep.subr.bf16.mxu0 0
  %3215 = vmatpush1.bf16.msra.mxu0 %v2992
  %3216 = vmatprep.subr.bf16.mxu0 0
  %3217 = vmatpush1.bf16.msra.mxu0 %v2995
  %3218 = vmatprep.subr.bf16.mxu0 0
  %3219 = vmatpush1.bf16.msra.mxu0 %v2998
  %3220 = vmatprep.subr.bf16.mxu0 0
  %3221 = vmatpush1.bf16.msra.mxu0 %v3001
  %3222 = vmatprep.subr.bf16.mxu0 0
  %3223 = vmatpush1.bf16.msra.mxu0 %v3004
  %3224 = vmatprep.subr.bf16.mxu0 0
  %3225 = vmatpush1.bf16.msra.mxu0 %v3007
  %3226 = vmatprep.subr.bf16.mxu0 0
  %3227 = vmatpush1.bf16.msra.mxu0 %v3010
  %3228 = vmatprep.subr.bf16.mxu0 0
  %3229 = vmatpush1.bf16.msra.mxu0 %v3013
  %3230 = vmatprep.subr.bf16.mxu0 0
  %3231 = vmatpush1.bf16.msra.mxu0 %v3016
  %3232 = vmatprep.subr.bf16.mxu0 0
  %3233 = vmatpush1.bf16.msra.mxu0 %v3019
  %3234 = vmatprep.subr.bf16.mxu0 0
  %3235 = vmatpush1.bf16.msra.mxu0 %v3022
  %3236 = vmatprep.subr.bf16.mxu0 0
  %3237 = vmatpush1.bf16.msra.mxu0 %v3025
  %3238 = vmatprep.subr.bf16.mxu0 0
  %3239 = vmatpush1.bf16.msra.mxu0 %v3028
  %3240 = vmatprep.subr.bf16.mxu0 0
  %3241 = vmatpush1.bf16.msra.mxu0 %v3031
  %3242 = vmatprep.mubr.bf16.mxu0 %v2629
  %3243 = vmatmul.mubr.bf16.gmra.mrb[0].mxu0 %v2628
  %v3244 = vpop.f32.mrb[0].mxu0
  %v3245 = vadd.f32 %v2740, %v3244
  %v3246 = vpop.f32.mrb[0].mxu0
  %v3247 = vpop.f32.mrb[0].mxu0
  %v3248 = vpop.f32.mrb[0].mxu0
  %3249 = vdwg.mxu0
  %3250 = vmatprep.subr.bf16.mxu0 0
  %3251 = vmatpush1.bf16.msra.mxu0 %v3034
  %3252 = vmatprep.subr.bf16.mxu0 0
  %3253 = vmatpush1.bf16.msra.mxu0 %v3037
  %3254 = vmatprep.subr.bf16.mxu0 0
  %3255 = vmatpush1.bf16.msra.mxu0 %v3040
  %3256 = vmatprep.subr.bf16.mxu0 0
  %3257 = vmatpush1.bf16.msra.mxu0 %v3043
  %3258 = vmatprep.subr.bf16.mxu0 0
  %3259 = vmatpush1.bf16.msra.mxu0 %v3046
  %3260 = vmatprep.subr.bf16.mxu0 0
  %3261 = vmatpush1.bf16.msra.mxu0 %v3049
  %3262 = vmatprep.subr.bf16.mxu0 0
  %3263 = vmatpush1.bf16.msra.mxu0 %v3052
  %3264 = vmatprep.subr.bf16.mxu0 0
  %3265 = vmatpush1.bf16.msra.mxu0 %v3055
  %3266 = vmatprep.subr.bf16.mxu0 0
  %3267 = vmatpush1.bf16.msra.mxu0 0
  %3268 = vmatprep.subr.bf16.mxu0 0
  %3269 = vmatpush1.bf16.msra.mxu0 0
  %3270 = vmatprep.subr.bf16.mxu0 0
  %3271 = vmatpush1.bf16.msra.mxu0 0
  %3272 = vmatprep.subr.bf16.mxu0 0
  %3273 = vmatpush1.bf16.msra.mxu0 0
  %3274 = vmatprep.subr.bf16.mxu0 0
  %3275 = vmatpush1.bf16.msra.mxu0 0
  %3276 = vmatprep.subr.bf16.mxu0 0
  %3277 = vmatpush1.bf16.msra.mxu0 0
  %3278 = vmatprep.subr.bf16.mxu0 0
  %3279 = vmatpush1.bf16.msra.mxu0 0
  %3280 = vmatprep.subr.bf16.mxu0 0
  %3281 = vmatpush1.bf16.msra.mxu0 0
  %3282 = vmatprep.mubr.bf16.mxu0 0
  %3283 = vmatmul.mubr.bf16.gmra.mrb[0].mxu0 %v2630
  %v3284 = vpop.f32.mrb[0].mxu0
  %v3285 = vadd.f32 %v3245, %v3284
  %v3286 = vpop.f32.mrb[0].mxu0
  %v3287 = vpop.f32.mrb[0].mxu0
  %v3288 = vpop.f32.mrb[0].mxu0
  %3289 = vdwg.mxu0
  %v3292 = vcombine.low %v3204, %v3206
  %v3294 = vunpack.c.l.s4 1966171168
  %v3295 = vunpack.c.0.s8 %v3294
  %v3296 = vlaneseq
  %v3297 = vshrl.u32 %v3296, 7
  %v3298 = vsub.s32 %v3295, %v3297
  %v3299 = vrot.slane %v3292, %v3298
  %v3300 = vcombine.high %v3299, %v3299
  %v3302 = vunpack.c.l.s4 1966171168
  %v3303 = vunpack.c.0.s8 %v3302
  %v3304 = vlaneseq
  %v3305 = vshrl.u32 %v3304, 7
  %v3306 = vsub.s32 %v3303, %v3305
  %v3307 = vrot.slane %v3299, %v3306
  %v3309 = vunpack.c.l.s4 1966171168
  %v3310 = vunpack.c.0.s8 %v3309
  %v3311 = vlaneseq
  %v3312 = vshrl.u32 %v3311, 7
  %v3313 = vsub.s32 %v3310, %v3312
  %v3314 = vrot.slane %v3300, %v3313
  %v3315 = vlaneseq
  %v3316 = vshrl.u32 %v3315, 7
  %v3317 = vsub.s32 0, %v3316
  %v3318 = vrot.slane %v3307, %v3317
  %v3319 = vlaneseq
  %v3320 = vshrl.u32 %v3319, 7
  %v3321 = vsub.s32 1, %v3320
  %v3322 = vrot.slane %v3307, %v3321
  %v3323 = vlaneseq
  %v3324 = vshrl.u32 %v3323, 7
  %v3325 = vsub.s32 0, %v3324
  %v3326 = vrot.slane %v3314, %v3325
  %v3327 = vlaneseq
  %v3328 = vshrl.u32 %v3327, 7
  %v3329 = vsub.s32 1, %v3328
  %v3330 = vrot.slane %v3314, %v3329
  %v3335 = vmul.f32 %v3318, %v2081
  %v3336 = vmul.f32 %v3322, %v2082
  %v3337 = vmul.f32 %v3318, %v2083
  %v3338 = vmul.f32 %v3322, %v2084
  %v3339 = vmul.f32 %v3318, %v2085
  %v3340 = vmul.f32 %v3322, %v2086
  %v3341 = vmul.f32 %v3318, %v2087
  %v3342 = vmul.f32 %v3322, %v2088
  %v3343 = vmul.f32 %v3318, %v2089
  %v3344 = vmul.f32 %v3322, %v2090
  %v3345 = vmul.f32 %v3318, %v2091
  %v3346 = vmul.f32 %v3322, %v2092
  %v3347 = vmul.f32 %v3318, %v2093
  %v3348 = vmul.f32 %v3322, %v2094
  %v3349 = vmul.f32 %v3318, %v2095
  %v3350 = vmul.f32 %v3322, %v2096
  %v3351 = vmul.f32 %v3318, %v2097
  %v3352 = vmul.f32 %v3322, %v2098
  %v3353 = vmul.f32 %v3318, %v2099
  %v3354 = vmul.f32 %v3322, %v2100
  %v3355 = vmul.f32 %v3318, %v2101
  %v3356 = vmul.f32 %v3322, %v2102
  %v3357 = vmul.f32 %v3318, %v2103
  %v3358 = vmul.f32 %v3322, %v2104
  %v3359 = vmul.f32 %v3318, %v2105
  %v3360 = vmul.f32 %v3322, %v2106
  %v3361 = vmul.f32 %v3318, %v2107
  %v3362 = vmul.f32 %v3322, %v2108
  %v3363 = vmul.f32 %v3318, %v2109
  %v3364 = vmul.f32 %v3322, %v2110
  %v3365 = vmul.f32 %v3318, %v2111
  %v3366 = vmul.f32 %v3322, %v2112
  %v3367 = vmul.f32 %v3326, %v2113
  %v3368 = vmul.f32 %v3330, %v2114
  %v3369 = vmul.f32 %v3326, %v2115
  %v3370 = vmul.f32 %v3330, %v2116
  %v3371 = vmul.f32 %v3326, %v2117
  %v3372 = vmul.f32 %v3330, %v2118
  %v3373 = vmul.f32 %v3326, %v2119
  %v3374 = vmul.f32 %v3330, %v2120
  %v3375 = vmul.f32 %v3326, %v2121
  %v3376 = vmul.f32 %v3330, %v2122
  %v3377 = vmul.f32 %v3326, %v2123
  %v3378 = vmul.f32 %v3330, %v2124
  %v3379 = vmul.f32 %v3326, %v2125
  %v3380 = vmul.f32 %v3330, %v2126
  %v3381 = vmul.f32 %v3326, %v2127
  %v3382 = vmul.f32 %v3330, %v2128
  %v3383 = vmul.f32 %v3326, %v2129
  %v3384 = vmul.f32 %v3330, %v2130
  %v3385 = vmul.f32 %v3326, %v2131
  %v3386 = vmul.f32 %v3330, %v2132
  %v3387 = vmul.f32 %v3326, %v2133
  %v3388 = vmul.f32 %v3330, %v2134
  %v3389 = vmul.f32 %v3326, %v2135
  %v3390 = vmul.f32 %v3330, %v2136
  %v3391 = vmul.f32 %v3326, %v2137
  %v3392 = vmul.f32 %v3330, %v2138
  %v3393 = vmul.f32 %v3326, %v2139
  %v3394 = vmul.f32 %v3330, %v2140
  %v3395 = vmul.f32 %v3326, %v2141
  %v3396 = vmul.f32 %v3330, %v2142
  %v3397 = vmul.f32 %v3326, %v2143
  %v3398 = vmul.f32 %v3330, %v2144
  %v3400 = vcombine.low %v3206, %v3285
  %v3402 = vunpack.c.l.s4 1966171168
  %v3403 = vunpack.c.0.s8 %v3402
  %v3404 = vlaneseq
  %v3405 = vshrl.u32 %v3404, 7
  %v3406 = vsub.s32 %v3403, %v3405
  %v3407 = vrot.slane %v3400, %v3406
  %v3408 = vcombine.high %v3407, %v3407
  %v3410 = vunpack.c.l.s4 1966171168
  %v3411 = vunpack.c.0.s8 %v3410
  %v3412 = vlaneseq
  %v3413 = vshrl.u32 %v3412, 7
  %v3414 = vsub.s32 %v3411, %v3413
  %v3415 = vrot.slane %v3407, %v3414
  %v3417 = vunpack.c.l.s4 1966171168
  %v3418 = vunpack.c.0.s8 %v3417
  %v3419 = vlaneseq
  %v3420 = vshrl.u32 %v3419, 7
  %v3421 = vsub.s32 %v3418, %v3420
  %v3422 = vrot.slane %v3408, %v3421
  %v3423 = vlaneseq
  %v3424 = vshrl.u32 %v3423, 7
  %v3425 = vsub.s32 0, %v3424
  %v3426 = vrot.slane %v3415, %v3425
  %v3427 = vlaneseq
  %v3428 = vshrl.u32 %v3427, 7
  %v3429 = vsub.s32 1, %v3428
  %v3430 = vrot.slane %v3415, %v3429
  %v3431 = vlaneseq
  %v3432 = vshrl.u32 %v3431, 7
  %v3433 = vsub.s32 0, %v3432
  %v3434 = vrot.slane %v3422, %v3433
  %v3435 = vlaneseq
  %v3436 = vshrl.u32 %v3435, 7
  %v3437 = vsub.s32 1, %v3436
  %v3438 = vrot.slane %v3422, %v3437
  %3439 = vrot.lane.b32.xlu0 %v3426, 64
  %v3440 = vpop.permute.xlu0 %3439
  %3441 = vrot.lane.b32.xlu0 %v3430, 64
  %v3442 = vpop.permute.xlu0 %3441
  %3443 = vrot.lane.b32.xlu0 %v3434, 64
  %v3444 = vpop.permute.xlu0 %3443
  %3445 = vrot.lane.b32.xlu0 %v3438, 64
  %v3446 = vpop.permute.xlu0 %3445
  %v3447 = vsel %vm1415, %v3440, %v3442
  %v3448 = vsel %vm1415, %v3444, %v3446
  %v3453 = vadd.f32 %v3335, %v3447
  %v3454 = vadd.f32 %v3336, %v3442
  %v3455 = vadd.f32 %v3337, %v3447
  %v3456 = vadd.f32 %v3338, %v3442
  %v3457 = vadd.f32 %v3339, %v3447
  %v3458 = vadd.f32 %v3340, %v3442
  %v3459 = vadd.f32 %v3341, %v3447
  %v3460 = vadd.f32 %v3342, %v3442
  %v3461 = vadd.f32 %v3343, %v3447
  %v3462 = vadd.f32 %v3344, %v3442
  %v3463 = vadd.f32 %v3345, %v3447
  %v3464 = vadd.f32 %v3346, %v3442
  %v3465 = vadd.f32 %v3347, %v3447
  %v3466 = vadd.f32 %v3348, %v3442
  %v3467 = vadd.f32 %v3349, %v3447
  %v3468 = vadd.f32 %v3350, %v3442
  %v3469 = vadd.f32 %v3351, %v3447
  %v3470 = vadd.f32 %v3352, %v3442
  %v3471 = vadd.f32 %v3353, %v3447
  %v3472 = vadd.f32 %v3354, %v3442
  %v3473 = vadd.f32 %v3355, %v3447
  %v3474 = vadd.f32 %v3356, %v3442
  %v3475 = vadd.f32 %v3357, %v3447
  %v3476 = vadd.f32 %v3358, %v3442
  %v3477 = vadd.f32 %v3359, %v3447
  %v3478 = vadd.f32 %v3360, %v3442
  %v3479 = vadd.f32 %v3361, %v3447
  %v3480 = vadd.f32 %v3362, %v3442
  %v3481 = vadd.f32 %v3363, %v3447
  %v3482 = vadd.f32 %v3364, %v3442
  %v3483 = vadd.f32 %v3365, %v3447
  %v3484 = vadd.f32 %v3366, %v3442
  %v3485 = vadd.f32 %v3367, %v3448
  %v3486 = vadd.f32 %v3368, %v3446
  %v3487 = vadd.f32 %v3369, %v3448
  %v3488 = vadd.f32 %v3370, %v3446
  %v3489 = vadd.f32 %v3371, %v3448
  %v3490 = vadd.f32 %v3372, %v3446
  %v3491 = vadd.f32 %v3373, %v3448
  %v3492 = vadd.f32 %v3374, %v3446
  %v3493 = vadd.f32 %v3375, %v3448
  %v3494 = vadd.f32 %v3376, %v3446
  %v3495 = vadd.f32 %v3377, %v3448
  %v3496 = vadd.f32 %v3378, %v3446
  %v3497 = vadd.f32 %v3379, %v3448
  %v3498 = vadd.f32 %v3380, %v3446
  %v3499 = vadd.f32 %v3381, %v3448
  %v3500 = vadd.f32 %v3382, %v3446
  %v3501 = vadd.f32 %v3383, %v3448
  %v3502 = vadd.f32 %v3384, %v3446
  %v3503 = vadd.f32 %v3385, %v3448
  %v3504 = vadd.f32 %v3386, %v3446
  %v3505 = vadd.f32 %v3387, %v3448
  %v3506 = vadd.f32 %v3388, %v3446
  %v3507 = vadd.f32 %v3389, %v3448
  %v3508 = vadd.f32 %v3390, %v3446
  %v3509 = vadd.f32 %v3391, %v3448
  %v3510 = vadd.f32 %v3392, %v3446
  %v3511 = vadd.f32 %v3393, %v3448
  %v3512 = vadd.f32 %v3394, %v3446
  %v3513 = vadd.f32 %v3395, %v3448
  %v3514 = vadd.f32 %v3396, %v3446
  %v3515 = vadd.f32 %v3397, %v3448
  %v3516 = vadd.f32 %v3398, %v3446
  %3517 = vmatprep.subr.mxu0 %v3454
  %3518 = vmatpush1.msra.mxu0 %v3453
  %3519 = vmatprep.subr.mxu0 %v3456
  %3520 = vmatpush1.msra.mxu0 %v3455
  %3521 = vmatprep.subr.mxu0 %v3458
  %3522 = vmatpush1.msra.mxu0 %v3457
  %3523 = vmatprep.subr.mxu0 %v3460
  %3524 = vmatpush1.msra.mxu0 %v3459
  %3525 = vmatprep.subr.mxu0 %v3462
  %3526 = vmatpush1.msra.mxu0 %v3461
  %3527 = vmatprep.subr.mxu0 %v3464
  %3528 = vmatpush1.msra.mxu0 %v3463
  %3529 = vmatprep.subr.mxu0 %v3466
  %3530 = vmatpush1.msra.mxu0 %v3465
  %3531 = vmatprep.subr.mxu0 %v3468
  %3532 = vmatpush1.msra.mxu0 %v3467
  %3533 = vmatprep.subr.mxu0 %v3470
  %3534 = vmatpush1.msra.mxu0 %v3469
  %3535 = vmatprep.subr.mxu0 %v3472
  %3536 = vmatpush1.msra.mxu0 %v3471
  %3537 = vmatprep.subr.mxu0 %v3474
  %3538 = vmatpush1.msra.mxu0 %v3473
  %3539 = vmatprep.subr.mxu0 %v3476
  %3540 = vmatpush1.msra.mxu0 %v3475
  %3541 = vmatprep.subr.mxu0 %v3478
  %3542 = vmatpush1.msra.mxu0 %v3477
  %3543 = vmatprep.subr.mxu0 %v3480
  %3544 = vmatpush1.msra.mxu0 %v3479
  %3545 = vmatprep.subr.mxu0 %v3482
  %3546 = vmatpush1.msra.mxu0 %v3481
  %3547 = vmatprep.subr.mxu0 %v3484
  %3548 = vmatpush1.msra.mxu0 %v3483
  %3549 = vmatprep.subr.mxu0 %v3486
  %3550 = vmatpush1.msra.mxu0 %v3485
  %3551 = vmatprep.subr.mxu0 %v3488
  %3552 = vmatpush1.msra.mxu0 %v3487
  %3553 = vmatprep.subr.mxu0 %v3490
  %3554 = vmatpush1.msra.mxu0 %v3489
  %3555 = vmatprep.subr.mxu0 %v3492
  %3556 = vmatpush1.msra.mxu0 %v3491
  %3557 = vmatprep.subr.mxu0 %v3494
  %3558 = vmatpush1.msra.mxu0 %v3493
  %3559 = vmatprep.subr.mxu0 %v3496
  %3560 = vmatpush1.msra.mxu0 %v3495
  %3561 = vmatprep.subr.mxu0 %v3498
  %3562 = vmatpush1.msra.mxu0 %v3497
  %3563 = vmatprep.subr.mxu0 %v3500
  %3564 = vmatpush1.msra.mxu0 %v3499
  %3565 = vmatprep.subr.mxu0 %v3502
  %3566 = vmatpush1.msra.mxu0 %v3501
  %3567 = vmatprep.subr.mxu0 %v3504
  %3568 = vmatpush1.msra.mxu0 %v3503
  %3569 = vmatprep.subr.mxu0 %v3506
  %3570 = vmatpush1.msra.mxu0 %v3505
  %3571 = vmatprep.subr.mxu0 %v3508
  %3572 = vmatpush1.msra.mxu0 %v3507
  %3573 = vmatprep.subr.mxu0 %v3510
  %3574 = vmatpush1.msra.mxu0 %v3509
  %3575 = vmatprep.subr.mxu0 %v3512
  %3576 = vmatpush1.msra.mxu0 %v3511
  %3577 = vmatprep.subr.mxu0 %v3514
  %3578 = vmatpush1.msra.mxu0 %v3513
  %3579 = vmatprep.subr.mxu0 %v3516
  %3580 = vmatpush1.msra.mxu0 %v3515
  %3581 = vmatprep.mubr.f32.mxu0 1.0
  %3582 = vmatmul.mubr.f32.gmra.mrb[0].mxu0 1.0
  %v3583 = vpop.f32.mrb[0].mxu0
  %v3584 = vadd.f32 0.0, %v3583
  %v3585 = vpop.f32.mrb[0].mxu0
  %v3586 = vadd.f32 0.0, %v3585
  %3587 = vdwg.mxu0
  %v3588 = vmul.f32 %v3453, %v3453
  %v3589 = vmul.f32 %v3454, %v3454
  %v3590 = vmul.f32 %v3455, %v3455
  %v3591 = vmul.f32 %v3456, %v3456
  %v3592 = vmul.f32 %v3457, %v3457
  %v3593 = vmul.f32 %v3458, %v3458
  %v3594 = vmul.f32 %v3459, %v3459
  %v3595 = vmul.f32 %v3460, %v3460
  %v3596 = vmul.f32 %v3461, %v3461
  %v3597 = vmul.f32 %v3462, %v3462
  %v3598 = vmul.f32 %v3463, %v3463
  %v3599 = vmul.f32 %v3464, %v3464
  %v3600 = vmul.f32 %v3465, %v3465
  %v3601 = vmul.f32 %v3466, %v3466
  %v3602 = vmul.f32 %v3467, %v3467
  %v3603 = vmul.f32 %v3468, %v3468
  %v3604 = vmul.f32 %v3469, %v3469
  %v3605 = vmul.f32 %v3470, %v3470
  %v3606 = vmul.f32 %v3471, %v3471
  %v3607 = vmul.f32 %v3472, %v3472
  %v3608 = vmul.f32 %v3473, %v3473
  %v3609 = vmul.f32 %v3474, %v3474
  %v3610 = vmul.f32 %v3475, %v3475
  %v3611 = vmul.f32 %v3476, %v3476
  %v3612 = vmul.f32 %v3477, %v3477
  %v3613 = vmul.f32 %v3478, %v3478
  %v3614 = vmul.f32 %v3479, %v3479
  %v3615 = vmul.f32 %v3480, %v3480
  %v3616 = vmul.f32 %v3481, %v3481
  %v3617 = vmul.f32 %v3482, %v3482
  %v3618 = vmul.f32 %v3483, %v3483
  %v3619 = vmul.f32 %v3484, %v3484
  %v3620 = vmul.f32 %v3485, %v3485
  %v3621 = vmul.f32 %v3486, %v3486
  %v3622 = vmul.f32 %v3487, %v3487
  %v3623 = vmul.f32 %v3488, %v3488
  %v3624 = vmul.f32 %v3489, %v3489
  %v3625 = vmul.f32 %v3490, %v3490
  %v3626 = vmul.f32 %v3491, %v3491
  %v3627 = vmul.f32 %v3492, %v3492
  %v3628 = vmul.f32 %v3493, %v3493
  %v3629 = vmul.f32 %v3494, %v3494
  %v3630 = vmul.f32 %v3495, %v3495
  %v3631 = vmul.f32 %v3496, %v3496
  %v3632 = vmul.f32 %v3497, %v3497
  %v3633 = vmul.f32 %v3498, %v3498
  %v3634 = vmul.f32 %v3499, %v3499
  %v3635 = vmul.f32 %v3500, %v3500
  %v3636 = vmul.f32 %v3501, %v3501
  %v3637 = vmul.f32 %v3502, %v3502
  %v3638 = vmul.f32 %v3503, %v3503
  %v3639 = vmul.f32 %v3504, %v3504
  %v3640 = vmul.f32 %v3505, %v3505
  %v3641 = vmul.f32 %v3506, %v3506
  %v3642 = vmul.f32 %v3507, %v3507
  %v3643 = vmul.f32 %v3508, %v3508
  %v3644 = vmul.f32 %v3509, %v3509
  %v3645 = vmul.f32 %v3510, %v3510
  %v3646 = vmul.f32 %v3511, %v3511
  %v3647 = vmul.f32 %v3512, %v3512
  %v3648 = vmul.f32 %v3513, %v3513
  %v3649 = vmul.f32 %v3514, %v3514
  %v3650 = vmul.f32 %v3515, %v3515
  %v3651 = vmul.f32 %v3516, %v3516
  %3652 = vmatprep.subr.mxu0 %v3589
  %3653 = vmatpush1.msra.mxu0 %v3588
  %3654 = vmatprep.subr.mxu0 %v3591
  %3655 = vmatpush1.msra.mxu0 %v3590
  %3656 = vmatprep.subr.mxu0 %v3593
  %3657 = vmatpush1.msra.mxu0 %v3592
  %3658 = vmatprep.subr.mxu0 %v3595
  %3659 = vmatpush1.msra.mxu0 %v3594
  %3660 = vmatprep.subr.mxu0 %v3597
  %3661 = vmatpush1.msra.mxu0 %v3596
  %3662 = vmatprep.subr.mxu0 %v3599
  %3663 = vmatpush1.msra.mxu0 %v3598
  %3664 = vmatprep.subr.mxu0 %v3601
  %3665 = vmatpush1.msra.mxu0 %v3600
  %3666 = vmatprep.subr.mxu0 %v3603
  %3667 = vmatpush1.msra.mxu0 %v3602
  %3668 = vmatprep.subr.mxu0 %v3605
  %3669 = vmatpush1.msra.mxu0 %v3604
  %3670 = vmatprep.subr.mxu0 %v3607
  %3671 = vmatpush1.msra.mxu0 %v3606
  %3672 = vmatprep.subr.mxu0 %v3609
  %3673 = vmatpush1.msra.mxu0 %v3608
  %3674 = vmatprep.subr.mxu0 %v3611
  %3675 = vmatpush1.msra.mxu0 %v3610
  %3676 = vmatprep.subr.mxu0 %v3613
  %3677 = vmatpush1.msra.mxu0 %v3612
  %3678 = vmatprep.subr.mxu0 %v3615
  %3679 = vmatpush1.msra.mxu0 %v3614
  %3680 = vmatprep.subr.mxu0 %v3617
  %3681 = vmatpush1.msra.mxu0 %v3616
  %3682 = vmatprep.subr.mxu0 %v3619
  %3683 = vmatpush1.msra.mxu0 %v3618
  %3684 = vmatprep.subr.mxu0 %v3621
  %3685 = vmatpush1.msra.mxu0 %v3620
  %3686 = vmatprep.subr.mxu0 %v3623
  %3687 = vmatpush1.msra.mxu0 %v3622
  %3688 = vmatprep.subr.mxu0 %v3625
  %3689 = vmatpush1.msra.mxu0 %v3624
  %3690 = vmatprep.subr.mxu0 %v3627
  %3691 = vmatpush1.msra.mxu0 %v3626
  %3692 = vmatprep.subr.mxu0 %v3629
  %3693 = vmatpush1.msra.mxu0 %v3628
  %3694 = vmatprep.subr.mxu0 %v3631
  %3695 = vmatpush1.msra.mxu0 %v3630
  %3696 = vmatprep.subr.mxu0 %v3633
  %3697 = vmatpush1.msra.mxu0 %v3632
  %3698 = vmatprep.subr.mxu0 %v3635
  %3699 = vmatpush1.msra.mxu0 %v3634
  %3700 = vmatprep.subr.mxu0 %v3637
  %3701 = vmatpush1.msra.mxu0 %v3636
  %3702 = vmatprep.subr.mxu0 %v3639
  %3703 = vmatpush1.msra.mxu0 %v3638
  %3704 = vmatprep.subr.mxu0 %v3641
  %3705 = vmatpush1.msra.mxu0 %v3640
  %3706 = vmatprep.subr.mxu0 %v3643
  %3707 = vmatpush1.msra.mxu0 %v3642
  %3708 = vmatprep.subr.mxu0 %v3645
  %3709 = vmatpush1.msra.mxu0 %v3644
  %3710 = vmatprep.subr.mxu0 %v3647
  %3711 = vmatpush1.msra.mxu0 %v3646
  %3712 = vmatprep.subr.mxu0 %v3649
  %3713 = vmatpush1.msra.mxu0 %v3648
  %3714 = vmatprep.subr.mxu0 %v3651
  %3715 = vmatpush1.msra.mxu0 %v3650
  %3716 = vmatprep.mubr.f32.mxu0 1.0
  %3717 = vmatmul.mubr.f32.gmra.mrb[0].mxu0 1.0
  %v3718 = vpop.f32.mrb[0].mxu0
  %v3719 = vadd.f32 0.0, %v3718
  %v3720 = vpop.f32.mrb[0].mxu0
  %v3721 = vadd.f32 0.0, %v3720
  %3722 = vdwg.mxu0
  %v3723 = vmul.f32 %v3584, 0.00390625
  %v3724 = vmul.f32 %v3586, 0.00390625
  %v3725 = vmul.f32 %v3719, 0.00390625
  %v3726 = vmul.f32 %v3721, 0.00390625
  %v3727 = vmul.f32 %v3723, %v3723
  %v3728 = vmul.f32 %v3724, %v3724
  %v3729 = vsub.f32 %v3725, %v3727
  %v3730 = vsub.f32 %v3726, %v3728
  %v3731 = vmax.f32 %v3729, 0.0
  %v3732 = vmax.f32 %v3730, 0.0
  %v3733 = vld [vmem:[%s27] sm:$0x3]
  %v3734 = vadd.f32 %v3731, 1e-05
  %v3735 = vadd.f32 %v3732, 1e-05
  %v3736 = vrsqrt.pop %v3734
  %v3737 = vrsqrt.pop %v3735
  %v3740 = vcombine.low %v3736, %v3737
  %v3742 = vunpack.c.l.s4 1966171168
  %v3743 = vunpack.c.0.s8 %v3742
  %v3744 = vlaneseq
  %v3745 = vshrl.u32 %v3744, 7
  %v3746 = vsub.s32 %v3743, %v3745
  %v3747 = vrot.slane %v3740, %v3746
  %v3749 = vunpack.c.l.s4 1966171168
  %v3750 = vunpack.c.0.s8 %v3749
  %v3751 = vlaneseq
  %v3752 = vshrl.u32 %v3751, 7
  %v3753 = vsub.s32 %v3750, %v3752
  %v3754 = vrot.slane %v3747, %v3753
  %v3756 = vmul.f32 %v3733, %v3754
  %v3757 = vld [vmem:[%s29] sm:$0x3]
  %v3759 = vlaneseq
  %v3760 = vshrl.u32 %v3759, 7
  %v3761 = vsub.s32 0, %v3760
  %v3762 = vrot.slane %v3756, %v3761
  %v3763 = vlaneseq
  %v3764 = vshrl.u32 %v3763, 7
  %v3765 = vsub.s32 1, %v3764
  %v3766 = vrot.slane %v3756, %v3765
  %v3769 = vmul.f32 %v3723, %v3762
  %v3770 = vmul.f32 %v3724, %v3766
  %v3773 = vcombine.low %v3769, %v3770
  %v3775 = vunpack.c.l.s4 1966171168
  %v3776 = vunpack.c.0.s8 %v3775
  %v3777 = vlaneseq
  %v3778 = vshrl.u32 %v3777, 7
  %v3779 = vsub.s32 %v3776, %v3778
  %v3780 = vrot.slane %v3773, %v3779
  %v3782 = vunpack.c.l.s4 1966171168
  %v3783 = vunpack.c.0.s8 %v3782
  %v3784 = vlaneseq
  %v3785 = vshrl.u32 %v3784, 7
  %v3786 = vsub.s32 %v3783, %v3785
  %v3787 = vrot.slane %v3780, %v3786
  %v3789 = vsub.f32 %v3757, %v3787
  %v3790 = vmul.f32 %v3453, %v3762
  %v3791 = vmul.f32 %v3454, %v3766
  %v3792 = vmul.f32 %v3455, %v3762
  %v3793 = vmul.f32 %v3456, %v3766
  %v3794 = vmul.f32 %v3457, %v3762
  %v3795 = vmul.f32 %v3458, %v3766
  %v3796 = vmul.f32 %v3459, %v3762
  %v3797 = vmul.f32 %v3460, %v3766
  %v3798 = vmul.f32 %v3461, %v3762
  %v3799 = vmul.f32 %v3462, %v3766
  %v3800 = vmul.f32 %v3463, %v3762
  %v3801 = vmul.f32 %v3464, %v3766
  %v3802 = vmul.f32 %v3465, %v3762
  %v3803 = vmul.f32 %v3466, %v3766
  %v3804 = vmul.f32 %v3467, %v3762
  %v3805 = vmul.f32 %v3468, %v3766
  %v3806 = vmul.f32 %v3469, %v3762
  %v3807 = vmul.f32 %v3470, %v3766
  %v3808 = vmul.f32 %v3471, %v3762
  %v3809 = vmul.f32 %v3472, %v3766
  %v3810 = vmul.f32 %v3473, %v3762
  %v3811 = vmul.f32 %v3474, %v3766
  %v3812 = vmul.f32 %v3475, %v3762
  %v3813 = vmul.f32 %v3476, %v3766
  %v3814 = vmul.f32 %v3477, %v3762
  %v3815 = vmul.f32 %v3478, %v3766
  %v3816 = vmul.f32 %v3479, %v3762
  %v3817 = vmul.f32 %v3480, %v3766
  %v3818 = vmul.f32 %v3481, %v3762
  %v3819 = vmul.f32 %v3482, %v3766
  %v3820 = vmul.f32 %v3483, %v3762
  %v3821 = vmul.f32 %v3484, %v3766
  %v3822 = vmul.f32 %v3485, %v3762
  %v3823 = vmul.f32 %v3486, %v3766
  %v3824 = vmul.f32 %v3487, %v3762
  %v3825 = vmul.f32 %v3488, %v3766
  %v3826 = vmul.f32 %v3489, %v3762
  %v3827 = vmul.f32 %v3490, %v3766
  %v3828 = vmul.f32 %v3491, %v3762
  %v3829 = vmul.f32 %v3492, %v3766
  %v3830 = vmul.f32 %v3493, %v3762
  %v3831 = vmul.f32 %v3494, %v3766
  %v3832 = vmul.f32 %v3495, %v3762
  %v3833 = vmul.f32 %v3496, %v3766
  %v3834 = vmul.f32 %v3497, %v3762
  %v3835 = vmul.f32 %v3498, %v3766
  %v3836 = vmul.f32 %v3499, %v3762
  %v3837 = vmul.f32 %v3500, %v3766
  %v3838 = vmul.f32 %v3501, %v3762
  %v3839 = vmul.f32 %v3502, %v3766
  %v3840 = vmul.f32 %v3503, %v3762
  %v3841 = vmul.f32 %v3504, %v3766
  %v3842 = vmul.f32 %v3505, %v3762
  %v3843 = vmul.f32 %v3506, %v3766
  %v3844 = vmul.f32 %v3507, %v3762
  %v3845 = vmul.f32 %v3508, %v3766
  %v3846 = vmul.f32 %v3509, %v3762
  %v3847 = vmul.f32 %v3510, %v3766
  %v3848 = vmul.f32 %v3511, %v3762
  %v3849 = vmul.f32 %v3512, %v3766
  %v3850 = vmul.f32 %v3513, %v3762
  %v3851 = vmul.f32 %v3514, %v3766
  %v3852 = vmul.f32 %v3515, %v3762
  %v3853 = vmul.f32 %v3516, %v3766
  %v3855 = vlaneseq
  %v3856 = vshrl.u32 %v3855, 7
  %v3857 = vsub.s32 0, %v3856
  %v3858 = vrot.slane %v3789, %v3857
  %v3859 = vlaneseq
  %v3860 = vshrl.u32 %v3859, 7
  %v3861 = vsub.s32 1, %v3860
  %v3862 = vrot.slane %v3789, %v3861
  %v3865 = vadd.f32 %v3790, %v3858
  %v3866 = vadd.f32 %v3791, %v3862
  %v3867 = vadd.f32 %v3792, %v3858
  %v3868 = vadd.f32 %v3793, %v3862
  %v3869 = vadd.f32 %v3794, %v3858
  %v3870 = vadd.f32 %v3795, %v3862
  %v3871 = vadd.f32 %v3796, %v3858
  %v3872 = vadd.f32 %v3797, %v3862
  %v3873 = vadd.f32 %v3798, %v3858
  %v3874 = vadd.f32 %v3799, %v3862
  %v3875 = vadd.f32 %v3800, %v3858
  %v3876 = vadd.f32 %v3801, %v3862
  %v3877 = vadd.f32 %v3802, %v3858
  %v3878 = vadd.f32 %v3803, %v3862
  %v3879 = vadd.f32 %v3804, %v3858
  %v3880 = vadd.f32 %v3805, %v3862
  %v3881 = vadd.f32 %v3806, %v3858
  %v3882 = vadd.f32 %v3807, %v3862
  %v3883 = vadd.f32 %v3808, %v3858
  %v3884 = vadd.f32 %v3809, %v3862
  %v3885 = vadd.f32 %v3810, %v3858
  %v3886 = vadd.f32 %v3811, %v3862
  %v3887 = vadd.f32 %v3812, %v3858
  %v3888 = vadd.f32 %v3813, %v3862
  %v3889 = vadd.f32 %v3814, %v3858
  %v3890 = vadd.f32 %v3815, %v3862
  %v3891 = vadd.f32 %v3816, %v3858
  %v3892 = vadd.f32 %v3817, %v3862
  %v3893 = vadd.f32 %v3818, %v3858
  %v3894 = vadd.f32 %v3819, %v3862
  %v3895 = vadd.f32 %v3820, %v3858
  %v3896 = vadd.f32 %v3821, %v3862
  %v3897 = vadd.f32 %v3822, %v3858
  %v3898 = vadd.f32 %v3823, %v3862
  %v3899 = vadd.f32 %v3824, %v3858
  %v3900 = vadd.f32 %v3825, %v3862
  %v3901 = vadd.f32 %v3826, %v3858
  %v3902 = vadd.f32 %v3827, %v3862
  %v3903 = vadd.f32 %v3828, %v3858
  %v3904 = vadd.f32 %v3829, %v3862
  %v3905 = vadd.f32 %v3830, %v3858
  %v3906 = vadd.f32 %v3831, %v3862
  %v3907 = vadd.f32 %v3832, %v3858
  %v3908 = vadd.f32 %v3833, %v3862
  %v3909 = vadd.f32 %v3834, %v3858
  %v3910 = vadd.f32 %v3835, %v3862
  %v3911 = vadd.f32 %v3836, %v3858
  %v3912 = vadd.f32 %v3837, %v3862
  %v3913 = vadd.f32 %v3838, %v3858
  %v3914 = vadd.f32 %v3839, %v3862
  %v3915 = vadd.f32 %v3840, %v3858
  %v3916 = vadd.f32 %v3841, %v3862
  %v3917 = vadd.f32 %v3842, %v3858
  %v3918 = vadd.f32 %v3843, %v3862
  %v3919 = vadd.f32 %v3844, %v3858
  %v3920 = vadd.f32 %v3845, %v3862
  %v3921 = vadd.f32 %v3846, %v3858
  %v3922 = vadd.f32 %v3847, %v3862
  %v3923 = vadd.f32 %v3848, %v3858
  %v3924 = vadd.f32 %v3849, %v3862
  %v3925 = vadd.f32 %v3850, %v3858
  %v3926 = vadd.f32 %v3851, %v3862
  %v3927 = vadd.f32 %v3852, %v3858
  %v3928 = vadd.f32 %v3853, %v3862
  %3993 = vrot.lane.b32.xlu0 %v668, 64
  %v3994 = vpop.permute.xlu0 %3993
  %3995 = vrot.lane.b32.xlu0 %v669, 64
  %v3996 = vpop.permute.xlu0 %3995
  %3997 = vrot.lane.b32.xlu0 %v671, 64
  %v3998 = vpop.permute.xlu0 %3997
  %3999 = vrot.lane.b32.xlu0 %v672, 64
  %v4000 = vpop.permute.xlu0 %3999
  %4001 = vrot.lane.b32.xlu0 %v674, 64
  %v4002 = vpop.permute.xlu0 %4001
  %4003 = vrot.lane.b32.xlu0 %v675, 64
  %v4004 = vpop.permute.xlu0 %4003
  %4005 = vrot.lane.b32.xlu0 %v677, 64
  %v4006 = vpop.permute.xlu0 %4005
  %4007 = vrot.lane.b32.xlu0 %v678, 64
  %v4008 = vpop.permute.xlu0 %4007
  %4009 = vrot.lane.b32.xlu0 %v680, 64
  %v4010 = vpop.permute.xlu0 %4009
  %4011 = vrot.lane.b32.xlu0 %v681, 64
  %v4012 = vpop.permute.xlu0 %4011
  %4013 = vrot.lane.b32.xlu0 %v683, 64
  %v4014 = vpop.permute.xlu0 %4013
  %4015 = vrot.lane.b32.xlu0 %v684, 64
  %v4016 = vpop.permute.xlu0 %4015
  %4017 = vrot.lane.b32.xlu0 %v686, 64
  %v4018 = vpop.permute.xlu0 %4017
  %4019 = vrot.lane.b32.xlu0 %v687, 64
  %v4020 = vpop.permute.xlu0 %4019
  %4021 = vrot.lane.b32.xlu0 %v689, 64
  %v4022 = vpop.permute.xlu0 %4021
  %4023 = vrot.lane.b32.xlu0 %v690, 64
  %v4024 = vpop.permute.xlu0 %4023
  %4025 = vrot.lane.b32.xlu0 %v692, 64
  %v4026 = vpop.permute.xlu0 %4025
  %4027 = vrot.lane.b32.xlu0 %v693, 64
  %v4028 = vpop.permute.xlu0 %4027
  %4029 = vrot.lane.b32.xlu0 %v695, 64
  %v4030 = vpop.permute.xlu0 %4029
  %4031 = vrot.lane.b32.xlu0 %v696, 64
  %v4032 = vpop.permute.xlu0 %4031
  %4033 = vrot.lane.b32.xlu0 %v698, 64
  %v4034 = vpop.permute.xlu0 %4033
  %4035 = vrot.lane.b32.xlu0 %v699, 64
  %v4036 = vpop.permute.xlu0 %4035
  %4037 = vrot.lane.b32.xlu0 %v701, 64
  %v4038 = vpop.permute.xlu0 %4037
  %4039 = vrot.lane.b32.xlu0 %v702, 64
  %v4040 = vpop.permute.xlu0 %4039
  %4041 = vrot.lane.b32.xlu0 %v704, 64
  %v4042 = vpop.permute.xlu0 %4041
  %4043 = vrot.lane.b32.xlu0 %v705, 64
  %v4044 = vpop.permute.xlu0 %4043
  %4045 = vrot.lane.b32.xlu0 %v707, 64
  %v4046 = vpop.permute.xlu0 %4045
  %4047 = vrot.lane.b32.xlu0 %v708, 64
  %v4048 = vpop.permute.xlu0 %4047
  %4049 = vrot.lane.b32.xlu0 %v710, 64
  %v4050 = vpop.permute.xlu0 %4049
  %4051 = vrot.lane.b32.xlu0 %v711, 64
  %v4052 = vpop.permute.xlu0 %4051
  %4053 = vrot.lane.b32.xlu0 %v713, 64
  %v4054 = vpop.permute.xlu0 %4053
  %4055 = vrot.lane.b32.xlu0 %v714, 64
  %v4056 = vpop.permute.xlu0 %4055
  %4057 = vrot.lane.b32.xlu0 %v716, 64
  %v4058 = vpop.permute.xlu0 %4057
  %4059 = vrot.lane.b32.xlu0 %v717, 64
  %v4060 = vpop.permute.xlu0 %4059
  %4061 = vrot.lane.b32.xlu0 %v719, 64
  %v4062 = vpop.permute.xlu0 %4061
  %4063 = vrot.lane.b32.xlu0 %v720, 64
  %v4064 = vpop.permute.xlu0 %4063
  %4065 = vrot.lane.b32.xlu0 %v722, 64
  %v4066 = vpop.permute.xlu0 %4065
  %4067 = vrot.lane.b32.xlu0 %v723, 64
  %v4068 = vpop.permute.xlu0 %4067
  %4069 = vrot.lane.b32.xlu0 %v725, 64
  %v4070 = vpop.permute.xlu0 %4069
  %4071 = vrot.lane.b32.xlu0 %v726, 64
  %v4072 = vpop.permute.xlu0 %4071
  %4073 = vrot.lane.b32.xlu0 %v728, 64
  %v4074 = vpop.permute.xlu0 %4073
  %4075 = vrot.lane.b32.xlu0 %v729, 64
  %v4076 = vpop.permute.xlu0 %4075
  %4077 = vrot.lane.b32.xlu0 %v731, 64
  %v4078 = vpop.permute.xlu0 %4077
  %4079 = vrot.lane.b32.xlu0 %v732, 64
  %v4080 = vpop.permute.xlu0 %4079
  %4081 = vrot.lane.b32.xlu0 %v734, 64
  %v4082 = vpop.permute.xlu0 %4081
  %4083 = vrot.lane.b32.xlu0 %v735, 64
  %v4084 = vpop.permute.xlu0 %4083
  %4085 = vrot.lane.b32.xlu0 %v737, 64
  %v4086 = vpop.permute.xlu0 %4085
  %4087 = vrot.lane.b32.xlu0 %v738, 64
  %v4088 = vpop.permute.xlu0 %4087
  %4089 = vrot.lane.b32.xlu0 %v740, 64
  %v4090 = vpop.permute.xlu0 %4089
  %4091 = vrot.lane.b32.xlu0 %v741, 64
  %v4092 = vpop.permute.xlu0 %4091
  %4093 = vrot.lane.b32.xlu0 %v743, 64
  %v4094 = vpop.permute.xlu0 %4093
  %4095 = vrot.lane.b32.xlu0 %v744, 64
  %v4096 = vpop.permute.xlu0 %4095
  %4097 = vrot.lane.b32.xlu0 %v746, 64
  %v4098 = vpop.permute.xlu0 %4097
  %4099 = vrot.lane.b32.xlu0 %v747, 64
  %v4100 = vpop.permute.xlu0 %4099
  %4101 = vrot.lane.b32.xlu0 %v749, 64
  %v4102 = vpop.permute.xlu0 %4101
  %4103 = vrot.lane.b32.xlu0 %v750, 64
  %v4104 = vpop.permute.xlu0 %4103
  %4105 = vrot.lane.b32.xlu0 %v752, 64
  %v4106 = vpop.permute.xlu0 %4105
  %4107 = vrot.lane.b32.xlu0 %v753, 64
  %v4108 = vpop.permute.xlu0 %4107
  %4109 = vrot.lane.b32.xlu0 %v755, 64
  %v4110 = vpop.permute.xlu0 %4109
  %4111 = vrot.lane.b32.xlu0 %v756, 64
  %v4112 = vpop.permute.xlu0 %4111
  %4113 = vrot.lane.b32.xlu0 %v758, 64
  %v4114 = vpop.permute.xlu0 %4113
  %4115 = vrot.lane.b32.xlu0 %v759, 64
  %v4116 = vpop.permute.xlu0 %4115
  %4117 = vrot.lane.b32.xlu0 %v761, 64
  %v4118 = vpop.permute.xlu0 %4117
  %4119 = vrot.lane.b32.xlu0 %v762, 64
  %v4120 = vpop.permute.xlu0 %4119
  %v4121 = vsel %vm1415, %v3994, %v3996
  %v4122 = vsel %vm1415, %v3998, %v4000
  %v4123 = vsel %vm1415, %v4002, %v4004
  %v4124 = vsel %vm1415, %v4006, %v4008
  %v4125 = vsel %vm1415, %v4010, %v4012
  %v4126 = vsel %vm1415, %v4014, %v4016
  %v4127 = vsel %vm1415, %v4018, %v4020
  %v4128 = vsel %vm1415, %v4022, %v4024
  %v4129 = vsel %vm1415, %v4026, %v4028
  %v4130 = vsel %vm1415, %v4030, %v4032
  %v4131 = vsel %vm1415, %v4034, %v4036
  %v4132 = vsel %vm1415, %v4038, %v4040
  %v4133 = vsel %vm1415, %v4042, %v4044
  %v4134 = vsel %vm1415, %v4046, %v4048
  %v4135 = vsel %vm1415, %v4050, %v4052
  %v4136 = vsel %vm1415, %v4054, %v4056
  %v4137 = vsel %vm1415, %v4058, %v4060
  %v4138 = vsel %vm1415, %v4062, %v4064
  %v4139 = vsel %vm1415, %v4066, %v4068
  %v4140 = vsel %vm1415, %v4070, %v4072
  %v4141 = vsel %vm1415, %v4074, %v4076
  %v4142 = vsel %vm1415, %v4078, %v4080
  %v4143 = vsel %vm1415, %v4082, %v4084
  %v4144 = vsel %vm1415, %v4086, %v4088
  %v4145 = vsel %vm1415, %v4090, %v4092
  %v4146 = vsel %vm1415, %v4094, %v4096
  %v4147 = vsel %vm1415, %v4098, %v4100
  %v4148 = vsel %vm1415, %v4102, %v4104
  %v4149 = vsel %vm1415, %v4106, %v4108
  %v4150 = vsel %vm1415, %v4110, %v4112
  %v4151 = vsel %vm1415, %v4114, %v4116
  %v4152 = vsel %vm1415, %v4118, %v4120
  %v4217 = vadd.f32 %v3865, %v4121
  %v4218 = vadd.f32 %v3866, %v3996
  %v4219 = vadd.f32 %v3867, %v4122
  %v4220 = vadd.f32 %v3868, %v4000
  %v4221 = vadd.f32 %v3869, %v4123
  %v4222 = vadd.f32 %v3870, %v4004
  %v4223 = vadd.f32 %v3871, %v4124
  %v4224 = vadd.f32 %v3872, %v4008
  %v4225 = vadd.f32 %v3873, %v4125
  %v4226 = vadd.f32 %v3874, %v4012
  %v4227 = vadd.f32 %v3875, %v4126
  %v4228 = vadd.f32 %v3876, %v4016
  %v4229 = vadd.f32 %v3877, %v4127
  %v4230 = vadd.f32 %v3878, %v4020
  %v4231 = vadd.f32 %v3879, %v4128
  %v4232 = vadd.f32 %v3880, %v4024
  %v4233 = vadd.f32 %v3881, %v4129
  %v4234 = vadd.f32 %v3882, %v4028
  %v4235 = vadd.f32 %v3883, %v4130
  %v4236 = vadd.f32 %v3884, %v4032
  %v4237 = vadd.f32 %v3885, %v4131
  %v4238 = vadd.f32 %v3886, %v4036
  %v4239 = vadd.f32 %v3887, %v4132
  %v4240 = vadd.f32 %v3888, %v4040
  %v4241 = vadd.f32 %v3889, %v4133
  %v4242 = vadd.f32 %v3890, %v4044
  %v4243 = vadd.f32 %v3891, %v4134
  %v4244 = vadd.f32 %v3892, %v4048
  %v4245 = vadd.f32 %v3893, %v4135
  %v4246 = vadd.f32 %v3894, %v4052
  %v4247 = vadd.f32 %v3895, %v4136
  %v4248 = vadd.f32 %v3896, %v4056
  %v4249 = vadd.f32 %v3897, %v4137
  %v4250 = vadd.f32 %v3898, %v4060
  %v4251 = vadd.f32 %v3899, %v4138
  %v4252 = vadd.f32 %v3900, %v4064
  %v4253 = vadd.f32 %v3901, %v4139
  %v4254 = vadd.f32 %v3902, %v4068
  %v4255 = vadd.f32 %v3903, %v4140
  %v4256 = vadd.f32 %v3904, %v4072
  %v4257 = vadd.f32 %v3905, %v4141
  %v4258 = vadd.f32 %v3906, %v4076
  %v4259 = vadd.f32 %v3907, %v4142
  %v4260 = vadd.f32 %v3908, %v4080
  %v4261 = vadd.f32 %v3909, %v4143
  %v4262 = vadd.f32 %v3910, %v4084
  %v4263 = vadd.f32 %v3911, %v4144
  %v4264 = vadd.f32 %v3912, %v4088
  %v4265 = vadd.f32 %v3913, %v4145
  %v4266 = vadd.f32 %v3914, %v4092
  %v4267 = vadd.f32 %v3915, %v4146
  %v4268 = vadd.f32 %v3916, %v4096
  %v4269 = vadd.f32 %v3917, %v4147
  %v4270 = vadd.f32 %v3918, %v4100
  %v4271 = vadd.f32 %v3919, %v4148
  %v4272 = vadd.f32 %v3920, %v4104
  %v4273 = vadd.f32 %v3921, %v4149
  %v4274 = vadd.f32 %v3922, %v4108
  %v4275 = vadd.f32 %v3923, %v4150
  %v4276 = vadd.f32 %v3924, %v4112
  %v4277 = vadd.f32 %v3925, %v4151
  %v4278 = vadd.f32 %v3926, %v4116
  %v4279 = vadd.f32 %v3927, %v4152
  %v4280 = vadd.f32 %v3928, %v4120
  %v4281 = vmax.f32 %v4217, 0.0
  %v4282 = vmax.f32 %v4218, 0.0
  %v4283 = vmax.f32 %v4219, 0.0
  %v4284 = vmax.f32 %v4220, 0.0
  %v4285 = vmax.f32 %v4221, 0.0
  %v4286 = vmax.f32 %v4222, 0.0
  %v4287 = vmax.f32 %v4223, 0.0
  %v4288 = vmax.f32 %v4224, 0.0
  %v4289 = vmax.f32 %v4225, 0.0
  %v4290 = vmax.f32 %v4226, 0.0
  %v4291 = vmax.f32 %v4227, 0.0
  %v4292 = vmax.f32 %v4228, 0.0
  %v4293 = vmax.f32 %v4229, 0.0
  %v4294 = vmax.f32 %v4230, 0.0
  %v4295 = vmax.f32 %v4231, 0.0
  %v4296 = vmax.f32 %v4232, 0.0
  %v4297 = vmax.f32 %v4233, 0.0
  %v4298 = vmax.f32 %v4234, 0.0
  %v4299 = vmax.f32 %v4235, 0.0
  %v4300 = vmax.f32 %v4236, 0.0
  %v4301 = vmax.f32 %v4237, 0.0
  %v4302 = vmax.f32 %v4238, 0.0
  %v4303 = vmax.f32 %v4239, 0.0
  %v4304 = vmax.f32 %v4240, 0.0
  %v4305 = vmax.f32 %v4241, 0.0
  %v4306 = vmax.f32 %v4242, 0.0
  %v4307 = vmax.f32 %v4243, 0.0
  %v4308 = vmax.f32 %v4244, 0.0
  %v4309 = vmax.f32 %v4245, 0.0
  %v4310 = vmax.f32 %v4246, 0.0
  %v4311 = vmax.f32 %v4247, 0.0
  %v4312 = vmax.f32 %v4248, 0.0
  %v4313 = vmax.f32 %v4249, 0.0
  %v4314 = vmax.f32 %v4250, 0.0
  %v4315 = vmax.f32 %v4251, 0.0
  %v4316 = vmax.f32 %v4252, 0.0
  %v4317 = vmax.f32 %v4253, 0.0
  %v4318 = vmax.f32 %v4254, 0.0
  %v4319 = vmax.f32 %v4255, 0.0
  %v4320 = vmax.f32 %v4256, 0.0
  %v4321 = vmax.f32 %v4257, 0.0
  %v4322 = vmax.f32 %v4258, 0.0
  %v4323 = vmax.f32 %v4259, 0.0
  %v4324 = vmax.f32 %v4260, 0.0
  %v4325 = vmax.f32 %v4261, 0.0
  %v4326 = vmax.f32 %v4262, 0.0
  %v4327 = vmax.f32 %v4263, 0.0
  %v4328 = vmax.f32 %v4264, 0.0
  %v4329 = vmax.f32 %v4265, 0.0
  %v4330 = vmax.f32 %v4266, 0.0
  %v4331 = vmax.f32 %v4267, 0.0
  %v4332 = vmax.f32 %v4268, 0.0
  %v4333 = vmax.f32 %v4269, 0.0
  %v4334 = vmax.f32 %v4270, 0.0
  %v4335 = vmax.f32 %v4271, 0.0
  %v4336 = vmax.f32 %v4272, 0.0
  %v4337 = vmax.f32 %v4273, 0.0
  %v4338 = vmax.f32 %v4274, 0.0
  %v4339 = vmax.f32 %v4275, 0.0
  %v4340 = vmax.f32 %v4276, 0.0
  %v4341 = vmax.f32 %v4277, 0.0
  %v4342 = vmax.f32 %v4278, 0.0
  %v4343 = vmax.f32 %v4279, 0.0
  %v4344 = vmax.f32 %v4280, 0.0
  %v4345 = vpack.c.bf16 %v4283, %v4281
  %v4346 = vpack.c.bf16 %v4287, %v4285
  %v4347 = vpack.c.bf16 %v4291, %v4289
  %v4348 = vpack.c.bf16 %v4295, %v4293
  %v4349 = vpack.c.bf16 %v4299, %v4297
  %v4350 = vpack.c.bf16 %v4303, %v4301
  %v4351 = vpack.c.bf16 %v4307, %v4305
  %v4352 = vpack.c.bf16 %v4311, %v4309
  %v4353 = vpack.c.bf16 %v4315, %v4313
  %v4354 = vpack.c.bf16 %v4319, %v4317
  %v4355 = vpack.c.bf16 %v4323, %v4321
  %v4356 = vpack.c.bf16 %v4327, %v4325
  %v4357 = vpack.c.bf16 %v4331, %v4329
  %v4358 = vpack.c.bf16 %v4335, %v4333
  %v4359 = vpack.c.bf16 %v4339, %v4337
  %v4360 = vpack.c.bf16 %v4343, %v4341
  %v4361 = vld [vmem:[%s31] sm:$0xff]
  %v4362 = vld [vmem:[%s31 + $0x8] sm:$0xff]
  %v4363 = vld [vmem:[%s31 + $0x10] sm:$0xff]
  %v4364 = vld [vmem:[%s31 + $0x18] sm:$0xff]
  %v4365 = vld [vmem:[%s31 + $0x20] sm:$0xff]
  %v4366 = vld [vmem:[%s31 + $0x28] sm:$0xff]
  %v4367 = vld [vmem:[%s31 + $0x30] sm:$0xff]
  %v4368 = vld [vmem:[%s31 + $0x38] sm:$0xff]
  %v4369 = vld [vmem:[%s31 + $0x40] sm:$0xff]
  %v4370 = vld [vmem:[%s31 + $0x48] sm:$0xff]
  %v4371 = vld [vmem:[%s31 + $0x50] sm:$0xff]
  %v4372 = vld [vmem:[%s31 + $0x58] sm:$0xff]
  %v4373 = vld [vmem:[%s31 + $0x60] sm:$0xff]
  %v4374 = vld [vmem:[%s31 + $0x68] sm:$0xff]
  %v4375 = vld [vmem:[%s31 + $0x70] sm:$0xff]
  %v4376 = vld [vmem:[%s31 + $0x78] sm:$0xff]
  %v4377 = vld [vmem:[%s31 + $0x80] sm:$0xff]
  %v4378 = vld [vmem:[%s31 + $0x88] sm:$0xff]
  %v4379 = vld [vmem:[%s31 + $0x90] sm:$0xff]
  %v4380 = vld [vmem:[%s31 + $0x98] sm:$0xff]
  %v4381 = vld [vmem:[%s31 + $0xa0] sm:$0xff]
  %v4382 = vld [vmem:[%s31 + $0xa8] sm:$0xff]
  %v4383 = vld [vmem:[%s31 + $0xb0] sm:$0xff]
  %v4384 = vld [vmem:[%s31 + $0xb8] sm:$0xff]
  %v4385 = vld [vmem:[%s31 + $0xc0] sm:$0xff]
  %v4386 = vld [vmem:[%s31 + $0xc8] sm:$0xff]
  %v4387 = vld [vmem:[%s31 + $0xd0] sm:$0xff]
  %v4388 = vld [vmem:[%s31 + $0xd8] sm:$0xff]
  %v4389 = vld [vmem:[%s31 + $0xe0] sm:$0xff]
  %v4390 = vld [vmem:[%s31 + $0xe8] sm:$0xff]
  %v4391 = vld [vmem:[%s31 + $0xf0] sm:$0xff]
  %v4392 = vld [vmem:[%s31 + $0xf8] sm:$0xff]
  %v4425 = vunpack.c.l.b16 %v4361
  %v4426 = vunpack.c.h.b16 %v4361
  %v4427 = vunpack.c.l.b16 %v4362
  %v4428 = vunpack.c.h.b16 %v4362
  %v4429 = vunpack.c.l.b16 %v4363
  %v4430 = vunpack.c.h.b16 %v4363
  %v4431 = vunpack.c.l.b16 %v4364
  %v4432 = vunpack.c.h.b16 %v4364
  %v4433 = vunpack.c.l.b16 %v4365
  %v4434 = vunpack.c.h.b16 %v4365
  %v4435 = vunpack.c.l.b16 %v4366
  %v4436 = vunpack.c.h.b16 %v4366
  %v4437 = vunpack.c.l.b16 %v4367
  %v4438 = vunpack.c.h.b16 %v4367
  %v4439 = vunpack.c.l.b16 %v4368
  %v4440 = vunpack.c.h.b16 %v4368
  %v4441 = vunpack.c.l.b16 %v4369
  %v4442 = vunpack.c.h.b16 %v4369
  %v4443 = vunpack.c.l.b16 %v4370
  %v4444 = vunpack.c.h.b16 %v4370
  %v4445 = vunpack.c.l.b16 %v4371
  %v4446 = vunpack.c.h.b16 %v4371
  %v4447 = vunpack.c.l.b16 %v4372
  %v4448 = vunpack.c.h.b16 %v4372
  %v4449 = vunpack.c.l.b16 %v4373
  %v4450 = vunpack.c.h.b16 %v4373
  %v4451 = vunpack.c.l.b16 %v4374
  %v4452 = vunpack.c.h.b16 %v4374
  %v4453 = vunpack.c.l.b16 %v4375
  %v4454 = vunpack.c.h.b16 %v4375
  %v4455 = vunpack.c.l.b16 %v4376
  %v4456 = vunpack.c.h.b16 %v4376
  %v4457 = vunpack.c.l.b16 %v4377
  %v4458 = vunpack.c.h.b16 %v4377
  %v4459 = vunpack.c.l.b16 %v4378
  %v4460 = vunpack.c.h.b16 %v4378
  %v4461 = vunpack.c.l.b16 %v4379
  %v4462 = vunpack.c.h.b16 %v4379
  %v4463 = vunpack.c.l.b16 %v4380
  %v4464 = vunpack.c.h.b16 %v4380
  %v4465 = vunpack.c.l.b16 %v4381
  %v4466 = vunpack.c.h.b16 %v4381
  %v4467 = vunpack.c.l.b16 %v4382
  %v4468 = vunpack.c.h.b16 %v4382
  %v4469 = vunpack.c.l.b16 %v4383
  %v4470 = vunpack.c.h.b16 %v4383
  %v4471 = vunpack.c.l.b16 %v4384
  %v4472 = vunpack.c.h.b16 %v4384
  %v4473 = vunpack.c.l.b16 %v4385
  %v4474 = vunpack.c.h.b16 %v4385
  %v4475 = vunpack.c.l.b16 %v4386
  %v4476 = vunpack.c.h.b16 %v4386
  %v4477 = vunpack.c.l.b16 %v4387
  %v4478 = vunpack.c.h.b16 %v4387
  %v4479 = vunpack.c.l.b16 %v4388
  %v4480 = vunpack.c.h.b16 %v4388
  %v4481 = vunpack.c.l.b16 %v4389
  %v4482 = vunpack.c.h.b16 %v4389
  %v4483 = vunpack.c.l.b16 %v4390
  %v4484 = vunpack.c.h.b16 %v4390
  %v4485 = vunpack.c.l.b16 %v4391
  %v4486 = vunpack.c.h.b16 %v4391
  %v4487 = vunpack.c.l.b16 %v4392
  %v4488 = vunpack.c.h.b16 %v4392
  %v4489 = vpack.c.b16 %v4429, %v4425
  %v4490 = vpack.c.b16 %v4430, %v4426
  %v4491 = vpack.c.b16 %v4431, %v4427
  %v4492 = vpack.c.b16 %v4432, %v4428
  %v4493 = vpack.c.b16 %v4437, %v4433
  %v4494 = vpack.c.b16 %v4438, %v4434
  %v4495 = vpack.c.b16 %v4439, %v4435
  %v4496 = vpack.c.b16 %v4440, %v4436
  %v4497 = vpack.c.b16 %v4445, %v4441
  %v4498 = vpack.c.b16 %v4446, %v4442
  %v4499 = vpack.c.b16 %v4447, %v4443
  %v4500 = vpack.c.b16 %v4448, %v4444
  %v4501 = vpack.c.b16 %v4453, %v4449
  %v4502 = vpack.c.b16 %v4454, %v4450
  %v4503 = vpack.c.b16 %v4455, %v4451
  %v4504 = vpack.c.b16 %v4456, %v4452
  %v4505 = vpack.c.b16 %v4461, %v4457
  %v4506 = vpack.c.b16 %v4462, %v4458
  %v4507 = vpack.c.b16 %v4463, %v4459
  %v4508 = vpack.c.b16 %v4464, %v4460
  %v4509 = vpack.c.b16 %v4469, %v4465
  %v4510 = vpack.c.b16 %v4470, %v4466
  %v4511 = vpack.c.b16 %v4471, %v4467
  %v4512 = vpack.c.b16 %v4472, %v4468
  %v4513 = vpack.c.b16 %v4477, %v4473
  %v4514 = vpack.c.b16 %v4478, %v4474
  %v4515 = vpack.c.b16 %v4479, %v4475
  %v4516 = vpack.c.b16 %v4480, %v4476
  %v4517 = vpack.c.b16 %v4485, %v4481
  %v4518 = vpack.c.b16 %v4486, %v4482
  %v4519 = vpack.c.b16 %v4487, %v4483
  %v4520 = vpack.c.b16 %v4488, %v4484
  %4553 = vmatprep.subr.bf16.mxu0 %v4490
  %4554 = vmatpush1.bf16.msra.mxu0 %v4489
  %4555 = vmatprep.subr.bf16.mxu0 %v4494
  %4556 = vmatpush1.bf16.msra.mxu0 %v4493
  %4557 = vmatprep.subr.bf16.mxu0 %v4498
  %4558 = vmatpush1.bf16.msra.mxu0 %v4497
  %4559 = vmatprep.subr.bf16.mxu0 %v4502
  %4560 = vmatpush1.bf16.msra.mxu0 %v4501
  %4561 = vmatprep.subr.bf16.mxu0 %v4506
  %4562 = vmatpush1.bf16.msra.mxu0 %v4505
  %4563 = vmatprep.subr.bf16.mxu0 %v4510
  %4564 = vmatpush1.bf16.msra.mxu0 %v4509
  %4565 = vmatprep.subr.bf16.mxu0 %v4514
  %4566 = vmatpush1.bf16.msra.mxu0 %v4513
  %4567 = vmatprep.subr.bf16.mxu0 %v4518
  %4568 = vmatpush1.bf16.msra.mxu0 %v4517
  %4569 = vmatprep.subr.bf16.mxu0 0
  %4570 = vmatpush1.bf16.msra.mxu0 0
  %4571 = vmatprep.subr.bf16.mxu0 0
  %4572 = vmatpush1.bf16.msra.mxu0 0
  %4573 = vmatprep.subr.bf16.mxu0 0
  %4574 = vmatpush1.bf16.msra.mxu0 0
  %4575 = vmatprep.subr.bf16.mxu0 0
  %4576 = vmatpush1.bf16.msra.mxu0 0
  %4577 = vmatprep.subr.bf16.mxu0 0
  %4578 = vmatpush1.bf16.msra.mxu0 0
  %4579 = vmatprep.subr.bf16.mxu0 0
  %4580 = vmatpush1.bf16.msra.mxu0 0
  %4581 = vmatprep.subr.bf16.mxu0 0
  %4582 = vmatpush1.bf16.msra.mxu0 0
  %4583 = vmatprep.subr.bf16.mxu0 0
  %4584 = vmatpush1.bf16.msra.mxu0 0
  %4585 = vmatprep.mubr.bf16.mxu0 0
  %4586 = vmatmul.mubr.bf16.gmra.mrb[0].mxu0 %v4345
  %v4587 = vpop.f32.mrb[0].mxu0
  %v4588 = vadd.f32 0.0, %v4587
  %v4589 = vpop.f32.mrb[0].mxu0
  %v4590 = vadd.f32 0.0, %v4589
  %v4591 = vpop.f32.mrb[0].mxu0
  %v4592 = vadd.f32 0.0, %v4591
  %v4593 = vpop.f32.mrb[0].mxu0
  %v4594 = vadd.f32 0.0, %v4593
  %4595 = vmatprep.mubr.bf16.mxu0 0
  %4596 = vmatmul.mubr.bf16.gmra.mrb[0].mxu0 %v4346
  %v4597 = vpop.f32.mrb[0].mxu0
  %v4598 = vadd.f32 0.0, %v4597
  %v4599 = vpop.f32.mrb[0].mxu0
  %v4600 = vadd.f32 0.0, %v4599
  %v4601 = vpop.f32.mrb[0].mxu0
  %v4602 = vadd.f32 0.0, %v4601
  %v4603 = vpop.f32.mrb[0].mxu0
  %v4604 = vadd.f32 0.0, %v4603
  %4605 = vmatprep.mubr.bf16.mxu0 0
  %4606 = vmatmul.mubr.bf16.gmra.mrb[0].mxu0 %v4347
  %v4607 = vpop.f32.mrb[0].mxu0
  %v4608 = vadd.f32 0.0, %v4607
  %v4609 = vpop.f32.mrb[0].mxu0
  %v4610 = vadd.f32 0.0, %v4609
  %v4611 = vpop.f32.mrb[0].mxu0
  %v4612 = vadd.f32 0.0, %v4611
  %v4613 = vpop.f32.mrb[0].mxu0
  %v4614 = vadd.f32 0.0, %v4613
  %4615 = vmatprep.mubr.bf16.mxu0 0
  %4616 = vmatmul.mubr.bf16.gmra.mrb[0].mxu0 %v4348
  %v4617 = vpop.f32.mrb[0].mxu0
  %v4618 = vadd.f32 0.0, %v4617
  %v4619 = vpop.f32.mrb[0].mxu0
  %v4620 = vadd.f32 0.0, %v4619
  %v4621 = vpop.f32.mrb[0].mxu0
  %v4622 = vadd.f32 0.0, %v4621
  %v4623 = vpop.f32.mrb[0].mxu0
  %v4624 = vadd.f32 0.0, %v4623
  %4625 = vmatprep.mubr.bf16.mxu0 0
  %4626 = vmatmul.mubr.bf16.gmra.mrb[0].mxu0 %v4349
  %v4627 = vpop.f32.mrb[0].mxu0
  %v4628 = vadd.f32 0.0, %v4627
  %v4629 = vpop.f32.mrb[0].mxu0
  %v4630 = vadd.f32 0.0, %v4629
  %v4631 = vpop.f32.mrb[0].mxu0
  %v4632 = vadd.f32 0.0, %v4631
  %v4633 = vpop.f32.mrb[0].mxu0
  %v4634 = vadd.f32 0.0, %v4633
  %4635 = vmatprep.mubr.bf16.mxu0 0
  %4636 = vmatmul.mubr.bf16.gmra.mrb[0].mxu0 %v4350
  %v4637 = vpop.f32.mrb[0].mxu0
  %v4638 = vadd.f32 0.0, %v4637
  %v4639 = vpop.f32.mrb[0].mxu0
  %v4640 = vadd.f32 0.0, %v4639
  %v4641 = vpop.f32.mrb[0].mxu0
  %v4642 = vadd.f32 0.0, %v4641
  %v4643 = vpop.f32.mrb[0].mxu0
  %v4644 = vadd.f32 0.0, %v4643
  %4645 = vmatprep.mubr.bf16.mxu0 0
  %4646 = vmatmul.mubr.bf16.gmra.mrb[0].mxu0 %v4351
  %v4647 = vpop.f32.mrb[0].mxu0
  %v4648 = vadd.f32 0.0, %v4647
  %v4649 = vpop.f32.mrb[0].mxu0
  %v4650 = vadd.f32 0.0, %v4649
  %v4651 = vpop.f32.mrb[0].mxu0
  %v4652 = vadd.f32 0.0, %v4651
  %v4653 = vpop.f32.mrb[0].mxu0
  %v4654 = vadd.f32 0.0, %v4653
  %4655 = vmatprep.mubr.bf16.mxu0 0
  %4656 = vmatmul.mubr.bf16.gmra.mrb[0].mxu0 %v4352
  %v4657 = vpop.f32.mrb[0].mxu0
  %v4658 = vadd.f32 0.0, %v4657
  %v4659 = vpop.f32.mrb[0].mxu0
  %v4660 = vadd.f32 0.0, %v4659
  %v4661 = vpop.f32.mrb[0].mxu0
  %v4662 = vadd.f32 0.0, %v4661
  %v4663 = vpop.f32.mrb[0].mxu0
  %v4664 = vadd.f32 0.0, %v4663
  %4665 = vmatprep.mubr.bf16.mxu0 0
  %4666 = vmatmul.mubr.bf16.gmra.mrb[0].mxu0 %v4353
  %v4667 = vpop.f32.mrb[0].mxu0
  %v4668 = vadd.f32 0.0, %v4667
  %v4669 = vpop.f32.mrb[0].mxu0
  %v4670 = vadd.f32 0.0, %v4669
  %v4671 = vpop.f32.mrb[0].mxu0
  %v4672 = vadd.f32 0.0, %v4671
  %v4673 = vpop.f32.mrb[0].mxu0
  %v4674 = vadd.f32 0.0, %v4673
  %4675 = vmatprep.mubr.bf16.mxu0 0
  %4676 = vmatmul.mubr.bf16.gmra.mrb[0].mxu0 %v4354
  %v4677 = vpop.f32.mrb[0].mxu0
  %v4678 = vadd.f32 0.0, %v4677
  %v4679 = vpop.f32.mrb[0].mxu0
  %v4680 = vadd.f32 0.0, %v4679
  %v4681 = vpop.f32.mrb[0].mxu0
  %v4682 = vadd.f32 0.0, %v4681
  %v4683 = vpop.f32.mrb[0].mxu0
  %v4684 = vadd.f32 0.0, %v4683
  %4685 = vmatprep.mubr.bf16.mxu0 0
  %4686 = vmatmul.mubr.bf16.gmra.mrb[0].mxu0 %v4355
  %v4687 = vpop.f32.mrb[0].mxu0
  %v4688 = vadd.f32 0.0, %v4687
  %v4689 = vpop.f32.mrb[0].mxu0
  %v4690 = vadd.f32 0.0, %v4689
  %v4691 = vpop.f32.mrb[0].mxu0
  %v4692 = vadd.f32 0.0, %v4691
  %v4693 = vpop.f32.mrb[0].mxu0
  %v4694 = vadd.f32 0.0, %v4693
  %4695 = vmatprep.mubr.bf16.mxu0 0
  %4696 = vmatmul.mubr.bf16.gmra.mrb[0].mxu0 %v4356
  %v4697 = vpop.f32.mrb[0].mxu0
  %v4698 = vadd.f32 0.0, %v4697
  %v4699 = vpop.f32.mrb[0].mxu0
  %v4700 = vadd.f32 0.0, %v4699
  %v4701 = vpop.f32.mrb[0].mxu0
  %v4702 = vadd.f32 0.0, %v4701
  %v4703 = vpop.f32.mrb[0].mxu0
  %v4704 = vadd.f32 0.0, %v4703
  %4705 = vmatprep.mubr.bf16.mxu0 0
  %4706 = vmatmul.mubr.bf16.gmra.mrb[0].mxu0 %v4357
  %v4707 = vpop.f32.mrb[0].mxu0
  %v4708 = vadd.f32 0.0, %v4707
  %v4709 = vpop.f32.mrb[0].mxu0
  %v4710 = vadd.f32 0.0, %v4709
  %v4711 = vpop.f32.mrb[0].mxu0
  %v4712 = vadd.f32 0.0, %v4711
  %v4713 = vpop.f32.mrb[0].mxu0
  %v4714 = vadd.f32 0.0, %v4713
  %4715 = vmatprep.mubr.bf16.mxu0 0
  %4716 = vmatmul.mubr.bf16.gmra.mrb[0].mxu0 %v4358
  %v4717 = vpop.f32.mrb[0].mxu0
  %v4718 = vadd.f32 0.0, %v4717
  %v4719 = vpop.f32.mrb[0].mxu0
  %v4720 = vadd.f32 0.0, %v4719
  %v4721 = vpop.f32.mrb[0].mxu0
  %v4722 = vadd.f32 0.0, %v4721
  %v4723 = vpop.f32.mrb[0].mxu0
  %v4724 = vadd.f32 0.0, %v4723
  %4725 = vmatprep.mubr.bf16.mxu0 0
  %4726 = vmatmul.mubr.bf16.gmra.mrb[0].mxu0 %v4359
  %v4727 = vpop.f32.mrb[0].mxu0
  %v4728 = vadd.f32 0.0, %v4727
  %v4729 = vpop.f32.mrb[0].mxu0
  %v4730 = vadd.f32 0.0, %v4729
  %v4731 = vpop.f32.mrb[0].mxu0
  %v4732 = vadd.f32 0.0, %v4731
  %v4733 = vpop.f32.mrb[0].mxu0
  %v4734 = vadd.f32 0.0, %v4733
  %4735 = vmatprep.mubr.bf16.mxu0 0
  %4736 = vmatmul.mubr.bf16.gmra.mrb[0].mxu0 %v4360
  %v4737 = vpop.f32.mrb[0].mxu0
  %v4738 = vadd.f32 0.0, %v4737
  %v4739 = vpop.f32.mrb[0].mxu0
  %v4740 = vadd.f32 0.0, %v4739
  %v4741 = vpop.f32.mrb[0].mxu0
  %v4742 = vadd.f32 0.0, %v4741
  %v4743 = vpop.f32.mrb[0].mxu0
  %v4744 = vadd.f32 0.0, %v4743
  %4745 = vdwg.mxu0
  %4746 = vmatprep.subr.bf16.mxu0 %v4492
  %4747 = vmatpush1.bf16.msra.mxu0 %v4491
  %4748 = vmatprep.subr.bf16.mxu0 %v4496
  %4749 = vmatpush1.bf16.msra.mxu0 %v4495
  %4750 = vmatprep.subr.bf16.mxu0 %v4500
  %4751 = vmatpush1.bf16.msra.mxu0 %v4499
  %4752 = vmatprep.subr.bf16.mxu0 %v4504
  %4753 = vmatpush1.bf16.msra.mxu0 %v4503
  %4754 = vmatprep.subr.bf16.mxu0 %v4508
  %4755 = vmatpush1.bf16.msra.mxu0 %v4507
  %4756 = vmatprep.subr.bf16.mxu0 %v4512
  %4757 = vmatpush1.bf16.msra.mxu0 %v4511
  %4758 = vmatprep.subr.bf16.mxu0 %v4516
  %4759 = vmatpush1.bf16.msra.mxu0 %v4515
  %4760 = vmatprep.subr.bf16.mxu0 %v4520
  %4761 = vmatpush1.bf16.msra.mxu0 %v4519
  %4762 = vmatprep.subr.bf16.mxu0 0
  %4763 = vmatpush1.bf16.msra.mxu0 0
  %4764 = vmatprep.subr.bf16.mxu0 0
  %4765 = vmatpush1.bf16.msra.mxu0 0
  %4766 = vmatprep.subr.bf16.mxu0 0
  %4767 = vmatpush1.bf16.msra.mxu0 0
  %4768 = vmatprep.subr.bf16.mxu0 0
  %4769 = vmatpush1.bf16.msra.mxu0 0
  %4770 = vmatprep.subr.bf16.mxu0 0
  %4771 = vmatpush1.bf16.msra.mxu0 0
  %4772 = vmatprep.subr.bf16.mxu0 0
  %4773 = vmatpush1.bf16.msra.mxu0 0
  %4774 = vmatprep.subr.bf16.mxu0 0
  %4775 = vmatpush1.bf16.msra.mxu0 0
  %4776 = vmatprep.subr.bf16.mxu0 0
  %4777 = vmatpush1.bf16.msra.mxu0 0
  %4778 = vmatprep.mubr.bf16.mxu0 0
  %4779 = vmatmul.mubr.bf16.gmra.mrb[0].mxu0 %v4345
  %v4780 = vpop.f32.mrb[0].mxu0
  %v4781 = vadd.f32 0.0, %v4780
  %v4782 = vpop.f32.mrb[0].mxu0
  %v4783 = vadd.f32 0.0, %v4782
  %v4784 = vpop.f32.mrb[0].mxu0
  %v4785 = vadd.f32 0.0, %v4784
  %v4786 = vpop.f32.mrb[0].mxu0
  %v4787 = vadd.f32 0.0, %v4786
  %4788 = vmatprep.mubr.bf16.mxu0 0
  %4789 = vmatmul.mubr.bf16.gmra.mrb[0].mxu0 %v4346
  %v4790 = vpop.f32.mrb[0].mxu0
  %v4791 = vadd.f32 0.0, %v4790
  %v4792 = vpop.f32.mrb[0].mxu0
  %v4793 = vadd.f32 0.0, %v4792
  %v4794 = vpop.f32.mrb[0].mxu0
  %v4795 = vadd.f32 0.0, %v4794
  %v4796 = vpop.f32.mrb[0].mxu0
  %v4797 = vadd.f32 0.0, %v4796
  %4798 = vmatprep.mubr.bf16.mxu0 0
  %4799 = vmatmul.mubr.bf16.gmra.mrb[0].mxu0 %v4347
  %v4800 = vpop.f32.mrb[0].mxu0
  %v4801 = vadd.f32 0.0, %v4800
  %v4802 = vpop.f32.mrb[0].mxu0
  %v4803 = vadd.f32 0.0, %v4802
  %v4804 = vpop.f32.mrb[0].mxu0
  %v4805 = vadd.f32 0.0, %v4804
  %v4806 = vpop.f32.mrb[0].mxu0
  %v4807 = vadd.f32 0.0, %v4806
  %4808 = vmatprep.mubr.bf16.mxu0 0
  %4809 = vmatmul.mubr.bf16.gmra.mrb[0].mxu0 %v4348
  %v4810 = vpop.f32.mrb[0].mxu0
  %v4811 = vadd.f32 0.0, %v4810
  %v4812 = vpop.f32.mrb[0].mxu0
  %v4813 = vadd.f32 0.0, %v4812
  %v4814 = vpop.f32.mrb[0].mxu0
  %v4815 = vadd.f32 0.0, %v4814
  %v4816 = vpop.f32.mrb[0].mxu0
  %v4817 = vadd.f32 0.0, %v4816
  %4818 = vmatprep.mubr.bf16.mxu0 0
  %4819 = vmatmul.mubr.bf16.gmra.mrb[0].mxu0 %v4349
  %v4820 = vpop.f32.mrb[0].mxu0
  %v4821 = vadd.f32 0.0, %v4820
  %v4822 = vpop.f32.mrb[0].mxu0
  %v4823 = vadd.f32 0.0, %v4822
  %v4824 = vpop.f32.mrb[0].mxu0
  %v4825 = vadd.f32 0.0, %v4824
  %v4826 = vpop.f32.mrb[0].mxu0
  %v4827 = vadd.f32 0.0, %v4826
  %4828 = vmatprep.mubr.bf16.mxu0 0
  %4829 = vmatmul.mubr.bf16.gmra.mrb[0].mxu0 %v4350
  %v4830 = vpop.f32.mrb[0].mxu0
  %v4831 = vadd.f32 0.0, %v4830
  %v4832 = vpop.f32.mrb[0].mxu0
  %v4833 = vadd.f32 0.0, %v4832
  %v4834 = vpop.f32.mrb[0].mxu0
  %v4835 = vadd.f32 0.0, %v4834
  %v4836 = vpop.f32.mrb[0].mxu0
  %v4837 = vadd.f32 0.0, %v4836
  %4838 = vmatprep.mubr.bf16.mxu0 0
  %4839 = vmatmul.mubr.bf16.gmra.mrb[0].mxu0 %v4351
  %v4840 = vpop.f32.mrb[0].mxu0
  %v4841 = vadd.f32 0.0, %v4840
  %v4842 = vpop.f32.mrb[0].mxu0
  %v4843 = vadd.f32 0.0, %v4842
  %v4844 = vpop.f32.mrb[0].mxu0
  %v4845 = vadd.f32 0.0, %v4844
  %v4846 = vpop.f32.mrb[0].mxu0
  %v4847 = vadd.f32 0.0, %v4846
  %4848 = vmatprep.mubr.bf16.mxu0 0
  %4849 = vmatmul.mubr.bf16.gmra.mrb[0].mxu0 %v4352
  %v4850 = vpop.f32.mrb[0].mxu0
  %v4851 = vadd.f32 0.0, %v4850
  %v4852 = vpop.f32.mrb[0].mxu0
  %v4853 = vadd.f32 0.0, %v4852
  %v4854 = vpop.f32.mrb[0].mxu0
  %v4855 = vadd.f32 0.0, %v4854
  %v4856 = vpop.f32.mrb[0].mxu0
  %v4857 = vadd.f32 0.0, %v4856
  %4858 = vmatprep.mubr.bf16.mxu0 0
  %4859 = vmatmul.mubr.bf16.gmra.mrb[0].mxu0 %v4353
  %v4860 = vpop.f32.mrb[0].mxu0
  %v4861 = vadd.f32 0.0, %v4860
  %v4862 = vpop.f32.mrb[0].mxu0
  %v4863 = vadd.f32 0.0, %v4862
  %v4864 = vpop.f32.mrb[0].mxu0
  %v4865 = vadd.f32 0.0, %v4864
  %v4866 = vpop.f32.mrb[0].mxu0
  %v4867 = vadd.f32 0.0, %v4866
  %4868 = vmatprep.mubr.bf16.mxu0 0
  %4869 = vmatmul.mubr.bf16.gmra.mrb[0].mxu0 %v4354
  %v4870 = vpop.f32.mrb[0].mxu0
  %v4871 = vadd.f32 0.0, %v4870
  %v4872 = vpop.f32.mrb[0].mxu0
  %v4873 = vadd.f32 0.0, %v4872
  %v4874 = vpop.f32.mrb[0].mxu0
  %v4875 = vadd.f32 0.0, %v4874
  %v4876 = vpop.f32.mrb[0].mxu0
  %v4877 = vadd.f32 0.0, %v4876
  %4878 = vmatprep.mubr.bf16.mxu0 0
  %4879 = vmatmul.mubr.bf16.gmra.mrb[0].mxu0 %v4355
  %v4880 = vpop.f32.mrb[0].mxu0
  %v4881 = vadd.f32 0.0, %v4880
  %v4882 = vpop.f32.mrb[0].mxu0
  %v4883 = vadd.f32 0.0, %v4882
  %v4884 = vpop.f32.mrb[0].mxu0
  %v4885 = vadd.f32 0.0, %v4884
  %v4886 = vpop.f32.mrb[0].mxu0
  %v4887 = vadd.f32 0.0, %v4886
  %4888 = vmatprep.mubr.bf16.mxu0 0
  %4889 = vmatmul.mubr.bf16.gmra.mrb[0].mxu0 %v4356
  %v4890 = vpop.f32.mrb[0].mxu0
  %v4891 = vadd.f32 0.0, %v4890
  %v4892 = vpop.f32.mrb[0].mxu0
  %v4893 = vadd.f32 0.0, %v4892
  %v4894 = vpop.f32.mrb[0].mxu0
  %v4895 = vadd.f32 0.0, %v4894
  %v4896 = vpop.f32.mrb[0].mxu0
  %v4897 = vadd.f32 0.0, %v4896
  %4898 = vmatprep.mubr.bf16.mxu0 0
  %4899 = vmatmul.mubr.bf16.gmra.mrb[0].mxu0 %v4357
  %v4900 = vpop.f32.mrb[0].mxu0
  %v4901 = vadd.f32 0.0, %v4900
  %v4902 = vpop.f32.mrb[0].mxu0
  %v4903 = vadd.f32 0.0, %v4902
  %v4904 = vpop.f32.mrb[0].mxu0
  %v4905 = vadd.f32 0.0, %v4904
  %v4906 = vpop.f32.mrb[0].mxu0
  %v4907 = vadd.f32 0.0, %v4906
  %4908 = vmatprep.mubr.bf16.mxu0 0
  %4909 = vmatmul.mubr.bf16.gmra.mrb[0].mxu0 %v4358
  %v4910 = vpop.f32.mrb[0].mxu0
  %v4911 = vadd.f32 0.0, %v4910
  %v4912 = vpop.f32.mrb[0].mxu0
  %v4913 = vadd.f32 0.0, %v4912
  %v4914 = vpop.f32.mrb[0].mxu0
  %v4915 = vadd.f32 0.0, %v4914
  %v4916 = vpop.f32.mrb[0].mxu0
  %v4917 = vadd.f32 0.0, %v4916
  %4918 = vmatprep.mubr.bf16.mxu0 0
  %4919 = vmatmul.mubr.bf16.gmra.mrb[0].mxu0 %v4359
  %v4920 = vpop.f32.mrb[0].mxu0
  %v4921 = vadd.f32 0.0, %v4920
  %v4922 = vpop.f32.mrb[0].mxu0
  %v4923 = vadd.f32 0.0, %v4922
  %v4924 = vpop.f32.mrb[0].mxu0
  %v4925 = vadd.f32 0.0, %v4924
  %v4926 = vpop.f32.mrb[0].mxu0
  %v4927 = vadd.f32 0.0, %v4926
  %4928 = vmatprep.mubr.bf16.mxu0 0
  %4929 = vmatmul.mubr.bf16.gmra.mrb[0].mxu0 %v4360
  %v4930 = vpop.f32.mrb[0].mxu0
  %v4931 = vadd.f32 0.0, %v4930
  %v4932 = vpop.f32.mrb[0].mxu0
  %v4933 = vadd.f32 0.0, %v4932
  %v4934 = vpop.f32.mrb[0].mxu0
  %v4935 = vadd.f32 0.0, %v4934
  %v4936 = vpop.f32.mrb[0].mxu0
  %v4937 = vadd.f32 0.0, %v4936
  %4938 = vdwg.mxu0
  %v4939 = vld [vmem:[%s33] sm:$0xf]
  %v4941 = vlaneseq
  %v4942 = vshrl.u32 %v4941, 7
  %v4943 = vsub.s32 0, %v4942
  %v4944 = vrot.slane %v4939, %v4943
  %v4945 = vlaneseq
  %v4946 = vshrl.u32 %v4945, 7
  %v4947 = vsub.s32 1, %v4946
  %v4948 = vrot.slane %v4939, %v4947
  %v4949 = vlaneseq
  %v4950 = vshrl.u32 %v4949, 7
  %v4951 = vsub.s32 2, %v4950
  %v4952 = vrot.slane %v4939, %v4951
  %v4953 = vlaneseq
  %v4954 = vshrl.u32 %v4953, 7
  %v4955 = vsub.s32 3, %v4954
  %v4956 = vrot.slane %v4939, %v4955
  %v4961 = vadd.f32 %v4588, %v4944
  %v4962 = vadd.f32 %v4590, %v4948
  %v4963 = vadd.f32 %v4781, %v4952
  %v4964 = vadd.f32 %v4783, %v4956
  %v4965 = vadd.f32 %v4592, %v4944
  %v4966 = vadd.f32 %v4594, %v4948
  %v4967 = vadd.f32 %v4785, %v4952
  %v4968 = vadd.f32 %v4787, %v4956
  %v4969 = vadd.f32 %v4598, %v4944
  %v4970 = vadd.f32 %v4600, %v4948
  %v4971 = vadd.f32 %v4791, %v4952
  %v4972 = vadd.f32 %v4793, %v4956
  %v4973 = vadd.f32 %v4602, %v4944
  %v4974 = vadd.f32 %v4604, %v4948
  %v4975 = vadd.f32 %v4795, %v4952
  %v4976 = vadd.f32 %v4797, %v4956
  %v4977 = vadd.f32 %v4608, %v4944
  %v4978 = vadd.f32 %v4610, %v4948
  %v4979 = vadd.f32 %v4801, %v4952
  %v4980 = vadd.f32 %v4803, %v4956
  %v4981 = vadd.f32 %v4612, %v4944
  %v4982 = vadd.f32 %v4614, %v4948
  %v4983 = vadd.f32 %v4805, %v4952
  %v4984 = vadd.f32 %v4807, %v4956
  %v4985 = vadd.f32 %v4618, %v4944
  %v4986 = vadd.f32 %v4620, %v4948
  %v4987 = vadd.f32 %v4811, %v4952
  %v4988 = vadd.f32 %v4813, %v4956
  %v4989 = vadd.f32 %v4622, %v4944
  %v4990 = vadd.f32 %v4624, %v4948
  %v4991 = vadd.f32 %v4815, %v4952
  %v4992 = vadd.f32 %v4817, %v4956
  %v4993 = vadd.f32 %v4628, %v4944
  %v4994 = vadd.f32 %v4630, %v4948
  %v4995 = vadd.f32 %v4821, %v4952
  %v4996 = vadd.f32 %v4823, %v4956
  %v4997 = vadd.f32 %v4632, %v4944
  %v4998 = vadd.f32 %v4634, %v4948
  %v4999 = vadd.f32 %v4825, %v4952
  %v5000 = vadd.f32 %v4827, %v4956
  %v5001 = vadd.f32 %v4638, %v4944
  %v5002 = vadd.f32 %v4640, %v4948
  %v5003 = vadd.f32 %v4831, %v4952
  %v5004 = vadd.f32 %v4833, %v4956
  %v5005 = vadd.f32 %v4642, %v4944
  %v5006 = vadd.f32 %v4644, %v4948
  %v5007 = vadd.f32 %v4835, %v4952
  %v5008 = vadd.f32 %v4837, %v4956
  %v5009 = vadd.f32 %v4648, %v4944
  %v5010 = vadd.f32 %v4650, %v4948
  %v5011 = vadd.f32 %v4841, %v4952
  %v5012 = vadd.f32 %v4843, %v4956
  %v5013 = vadd.f32 %v4652, %v4944
  %v5014 = vadd.f32 %v4654, %v4948
  %v5015 = vadd.f32 %v4845, %v4952
  %v5016 = vadd.f32 %v4847, %v4956
  %v5017 = vadd.f32 %v4658, %v4944
  %v5018 = vadd.f32 %v4660, %v4948
  %v5019 = vadd.f32 %v4851, %v4952
  %v5020 = vadd.f32 %v4853, %v4956
  %v5021 = vadd.f32 %v4662, %v4944
  %v5022 = vadd.f32 %v4664, %v4948
  %v5023 = vadd.f32 %v4855, %v4952
  %v5024 = vadd.f32 %v4857, %v4956
  %v5025 = vadd.f32 %v4668, %v4944
  %v5026 = vadd.f32 %v4670, %v4948
  %v5027 = vadd.f32 %v4861, %v4952
  %v5028 = vadd.f32 %v4863, %v4956
  %v5029 = vadd.f32 %v4672, %v4944
  %v5030 = vadd.f32 %v4674, %v4948
  %v5031 = vadd.f32 %v4865, %v4952
  %v5032 = vadd.f32 %v4867, %v4956
  %v5033 = vadd.f32 %v4678, %v4944
  %v5034 = vadd.f32 %v4680, %v4948
  %v5035 = vadd.f32 %v4871, %v4952
  %v5036 = vadd.f32 %v4873, %v4956
  %v5037 = vadd.f32 %v4682, %v4944
  %v5038 = vadd.f32 %v4684, %v4948
  %v5039 = vadd.f32 %v4875, %v4952
  %v5040 = vadd.f32 %v4877, %v4956
  %v5041 = vadd.f32 %v4688, %v4944
  %v5042 = vadd.f32 %v4690, %v4948
  %v5043 = vadd.f32 %v4881, %v4952
  %v5044 = vadd.f32 %v4883, %v4956
  %v5045 = vadd.f32 %v4692, %v4944
  %v5046 = vadd.f32 %v4694, %v4948
  %v5047 = vadd.f32 %v4885, %v4952
  %v5048 = vadd.f32 %v4887, %v4956
  %v5049 = vadd.f32 %v4698, %v4944
  %v5050 = vadd.f32 %v4700, %v4948
  %v5051 = vadd.f32 %v4891, %v4952
  %v5052 = vadd.f32 %v4893, %v4956
  %v5053 = vadd.f32 %v4702, %v4944
  %v5054 = vadd.f32 %v4704, %v4948
  %v5055 = vadd.f32 %v4895, %v4952
  %v5056 = vadd.f32 %v4897, %v4956
  %v5057 = vadd.f32 %v4708, %v4944
  %v5058 = vadd.f32 %v4710, %v4948
  %v5059 = vadd.f32 %v4901, %v4952
  %v5060 = vadd.f32 %v4903, %v4956
  %v5061 = vadd.f32 %v4712, %v4944
  %v5062 = vadd.f32 %v4714, %v4948
  %v5063 = vadd.f32 %v4905, %v4952
  %v5064 = vadd.f32 %v4907, %v4956
  %v5065 = vadd.f32 %v4718, %v4944
  %v5066 = vadd.f32 %v4720, %v4948
  %v5067 = vadd.f32 %v4911, %v4952
  %v5068 = vadd.f32 %v4913, %v4956
  %v5069 = vadd.f32 %v4722, %v4944
  %v5070 = vadd.f32 %v4724, %v4948
  %v5071 = vadd.f32 %v4915, %v4952
  %v5072 = vadd.f32 %v4917, %v4956
  %v5073 = vadd.f32 %v4728, %v4944
  %v5074 = vadd.f32 %v4730, %v4948
  %v5075 = vadd.f32 %v4921, %v4952
  %v5076 = vadd.f32 %v4923, %v4956
  %v5077 = vadd.f32 %v4732, %v4944
  %v5078 = vadd.f32 %v4734, %v4948
  %v5079 = vadd.f32 %v4925, %v4952
  %v5080 = vadd.f32 %v4927, %v4956
  %v5081 = vadd.f32 %v4738, %v4944
  %v5082 = vadd.f32 %v4740, %v4948
  %v5083 = vadd.f32 %v4931, %v4952
  %v5084 = vadd.f32 %v4933, %v4956
  %v5085 = vadd.f32 %v4742, %v4944
  %v5086 = vadd.f32 %v4744, %v4948
  %v5087 = vadd.f32 %v4935, %v4952
  %v5088 = vadd.f32 %v4937, %v4956
  %5089 = vmatprep.subr.mxu0 %v4962
  %5090 = vmatpush1.msra.mxu0 %v4961
  %5091 = vmatprep.subr.mxu0 %v4966
  %5092 = vmatpush1.msra.mxu0 %v4965
  %5093 = vmatprep.subr.mxu0 %v4970
  %5094 = vmatpush1.msra.mxu0 %v4969
  %5095 = vmatprep.subr.mxu0 %v4974
  %5096 = vmatpush1.msra.mxu0 %v4973
  %5097 = vmatprep.subr.mxu0 %v4978
  %5098 = vmatpush1.msra.mxu0 %v4977
  %5099 = vmatprep.subr.mxu0 %v4982
  %5100 = vmatpush1.msra.mxu0 %v4981
  %5101 = vmatprep.subr.mxu0 %v4986
  %5102 = vmatpush1.msra.mxu0 %v4985
  %5103 = vmatprep.subr.mxu0 %v4990
  %5104 = vmatpush1.msra.mxu0 %v4989
  %5105 = vmatprep.subr.mxu0 %v4994
  %5106 = vmatpush1.msra.mxu0 %v4993
  %5107 = vmatprep.subr.mxu0 %v4998
  %5108 = vmatpush1.msra.mxu0 %v4997
  %5109 = vmatprep.subr.mxu0 %v5002
  %5110 = vmatpush1.msra.mxu0 %v5001
  %5111 = vmatprep.subr.mxu0 %v5006
  %5112 = vmatpush1.msra.mxu0 %v5005
  %5113 = vmatprep.subr.mxu0 %v5010
  %5114 = vmatpush1.msra.mxu0 %v5009
  %5115 = vmatprep.subr.mxu0 %v5014
  %5116 = vmatpush1.msra.mxu0 %v5013
  %5117 = vmatprep.subr.mxu0 %v5018
  %5118 = vmatpush1.msra.mxu0 %v5017
  %5119 = vmatprep.subr.mxu0 %v5022
  %5120 = vmatpush1.msra.mxu0 %v5021
  %5121 = vmatprep.subr.mxu0 %v5026
  %5122 = vmatpush1.msra.mxu0 %v5025
  %5123 = vmatprep.subr.mxu0 %v5030
  %5124 = vmatpush1.msra.mxu0 %v5029
  %5125 = vmatprep.subr.mxu0 %v5034
  %5126 = vmatpush1.msra.mxu0 %v5033
  %5127 = vmatprep.subr.mxu0 %v5038
  %5128 = vmatpush1.msra.mxu0 %v5037
  %5129 = vmatprep.subr.mxu0 %v5042
  %5130 = vmatpush1.msra.mxu0 %v5041
  %5131 = vmatprep.subr.mxu0 %v5046
  %5132 = vmatpush1.msra.mxu0 %v5045
  %5133 = vmatprep.subr.mxu0 %v5050
  %5134 = vmatpush1.msra.mxu0 %v5049
  %5135 = vmatprep.subr.mxu0 %v5054
  %5136 = vmatpush1.msra.mxu0 %v5053
  %5137 = vmatprep.subr.mxu0 %v5058
  %5138 = vmatpush1.msra.mxu0 %v5057
  %5139 = vmatprep.subr.mxu0 %v5062
  %5140 = vmatpush1.msra.mxu0 %v5061
  %5141 = vmatprep.subr.mxu0 %v5066
  %5142 = vmatpush1.msra.mxu0 %v5065
  %5143 = vmatprep.subr.mxu0 %v5070
  %5144 = vmatpush1.msra.mxu0 %v5069
  %5145 = vmatprep.subr.mxu0 %v5074
  %5146 = vmatpush1.msra.mxu0 %v5073
  %5147 = vmatprep.subr.mxu0 %v5078
  %5148 = vmatpush1.msra.mxu0 %v5077
  %5149 = vmatprep.subr.mxu0 %v5082
  %5150 = vmatpush1.msra.mxu0 %v5081
  %5151 = vmatprep.subr.mxu0 %v5086
  %5152 = vmatpush1.msra.mxu0 %v5085
  %5153 = vmatprep.mubr.f32.mxu0 1.0
  %5154 = vmatmul.mubr.f32.gmra.mrb[0].mxu0 1.0
  %v5155 = vpop.f32.mrb[0].mxu0
  %v5156 = vadd.f32 0.0, %v5155
  %v5157 = vpop.f32.mrb[0].mxu0
  %v5158 = vadd.f32 0.0, %v5157
  %5159 = vdwg.mxu0
  %v5160 = vmul.f32 %v4961, %v4961
  %v5161 = vmul.f32 %v4962, %v4962
  %v5162 = vmul.f32 %v4965, %v4965
  %v5163 = vmul.f32 %v4966, %v4966
  %v5164 = vmul.f32 %v4969, %v4969
  %v5165 = vmul.f32 %v4970, %v4970
  %v5166 = vmul.f32 %v4973, %v4973
  %v5167 = vmul.f32 %v4974, %v4974
  %v5168 = vmul.f32 %v4977, %v4977
  %v5169 = vmul.f32 %v4978, %v4978
  %v5170 = vmul.f32 %v4981, %v4981
  %v5171 = vmul.f32 %v4982, %v4982
  %v5172 = vmul.f32 %v4985, %v4985
  %v5173 = vmul.f32 %v4986, %v4986
  %v5174 = vmul.f32 %v4989, %v4989
  %v5175 = vmul.f32 %v4990, %v4990
  %v5176 = vmul.f32 %v4993, %v4993
  %v5177 = vmul.f32 %v4994, %v4994
  %v5178 = vmul.f32 %v4997, %v4997
  %v5179 = vmul.f32 %v4998, %v4998
  %v5180 = vmul.f32 %v5001, %v5001
  %v5181 = vmul.f32 %v5002, %v5002
  %v5182 = vmul.f32 %v5005, %v5005
  %v5183 = vmul.f32 %v5006, %v5006
  %v5184 = vmul.f32 %v5009, %v5009
  %v5185 = vmul.f32 %v5010, %v5010
  %v5186 = vmul.f32 %v5013, %v5013
  %v5187 = vmul.f32 %v5014, %v5014
  %v5188 = vmul.f32 %v5017, %v5017
  %v5189 = vmul.f32 %v5018, %v5018
  %v5190 = vmul.f32 %v5021, %v5021
  %v5191 = vmul.f32 %v5022, %v5022
  %v5192 = vmul.f32 %v5025, %v5025
  %v5193 = vmul.f32 %v5026, %v5026
  %v5194 = vmul.f32 %v5029, %v5029
  %v5195 = vmul.f32 %v5030, %v5030
  %v5196 = vmul.f32 %v5033, %v5033
  %v5197 = vmul.f32 %v5034, %v5034
  %v5198 = vmul.f32 %v5037, %v5037
  %v5199 = vmul.f32 %v5038, %v5038
  %v5200 = vmul.f32 %v5041, %v5041
  %v5201 = vmul.f32 %v5042, %v5042
  %v5202 = vmul.f32 %v5045, %v5045
  %v5203 = vmul.f32 %v5046, %v5046
  %v5204 = vmul.f32 %v5049, %v5049
  %v5205 = vmul.f32 %v5050, %v5050
  %v5206 = vmul.f32 %v5053, %v5053
  %v5207 = vmul.f32 %v5054, %v5054
  %v5208 = vmul.f32 %v5057, %v5057
  %v5209 = vmul.f32 %v5058, %v5058
  %v5210 = vmul.f32 %v5061, %v5061
  %v5211 = vmul.f32 %v5062, %v5062
  %v5212 = vmul.f32 %v5065, %v5065
  %v5213 = vmul.f32 %v5066, %v5066
  %v5214 = vmul.f32 %v5069, %v5069
  %v5215 = vmul.f32 %v5070, %v5070
  %v5216 = vmul.f32 %v5073, %v5073
  %v5217 = vmul.f32 %v5074, %v5074
  %v5218 = vmul.f32 %v5077, %v5077
  %v5219 = vmul.f32 %v5078, %v5078
  %v5220 = vmul.f32 %v5081, %v5081
  %v5221 = vmul.f32 %v5082, %v5082
  %v5222 = vmul.f32 %v5085, %v5085
  %v5223 = vmul.f32 %v5086, %v5086
  %5224 = vmatprep.subr.mxu0 %v5161
  %5225 = vmatpush1.msra.mxu0 %v5160
  %5226 = vmatprep.subr.mxu0 %v5163
  %5227 = vmatpush1.msra.mxu0 %v5162
  %5228 = vmatprep.subr.mxu0 %v5165
  %5229 = vmatpush1.msra.mxu0 %v5164
  %5230 = vmatprep.subr.mxu0 %v5167
  %5231 = vmatpush1.msra.mxu0 %v5166
  %5232 = vmatprep.subr.mxu0 %v5169
  %5233 = vmatpush1.msra.mxu0 %v5168
  %5234 = vmatprep.subr.mxu0 %v5171
  %5235 = vmatpush1.msra.mxu0 %v5170
  %5236 = vmatprep.subr.mxu0 %v5173
  %5237 = vmatpush1.msra.mxu0 %v5172
  %5238 = vmatprep.subr.mxu0 %v5175
  %5239 = vmatpush1.msra.mxu0 %v5174
  %5240 = vmatprep.subr.mxu0 %v5177
  %5241 = vmatpush1.msra.mxu0 %v5176
  %5242 = vmatprep.subr.mxu0 %v5179
  %5243 = vmatpush1.msra.mxu0 %v5178
  %5244 = vmatprep.subr.mxu0 %v5181
  %5245 = vmatpush1.msra.mxu0 %v5180
  %5246 = vmatprep.subr.mxu0 %v5183
  %5247 = vmatpush1.msra.mxu0 %v5182
  %5248 = vmatprep.subr.mxu0 %v5185
  %5249 = vmatpush1.msra.mxu0 %v5184
  %5250 = vmatprep.subr.mxu0 %v5187
  %5251 = vmatpush1.msra.mxu0 %v5186
  %5252 = vmatprep.subr.mxu0 %v5189
  %5253 = vmatpush1.msra.mxu0 %v5188
  %5254 = vmatprep.subr.mxu0 %v5191
  %5255 = vmatpush1.msra.mxu0 %v5190
  %5256 = vmatprep.subr.mxu0 %v5193
  %5257 = vmatpush1.msra.mxu0 %v5192
  %5258 = vmatprep.subr.mxu0 %v5195
  %5259 = vmatpush1.msra.mxu0 %v5194
  %5260 = vmatprep.subr.mxu0 %v5197
  %5261 = vmatpush1.msra.mxu0 %v5196
  %5262 = vmatprep.subr.mxu0 %v5199
  %5263 = vmatpush1.msra.mxu0 %v5198
  %5264 = vmatprep.subr.mxu0 %v5201
  %5265 = vmatpush1.msra.mxu0 %v5200
  %5266 = vmatprep.subr.mxu0 %v5203
  %5267 = vmatpush1.msra.mxu0 %v5202
  %5268 = vmatprep.subr.mxu0 %v5205
  %5269 = vmatpush1.msra.mxu0 %v5204
  %5270 = vmatprep.subr.mxu0 %v5207
  %5271 = vmatpush1.msra.mxu0 %v5206
  %5272 = vmatprep.subr.mxu0 %v5209
  %5273 = vmatpush1.msra.mxu0 %v5208
  %5274 = vmatprep.subr.mxu0 %v5211
  %5275 = vmatpush1.msra.mxu0 %v5210
  %5276 = vmatprep.subr.mxu0 %v5213
  %5277 = vmatpush1.msra.mxu0 %v5212
  %5278 = vmatprep.subr.mxu0 %v5215
  %5279 = vmatpush1.msra.mxu0 %v5214
  %5280 = vmatprep.subr.mxu0 %v5217
  %5281 = vmatpush1.msra.mxu0 %v5216
  %5282 = vmatprep.subr.mxu0 %v5219
  %5283 = vmatpush1.msra.mxu0 %v5218
  %5284 = vmatprep.subr.mxu0 %v5221
  %5285 = vmatpush1.msra.mxu0 %v5220
  %5286 = vmatprep.subr.mxu0 %v5223
  %5287 = vmatpush1.msra.mxu0 %v5222
  %5288 = vmatprep.mubr.f32.mxu0 1.0
  %5289 = vmatmul.mubr.f32.gmra.mrb[0].mxu0 1.0
  %v5290 = vpop.f32.mrb[0].mxu0
  %v5291 = vadd.f32 0.0, %v5290
  %v5292 = vpop.f32.mrb[0].mxu0
  %v5293 = vadd.f32 0.0, %v5292
  %5294 = vdwg.mxu0
  %v5295 = vmul.f32 %v5156, 0.00390625
  %v5296 = vmul.f32 %v5158, 0.00390625
  %v5297 = vmul.f32 %v5291, 0.00390625
  %v5298 = vmul.f32 %v5293, 0.00390625
  %v5299 = vmul.f32 %v5295, %v5295
  %v5300 = vmul.f32 %v5296, %v5296
  %v5301 = vsub.f32 %v5297, %v5299
  %v5302 = vsub.f32 %v5298, %v5300
  %v5303 = vmax.f32 %v5301, 0.0
  %v5304 = vmax.f32 %v5302, 0.0
  %v5305 = vld [vmem:[%s35] sm:$0x3]
  %v5306 = vadd.f32 %v5303, 1e-05
  %v5307 = vadd.f32 %v5304, 1e-05
  %v5308 = vrsqrt.pop %v5306
  %v5309 = vrsqrt.pop %v5307
  %v5312 = vcombine.low %v5308, %v5309
  %v5314 = vunpack.c.l.s4 1966171168
  %v5315 = vunpack.c.0.s8 %v5314
  %v5316 = vlaneseq
  %v5317 = vshrl.u32 %v5316, 7
  %v5318 = vsub.s32 %v5315, %v5317
  %v5319 = vrot.slane %v5312, %v5318
  %v5321 = vunpack.c.l.s4 1966171168
  %v5322 = vunpack.c.0.s8 %v5321
  %v5323 = vlaneseq
  %v5324 = vshrl.u32 %v5323, 7
  %v5325 = vsub.s32 %v5322, %v5324
  %v5326 = vrot.slane %v5319, %v5325
  %v5328 = vmul.f32 %v5305, %v5326
  %v5329 = vld [vmem:[%s37] sm:$0x3]
  %v5331 = vlaneseq
  %v5332 = vshrl.u32 %v5331, 7
  %v5333 = vsub.s32 0, %v5332
  %v5334 = vrot.slane %v5328, %v5333
  %v5335 = vlaneseq
  %v5336 = vshrl.u32 %v5335, 7
  %v5337 = vsub.s32 1, %v5336
  %v5338 = vrot.slane %v5328, %v5337
  %v5341 = vmul.f32 %v5295, %v5334
  %v5342 = vmul.f32 %v5296, %v5338
  %v5345 = vcombine.low %v5341, %v5342
  %v5347 = vunpack.c.l.s4 1966171168
  %v5348 = vunpack.c.0.s8 %v5347
  %v5349 = vlaneseq
  %v5350 = vshrl.u32 %v5349, 7
  %v5351 = vsub.s32 %v5348, %v5350
  %v5352 = vrot.slane %v5345, %v5351
  %v5354 = vunpack.c.l.s4 1966171168
  %v5355 = vunpack.c.0.s8 %v5354
  %v5356 = vlaneseq
  %v5357 = vshrl.u32 %v5356, 7
  %v5358 = vsub.s32 %v5355, %v5357
  %v5359 = vrot.slane %v5352, %v5358
  %v5361 = vsub.f32 %v5329, %v5359
  %v5362 = vmul.f32 %v4961, %v5334
  %v5363 = vmul.f32 %v4962, %v5338
  %v5364 = vmul.f32 %v4965, %v5334
  %v5365 = vmul.f32 %v4966, %v5338
  %v5366 = vmul.f32 %v4969, %v5334
  %v5367 = vmul.f32 %v4970, %v5338
  %v5368 = vmul.f32 %v4973, %v5334
  %v5369 = vmul.f32 %v4974, %v5338
  %v5370 = vmul.f32 %v4977, %v5334
  %v5371 = vmul.f32 %v4978, %v5338
  %v5372 = vmul.f32 %v4981, %v5334
  %v5373 = vmul.f32 %v4982, %v5338
  %v5374 = vmul.f32 %v4985, %v5334
  %v5375 = vmul.f32 %v4986, %v5338
  %v5376 = vmul.f32 %v4989, %v5334
  %v5377 = vmul.f32 %v4990, %v5338
  %v5378 = vmul.f32 %v4993, %v5334
  %v5379 = vmul.f32 %v4994, %v5338
  %v5380 = vmul.f32 %v4997, %v5334
  %v5381 = vmul.f32 %v4998, %v5338
  %v5382 = vmul.f32 %v5001, %v5334
  %v5383 = vmul.f32 %v5002, %v5338
  %v5384 = vmul.f32 %v5005, %v5334
  %v5385 = vmul.f32 %v5006, %v5338
  %v5386 = vmul.f32 %v5009, %v5334
  %v5387 = vmul.f32 %v5010, %v5338
  %v5388 = vmul.f32 %v5013, %v5334
  %v5389 = vmul.f32 %v5014, %v5338
  %v5390 = vmul.f32 %v5017, %v5334
  %v5391 = vmul.f32 %v5018, %v5338
  %v5392 = vmul.f32 %v5021, %v5334
  %v5393 = vmul.f32 %v5022, %v5338
  %v5394 = vmul.f32 %v5025, %v5334
  %v5395 = vmul.f32 %v5026, %v5338
  %v5396 = vmul.f32 %v5029, %v5334
  %v5397 = vmul.f32 %v5030, %v5338
  %v5398 = vmul.f32 %v5033, %v5334
  %v5399 = vmul.f32 %v5034, %v5338
  %v5400 = vmul.f32 %v5037, %v5334
  %v5401 = vmul.f32 %v5038, %v5338
  %v5402 = vmul.f32 %v5041, %v5334
  %v5403 = vmul.f32 %v5042, %v5338
  %v5404 = vmul.f32 %v5045, %v5334
  %v5405 = vmul.f32 %v5046, %v5338
  %v5406 = vmul.f32 %v5049, %v5334
  %v5407 = vmul.f32 %v5050, %v5338
  %v5408 = vmul.f32 %v5053, %v5334
  %v5409 = vmul.f32 %v5054, %v5338
  %v5410 = vmul.f32 %v5057, %v5334
  %v5411 = vmul.f32 %v5058, %v5338
  %v5412 = vmul.f32 %v5061, %v5334
  %v5413 = vmul.f32 %v5062, %v5338
  %v5414 = vmul.f32 %v5065, %v5334
  %v5415 = vmul.f32 %v5066, %v5338
  %v5416 = vmul.f32 %v5069, %v5334
  %v5417 = vmul.f32 %v5070, %v5338
  %v5418 = vmul.f32 %v5073, %v5334
  %v5419 = vmul.f32 %v5074, %v5338
  %v5420 = vmul.f32 %v5077, %v5334
  %v5421 = vmul.f32 %v5078, %v5338
  %v5422 = vmul.f32 %v5081, %v5334
  %v5423 = vmul.f32 %v5082, %v5338
  %v5424 = vmul.f32 %v5085, %v5334
  %v5425 = vmul.f32 %v5086, %v5338
  %v5427 = vlaneseq
  %v5428 = vshrl.u32 %v5427, 7
  %v5429 = vsub.s32 0, %v5428
  %v5430 = vrot.slane %v5361, %v5429
  %v5431 = vlaneseq
  %v5432 = vshrl.u32 %v5431, 7
  %v5433 = vsub.s32 1, %v5432
  %v5434 = vrot.slane %v5361, %v5433
  %v5437 = vadd.f32 %v5362, %v5430
  %v5438 = vadd.f32 %v5363, %v5434
  %v5439 = vadd.f32 %v5364, %v5430
  %v5440 = vadd.f32 %v5365, %v5434
  %v5441 = vadd.f32 %v5366, %v5430
  %v5442 = vadd.f32 %v5367, %v5434
  %v5443 = vadd.f32 %v5368, %v5430
  %v5444 = vadd.f32 %v5369, %v5434
  %v5445 = vadd.f32 %v5370, %v5430
  %v5446 = vadd.f32 %v5371, %v5434
  %v5447 = vadd.f32 %v5372, %v5430
  %v5448 = vadd.f32 %v5373, %v5434
  %v5449 = vadd.f32 %v5374, %v5430
  %v5450 = vadd.f32 %v5375, %v5434
  %v5451 = vadd.f32 %v5376, %v5430
  %v5452 = vadd.f32 %v5377, %v5434
  %v5453 = vadd.f32 %v5378, %v5430
  %v5454 = vadd.f32 %v5379, %v5434
  %v5455 = vadd.f32 %v5380, %v5430
  %v5456 = vadd.f32 %v5381, %v5434
  %v5457 = vadd.f32 %v5382, %v5430
  %v5458 = vadd.f32 %v5383, %v5434
  %v5459 = vadd.f32 %v5384, %v5430
  %v5460 = vadd.f32 %v5385, %v5434
  %v5461 = vadd.f32 %v5386, %v5430
  %v5462 = vadd.f32 %v5387, %v5434
  %v5463 = vadd.f32 %v5388, %v5430
  %v5464 = vadd.f32 %v5389, %v5434
  %v5465 = vadd.f32 %v5390, %v5430
  %v5466 = vadd.f32 %v5391, %v5434
  %v5467 = vadd.f32 %v5392, %v5430
  %v5468 = vadd.f32 %v5393, %v5434
  %v5469 = vadd.f32 %v5394, %v5430
  %v5470 = vadd.f32 %v5395, %v5434
  %v5471 = vadd.f32 %v5396, %v5430
  %v5472 = vadd.f32 %v5397, %v5434
  %v5473 = vadd.f32 %v5398, %v5430
  %v5474 = vadd.f32 %v5399, %v5434
  %v5475 = vadd.f32 %v5400, %v5430
  %v5476 = vadd.f32 %v5401, %v5434
  %v5477 = vadd.f32 %v5402, %v5430
  %v5478 = vadd.f32 %v5403, %v5434
  %v5479 = vadd.f32 %v5404, %v5430
  %v5480 = vadd.f32 %v5405, %v5434
  %v5481 = vadd.f32 %v5406, %v5430
  %v5482 = vadd.f32 %v5407, %v5434
  %v5483 = vadd.f32 %v5408, %v5430
  %v5484 = vadd.f32 %v5409, %v5434
  %v5485 = vadd.f32 %v5410, %v5430
  %v5486 = vadd.f32 %v5411, %v5434
  %v5487 = vadd.f32 %v5412, %v5430
  %v5488 = vadd.f32 %v5413, %v5434
  %v5489 = vadd.f32 %v5414, %v5430
  %v5490 = vadd.f32 %v5415, %v5434
  %v5491 = vadd.f32 %v5416, %v5430
  %v5492 = vadd.f32 %v5417, %v5434
  %v5493 = vadd.f32 %v5418, %v5430
  %v5494 = vadd.f32 %v5419, %v5434
  %v5495 = vadd.f32 %v5420, %v5430
  %v5496 = vadd.f32 %v5421, %v5434
  %v5497 = vadd.f32 %v5422, %v5430
  %v5498 = vadd.f32 %v5423, %v5434
  %v5499 = vadd.f32 %v5424, %v5430
  %v5500 = vadd.f32 %v5425, %v5434
  %v5501 = vmax.f32 %v5437, 0.0
  %v5502 = vmax.f32 %v5438, 0.0
  %v5503 = vmax.f32 %v5439, 0.0
  %v5504 = vmax.f32 %v5440, 0.0
  %v5505 = vmax.f32 %v5441, 0.0
  %v5506 = vmax.f32 %v5442, 0.0
  %v5507 = vmax.f32 %v5443, 0.0
  %v5508 = vmax.f32 %v5444, 0.0
  %v5509 = vmax.f32 %v5445, 0.0
  %v5510 = vmax.f32 %v5446, 0.0
  %v5511 = vmax.f32 %v5447, 0.0
  %v5512 = vmax.f32 %v5448, 0.0
  %v5513 = vmax.f32 %v5449, 0.0
  %v5514 = vmax.f32 %v5450, 0.0
  %v5515 = vmax.f32 %v5451, 0.0
  %v5516 = vmax.f32 %v5452, 0.0
  %v5517 = vmax.f32 %v5453, 0.0
  %v5518 = vmax.f32 %v5454, 0.0
  %v5519 = vmax.f32 %v5455, 0.0
  %v5520 = vmax.f32 %v5456, 0.0
  %v5521 = vmax.f32 %v5457, 0.0
  %v5522 = vmax.f32 %v5458, 0.0
  %v5523 = vmax.f32 %v5459, 0.0
  %v5524 = vmax.f32 %v5460, 0.0
  %v5525 = vmax.f32 %v5461, 0.0
  %v5526 = vmax.f32 %v5462, 0.0
  %v5527 = vmax.f32 %v5463, 0.0
  %v5528 = vmax.f32 %v5464, 0.0
  %v5529 = vmax.f32 %v5465, 0.0
  %v5530 = vmax.f32 %v5466, 0.0
  %v5531 = vmax.f32 %v5467, 0.0
  %v5532 = vmax.f32 %v5468, 0.0
  %v5533 = vmax.f32 %v5469, 0.0
  %v5534 = vmax.f32 %v5470, 0.0
  %v5535 = vmax.f32 %v5471, 0.0
  %v5536 = vmax.f32 %v5472, 0.0
  %v5537 = vmax.f32 %v5473, 0.0
  %v5538 = vmax.f32 %v5474, 0.0
  %v5539 = vmax.f32 %v5475, 0.0
  %v5540 = vmax.f32 %v5476, 0.0
  %v5541 = vmax.f32 %v5477, 0.0
  %v5542 = vmax.f32 %v5478, 0.0
  %v5543 = vmax.f32 %v5479, 0.0
  %v5544 = vmax.f32 %v5480, 0.0
  %v5545 = vmax.f32 %v5481, 0.0
  %v5546 = vmax.f32 %v5482, 0.0
  %v5547 = vmax.f32 %v5483, 0.0
  %v5548 = vmax.f32 %v5484, 0.0
  %v5549 = vmax.f32 %v5485, 0.0
  %v5550 = vmax.f32 %v5486, 0.0
  %v5551 = vmax.f32 %v5487, 0.0
  %v5552 = vmax.f32 %v5488, 0.0
  %v5553 = vmax.f32 %v5489, 0.0
  %v5554 = vmax.f32 %v5490, 0.0
  %v5555 = vmax.f32 %v5491, 0.0
  %v5556 = vmax.f32 %v5492, 0.0
  %v5557 = vmax.f32 %v5493, 0.0
  %v5558 = vmax.f32 %v5494, 0.0
  %v5559 = vmax.f32 %v5495, 0.0
  %v5560 = vmax.f32 %v5496, 0.0
  %v5561 = vmax.f32 %v5497, 0.0
  %v5562 = vmax.f32 %v5498, 0.0
  %v5563 = vmax.f32 %v5499, 0.0
  %v5564 = vmax.f32 %v5500, 0.0
  %v5565 = vpack.c.bf16 %v5503, %v5501
  %v5566 = vpack.c.bf16 %v5504, %v5502
  %v5567 = vpack.c.bf16 %v5507, %v5505
  %v5568 = vpack.c.bf16 %v5508, %v5506
  %v5569 = vpack.c.bf16 %v5511, %v5509
  %v5570 = vpack.c.bf16 %v5512, %v5510
  %v5571 = vpack.c.bf16 %v5515, %v5513
  %v5572 = vpack.c.bf16 %v5516, %v5514
  %v5573 = vpack.c.bf16 %v5519, %v5517
  %v5574 = vpack.c.bf16 %v5520, %v5518
  %v5575 = vpack.c.bf16 %v5523, %v5521
  %v5576 = vpack.c.bf16 %v5524, %v5522
  %v5577 = vpack.c.bf16 %v5527, %v5525
  %v5578 = vpack.c.bf16 %v5528, %v5526
  %v5579 = vpack.c.bf16 %v5531, %v5529
  %v5580 = vpack.c.bf16 %v5532, %v5530
  %v5581 = vpack.c.bf16 %v5535, %v5533
  %v5582 = vpack.c.bf16 %v5536, %v5534
  %v5583 = vpack.c.bf16 %v5539, %v5537
  %v5584 = vpack.c.bf16 %v5540, %v5538
  %v5585 = vpack.c.bf16 %v5543, %v5541
  %v5586 = vpack.c.bf16 %v5544, %v5542
  %v5587 = vpack.c.bf16 %v5547, %v5545
  %v5588 = vpack.c.bf16 %v5548, %v5546
  %v5589 = vpack.c.bf16 %v5551, %v5549
  %v5590 = vpack.c.bf16 %v5552, %v5550
  %v5591 = vpack.c.bf16 %v5555, %v5553
  %v5592 = vpack.c.bf16 %v5556, %v5554
  %v5593 = vpack.c.bf16 %v5559, %v5557
  %v5594 = vpack.c.bf16 %v5560, %v5558
  %v5595 = vpack.c.bf16 %v5563, %v5561
  %v5596 = vpack.c.bf16 %v5564, %v5562
  %v5597 = vld [vmem:[%s39] sm:$0xff]
  %v5598 = vld [vmem:[%s39 + $0x8] sm:$0xff]
  %v5599 = vld [vmem:[%s39 + $0x10] sm:$0xff]
  %v5600 = vld [vmem:[%s39 + $0x18] sm:$0xff]
  %v5601 = vld [vmem:[%s39 + $0x20] sm:$0xff]
  %v5602 = vld [vmem:[%s39 + $0x28] sm:$0xff]
  %v5603 = vld [vmem:[%s39 + $0x30] sm:$0xff]
  %v5604 = vld [vmem:[%s39 + $0x38] sm:$0xff]
  %v5605 = vld [vmem:[%s39 + $0x40] sm:$0xff]
  %v5606 = vld [vmem:[%s39 + $0x48] sm:$0xff]
  %v5607 = vld [vmem:[%s39 + $0x50] sm:$0xff]
  %v5608 = vld [vmem:[%s39 + $0x58] sm:$0xff]
  %v5609 = vld [vmem:[%s39 + $0x60] sm:$0xff]
  %v5610 = vld [vmem:[%s39 + $0x68] sm:$0xff]
  %v5611 = vld [vmem:[%s39 + $0x70] sm:$0xff]
  %v5612 = vld [vmem:[%s39 + $0x78] sm:$0xff]
  %v5613 = vld [vmem:[%s39 + $0x80] sm:$0xff]
  %v5614 = vld [vmem:[%s39 + $0x88] sm:$0xff]
  %v5615 = vld [vmem:[%s39 + $0x90] sm:$0xff]
  %v5616 = vld [vmem:[%s39 + $0x98] sm:$0xff]
  %v5617 = vld [vmem:[%s39 + $0xa0] sm:$0xff]
  %v5618 = vld [vmem:[%s39 + $0xa8] sm:$0xff]
  %v5619 = vld [vmem:[%s39 + $0xb0] sm:$0xff]
  %v5620 = vld [vmem:[%s39 + $0xb8] sm:$0xff]
  %v5621 = vld [vmem:[%s39 + $0xc0] sm:$0xff]
  %v5622 = vld [vmem:[%s39 + $0xc8] sm:$0xff]
  %v5623 = vld [vmem:[%s39 + $0xd0] sm:$0xff]
  %v5624 = vld [vmem:[%s39 + $0xd8] sm:$0xff]
  %v5625 = vld [vmem:[%s39 + $0xe0] sm:$0xff]
  %v5626 = vld [vmem:[%s39 + $0xe8] sm:$0xff]
  %v5627 = vld [vmem:[%s39 + $0xf0] sm:$0xff]
  %v5628 = vld [vmem:[%s39 + $0xf8] sm:$0xff]
  %v5661 = vunpack.c.l.b16 %v5597
  %v5662 = vunpack.c.h.b16 %v5597
  %v5663 = vunpack.c.l.b16 %v5598
  %v5664 = vunpack.c.h.b16 %v5598
  %v5665 = vunpack.c.l.b16 %v5599
  %v5666 = vunpack.c.h.b16 %v5599
  %v5667 = vunpack.c.l.b16 %v5600
  %v5668 = vunpack.c.h.b16 %v5600
  %v5669 = vunpack.c.l.b16 %v5601
  %v5670 = vunpack.c.h.b16 %v5601
  %v5671 = vunpack.c.l.b16 %v5602
  %v5672 = vunpack.c.h.b16 %v5602
  %v5673 = vunpack.c.l.b16 %v5603
  %v5674 = vunpack.c.h.b16 %v5603
  %v5675 = vunpack.c.l.b16 %v5604
  %v5676 = vunpack.c.h.b16 %v5604
  %v5677 = vunpack.c.l.b16 %v5605
  %v5678 = vunpack.c.h.b16 %v5605
  %v5679 = vunpack.c.l.b16 %v5606
  %v5680 = vunpack.c.h.b16 %v5606
  %v5681 = vunpack.c.l.b16 %v5607
  %v5682 = vunpack.c.h.b16 %v5607
  %v5683 = vunpack.c.l.b16 %v5608
  %v5684 = vunpack.c.h.b16 %v5608
  %v5685 = vunpack.c.l.b16 %v5609
  %v5686 = vunpack.c.h.b16 %v5609
  %v5687 = vunpack.c.l.b16 %v5610
  %v5688 = vunpack.c.h.b16 %v5610
  %v5689 = vunpack.c.l.b16 %v5611
  %v5690 = vunpack.c.h.b16 %v5611
  %v5691 = vunpack.c.l.b16 %v5612
  %v5692 = vunpack.c.h.b16 %v5612
  %v5693 = vunpack.c.l.b16 %v5613
  %v5694 = vunpack.c.h.b16 %v5613
  %v5695 = vunpack.c.l.b16 %v5614
  %v5696 = vunpack.c.h.b16 %v5614
  %v5697 = vunpack.c.l.b16 %v5615
  %v5698 = vunpack.c.h.b16 %v5615
  %v5699 = vunpack.c.l.b16 %v5616
  %v5700 = vunpack.c.h.b16 %v5616
  %v5701 = vunpack.c.l.b16 %v5617
  %v5702 = vunpack.c.h.b16 %v5617
  %v5703 = vunpack.c.l.b16 %v5618
  %v5704 = vunpack.c.h.b16 %v5618
  %v5705 = vunpack.c.l.b16 %v5619
  %v5706 = vunpack.c.h.b16 %v5619
  %v5707 = vunpack.c.l.b16 %v5620
  %v5708 = vunpack.c.h.b16 %v5620
  %v5709 = vunpack.c.l.b16 %v5621
  %v5710 = vunpack.c.h.b16 %v5621
  %v5711 = vunpack.c.l.b16 %v5622
  %v5712 = vunpack.c.h.b16 %v5622
  %v5713 = vunpack.c.l.b16 %v5623
  %v5714 = vunpack.c.h.b16 %v5623
  %v5715 = vunpack.c.l.b16 %v5624
  %v5716 = vunpack.c.h.b16 %v5624
  %v5717 = vunpack.c.l.b16 %v5625
  %v5718 = vunpack.c.h.b16 %v5625
  %v5719 = vunpack.c.l.b16 %v5626
  %v5720 = vunpack.c.h.b16 %v5626
  %v5721 = vunpack.c.l.b16 %v5627
  %v5722 = vunpack.c.h.b16 %v5627
  %v5723 = vunpack.c.l.b16 %v5628
  %v5724 = vunpack.c.h.b16 %v5628
  %v5725 = vpack.c.b16 %v5663, %v5661
  %v5726 = vpack.c.b16 %v5664, %v5662
  %v5727 = vpack.c.b16 %v5667, %v5665
  %v5728 = vpack.c.b16 %v5668, %v5666
  %v5729 = vpack.c.b16 %v5671, %v5669
  %v5730 = vpack.c.b16 %v5672, %v5670
  %v5731 = vpack.c.b16 %v5675, %v5673
  %v5732 = vpack.c.b16 %v5676, %v5674
  %v5733 = vpack.c.b16 %v5679, %v5677
  %v5734 = vpack.c.b16 %v5680, %v5678
  %v5735 = vpack.c.b16 %v5683, %v5681
  %v5736 = vpack.c.b16 %v5684, %v5682
  %v5737 = vpack.c.b16 %v5687, %v5685
  %v5738 = vpack.c.b16 %v5688, %v5686
  %v5739 = vpack.c.b16 %v5691, %v5689
  %v5740 = vpack.c.b16 %v5692, %v5690
  %v5741 = vpack.c.b16 %v5695, %v5693
  %v5742 = vpack.c.b16 %v5696, %v5694
  %v5743 = vpack.c.b16 %v5699, %v5697
  %v5744 = vpack.c.b16 %v5700, %v5698
  %v5745 = vpack.c.b16 %v5703, %v5701
  %v5746 = vpack.c.b16 %v5704, %v5702
  %v5747 = vpack.c.b16 %v5707, %v5705
  %v5748 = vpack.c.b16 %v5708, %v5706
  %v5749 = vpack.c.b16 %v5711, %v5709
  %v5750 = vpack.c.b16 %v5712, %v5710
  %v5751 = vpack.c.b16 %v5715, %v5713
  %v5752 = vpack.c.b16 %v5716, %v5714
  %v5753 = vpack.c.b16 %v5719, %v5717
  %v5754 = vpack.c.b16 %v5720, %v5718
  %v5755 = vpack.c.b16 %v5723, %v5721
  %v5756 = vpack.c.b16 %v5724, %v5722
  %5789 = vmatprep.subr.bf16.mxu0 %v5726
  %5790 = vmatpush1.bf16.msra.mxu0 %v5725
  %5791 = vmatprep.subr.bf16.mxu0 %v5728
  %5792 = vmatpush1.bf16.msra.mxu0 %v5727
  %5793 = vmatprep.subr.bf16.mxu0 %v5730
  %5794 = vmatpush1.bf16.msra.mxu0 %v5729
  %5795 = vmatprep.subr.bf16.mxu0 %v5732
  %5796 = vmatpush1.bf16.msra.mxu0 %v5731
  %5797 = vmatprep.subr.bf16.mxu0 %v5734
  %5798 = vmatpush1.bf16.msra.mxu0 %v5733
  %5799 = vmatprep.subr.bf16.mxu0 %v5736
  %5800 = vmatpush1.bf16.msra.mxu0 %v5735
  %5801 = vmatprep.subr.bf16.mxu0 %v5738
  %5802 = vmatpush1.bf16.msra.mxu0 %v5737
  %5803 = vmatprep.subr.bf16.mxu0 %v5740
  %5804 = vmatpush1.bf16.msra.mxu0 %v5739
  %5805 = vmatprep.subr.bf16.mxu0 %v5742
  %5806 = vmatpush1.bf16.msra.mxu0 %v5741
  %5807 = vmatprep.subr.bf16.mxu0 %v5744
  %5808 = vmatpush1.bf16.msra.mxu0 %v5743
  %5809 = vmatprep.subr.bf16.mxu0 %v5746
  %5810 = vmatpush1.bf16.msra.mxu0 %v5745
  %5811 = vmatprep.subr.bf16.mxu0 %v5748
  %5812 = vmatpush1.bf16.msra.mxu0 %v5747
  %5813 = vmatprep.subr.bf16.mxu0 %v5750
  %5814 = vmatpush1.bf16.msra.mxu0 %v5749
  %5815 = vmatprep.subr.bf16.mxu0 %v5752
  %5816 = vmatpush1.bf16.msra.mxu0 %v5751
  %5817 = vmatprep.subr.bf16.mxu0 %v5754
  %5818 = vmatpush1.bf16.msra.mxu0 %v5753
  %5819 = vmatprep.subr.bf16.mxu0 %v5756
  %5820 = vmatpush1.bf16.msra.mxu0 %v5755
  %5821 = vmatprep.mubr.bf16.mxu0 %v5566
  %5822 = vmatmul.mubr.bf16.gmra.mrb[0].mxu0 %v5565
  %v5823 = vpop.f32.mrb[0].mxu0
  %v5824 = vadd.f32 0.0, %v5823
  %v5825 = vpop.f32.mrb[0].mxu0
  %v5826 = vadd.f32 0.0, %v5825
  %v5827 = vpop.f32.mrb[0].mxu0
  %v5828 = vadd.f32 0.0, %v5827
  %v5829 = vpop.f32.mrb[0].mxu0
  %v5830 = vadd.f32 0.0, %v5829
  %5831 = vmatprep.mubr.bf16.mxu0 %v5568
  %5832 = vmatmul.mubr.bf16.gmra.mrb[0].mxu0 %v5567
  %v5833 = vpop.f32.mrb[0].mxu0
  %v5834 = vadd.f32 0.0, %v5833
  %v5835 = vpop.f32.mrb[0].mxu0
  %v5836 = vadd.f32 0.0, %v5835
  %v5837 = vpop.f32.mrb[0].mxu0
  %v5838 = vadd.f32 0.0, %v5837
  %v5839 = vpop.f32.mrb[0].mxu0
  %v5840 = vadd.f32 0.0, %v5839
  %5841 = vmatprep.mubr.bf16.mxu0 %v5570
  %5842 = vmatmul.mubr.bf16.gmra.mrb[0].mxu0 %v5569
  %v5843 = vpop.f32.mrb[0].mxu0
  %v5844 = vadd.f32 0.0, %v5843
  %v5845 = vpop.f32.mrb[0].mxu0
  %v5846 = vadd.f32 0.0, %v5845
  %v5847 = vpop.f32.mrb[0].mxu0
  %v5848 = vadd.f32 0.0, %v5847
  %v5849 = vpop.f32.mrb[0].mxu0
  %v5850 = vadd.f32 0.0, %v5849
  %5851 = vmatprep.mubr.bf16.mxu0 %v5572
  %5852 = vmatmul.mubr.bf16.gmra.mrb[0].mxu0 %v5571
  %v5853 = vpop.f32.mrb[0].mxu0
  %v5854 = vadd.f32 0.0, %v5853
  %v5855 = vpop.f32.mrb[0].mxu0
  %v5856 = vadd.f32 0.0, %v5855
  %v5857 = vpop.f32.mrb[0].mxu0
  %v5858 = vadd.f32 0.0, %v5857
  %v5859 = vpop.f32.mrb[0].mxu0
  %v5860 = vadd.f32 0.0, %v5859
  %5861 = vmatprep.mubr.bf16.mxu0 %v5574
  %5862 = vmatmul.mubr.bf16.gmra.mrb[0].mxu0 %v5573
  %v5863 = vpop.f32.mrb[0].mxu0
  %v5864 = vadd.f32 0.0, %v5863
  %v5865 = vpop.f32.mrb[0].mxu0
  %v5866 = vadd.f32 0.0, %v5865
  %v5867 = vpop.f32.mrb[0].mxu0
  %v5868 = vadd.f32 0.0, %v5867
  %v5869 = vpop.f32.mrb[0].mxu0
  %v5870 = vadd.f32 0.0, %v5869
  %5871 = vmatprep.mubr.bf16.mxu0 %v5576
  %5872 = vmatmul.mubr.bf16.gmra.mrb[0].mxu0 %v5575
  %v5873 = vpop.f32.mrb[0].mxu0
  %v5874 = vadd.f32 0.0, %v5873
  %v5875 = vpop.f32.mrb[0].mxu0
  %v5876 = vadd.f32 0.0, %v5875
  %v5877 = vpop.f32.mrb[0].mxu0
  %v5878 = vadd.f32 0.0, %v5877
  %v5879 = vpop.f32.mrb[0].mxu0
  %v5880 = vadd.f32 0.0, %v5879
  %5881 = vmatprep.mubr.bf16.mxu0 %v5578
  %5882 = vmatmul.mubr.bf16.gmra.mrb[0].mxu0 %v5577
  %v5883 = vpop.f32.mrb[0].mxu0
  %v5884 = vadd.f32 0.0, %v5883
  %v5885 = vpop.f32.mrb[0].mxu0
  %v5886 = vadd.f32 0.0, %v5885
  %v5887 = vpop.f32.mrb[0].mxu0
  %v5888 = vadd.f32 0.0, %v5887
  %v5889 = vpop.f32.mrb[0].mxu0
  %v5890 = vadd.f32 0.0, %v5889
  %5891 = vmatprep.mubr.bf16.mxu0 %v5580
  %5892 = vmatmul.mubr.bf16.gmra.mrb[0].mxu0 %v5579
  %v5893 = vpop.f32.mrb[0].mxu0
  %v5894 = vadd.f32 0.0, %v5893
  %v5895 = vpop.f32.mrb[0].mxu0
  %v5896 = vadd.f32 0.0, %v5895
  %v5897 = vpop.f32.mrb[0].mxu0
  %v5898 = vadd.f32 0.0, %v5897
  %v5899 = vpop.f32.mrb[0].mxu0
  %v5900 = vadd.f32 0.0, %v5899
  %5901 = vmatprep.mubr.bf16.mxu0 %v5582
  %5902 = vmatmul.mubr.bf16.gmra.mrb[0].mxu0 %v5581
  %v5903 = vpop.f32.mrb[0].mxu0
  %v5904 = vadd.f32 0.0, %v5903
  %v5905 = vpop.f32.mrb[0].mxu0
  %v5906 = vadd.f32 0.0, %v5905
  %v5907 = vpop.f32.mrb[0].mxu0
  %v5908 = vadd.f32 0.0, %v5907
  %v5909 = vpop.f32.mrb[0].mxu0
  %v5910 = vadd.f32 0.0, %v5909
  %5911 = vmatprep.mubr.bf16.mxu0 %v5584
  %5912 = vmatmul.mubr.bf16.gmra.mrb[0].mxu0 %v5583
  %v5913 = vpop.f32.mrb[0].mxu0
  %v5914 = vadd.f32 0.0, %v5913
  %v5915 = vpop.f32.mrb[0].mxu0
  %v5916 = vadd.f32 0.0, %v5915
  %v5917 = vpop.f32.mrb[0].mxu0
  %v5918 = vadd.f32 0.0, %v5917
  %v5919 = vpop.f32.mrb[0].mxu0
  %v5920 = vadd.f32 0.0, %v5919
  %5921 = vmatprep.mubr.bf16.mxu0 %v5586
  %5922 = vmatmul.mubr.bf16.gmra.mrb[0].mxu0 %v5585
  %v5923 = vpop.f32.mrb[0].mxu0
  %v5924 = vadd.f32 0.0, %v5923
  %v5925 = vpop.f32.mrb[0].mxu0
  %v5926 = vadd.f32 0.0, %v5925
  %v5927 = vpop.f32.mrb[0].mxu0
  %v5928 = vadd.f32 0.0, %v5927
  %v5929 = vpop.f32.mrb[0].mxu0
  %v5930 = vadd.f32 0.0, %v5929
  %5931 = vmatprep.mubr.bf16.mxu0 %v5588
  %5932 = vmatmul.mubr.bf16.gmra.mrb[0].mxu0 %v5587
  %v5933 = vpop.f32.mrb[0].mxu0
  %v5934 = vadd.f32 0.0, %v5933
  %v5935 = vpop.f32.mrb[0].mxu0
  %v5936 = vadd.f32 0.0, %v5935
  %v5937 = vpop.f32.mrb[0].mxu0
  %v5938 = vadd.f32 0.0, %v5937
  %v5939 = vpop.f32.mrb[0].mxu0
  %v5940 = vadd.f32 0.0, %v5939
  %5941 = vmatprep.mubr.bf16.mxu0 %v5590
  %5942 = vmatmul.mubr.bf16.gmra.mrb[0].mxu0 %v5589
  %v5943 = vpop.f32.mrb[0].mxu0
  %v5944 = vadd.f32 0.0, %v5943
  %v5945 = vpop.f32.mrb[0].mxu0
  %v5946 = vadd.f32 0.0, %v5945
  %v5947 = vpop.f32.mrb[0].mxu0
  %v5948 = vadd.f32 0.0, %v5947
  %v5949 = vpop.f32.mrb[0].mxu0
  %v5950 = vadd.f32 0.0, %v5949
  %5951 = vmatprep.mubr.bf16.mxu0 %v5592
  %5952 = vmatmul.mubr.bf16.gmra.mrb[0].mxu0 %v5591
  %v5953 = vpop.f32.mrb[0].mxu0
  %v5954 = vadd.f32 0.0, %v5953
  %v5955 = vpop.f32.mrb[0].mxu0
  %v5956 = vadd.f32 0.0, %v5955
  %v5957 = vpop.f32.mrb[0].mxu0
  %v5958 = vadd.f32 0.0, %v5957
  %v5959 = vpop.f32.mrb[0].mxu0
  %v5960 = vadd.f32 0.0, %v5959
  %5961 = vmatprep.mubr.bf16.mxu0 %v5594
  %5962 = vmatmul.mubr.bf16.gmra.mrb[0].mxu0 %v5593
  %v5963 = vpop.f32.mrb[0].mxu0
  %v5964 = vadd.f32 0.0, %v5963
  %v5965 = vpop.f32.mrb[0].mxu0
  %v5966 = vadd.f32 0.0, %v5965
  %v5967 = vpop.f32.mrb[0].mxu0
  %v5968 = vadd.f32 0.0, %v5967
  %v5969 = vpop.f32.mrb[0].mxu0
  %v5970 = vadd.f32 0.0, %v5969
  %5971 = vmatprep.mubr.bf16.mxu0 %v5596
  %5972 = vmatmul.mubr.bf16.gmra.mrb[0].mxu0 %v5595
  %v5973 = vpop.f32.mrb[0].mxu0
  %v5974 = vadd.f32 0.0, %v5973
  %v5975 = vpop.f32.mrb[0].mxu0
  %v5976 = vadd.f32 0.0, %v5975
  %v5977 = vpop.f32.mrb[0].mxu0
  %v5978 = vadd.f32 0.0, %v5977
  %v5979 = vpop.f32.mrb[0].mxu0
  %v5980 = vadd.f32 0.0, %v5979
  %5981 = vdwg.mxu0
  %v5982 = vld [vmem:[%s41] sm:$0x3]
  %v5984 = vlaneseq
  %v5985 = vshrl.u32 %v5984, 7
  %v5986 = vsub.s32 0, %v5985
  %v5987 = vrot.slane %v5982, %v5986
  %v5988 = vlaneseq
  %v5989 = vshrl.u32 %v5988, 7
  %v5990 = vsub.s32 1, %v5989
  %v5991 = vrot.slane %v5982, %v5990
  %v5994 = vadd.f32 %v5824, %v5987
  %v5995 = vadd.f32 %v5826, %v5991
  %v5996 = vadd.f32 %v5828, %v5987
  %v5997 = vadd.f32 %v5830, %v5991
  %v5998 = vadd.f32 %v5834, %v5987
  %v5999 = vadd.f32 %v5836, %v5991
  %v6000 = vadd.f32 %v5838, %v5987
  %v6001 = vadd.f32 %v5840, %v5991
  %v6002 = vadd.f32 %v5844, %v5987
  %v6003 = vadd.f32 %v5846, %v5991
  %v6004 = vadd.f32 %v5848, %v5987
  %v6005 = vadd.f32 %v5850, %v5991
  %v6006 = vadd.f32 %v5854, %v5987
  %v6007 = vadd.f32 %v5856, %v5991
  %v6008 = vadd.f32 %v5858, %v5987
  %v6009 = vadd.f32 %v5860, %v5991
  %v6010 = vadd.f32 %v5864, %v5987
  %v6011 = vadd.f32 %v5866, %v5991
  %v6012 = vadd.f32 %v5868, %v5987
  %v6013 = vadd.f32 %v5870, %v5991
  %v6014 = vadd.f32 %v5874, %v5987
  %v6015 = vadd.f32 %v5876, %v5991
  %v6016 = vadd.f32 %v5878, %v5987
  %v6017 = vadd.f32 %v5880, %v5991
  %v6018 = vadd.f32 %v5884, %v5987
  %v6019 = vadd.f32 %v5886, %v5991
  %v6020 = vadd.f32 %v5888, %v5987
  %v6021 = vadd.f32 %v5890, %v5991
  %v6022 = vadd.f32 %v5894, %v5987
  %v6023 = vadd.f32 %v5896, %v5991
  %v6024 = vadd.f32 %v5898, %v5987
  %v6025 = vadd.f32 %v5900, %v5991
  %v6026 = vadd.f32 %v5904, %v5987
  %v6027 = vadd.f32 %v5906, %v5991
  %v6028 = vadd.f32 %v5908, %v5987
  %v6029 = vadd.f32 %v5910, %v5991
  %v6030 = vadd.f32 %v5914, %v5987
  %v6031 = vadd.f32 %v5916, %v5991
  %v6032 = vadd.f32 %v5918, %v5987
  %v6033 = vadd.f32 %v5920, %v5991
  %v6034 = vadd.f32 %v5924, %v5987
  %v6035 = vadd.f32 %v5926, %v5991
  %v6036 = vadd.f32 %v5928, %v5987
  %v6037 = vadd.f32 %v5930, %v5991
  %v6038 = vadd.f32 %v5934, %v5987
  %v6039 = vadd.f32 %v5936, %v5991
  %v6040 = vadd.f32 %v5938, %v5987
  %v6041 = vadd.f32 %v5940, %v5991
  %v6042 = vadd.f32 %v5944, %v5987
  %v6043 = vadd.f32 %v5946, %v5991
  %v6044 = vadd.f32 %v5948, %v5987
  %v6045 = vadd.f32 %v5950, %v5991
  %v6046 = vadd.f32 %v5954, %v5987
  %v6047 = vadd.f32 %v5956, %v5991
  %v6048 = vadd.f32 %v5958, %v5987
  %v6049 = vadd.f32 %v5960, %v5991
  %v6050 = vadd.f32 %v5964, %v5987
  %v6051 = vadd.f32 %v5966, %v5991
  %v6052 = vadd.f32 %v5968, %v5987
  %v6053 = vadd.f32 %v5970, %v5991
  %v6054 = vadd.f32 %v5974, %v5987
  %v6055 = vadd.f32 %v5976, %v5991
  %v6056 = vadd.f32 %v5978, %v5987
  %v6057 = vadd.f32 %v5980, %v5991
  %6058 = vmatprep.subr.mxu0 %v5995
  %6059 = vmatpush1.msra.mxu0 %v5994
  %6060 = vmatprep.subr.mxu0 %v5997
  %6061 = vmatpush1.msra.mxu0 %v5996
  %6062 = vmatprep.subr.mxu0 %v5999
  %6063 = vmatpush1.msra.mxu0 %v5998
  %6064 = vmatprep.subr.mxu0 %v6001
  %6065 = vmatpush1.msra.mxu0 %v6000
  %6066 = vmatprep.subr.mxu0 %v6003
  %6067 = vmatpush1.msra.mxu0 %v6002
  %6068 = vmatprep.subr.mxu0 %v6005
  %6069 = vmatpush1.msra.mxu0 %v6004
  %6070 = vmatprep.subr.mxu0 %v6007
  %6071 = vmatpush1.msra.mxu0 %v6006
  %6072 = vmatprep.subr.mxu0 %v6009
  %6073 = vmatpush1.msra.mxu0 %v6008
  %6074 = vmatprep.subr.mxu0 %v6011
  %6075 = vmatpush1.msra.mxu0 %v6010
  %6076 = vmatprep.subr.mxu0 %v6013
  %6077 = vmatpush1.msra.mxu0 %v6012
  %6078 = vmatprep.subr.mxu0 %v6015
  %6079 = vmatpush1.msra.mxu0 %v6014
  %6080 = vmatprep.subr.mxu0 %v6017
  %6081 = vmatpush1.msra.mxu0 %v6016
  %6082 = vmatprep.subr.mxu0 %v6019
  %6083 = vmatpush1.msra.mxu0 %v6018
  %6084 = vmatprep.subr.mxu0 %v6021
  %6085 = vmatpush1.msra.mxu0 %v6020
  %6086 = vmatprep.subr.mxu0 %v6023
  %6087 = vmatpush1.msra.mxu0 %v6022
  %6088 = vmatprep.subr.mxu0 %v6025
  %6089 = vmatpush1.msra.mxu0 %v6024
  %6090 = vmatprep.subr.mxu0 %v6027
  %6091 = vmatpush1.msra.mxu0 %v6026
  %6092 = vmatprep.subr.mxu0 %v6029
  %6093 = vmatpush1.msra.mxu0 %v6028
  %6094 = vmatprep.subr.mxu0 %v6031
  %6095 = vmatpush1.msra.mxu0 %v6030
  %6096 = vmatprep.subr.mxu0 %v6033
  %6097 = vmatpush1.msra.mxu0 %v6032
  %6098 = vmatprep.subr.mxu0 %v6035
  %6099 = vmatpush1.msra.mxu0 %v6034
  %6100 = vmatprep.subr.mxu0 %v6037
  %6101 = vmatpush1.msra.mxu0 %v6036
  %6102 = vmatprep.subr.mxu0 %v6039
  %6103 = vmatpush1.msra.mxu0 %v6038
  %6104 = vmatprep.subr.mxu0 %v6041
  %6105 = vmatpush1.msra.mxu0 %v6040
  %6106 = vmatprep.subr.mxu0 %v6043
  %6107 = vmatpush1.msra.mxu0 %v6042
  %6108 = vmatprep.subr.mxu0 %v6045
  %6109 = vmatpush1.msra.mxu0 %v6044
  %6110 = vmatprep.subr.mxu0 %v6047
  %6111 = vmatpush1.msra.mxu0 %v6046
  %6112 = vmatprep.subr.mxu0 %v6049
  %6113 = vmatpush1.msra.mxu0 %v6048
  %6114 = vmatprep.subr.mxu0 %v6051
  %6115 = vmatpush1.msra.mxu0 %v6050
  %6116 = vmatprep.subr.mxu0 %v6053
  %6117 = vmatpush1.msra.mxu0 %v6052
  %6118 = vmatprep.subr.mxu0 %v6055
  %6119 = vmatpush1.msra.mxu0 %v6054
  %6120 = vmatprep.subr.mxu0 %v6057
  %6121 = vmatpush1.msra.mxu0 %v6056
  %6122 = vmatprep.mubr.f32.mxu0 1.0
  %6123 = vmatmul.mubr.f32.gmra.mrb[0].mxu0 1.0
  %v6124 = vpop.f32.mrb[0].mxu0
  %v6125 = vadd.f32 0.0, %v6124
  %v6126 = vpop.f32.mrb[0].mxu0
  %v6127 = vadd.f32 0.0, %v6126
  %6128 = vdwg.mxu0
  %v6129 = vmul.f32 %v5994, %v5994
  %v6130 = vmul.f32 %v5995, %v5995
  %v6131 = vmul.f32 %v5996, %v5996
  %v6132 = vmul.f32 %v5997, %v5997
  %v6133 = vmul.f32 %v5998, %v5998
  %v6134 = vmul.f32 %v5999, %v5999
  %v6135 = vmul.f32 %v6000, %v6000
  %v6136 = vmul.f32 %v6001, %v6001
  %v6137 = vmul.f32 %v6002, %v6002
  %v6138 = vmul.f32 %v6003, %v6003
  %v6139 = vmul.f32 %v6004, %v6004
  %v6140 = vmul.f32 %v6005, %v6005
  %v6141 = vmul.f32 %v6006, %v6006
  %v6142 = vmul.f32 %v6007, %v6007
  %v6143 = vmul.f32 %v6008, %v6008
  %v6144 = vmul.f32 %v6009, %v6009
  %v6145 = vmul.f32 %v6010, %v6010
  %v6146 = vmul.f32 %v6011, %v6011
  %v6147 = vmul.f32 %v6012, %v6012
  %v6148 = vmul.f32 %v6013, %v6013
  %v6149 = vmul.f32 %v6014, %v6014
  %v6150 = vmul.f32 %v6015, %v6015
  %v6151 = vmul.f32 %v6016, %v6016
  %v6152 = vmul.f32 %v6017, %v6017
  %v6153 = vmul.f32 %v6018, %v6018
  %v6154 = vmul.f32 %v6019, %v6019
  %v6155 = vmul.f32 %v6020, %v6020
  %v6156 = vmul.f32 %v6021, %v6021
  %v6157 = vmul.f32 %v6022, %v6022
  %v6158 = vmul.f32 %v6023, %v6023
  %v6159 = vmul.f32 %v6024, %v6024
  %v6160 = vmul.f32 %v6025, %v6025
  %v6161 = vmul.f32 %v6026, %v6026
  %v6162 = vmul.f32 %v6027, %v6027
  %v6163 = vmul.f32 %v6028, %v6028
  %v6164 = vmul.f32 %v6029, %v6029
  %v6165 = vmul.f32 %v6030, %v6030
  %v6166 = vmul.f32 %v6031, %v6031
  %v6167 = vmul.f32 %v6032, %v6032
  %v6168 = vmul.f32 %v6033, %v6033
  %v6169 = vmul.f32 %v6034, %v6034
  %v6170 = vmul.f32 %v6035, %v6035
  %v6171 = vmul.f32 %v6036, %v6036
  %v6172 = vmul.f32 %v6037, %v6037
  %v6173 = vmul.f32 %v6038, %v6038
  %v6174 = vmul.f32 %v6039, %v6039
  %v6175 = vmul.f32 %v6040, %v6040
  %v6176 = vmul.f32 %v6041, %v6041
  %v6177 = vmul.f32 %v6042, %v6042
  %v6178 = vmul.f32 %v6043, %v6043
  %v6179 = vmul.f32 %v6044, %v6044
  %v6180 = vmul.f32 %v6045, %v6045
  %v6181 = vmul.f32 %v6046, %v6046
  %v6182 = vmul.f32 %v6047, %v6047
  %v6183 = vmul.f32 %v6048, %v6048
  %v6184 = vmul.f32 %v6049, %v6049
  %v6185 = vmul.f32 %v6050, %v6050
  %v6186 = vmul.f32 %v6051, %v6051
  %v6187 = vmul.f32 %v6052, %v6052
  %v6188 = vmul.f32 %v6053, %v6053
  %v6189 = vmul.f32 %v6054, %v6054
  %v6190 = vmul.f32 %v6055, %v6055
  %v6191 = vmul.f32 %v6056, %v6056
  %v6192 = vmul.f32 %v6057, %v6057
  %6193 = vmatprep.subr.mxu0 %v6130
  %6194 = vmatpush1.msra.mxu0 %v6129
  %6195 = vmatprep.subr.mxu0 %v6132
  %6196 = vmatpush1.msra.mxu0 %v6131
  %6197 = vmatprep.subr.mxu0 %v6134
  %6198 = vmatpush1.msra.mxu0 %v6133
  %6199 = vmatprep.subr.mxu0 %v6136
  %6200 = vmatpush1.msra.mxu0 %v6135
  %6201 = vmatprep.subr.mxu0 %v6138
  %6202 = vmatpush1.msra.mxu0 %v6137
  %6203 = vmatprep.subr.mxu0 %v6140
  %6204 = vmatpush1.msra.mxu0 %v6139
  %6205 = vmatprep.subr.mxu0 %v6142
  %6206 = vmatpush1.msra.mxu0 %v6141
  %6207 = vmatprep.subr.mxu0 %v6144
  %6208 = vmatpush1.msra.mxu0 %v6143
  %6209 = vmatprep.subr.mxu0 %v6146
  %6210 = vmatpush1.msra.mxu0 %v6145
  %6211 = vmatprep.subr.mxu0 %v6148
  %6212 = vmatpush1.msra.mxu0 %v6147
  %6213 = vmatprep.subr.mxu0 %v6150
  %6214 = vmatpush1.msra.mxu0 %v6149
  %6215 = vmatprep.subr.mxu0 %v6152
  %6216 = vmatpush1.msra.mxu0 %v6151
  %6217 = vmatprep.subr.mxu0 %v6154
  %6218 = vmatpush1.msra.mxu0 %v6153
  %6219 = vmatprep.subr.mxu0 %v6156
  %6220 = vmatpush1.msra.mxu0 %v6155
  %6221 = vmatprep.subr.mxu0 %v6158
  %6222 = vmatpush1.msra.mxu0 %v6157
  %6223 = vmatprep.subr.mxu0 %v6160
  %6224 = vmatpush1.msra.mxu0 %v6159
  %6225 = vmatprep.subr.mxu0 %v6162
  %6226 = vmatpush1.msra.mxu0 %v6161
  %6227 = vmatprep.subr.mxu0 %v6164
  %6228 = vmatpush1.msra.mxu0 %v6163
  %6229 = vmatprep.subr.mxu0 %v6166
  %6230 = vmatpush1.msra.mxu0 %v6165
  %6231 = vmatprep.subr.mxu0 %v6168
  %6232 = vmatpush1.msra.mxu0 %v6167
  %6233 = vmatprep.subr.mxu0 %v6170
  %6234 = vmatpush1.msra.mxu0 %v6169
  %6235 = vmatprep.subr.mxu0 %v6172
  %6236 = vmatpush1.msra.mxu0 %v6171
  %6237 = vmatprep.subr.mxu0 %v6174
  %6238 = vmatpush1.msra.mxu0 %v6173
  %6239 = vmatprep.subr.mxu0 %v6176
  %6240 = vmatpush1.msra.mxu0 %v6175
  %6241 = vmatprep.subr.mxu0 %v6178
  %6242 = vmatpush1.msra.mxu0 %v6177
  %6243 = vmatprep.subr.mxu0 %v6180
  %6244 = vmatpush1.msra.mxu0 %v6179
  %6245 = vmatprep.subr.mxu0 %v6182
  %6246 = vmatpush1.msra.mxu0 %v6181
  %6247 = vmatprep.subr.mxu0 %v6184
  %6248 = vmatpush1.msra.mxu0 %v6183
  %6249 = vmatprep.subr.mxu0 %v6186
  %6250 = vmatpush1.msra.mxu0 %v6185
  %6251 = vmatprep.subr.mxu0 %v6188
  %6252 = vmatpush1.msra.mxu0 %v6187
  %6253 = vmatprep.subr.mxu0 %v6190
  %6254 = vmatpush1.msra.mxu0 %v6189
  %6255 = vmatprep.subr.mxu0 %v6192
  %6256 = vmatpush1.msra.mxu0 %v6191
  %6257 = vmatprep.mubr.f32.mxu0 1.0
  %6258 = vmatmul.mubr.f32.gmra.mrb[0].mxu0 1.0
  %v6259 = vpop.f32.mrb[0].mxu0
  %v6260 = vadd.f32 0.0, %v6259
  %v6261 = vpop.f32.mrb[0].mxu0
  %v6262 = vadd.f32 0.0, %v6261
  %6263 = vdwg.mxu0
  %v6264 = vmul.f32 %v6125, 0.00390625
  %v6265 = vmul.f32 %v6127, 0.00390625
  %v6266 = vmul.f32 %v6260, 0.00390625
  %v6267 = vmul.f32 %v6262, 0.00390625
  %v6268 = vmul.f32 %v6264, %v6264
  %v6269 = vmul.f32 %v6265, %v6265
  %v6270 = vsub.f32 %v6266, %v6268
  %v6271 = vsub.f32 %v6267, %v6269
  %v6272 = vmax.f32 %v6270, 0.0
  %v6273 = vmax.f32 %v6271, 0.0
  %v6274 = vld [vmem:[%s43] sm:$0x3]
  %v6275 = vadd.f32 %v6272, 1e-05
  %v6276 = vadd.f32 %v6273, 1e-05
  %v6277 = vrsqrt.pop %v6275
  %v6278 = vrsqrt.pop %v6276
  %v6281 = vcombine.low %v6277, %v6278
  %v6283 = vunpack.c.l.s4 1966171168
  %v6284 = vunpack.c.0.s8 %v6283
  %v6285 = vlaneseq
  %v6286 = vshrl.u32 %v6285, 7
  %v6287 = vsub.s32 %v6284, %v6286
  %v6288 = vrot.slane %v6281, %v6287
  %v6290 = vunpack.c.l.s4 1966171168
  %v6291 = vunpack.c.0.s8 %v6290
  %v6292 = vlaneseq
  %v6293 = vshrl.u32 %v6292, 7
  %v6294 = vsub.s32 %v6291, %v6293
  %v6295 = vrot.slane %v6288, %v6294
  %v6297 = vmul.f32 %v6274, %v6295
  %v6298 = vld [vmem:[%s45] sm:$0x3]
  %v6300 = vlaneseq
  %v6301 = vshrl.u32 %v6300, 7
  %v6302 = vsub.s32 0, %v6301
  %v6303 = vrot.slane %v6297, %v6302
  %v6304 = vlaneseq
  %v6305 = vshrl.u32 %v6304, 7
  %v6306 = vsub.s32 1, %v6305
  %v6307 = vrot.slane %v6297, %v6306
  %v6310 = vmul.f32 %v6264, %v6303
  %v6311 = vmul.f32 %v6265, %v6307
  %v6314 = vcombine.low %v6310, %v6311
  %v6316 = vunpack.c.l.s4 1966171168
  %v6317 = vunpack.c.0.s8 %v6316
  %v6318 = vlaneseq
  %v6319 = vshrl.u32 %v6318, 7
  %v6320 = vsub.s32 %v6317, %v6319
  %v6321 = vrot.slane %v6314, %v6320
  %v6323 = vunpack.c.l.s4 1966171168
  %v6324 = vunpack.c.0.s8 %v6323
  %v6325 = vlaneseq
  %v6326 = vshrl.u32 %v6325, 7
  %v6327 = vsub.s32 %v6324, %v6326
  %v6328 = vrot.slane %v6321, %v6327
  %v6330 = vsub.f32 %v6298, %v6328
  %v6331 = vmul.f32 %v5994, %v6303
  %v6332 = vmul.f32 %v5995, %v6307
  %v6333 = vmul.f32 %v5996, %v6303
  %v6334 = vmul.f32 %v5997, %v6307
  %v6335 = vmul.f32 %v5998, %v6303
  %v6336 = vmul.f32 %v5999, %v6307
  %v6337 = vmul.f32 %v6000, %v6303
  %v6338 = vmul.f32 %v6001, %v6307
  %v6339 = vmul.f32 %v6002, %v6303
  %v6340 = vmul.f32 %v6003, %v6307
  %v6341 = vmul.f32 %v6004, %v6303
  %v6342 = vmul.f32 %v6005, %v6307
  %v6343 = vmul.f32 %v6006, %v6303
  %v6344 = vmul.f32 %v6007, %v6307
  %v6345 = vmul.f32 %v6008, %v6303
  %v6346 = vmul.f32 %v6009, %v6307
  %v6347 = vmul.f32 %v6010, %v6303
  %v6348 = vmul.f32 %v6011, %v6307
  %v6349 = vmul.f32 %v6012, %v6303
  %v6350 = vmul.f32 %v6013, %v6307
  %v6351 = vmul.f32 %v6014, %v6303
  %v6352 = vmul.f32 %v6015, %v6307
  %v6353 = vmul.f32 %v6016, %v6303
  %v6354 = vmul.f32 %v6017, %v6307
  %v6355 = vmul.f32 %v6018, %v6303
  %v6356 = vmul.f32 %v6019, %v6307
  %v6357 = vmul.f32 %v6020, %v6303
  %v6358 = vmul.f32 %v6021, %v6307
  %v6359 = vmul.f32 %v6022, %v6303
  %v6360 = vmul.f32 %v6023, %v6307
  %v6361 = vmul.f32 %v6024, %v6303
  %v6362 = vmul.f32 %v6025, %v6307
  %v6363 = vmul.f32 %v6026, %v6303
  %v6364 = vmul.f32 %v6027, %v6307
  %v6365 = vmul.f32 %v6028, %v6303
  %v6366 = vmul.f32 %v6029, %v6307
  %v6367 = vmul.f32 %v6030, %v6303
  %v6368 = vmul.f32 %v6031, %v6307
  %v6369 = vmul.f32 %v6032, %v6303
  %v6370 = vmul.f32 %v6033, %v6307
  %v6371 = vmul.f32 %v6034, %v6303
  %v6372 = vmul.f32 %v6035, %v6307
  %v6373 = vmul.f32 %v6036, %v6303
  %v6374 = vmul.f32 %v6037, %v6307
  %v6375 = vmul.f32 %v6038, %v6303
  %v6376 = vmul.f32 %v6039, %v6307
  %v6377 = vmul.f32 %v6040, %v6303
  %v6378 = vmul.f32 %v6041, %v6307
  %v6379 = vmul.f32 %v6042, %v6303
  %v6380 = vmul.f32 %v6043, %v6307
  %v6381 = vmul.f32 %v6044, %v6303
  %v6382 = vmul.f32 %v6045, %v6307
  %v6383 = vmul.f32 %v6046, %v6303
  %v6384 = vmul.f32 %v6047, %v6307
  %v6385 = vmul.f32 %v6048, %v6303
  %v6386 = vmul.f32 %v6049, %v6307
  %v6387 = vmul.f32 %v6050, %v6303
  %v6388 = vmul.f32 %v6051, %v6307
  %v6389 = vmul.f32 %v6052, %v6303
  %v6390 = vmul.f32 %v6053, %v6307
  %v6391 = vmul.f32 %v6054, %v6303
  %v6392 = vmul.f32 %v6055, %v6307
  %v6393 = vmul.f32 %v6056, %v6303
  %v6394 = vmul.f32 %v6057, %v6307
  %v6396 = vlaneseq
  %v6397 = vshrl.u32 %v6396, 7
  %v6398 = vsub.s32 0, %v6397
  %v6399 = vrot.slane %v6330, %v6398
  %v6400 = vlaneseq
  %v6401 = vshrl.u32 %v6400, 7
  %v6402 = vsub.s32 1, %v6401
  %v6403 = vrot.slane %v6330, %v6402
  %v6406 = vadd.f32 %v6331, %v6399
  %v6407 = vadd.f32 %v6332, %v6403
  %v6408 = vadd.f32 %v6333, %v6399
  %v6409 = vadd.f32 %v6334, %v6403
  %v6410 = vadd.f32 %v6335, %v6399
  %v6411 = vadd.f32 %v6336, %v6403
  %v6412 = vadd.f32 %v6337, %v6399
  %v6413 = vadd.f32 %v6338, %v6403
  %v6414 = vadd.f32 %v6339, %v6399
  %v6415 = vadd.f32 %v6340, %v6403
  %v6416 = vadd.f32 %v6341, %v6399
  %v6417 = vadd.f32 %v6342, %v6403
  %v6418 = vadd.f32 %v6343, %v6399
  %v6419 = vadd.f32 %v6344, %v6403
  %v6420 = vadd.f32 %v6345, %v6399
  %v6421 = vadd.f32 %v6346, %v6403
  %v6422 = vadd.f32 %v6347, %v6399
  %v6423 = vadd.f32 %v6348, %v6403
  %v6424 = vadd.f32 %v6349, %v6399
  %v6425 = vadd.f32 %v6350, %v6403
  %v6426 = vadd.f32 %v6351, %v6399
  %v6427 = vadd.f32 %v6352, %v6403
  %v6428 = vadd.f32 %v6353, %v6399
  %v6429 = vadd.f32 %v6354, %v6403
  %v6430 = vadd.f32 %v6355, %v6399
  %v6431 = vadd.f32 %v6356, %v6403
  %v6432 = vadd.f32 %v6357, %v6399
  %v6433 = vadd.f32 %v6358, %v6403
  %v6434 = vadd.f32 %v6359, %v6399
  %v6435 = vadd.f32 %v6360, %v6403
  %v6436 = vadd.f32 %v6361, %v6399
  %v6437 = vadd.f32 %v6362, %v6403
  %v6438 = vadd.f32 %v6363, %v6399
  %v6439 = vadd.f32 %v6364, %v6403
  %v6440 = vadd.f32 %v6365, %v6399
  %v6441 = vadd.f32 %v6366, %v6403
  %v6442 = vadd.f32 %v6367, %v6399
  %v6443 = vadd.f32 %v6368, %v6403
  %v6444 = vadd.f32 %v6369, %v6399
  %v6445 = vadd.f32 %v6370, %v6403
  %v6446 = vadd.f32 %v6371, %v6399
  %v6447 = vadd.f32 %v6372, %v6403
  %v6448 = vadd.f32 %v6373, %v6399
  %v6449 = vadd.f32 %v6374, %v6403
  %v6450 = vadd.f32 %v6375, %v6399
  %v6451 = vadd.f32 %v6376, %v6403
  %v6452 = vadd.f32 %v6377, %v6399
  %v6453 = vadd.f32 %v6378, %v6403
  %v6454 = vadd.f32 %v6379, %v6399
  %v6455 = vadd.f32 %v6380, %v6403
  %v6456 = vadd.f32 %v6381, %v6399
  %v6457 = vadd.f32 %v6382, %v6403
  %v6458 = vadd.f32 %v6383, %v6399
  %v6459 = vadd.f32 %v6384, %v6403
  %v6460 = vadd.f32 %v6385, %v6399
  %v6461 = vadd.f32 %v6386, %v6403
  %v6462 = vadd.f32 %v6387, %v6399
  %v6463 = vadd.f32 %v6388, %v6403
  %v6464 = vadd.f32 %v6389, %v6399
  %v6465 = vadd.f32 %v6390, %v6403
  %v6466 = vadd.f32 %v6391, %v6399
  %v6467 = vadd.f32 %v6392, %v6403
  %v6468 = vadd.f32 %v6393, %v6399
  %v6469 = vadd.f32 %v6394, %v6403
  %v6470 = vadd.f32 %v6406, %v6408
  %v6471 = vadd.f32 %v6470, %v6410
  %v6472 = vadd.f32 %v6471, %v6412
  %v6473 = vadd.f32 %v6472, %v6414
  %v6474 = vadd.f32 %v6473, %v6416
  %v6475 = vadd.f32 %v6474, %v6418
  %v6476 = vadd.f32 %v6475, %v6420
  %v6477 = vadd.f32 %v6476, %v6422
  %v6478 = vadd.f32 %v6477, %v6424
  %v6479 = vadd.f32 %v6478, %v6426
  %v6480 = vadd.f32 %v6479, %v6428
  %v6481 = vadd.f32 %v6480, %v6430
  %v6482 = vadd.f32 %v6481, %v6432
  %v6483 = vadd.f32 %v6482, %v6434
  %v6484 = vadd.f32 %v6483, %v6436
  %v6485 = vrot.slane %v6484, 4
  %v6486 = vadd.f32 %v6484, %v6485
  %v6487 = vrot.slane %v6486, 2
  %v6488 = vadd.f32 %v6486, %v6487
  %v6489 = vrot.slane %v6488, 1
  %v6490 = vadd.f32 %v6488, %v6489
  %v6491 = vadd.f32 %v6407, %v6409
  %v6492 = vadd.f32 %v6491, %v6411
  %v6493 = vadd.f32 %v6492, %v6413
  %v6494 = vadd.f32 %v6493, %v6415
  %v6495 = vadd.f32 %v6494, %v6417
  %v6496 = vadd.f32 %v6495, %v6419
  %v6497 = vadd.f32 %v6496, %v6421
  %v6498 = vadd.f32 %v6497, %v6423
  %v6499 = vadd.f32 %v6498, %v6425
  %v6500 = vadd.f32 %v6499, %v6427
  %v6501 = vadd.f32 %v6500, %v6429
  %v6502 = vadd.f32 %v6501, %v6431
  %v6503 = vadd.f32 %v6502, %v6433
  %v6504 = vadd.f32 %v6503, %v6435
  %v6505 = vadd.f32 %v6504, %v6437
  %v6506 = vrot.slane %v6505, 4
  %v6507 = vadd.f32 %v6505, %v6506
  %v6508 = vrot.slane %v6507, 2
  %v6509 = vadd.f32 %v6507, %v6508
  %v6510 = vrot.slane %v6509, 1
  %v6511 = vadd.f32 %v6509, %v6510
  %v6512 = vadd.f32 %v6438, %v6440
  %v6513 = vadd.f32 %v6512, %v6442
  %v6514 = vadd.f32 %v6513, %v6444
  %v6515 = vadd.f32 %v6514, %v6446
  %v6516 = vadd.f32 %v6515, %v6448
  %v6517 = vadd.f32 %v6516, %v6450
  %v6518 = vadd.f32 %v6517, %v6452
  %v6519 = vadd.f32 %v6518, %v6454
  %v6520 = vadd.f32 %v6519, %v6456
  %v6521 = vadd.f32 %v6520, %v6458
  %v6522 = vadd.f32 %v6521, %v6460
  %v6523 = vadd.f32 %v6522, %v6462
  %v6524 = vadd.f32 %v6523, %v6464
  %v6525 = vadd.f32 %v6524, %v6466
  %v6526 = vadd.f32 %v6525, %v6468
  %v6527 = vrot.slane %v6526, 4
  %v6528 = vadd.f32 %v6526, %v6527
  %v6529 = vrot.slane %v6528, 2
  %v6530 = vadd.f32 %v6528, %v6529
  %v6531 = vrot.slane %v6530, 1
  %v6532 = vadd.f32 %v6530, %v6531
  %v6533 = vadd.f32 %v6439, %v6441
  %v6534 = vadd.f32 %v6533, %v6443
  %v6535 = vadd.f32 %v6534, %v6445
  %v6536 = vadd.f32 %v6535, %v6447
  %v6537 = vadd.f32 %v6536, %v6449
  %v6538 = vadd.f32 %v6537, %v6451
  %v6539 = vadd.f32 %v6538, %v6453
  %v6540 = vadd.f32 %v6539, %v6455
  %v6541 = vadd.f32 %v6540, %v6457
  %v6542 = vadd.f32 %v6541, %v6459
  %v6543 = vadd.f32 %v6542, %v6461
  %v6544 = vadd.f32 %v6543, %v6463
  %v6545 = vadd.f32 %v6544, %v6465
  %v6546 = vadd.f32 %v6545, %v6467
  %v6547 = vadd.f32 %v6546, %v6469
  %v6548 = vrot.slane %v6547, 4
  %v6549 = vadd.f32 %v6547, %v6548
  %v6550 = vrot.slane %v6549, 2
  %v6551 = vadd.f32 %v6549, %v6550
  %v6552 = vrot.slane %v6551, 1
  %v6553 = vadd.f32 %v6551, %v6552
  %v6554 = vmul.f32 %v6490, %v2261
  %v6555 = vmul.f32 %v6511, %v2261
  %v6556 = vmul.f32 %v6532, %v2261
  %v6557 = vmul.f32 %v6553, %v2261
  %v6558 = vpack.c.bf16 %v6554, %v6554
  %v6559 = vpack.c.bf16 %v6555, %v6555
  %v6560 = vpack.c.bf16 %v6556, %v6556
  %v6561 = vpack.c.bf16 %v6557, %v6557
  %v6562 = vld [vmem:[%s47] sm:$0xff]
  %v6563 = vld [vmem:[%s47 + $0x8] sm:$0xff]
  %v6564 = vld [vmem:[%s47 + $0x10] sm:$0xff]
  %v6565 = vld [vmem:[%s47 + $0x18] sm:$0xff]
  %v6566 = vld [vmem:[%s47 + $0x20] sm:$0xff]
  %v6567 = vld [vmem:[%s47 + $0x28] sm:$0xff]
  %v6568 = vld [vmem:[%s47 + $0x30] sm:$0xff]
  %v6569 = vld [vmem:[%s47 + $0x38] sm:$0xff]
  %v6570 = vld [vmem:[%s47 + $0x40] sm:$0xff]
  %v6571 = vld [vmem:[%s47 + $0x48] sm:$0xff]
  %v6572 = vld [vmem:[%s47 + $0x50] sm:$0xff]
  %v6573 = vld [vmem:[%s47 + $0x58] sm:$0xff]
  %v6574 = vld [vmem:[%s47 + $0x60] sm:$0xff]
  %v6575 = vld [vmem:[%s47 + $0x68] sm:$0xff]
  %v6576 = vld [vmem:[%s47 + $0x70] sm:$0xff]
  %v6577 = vld [vmem:[%s47 + $0x78] sm:$0xff]
  %v6578 = vld [vmem:[%s47 + $0x80] sm:$0xff]
  %v6579 = vld [vmem:[%s47 + $0x88] sm:$0xff]
  %v6580 = vld [vmem:[%s47 + $0x90] sm:$0xff]
  %v6581 = vld [vmem:[%s47 + $0x98] sm:$0xff]
  %v6582 = vld [vmem:[%s47 + $0xa0] sm:$0xff]
  %v6583 = vld [vmem:[%s47 + $0xa8] sm:$0xff]
  %v6584 = vld [vmem:[%s47 + $0xb0] sm:$0xff]
  %v6585 = vld [vmem:[%s47 + $0xb8] sm:$0xff]
  %v6586 = vld [vmem:[%s47 + $0xc0] sm:$0xff]
  %v6587 = vld [vmem:[%s47 + $0xc8] sm:$0xff]
  %v6588 = vld [vmem:[%s47 + $0xd0] sm:$0xff]
  %v6589 = vld [vmem:[%s47 + $0xd8] sm:$0xff]
  %v6590 = vld [vmem:[%s47 + $0xe0] sm:$0xff]
  %v6591 = vld [vmem:[%s47 + $0xe8] sm:$0xff]
  %v6592 = vld [vmem:[%s47 + $0xf0] sm:$0xff]
  %v6593 = vld [vmem:[%s47 + $0xf8] sm:$0xff]
  %v6594 = vld [vmem:[%s47 + $0x100] sm:$0xff]
  %v6595 = vld [vmem:[%s47 + $0x108] sm:$0xff]
  %v6596 = vld [vmem:[%s47 + $0x110] sm:$0xff]
  %v6597 = vld [vmem:[%s47 + $0x118] sm:$0xff]
  %v6598 = vld [vmem:[%s47 + $0x120] sm:$0xff]
  %v6599 = vld [vmem:[%s47 + $0x128] sm:$0xff]
  %v6600 = vld [vmem:[%s47 + $0x130] sm:$0xff]
  %v6601 = vld [vmem:[%s47 + $0x138] sm:$0xff]
  %v6602 = vld [vmem:[%s47 + $0x140] sm:$0xff]
  %v6603 = vld [vmem:[%s47 + $0x148] sm:$0xff]
  %v6604 = vld [vmem:[%s47 + $0x150] sm:$0xff]
  %v6605 = vld [vmem:[%s47 + $0x158] sm:$0xff]
  %v6606 = vld [vmem:[%s47 + $0x160] sm:$0xff]
  %v6607 = vld [vmem:[%s47 + $0x168] sm:$0xff]
  %v6608 = vld [vmem:[%s47 + $0x170] sm:$0xff]
  %v6609 = vld [vmem:[%s47 + $0x178] sm:$0xff]
  %v6610 = vld [vmem:[%s47 + $0x180] sm:$0xff]
  %v6611 = vld [vmem:[%s47 + $0x188] sm:$0xff]
  %v6612 = vld [vmem:[%s47 + $0x190] sm:$0xff]
  %v6613 = vld [vmem:[%s47 + $0x198] sm:$0xff]
  %v6614 = vld [vmem:[%s47 + $0x1a0] sm:$0xff]
  %v6615 = vld [vmem:[%s47 + $0x1a8] sm:$0xff]
  %v6616 = vld [vmem:[%s47 + $0x1b0] sm:$0xff]
  %v6617 = vld [vmem:[%s47 + $0x1b8] sm:$0xff]
  %v6618 = vld [vmem:[%s47 + $0x1c0] sm:$0xff]
  %v6619 = vld [vmem:[%s47 + $0x1c8] sm:$0xff]
  %v6620 = vld [vmem:[%s47 + $0x1d0] sm:$0xff]
  %v6621 = vld [vmem:[%s47 + $0x1d8] sm:$0xff]
  %v6622 = vld [vmem:[%s47 + $0x1e0] sm:$0xff]
  %v6623 = vld [vmem:[%s47 + $0x1e8] sm:$0xff]
  %v6624 = vld [vmem:[%s47 + $0x1f0] sm:$0xff]
  %v6625 = vld [vmem:[%s47 + $0x1f8] sm:$0xff]
  %v6626 = vld [vmem:[%s49] sm:$0xf]
  %v6628 = vlaneseq
  %v6629 = vshrl.u32 %v6628, 7
  %v6630 = vsub.s32 0, %v6629
  %v6631 = vrot.slane %v6626, %v6630
  %v6632 = vlaneseq
  %v6633 = vshrl.u32 %v6632, 7
  %v6634 = vsub.s32 1, %v6633
  %v6635 = vrot.slane %v6626, %v6634
  %v6636 = vlaneseq
  %v6637 = vshrl.u32 %v6636, 7
  %v6638 = vsub.s32 2, %v6637
  %v6639 = vrot.slane %v6626, %v6638
  %v6640 = vlaneseq
  %v6641 = vshrl.u32 %v6640, 7
  %v6642 = vsub.s32 3, %v6641
  %v6643 = vrot.slane %v6626, %v6642
  %v6652 = vunpack.c.l.b16 %v6558
  %v6653 = vunpack.c.l.b16 %v6559
  %v6654 = vunpack.c.l.b16 %v6560
  %v6655 = vunpack.c.l.b16 %v6561
  %v6656 = vsel %vm2343, %v6654, %v6652
  %v6657 = vsel %vm2343, %v6655, %v6653
  %v6658 = vpack.c.b16 %v6656, %v6656
  %v6659 = vpack.c.b16 %v6657, %v6657
  %v6726 = vunpack.c.l.b16 %v6562
  %v6727 = vunpack.c.h.b16 %v6562
  %v6728 = vunpack.c.l.b16 %v6563
  %v6729 = vunpack.c.h.b16 %v6563
  %v6730 = vunpack.c.l.b16 %v6564
  %v6731 = vunpack.c.h.b16 %v6564
  %v6732 = vunpack.c.l.b16 %v6565
  %v6733 = vunpack.c.h.b16 %v6565
  %v6734 = vunpack.c.l.b16 %v6566
  %v6735 = vunpack.c.h.b16 %v6566
  %v6736 = vunpack.c.l.b16 %v6567
  %v6737 = vunpack.c.h.b16 %v6567
  %v6738 = vunpack.c.l.b16 %v6568
  %v6739 = vunpack.c.h.b16 %v6568
  %v6740 = vunpack.c.l.b16 %v6569
  %v6741 = vunpack.c.h.b16 %v6569
  %v6742 = vunpack.c.l.b16 %v6570
  %v6743 = vunpack.c.h.b16 %v6570
  %v6744 = vunpack.c.l.b16 %v6571
  %v6745 = vunpack.c.h.b16 %v6571
  %v6746 = vunpack.c.l.b16 %v6572
  %v6747 = vunpack.c.h.b16 %v6572
  %v6748 = vunpack.c.l.b16 %v6573
  %v6749 = vunpack.c.h.b16 %v6573
  %v6750 = vunpack.c.l.b16 %v6574
  %v6751 = vunpack.c.h.b16 %v6574
  %v6752 = vunpack.c.l.b16 %v6575
  %v6753 = vunpack.c.h.b16 %v6575
  %v6754 = vunpack.c.l.b16 %v6576
  %v6755 = vunpack.c.h.b16 %v6576
  %v6756 = vunpack.c.l.b16 %v6577
  %v6757 = vunpack.c.h.b16 %v6577
  %v6758 = vunpack.c.l.b16 %v6578
  %v6759 = vunpack.c.h.b16 %v6578
  %v6760 = vunpack.c.l.b16 %v6579
  %v6761 = vunpack.c.h.b16 %v6579
  %v6762 = vunpack.c.l.b16 %v6580
  %v6763 = vunpack.c.h.b16 %v6580
  %v6764 = vunpack.c.l.b16 %v6581
  %v6765 = vunpack.c.h.b16 %v6581
  %v6766 = vunpack.c.l.b16 %v6582
  %v6767 = vunpack.c.h.b16 %v6582
  %v6768 = vunpack.c.l.b16 %v6583
  %v6769 = vunpack.c.h.b16 %v6583
  %v6770 = vunpack.c.l.b16 %v6584
  %v6771 = vunpack.c.h.b16 %v6584
  %v6772 = vunpack.c.l.b16 %v6585
  %v6773 = vunpack.c.h.b16 %v6585
  %v6774 = vunpack.c.l.b16 %v6586
  %v6775 = vunpack.c.h.b16 %v6586
  %v6776 = vunpack.c.l.b16 %v6587
  %v6777 = vunpack.c.h.b16 %v6587
  %v6778 = vunpack.c.l.b16 %v6588
  %v6779 = vunpack.c.h.b16 %v6588
  %v6780 = vunpack.c.l.b16 %v6589
  %v6781 = vunpack.c.h.b16 %v6589
  %v6782 = vunpack.c.l.b16 %v6590
  %v6783 = vunpack.c.h.b16 %v6590
  %v6784 = vunpack.c.l.b16 %v6591
  %v6785 = vunpack.c.h.b16 %v6591
  %v6786 = vunpack.c.l.b16 %v6592
  %v6787 = vunpack.c.h.b16 %v6592
  %v6788 = vunpack.c.l.b16 %v6593
  %v6789 = vunpack.c.h.b16 %v6593
  %v6790 = vunpack.c.l.b16 %v6594
  %v6791 = vunpack.c.h.b16 %v6594
  %v6792 = vunpack.c.l.b16 %v6595
  %v6793 = vunpack.c.h.b16 %v6595
  %v6794 = vunpack.c.l.b16 %v6596
  %v6795 = vunpack.c.h.b16 %v6596
  %v6796 = vunpack.c.l.b16 %v6597
  %v6797 = vunpack.c.h.b16 %v6597
  %v6798 = vunpack.c.l.b16 %v6598
  %v6799 = vunpack.c.h.b16 %v6598
  %v6800 = vunpack.c.l.b16 %v6599
  %v6801 = vunpack.c.h.b16 %v6599
  %v6802 = vunpack.c.l.b16 %v6600
  %v6803 = vunpack.c.h.b16 %v6600
  %v6804 = vunpack.c.l.b16 %v6601
  %v6805 = vunpack.c.h.b16 %v6601
  %v6806 = vunpack.c.l.b16 %v6602
  %v6807 = vunpack.c.h.b16 %v6602
  %v6808 = vunpack.c.l.b16 %v6603
  %v6809 = vunpack.c.h.b16 %v6603
  %v6810 = vunpack.c.l.b16 %v6604
  %v6811 = vunpack.c.h.b16 %v6604
  %v6812 = vunpack.c.l.b16 %v6605
  %v6813 = vunpack.c.h.b16 %v6605
  %v6814 = vunpack.c.l.b16 %v6606
  %v6815 = vunpack.c.h.b16 %v6606
  %v6816 = vunpack.c.l.b16 %v6607
  %v6817 = vunpack.c.h.b16 %v6607
  %v6818 = vunpack.c.l.b16 %v6608
  %v6819 = vunpack.c.h.b16 %v6608
  %v6820 = vunpack.c.l.b16 %v6609
  %v6821 = vunpack.c.h.b16 %v6609
  %v6822 = vunpack.c.l.b16 %v6610
  %v6823 = vunpack.c.h.b16 %v6610
  %v6824 = vunpack.c.l.b16 %v6611
  %v6825 = vunpack.c.h.b16 %v6611
  %v6826 = vunpack.c.l.b16 %v6612
  %v6827 = vunpack.c.h.b16 %v6612
  %v6828 = vunpack.c.l.b16 %v6613
  %v6829 = vunpack.c.h.b16 %v6613
  %v6830 = vunpack.c.l.b16 %v6614
  %v6831 = vunpack.c.h.b16 %v6614
  %v6832 = vunpack.c.l.b16 %v6615
  %v6833 = vunpack.c.h.b16 %v6615
  %v6834 = vunpack.c.l.b16 %v6616
  %v6835 = vunpack.c.h.b16 %v6616
  %v6836 = vunpack.c.l.b16 %v6617
  %v6837 = vunpack.c.h.b16 %v6617
  %v6838 = vunpack.c.l.b16 %v6618
  %v6839 = vunpack.c.h.b16 %v6618
  %v6840 = vunpack.c.l.b16 %v6619
  %v6841 = vunpack.c.h.b16 %v6619
  %v6842 = vunpack.c.l.b16 %v6620
  %v6843 = vunpack.c.h.b16 %v6620
  %v6844 = vunpack.c.l.b16 %v6621
  %v6845 = vunpack.c.h.b16 %v6621
  %v6846 = vunpack.c.l.b16 %v6622
  %v6847 = vunpack.c.h.b16 %v6622
  %v6848 = vunpack.c.l.b16 %v6623
  %v6849 = vunpack.c.h.b16 %v6623
  %v6850 = vunpack.c.l.b16 %v6624
  %v6851 = vunpack.c.h.b16 %v6624
  %v6852 = vunpack.c.l.b16 %v6625
  %v6853 = vunpack.c.h.b16 %v6625
  %v6854 = vpack.c.b16 %v6730, %v6726
  %v6855 = vpack.c.b16 %v6731, %v6727
  %v6856 = vpack.c.b16 %v6732, %v6728
  %v6857 = vpack.c.b16 %v6733, %v6729
  %v6858 = vpack.c.b16 %v6738, %v6734
  %v6859 = vpack.c.b16 %v6739, %v6735
  %v6860 = vpack.c.b16 %v6740, %v6736
  %v6861 = vpack.c.b16 %v6741, %v6737
  %v6862 = vpack.c.b16 %v6746, %v6742
  %v6863 = vpack.c.b16 %v6747, %v6743
  %v6864 = vpack.c.b16 %v6748, %v6744
  %v6865 = vpack.c.b16 %v6749, %v6745
  %v6866 = vpack.c.b16 %v6754, %v6750
  %v6867 = vpack.c.b16 %v6755, %v6751
  %v6868 = vpack.c.b16 %v6756, %v6752
  %v6869 = vpack.c.b16 %v6757, %v6753
  %v6870 = vpack.c.b16 %v6762, %v6758
  %v6871 = vpack.c.b16 %v6763, %v6759
  %v6872 = vpack.c.b16 %v6764, %v6760
  %v6873 = vpack.c.b16 %v6765, %v6761
  %v6874 = vpack.c.b16 %v6770, %v6766
  %v6875 = vpack.c.b16 %v6771, %v6767
  %v6876 = vpack.c.b16 %v6772, %v6768
  %v6877 = vpack.c.b16 %v6773, %v6769
  %v6878 = vpack.c.b16 %v6778, %v6774
  %v6879 = vpack.c.b16 %v6779, %v6775
  %v6880 = vpack.c.b16 %v6780, %v6776
  %v6881 = vpack.c.b16 %v6781, %v6777
  %v6882 = vpack.c.b16 %v6786, %v6782
  %v6883 = vpack.c.b16 %v6787, %v6783
  %v6884 = vpack.c.b16 %v6788, %v6784
  %v6885 = vpack.c.b16 %v6789, %v6785
  %v6886 = vpack.c.b16 %v6794, %v6790
  %v6887 = vpack.c.b16 %v6795, %v6791
  %v6888 = vpack.c.b16 %v6796, %v6792
  %v6889 = vpack.c.b16 %v6797, %v6793
  %v6890 = vpack.c.b16 %v6802, %v6798
  %v6891 = vpack.c.b16 %v6803, %v6799
  %v6892 = vpack.c.b16 %v6804, %v6800
  %v6893 = vpack.c.b16 %v6805, %v6801
  %v6894 = vpack.c.b16 %v6810, %v6806
  %v6895 = vpack.c.b16 %v6811, %v6807
  %v6896 = vpack.c.b16 %v6812, %v6808
  %v6897 = vpack.c.b16 %v6813, %v6809
  %v6898 = vpack.c.b16 %v6818, %v6814
  %v6899 = vpack.c.b16 %v6819, %v6815
  %v6900 = vpack.c.b16 %v6820, %v6816
  %v6901 = vpack.c.b16 %v6821, %v6817
  %v6902 = vpack.c.b16 %v6826, %v6822
  %v6903 = vpack.c.b16 %v6827, %v6823
  %v6904 = vpack.c.b16 %v6828, %v6824
  %v6905 = vpack.c.b16 %v6829, %v6825
  %v6906 = vpack.c.b16 %v6834, %v6830
  %v6907 = vpack.c.b16 %v6835, %v6831
  %v6908 = vpack.c.b16 %v6836, %v6832
  %v6909 = vpack.c.b16 %v6837, %v6833
  %v6910 = vpack.c.b16 %v6842, %v6838
  %v6911 = vpack.c.b16 %v6843, %v6839
  %v6912 = vpack.c.b16 %v6844, %v6840
  %v6913 = vpack.c.b16 %v6845, %v6841
  %v6914 = vpack.c.b16 %v6850, %v6846
  %v6915 = vpack.c.b16 %v6851, %v6847
  %v6916 = vpack.c.b16 %v6852, %v6848
  %v6917 = vpack.c.b16 %v6853, %v6849
  %6982 = vmatprep.subr.bf16.mxu0 %v6855
  %6983 = vmatpush1.bf16.msra.mxu0 %v6854
  %6984 = vmatprep.subr.bf16.mxu0 %v6859
  %6985 = vmatpush1.bf16.msra.mxu0 %v6858
  %6986 = vmatprep.subr.bf16.mxu0 %v6863
  %6987 = vmatpush1.bf16.msra.mxu0 %v6862
  %6988 = vmatprep.subr.bf16.mxu0 %v6867
  %6989 = vmatpush1.bf16.msra.mxu0 %v6866
  %6990 = vmatprep.subr.bf16.mxu0 %v6871
  %6991 = vmatpush1.bf16.msra.mxu0 %v6870
  %6992 = vmatprep.subr.bf16.mxu0 %v6875
  %6993 = vmatpush1.bf16.msra.mxu0 %v6874
  %6994 = vmatprep.subr.bf16.mxu0 %v6879
  %6995 = vmatpush1.bf16.msra.mxu0 %v6878
  %6996 = vmatprep.subr.bf16.mxu0 %v6883
  %6997 = vmatpush1.bf16.msra.mxu0 %v6882
  %6998 = vmatprep.subr.bf16.mxu0 %v6887
  %6999 = vmatpush1.bf16.msra.mxu0 %v6886
  %7000 = vmatprep.subr.bf16.mxu0 %v6891
  %7001 = vmatpush1.bf16.msra.mxu0 %v6890
  %7002 = vmatprep.subr.bf16.mxu0 %v6895
  %7003 = vmatpush1.bf16.msra.mxu0 %v6894
  %7004 = vmatprep.subr.bf16.mxu0 %v6899
  %7005 = vmatpush1.bf16.msra.mxu0 %v6898
  %7006 = vmatprep.subr.bf16.mxu0 %v6903
  %7007 = vmatpush1.bf16.msra.mxu0 %v6902
  %7008 = vmatprep.subr.bf16.mxu0 %v6907
  %7009 = vmatpush1.bf16.msra.mxu0 %v6906
  %7010 = vmatprep.subr.bf16.mxu0 %v6911
  %7011 = vmatpush1.bf16.msra.mxu0 %v6910
  %7012 = vmatprep.subr.bf16.mxu0 %v6915
  %7013 = vmatpush1.bf16.msra.mxu0 %v6914
  %7014 = vmatprep.mubr.bf16.mxu0 %v6659
  %7015 = vmatmul.mubr.bf16.gmra.mrb[0].mxu0 %v6658
  %v7016 = vpop.f32.mrb[0].mxu0
  %v7017 = vadd.f32 %v6631, %v7016
  %v7018 = vpop.f32.mrb[0].mxu0
  %v7019 = vadd.f32 %v6635, %v7018
  %v7020 = vpop.f32.mrb[0].mxu0
  %v7021 = vpop.f32.mrb[0].mxu0
  %7022 = vdwg.mxu0
  %7023 = vmatprep.subr.bf16.mxu0 %v6857
  %7024 = vmatpush1.bf16.msra.mxu0 %v6856
  %7025 = vmatprep.subr.bf16.mxu0 %v6861
  %7026 = vmatpush1.bf16.msra.mxu0 %v6860
  %7027 = vmatprep.subr.bf16.mxu0 %v6865
  %7028 = vmatpush1.bf16.msra.mxu0 %v6864
  %7029 = vmatprep.subr.bf16.mxu0 %v6869
  %7030 = vmatpush1.bf16.msra.mxu0 %v6868
  %7031 = vmatprep.subr.bf16.mxu0 %v6873
  %7032 = vmatpush1.bf16.msra.mxu0 %v6872
  %7033 = vmatprep.subr.bf16.mxu0 %v6877
  %7034 = vmatpush1.bf16.msra.mxu0 %v6876
  %7035 = vmatprep.subr.bf16.mxu0 %v6881
  %7036 = vmatpush1.bf16.msra.mxu0 %v6880
  %7037 = vmatprep.subr.bf16.mxu0 %v6885
  %7038 = vmatpush1.bf16.msra.mxu0 %v6884
  %7039 = vmatprep.subr.bf16.mxu0 %v6889
  %7040 = vmatpush1.bf16.msra.mxu0 %v6888
  %7041 = vmatprep.subr.bf16.mxu0 %v6893
  %7042 = vmatpush1.bf16.msra.mxu0 %v6892
  %7043 = vmatprep.subr.bf16.mxu0 %v6897
  %7044 = vmatpush1.bf16.msra.mxu0 %v6896
  %7045 = vmatprep.subr.bf16.mxu0 %v6901
  %7046 = vmatpush1.bf16.msra.mxu0 %v6900
  %7047 = vmatprep.subr.bf16.mxu0 %v6905
  %7048 = vmatpush1.bf16.msra.mxu0 %v6904
  %7049 = vmatprep.subr.bf16.mxu0 %v6909
  %7050 = vmatpush1.bf16.msra.mxu0 %v6908
  %7051 = vmatprep.subr.bf16.mxu0 %v6913
  %7052 = vmatpush1.bf16.msra.mxu0 %v6912
  %7053 = vmatprep.subr.bf16.mxu0 %v6917
  %7054 = vmatpush1.bf16.msra.mxu0 %v6916
  %7055 = vmatprep.mubr.bf16.mxu0 %v6659
  %7056 = vmatmul.mubr.bf16.gmra.mrb[0].mxu0 %v6658
  %v7057 = vpop.f32.mrb[0].mxu0
  %v7058 = vadd.f32 %v6639, %v7057
  %v7059 = vpop.f32.mrb[0].mxu0
  %v7060 = vadd.f32 %v6643, %v7059
  %v7061 = vpop.f32.mrb[0].mxu0
  %v7062 = vpop.f32.mrb[0].mxu0
  %7063 = vdwg.mxu0
  %v7064 = vmax.f32 %v7017, 0.0
  %v7065 = vmax.f32 %v7019, 0.0
  %v7066 = vmax.f32 %v7058, 0.0
  %v7067 = vmax.f32 %v7060, 0.0
  %v7068 = vpack.c.bf16 %v7064, %v7064
  %v7069 = vpack.c.bf16 %v7065, %v7065
  %v7070 = vpack.c.bf16 %v7066, %v7066
  %v7071 = vpack.c.bf16 %v7067, %v7067
  %v7072 = vld [vmem:[%s51] sm:$0xff]
  %v7073 = vld [vmem:[%s51 + $0x8] sm:$0xff]
  %v7074 = vld [vmem:[%s51 + $0x10] sm:$0xff]
  %v7075 = vld [vmem:[%s51 + $0x18] sm:$0xff]
  %v7076 = vld [vmem:[%s51 + $0x20] sm:$0xff]
  %v7077 = vld [vmem:[%s51 + $0x28] sm:$0xff]
  %v7078 = vld [vmem:[%s51 + $0x30] sm:$0xff]
  %v7079 = vld [vmem:[%s51 + $0x38] sm:$0xff]
  %v7080 = vld [vmem:[%s51 + $0x40] sm:$0xff]
  %v7081 = vld [vmem:[%s51 + $0x48] sm:$0xff]
  %v7082 = vld [vmem:[%s51 + $0x50] sm:$0xff]
  %v7083 = vld [vmem:[%s51 + $0x58] sm:$0xff]
  %v7084 = vld [vmem:[%s51 + $0x60] sm:$0xff]
  %v7085 = vld [vmem:[%s51 + $0x68] sm:$0xff]
  %v7086 = vld [vmem:[%s51 + $0x70] sm:$0xff]
  %v7087 = vld [vmem:[%s51 + $0x78] sm:$0xff]
  %v7088 = vld [vmem:[%s51 + $0x80] sm:$0xff]
  %v7089 = vld [vmem:[%s51 + $0x88] sm:$0xff]
  %v7090 = vld [vmem:[%s51 + $0x90] sm:$0xff]
  %v7091 = vld [vmem:[%s51 + $0x98] sm:$0xff]
  %v7092 = vld [vmem:[%s51 + $0xa0] sm:$0xff]
  %v7093 = vld [vmem:[%s51 + $0xa8] sm:$0xff]
  %v7094 = vld [vmem:[%s51 + $0xb0] sm:$0xff]
  %v7095 = vld [vmem:[%s51 + $0xb8] sm:$0xff]
  %v7096 = vld [vmem:[%s51 + $0xc0] sm:$0xff]
  %v7097 = vld [vmem:[%s51 + $0xc8] sm:$0xff]
  %v7098 = vld [vmem:[%s51 + $0xd0] sm:$0xff]
  %v7099 = vld [vmem:[%s51 + $0xd8] sm:$0xff]
  %v7100 = vld [vmem:[%s51 + $0xe0] sm:$0xff]
  %v7101 = vld [vmem:[%s51 + $0xe8] sm:$0xff]
  %v7102 = vld [vmem:[%s51 + $0xf0] sm:$0xff]
  %v7103 = vld [vmem:[%s51 + $0xf8] sm:$0xff]
  %v7104 = vld [vmem:[%s51 + $0x100] sm:$0xff]
  %v7105 = vld [vmem:[%s51 + $0x108] sm:$0xff]
  %v7106 = vld [vmem:[%s51 + $0x110] sm:$0xff]
  %v7107 = vld [vmem:[%s51 + $0x118] sm:$0xff]
  %v7108 = vld [vmem:[%s51 + $0x120] sm:$0xff]
  %v7109 = vld [vmem:[%s51 + $0x128] sm:$0xff]
  %v7110 = vld [vmem:[%s51 + $0x130] sm:$0xff]
  %v7111 = vld [vmem:[%s51 + $0x138] sm:$0xff]
  %v7112 = vld [vmem:[%s51 + $0x140] sm:$0xff]
  %v7113 = vld [vmem:[%s51 + $0x148] sm:$0xff]
  %v7114 = vld [vmem:[%s51 + $0x150] sm:$0xff]
  %v7115 = vld [vmem:[%s51 + $0x158] sm:$0xff]
  %v7116 = vld [vmem:[%s51 + $0x160] sm:$0xff]
  %v7117 = vld [vmem:[%s51 + $0x168] sm:$0xff]
  %v7118 = vld [vmem:[%s51 + $0x170] sm:$0xff]
  %v7119 = vld [vmem:[%s51 + $0x178] sm:$0xff]
  %v7120 = vld [vmem:[%s51 + $0x180] sm:$0xff]
  %v7121 = vld [vmem:[%s51 + $0x188] sm:$0xff]
  %v7122 = vld [vmem:[%s51 + $0x190] sm:$0xff]
  %v7123 = vld [vmem:[%s51 + $0x198] sm:$0xff]
  %v7124 = vld [vmem:[%s51 + $0x1a0] sm:$0xff]
  %v7125 = vld [vmem:[%s51 + $0x1a8] sm:$0xff]
  %v7126 = vld [vmem:[%s51 + $0x1b0] sm:$0xff]
  %v7127 = vld [vmem:[%s51 + $0x1b8] sm:$0xff]
  %v7128 = vld [vmem:[%s51 + $0x1c0] sm:$0xff]
  %v7129 = vld [vmem:[%s51 + $0x1c8] sm:$0xff]
  %v7130 = vld [vmem:[%s51 + $0x1d0] sm:$0xff]
  %v7131 = vld [vmem:[%s51 + $0x1d8] sm:$0xff]
  %v7132 = vld [vmem:[%s51 + $0x1e0] sm:$0xff]
  %v7133 = vld [vmem:[%s51 + $0x1e8] sm:$0xff]
  %v7134 = vld [vmem:[%s51 + $0x1f0] sm:$0xff]
  %v7135 = vld [vmem:[%s51 + $0x1f8] sm:$0xff]
  %v7136 = vld [vmem:[%s51 + $0x200] sm:$0xff]
  %v7137 = vld [vmem:[%s51 + $0x208] sm:$0xff]
  %v7138 = vld [vmem:[%s51 + $0x210] sm:$0xff]
  %v7139 = vld [vmem:[%s51 + $0x218] sm:$0xff]
  %v7140 = vld [vmem:[%s51 + $0x220] sm:$0xff]
  %v7141 = vld [vmem:[%s51 + $0x228] sm:$0xff]
  %v7142 = vld [vmem:[%s51 + $0x230] sm:$0xff]
  %v7143 = vld [vmem:[%s51 + $0x238] sm:$0xff]
  %v7144 = vld [vmem:[%s51 + $0x240] sm:$0xff]
  %v7145 = vld [vmem:[%s51 + $0x248] sm:$0xff]
  %v7146 = vld [vmem:[%s51 + $0x250] sm:$0xff]
  %v7147 = vld [vmem:[%s51 + $0x258] sm:$0xff]
  %v7148 = vld [vmem:[%s51 + $0x260] sm:$0xff]
  %v7149 = vld [vmem:[%s51 + $0x268] sm:$0xff]
  %v7150 = vld [vmem:[%s51 + $0x270] sm:$0xff]
  %v7151 = vld [vmem:[%s51 + $0x278] sm:$0xff]
  %v7152 = vld [vmem:[%s51 + $0x280] sm:$0xff]
  %v7153 = vld [vmem:[%s51 + $0x288] sm:$0xff]
  %v7154 = vld [vmem:[%s51 + $0x290] sm:$0xff]
  %v7155 = vld [vmem:[%s51 + $0x298] sm:$0xff]
  %v7156 = vld [vmem:[%s51 + $0x2a0] sm:$0xff]
  %v7157 = vld [vmem:[%s51 + $0x2a8] sm:$0xff]
  %v7158 = vld [vmem:[%s51 + $0x2b0] sm:$0xff]
  %v7159 = vld [vmem:[%s51 + $0x2b8] sm:$0xff]
  %v7160 = vld [vmem:[%s51 + $0x2c0] sm:$0xff]
  %v7161 = vld [vmem:[%s51 + $0x2c8] sm:$0xff]
  %v7162 = vld [vmem:[%s51 + $0x2d0] sm:$0xff]
  %v7163 = vld [vmem:[%s51 + $0x2d8] sm:$0xff]
  %v7164 = vld [vmem:[%s51 + $0x2e0] sm:$0xff]
  %v7165 = vld [vmem:[%s51 + $0x2e8] sm:$0xff]
  %v7166 = vld [vmem:[%s51 + $0x2f0] sm:$0xff]
  %v7167 = vld [vmem:[%s51 + $0x2f8] sm:$0xff]
  %v7168 = vld [vmem:[%s51 + $0x300] sm:$0xff]
  %v7169 = vld [vmem:[%s51 + $0x308] sm:$0xff]
  %v7170 = vld [vmem:[%s51 + $0x310] sm:$0xff]
  %v7171 = vld [vmem:[%s51 + $0x318] sm:$0xff]
  %v7172 = vld [vmem:[%s51 + $0x320] sm:$0xff]
  %v7173 = vld [vmem:[%s51 + $0x328] sm:$0xff]
  %v7174 = vld [vmem:[%s51 + $0x330] sm:$0xff]
  %v7175 = vld [vmem:[%s51 + $0x338] sm:$0xff]
  %v7176 = vld [vmem:[%s51 + $0x340] sm:$0xff]
  %v7177 = vld [vmem:[%s51 + $0x348] sm:$0xff]
  %v7178 = vld [vmem:[%s51 + $0x350] sm:$0xff]
  %v7179 = vld [vmem:[%s51 + $0x358] sm:$0xff]
  %v7180 = vld [vmem:[%s51 + $0x360] sm:$0xff]
  %v7181 = vld [vmem:[%s51 + $0x368] sm:$0xff]
  %v7182 = vld [vmem:[%s51 + $0x370] sm:$0xff]
  %v7183 = vld [vmem:[%s51 + $0x378] sm:$0xff]
  %v7184 = vld [vmem:[%s51 + $0x380] sm:$0xff]
  %v7185 = vld [vmem:[%s51 + $0x388] sm:$0xff]
  %v7186 = vld [vmem:[%s51 + $0x390] sm:$0xff]
  %v7187 = vld [vmem:[%s51 + $0x398] sm:$0xff]
  %v7188 = vld [vmem:[%s51 + $0x3a0] sm:$0xff]
  %v7189 = vld [vmem:[%s51 + $0x3a8] sm:$0xff]
  %v7190 = vld [vmem:[%s51 + $0x3b0] sm:$0xff]
  %v7191 = vld [vmem:[%s51 + $0x3b8] sm:$0xff]
  %v7192 = vld [vmem:[%s51 + $0x3c0] sm:$0xff]
  %v7193 = vld [vmem:[%s51 + $0x3c8] sm:$0xff]
  %v7194 = vld [vmem:[%s51 + $0x3d0] sm:$0xff]
  %v7195 = vld [vmem:[%s51 + $0x3d8] sm:$0xff]
  %v7196 = vld [vmem:[%s51 + $0x3e0] sm:$0xff]
  %v7197 = vld [vmem:[%s51 + $0x3e8] sm:$0xff]
  %v7198 = vld [vmem:[%s51 + $0x3f0] sm:$0xff]
  %v7199 = vld [vmem:[%s51 + $0x3f8] sm:$0xff]
  %v7200 = vld [vmem:[%s53] sm:$0xf]
  %v7202 = vlaneseq
  %v7203 = vshrl.u32 %v7202, 7
  %v7204 = vsub.s32 0, %v7203
  %v7205 = vrot.slane %v7200, %v7204
  %v7206 = vlaneseq
  %v7207 = vshrl.u32 %v7206, 7
  %v7208 = vsub.s32 1, %v7207
  %v7209 = vrot.slane %v7200, %v7208
  %v7210 = vlaneseq
  %v7211 = vshrl.u32 %v7210, 7
  %v7212 = vsub.s32 2, %v7211
  %v7213 = vrot.slane %v7200, %v7212
  %v7214 = vlaneseq
  %v7215 = vshrl.u32 %v7214, 7
  %v7216 = vsub.s32 3, %v7215
  %v7217 = vrot.slane %v7200, %v7216
  %v7350 = vunpack.c.l.b16 %v7072
  %v7351 = vunpack.c.h.b16 %v7072
  %v7352 = vunpack.c.l.b16 %v7073
  %v7353 = vunpack.c.h.b16 %v7073
  %v7354 = vunpack.c.l.b16 %v7074
  %v7355 = vunpack.c.h.b16 %v7074
  %v7356 = vunpack.c.l.b16 %v7075
  %v7357 = vunpack.c.h.b16 %v7075
  %v7358 = vunpack.c.l.b16 %v7076
  %v7359 = vunpack.c.h.b16 %v7076
  %v7360 = vunpack.c.l.b16 %v7077
  %v7361 = vunpack.c.h.b16 %v7077
  %v7362 = vunpack.c.l.b16 %v7078
  %v7363 = vunpack.c.h.b16 %v7078
  %v7364 = vunpack.c.l.b16 %v7079
  %v7365 = vunpack.c.h.b16 %v7079
  %v7366 = vunpack.c.l.b16 %v7080
  %v7367 = vunpack.c.h.b16 %v7080
  %v7368 = vunpack.c.l.b16 %v7081
  %v7369 = vunpack.c.h.b16 %v7081
  %v7370 = vunpack.c.l.b16 %v7082
  %v7371 = vunpack.c.h.b16 %v7082
  %v7372 = vunpack.c.l.b16 %v7083
  %v7373 = vunpack.c.h.b16 %v7083
  %v7374 = vunpack.c.l.b16 %v7084
  %v7375 = vunpack.c.h.b16 %v7084
  %v7376 = vunpack.c.l.b16 %v7085
  %v7377 = vunpack.c.h.b16 %v7085
  %v7378 = vunpack.c.l.b16 %v7086
  %v7379 = vunpack.c.h.b16 %v7086
  %v7380 = vunpack.c.l.b16 %v7087
  %v7381 = vunpack.c.h.b16 %v7087
  %v7382 = vunpack.c.l.b16 %v7088
  %v7383 = vunpack.c.h.b16 %v7088
  %v7384 = vunpack.c.l.b16 %v7089
  %v7385 = vunpack.c.h.b16 %v7089
  %v7386 = vunpack.c.l.b16 %v7090
  %v7387 = vunpack.c.h.b16 %v7090
  %v7388 = vunpack.c.l.b16 %v7091
  %v7389 = vunpack.c.h.b16 %v7091
  %v7390 = vunpack.c.l.b16 %v7092
  %v7391 = vunpack.c.h.b16 %v7092
  %v7392 = vunpack.c.l.b16 %v7093
  %v7393 = vunpack.c.h.b16 %v7093
  %v7394 = vunpack.c.l.b16 %v7094
  %v7395 = vunpack.c.h.b16 %v7094
  %v7396 = vunpack.c.l.b16 %v7095
  %v7397 = vunpack.c.h.b16 %v7095
  %v7398 = vunpack.c.l.b16 %v7096
  %v7399 = vunpack.c.h.b16 %v7096
  %v7400 = vunpack.c.l.b16 %v7097
  %v7401 = vunpack.c.h.b16 %v7097
  %v7402 = vunpack.c.l.b16 %v7098
  %v7403 = vunpack.c.h.b16 %v7098
  %v7404 = vunpack.c.l.b16 %v7099
  %v7405 = vunpack.c.h.b16 %v7099
  %v7406 = vunpack.c.l.b16 %v7100
  %v7407 = vunpack.c.h.b16 %v7100
  %v7408 = vunpack.c.l.b16 %v7101
  %v7409 = vunpack.c.h.b16 %v7101
  %v7410 = vunpack.c.l.b16 %v7102
  %v7411 = vunpack.c.h.b16 %v7102
  %v7412 = vunpack.c.l.b16 %v7103
  %v7413 = vunpack.c.h.b16 %v7103
  %v7414 = vunpack.c.l.b16 %v7104
  %v7415 = vunpack.c.h.b16 %v7104
  %v7416 = vunpack.c.l.b16 %v7105
  %v7417 = vunpack.c.h.b16 %v7105
  %v7418 = vunpack.c.l.b16 %v7106
  %v7419 = vunpack.c.h.b16 %v7106
  %v7420 = vunpack.c.l.b16 %v7107
  %v7421 = vunpack.c.h.b16 %v7107
  %v7422 = vunpack.c.l.b16 %v7108
  %v7423 = vunpack.c.h.b16 %v7108
  %v7424 = vunpack.c.l.b16 %v7109
  %v7425 = vunpack.c.h.b16 %v7109
  %v7426 = vunpack.c.l.b16 %v7110
  %v7427 = vunpack.c.h.b16 %v7110
  %v7428 = vunpack.c.l.b16 %v7111
  %v7429 = vunpack.c.h.b16 %v7111
  %v7430 = vunpack.c.l.b16 %v7112
  %v7431 = vunpack.c.h.b16 %v7112
  %v7432 = vunpack.c.l.b16 %v7113
  %v7433 = vunpack.c.h.b16 %v7113
  %v7434 = vunpack.c.l.b16 %v7114
  %v7435 = vunpack.c.h.b16 %v7114
  %v7436 = vunpack.c.l.b16 %v7115
  %v7437 = vunpack.c.h.b16 %v7115
  %v7438 = vunpack.c.l.b16 %v7116
  %v7439 = vunpack.c.h.b16 %v7116
  %v7440 = vunpack.c.l.b16 %v7117
  %v7441 = vunpack.c.h.b16 %v7117
  %v7442 = vunpack.c.l.b16 %v7118
  %v7443 = vunpack.c.h.b16 %v7118
  %v7444 = vunpack.c.l.b16 %v7119
  %v7445 = vunpack.c.h.b16 %v7119
  %v7446 = vunpack.c.l.b16 %v7120
  %v7447 = vunpack.c.h.b16 %v7120
  %v7448 = vunpack.c.l.b16 %v7121
  %v7449 = vunpack.c.h.b16 %v7121
  %v7450 = vunpack.c.l.b16 %v7122
  %v7451 = vunpack.c.h.b16 %v7122
  %v7452 = vunpack.c.l.b16 %v7123
  %v7453 = vunpack.c.h.b16 %v7123
  %v7454 = vunpack.c.l.b16 %v7124
  %v7455 = vunpack.c.h.b16 %v7124
  %v7456 = vunpack.c.l.b16 %v7125
  %v7457 = vunpack.c.h.b16 %v7125
  %v7458 = vunpack.c.l.b16 %v7126
  %v7459 = vunpack.c.h.b16 %v7126
  %v7460 = vunpack.c.l.b16 %v7127
  %v7461 = vunpack.c.h.b16 %v7127
  %v7462 = vunpack.c.l.b16 %v7128
  %v7463 = vunpack.c.h.b16 %v7128
  %v7464 = vunpack.c.l.b16 %v7129
  %v7465 = vunpack.c.h.b16 %v7129
  %v7466 = vunpack.c.l.b16 %v7130
  %v7467 = vunpack.c.h.b16 %v7130
  %v7468 = vunpack.c.l.b16 %v7131
  %v7469 = vunpack.c.h.b16 %v7131
  %v7470 = vunpack.c.l.b16 %v7132
  %v7471 = vunpack.c.h.b16 %v7132
  %v7472 = vunpack.c.l.b16 %v7133
  %v7473 = vunpack.c.h.b16 %v7133
  %v7474 = vunpack.c.l.b16 %v7134
  %v7475 = vunpack.c.h.b16 %v7134
  %v7476 = vunpack.c.l.b16 %v7135
  %v7477 = vunpack.c.h.b16 %v7135
  %v7478 = vunpack.c.l.b16 %v7136
  %v7479 = vunpack.c.h.b16 %v7136
  %v7480 = vunpack.c.l.b16 %v7137
  %v7481 = vunpack.c.h.b16 %v7137
  %v7482 = vunpack.c.l.b16 %v7138
  %v7483 = vunpack.c.h.b16 %v7138
  %v7484 = vunpack.c.l.b16 %v7139
  %v7485 = vunpack.c.h.b16 %v7139
  %v7486 = vunpack.c.l.b16 %v7140
  %v7487 = vunpack.c.h.b16 %v7140
  %v7488 = vunpack.c.l.b16 %v7141
  %v7489 = vunpack.c.h.b16 %v7141
  %v7490 = vunpack.c.l.b16 %v7142
  %v7491 = vunpack.c.h.b16 %v7142
  %v7492 = vunpack.c.l.b16 %v7143
  %v7493 = vunpack.c.h.b16 %v7143
  %v7494 = vunpack.c.l.b16 %v7144
  %v7495 = vunpack.c.h.b16 %v7144
  %v7496 = vunpack.c.l.b16 %v7145
  %v7497 = vunpack.c.h.b16 %v7145
  %v7498 = vunpack.c.l.b16 %v7146
  %v7499 = vunpack.c.h.b16 %v7146
  %v7500 = vunpack.c.l.b16 %v7147
  %v7501 = vunpack.c.h.b16 %v7147
  %v7502 = vunpack.c.l.b16 %v7148
  %v7503 = vunpack.c.h.b16 %v7148
  %v7504 = vunpack.c.l.b16 %v7149
  %v7505 = vunpack.c.h.b16 %v7149
  %v7506 = vunpack.c.l.b16 %v7150
  %v7507 = vunpack.c.h.b16 %v7150
  %v7508 = vunpack.c.l.b16 %v7151
  %v7509 = vunpack.c.h.b16 %v7151
  %v7510 = vunpack.c.l.b16 %v7152
  %v7511 = vunpack.c.h.b16 %v7152
  %v7512 = vunpack.c.l.b16 %v7153
  %v7513 = vunpack.c.h.b16 %v7153
  %v7514 = vunpack.c.l.b16 %v7154
  %v7515 = vunpack.c.h.b16 %v7154
  %v7516 = vunpack.c.l.b16 %v7155
  %v7517 = vunpack.c.h.b16 %v7155
  %v7518 = vunpack.c.l.b16 %v7156
  %v7519 = vunpack.c.h.b16 %v7156
  %v7520 = vunpack.c.l.b16 %v7157
  %v7521 = vunpack.c.h.b16 %v7157
  %v7522 = vunpack.c.l.b16 %v7158
  %v7523 = vunpack.c.h.b16 %v7158
  %v7524 = vunpack.c.l.b16 %v7159
  %v7525 = vunpack.c.h.b16 %v7159
  %v7526 = vunpack.c.l.b16 %v7160
  %v7527 = vunpack.c.h.b16 %v7160
  %v7528 = vunpack.c.l.b16 %v7161
  %v7529 = vunpack.c.h.b16 %v7161
  %v7530 = vunpack.c.l.b16 %v7162
  %v7531 = vunpack.c.h.b16 %v7162
  %v7532 = vunpack.c.l.b16 %v7163
  %v7533 = vunpack.c.h.b16 %v7163
  %v7534 = vunpack.c.l.b16 %v7164
  %v7535 = vunpack.c.h.b16 %v7164
  %v7536 = vunpack.c.l.b16 %v7165
  %v7537 = vunpack.c.h.b16 %v7165
  %v7538 = vunpack.c.l.b16 %v7166
  %v7539 = vunpack.c.h.b16 %v7166
  %v7540 = vunpack.c.l.b16 %v7167
  %v7541 = vunpack.c.h.b16 %v7167
  %v7542 = vunpack.c.l.b16 %v7168
  %v7543 = vunpack.c.h.b16 %v7168
  %v7544 = vunpack.c.l.b16 %v7169
  %v7545 = vunpack.c.h.b16 %v7169
  %v7546 = vunpack.c.l.b16 %v7170
  %v7547 = vunpack.c.h.b16 %v7170
  %v7548 = vunpack.c.l.b16 %v7171
  %v7549 = vunpack.c.h.b16 %v7171
  %v7550 = vunpack.c.l.b16 %v7172
  %v7551 = vunpack.c.h.b16 %v7172
  %v7552 = vunpack.c.l.b16 %v7173
  %v7553 = vunpack.c.h.b16 %v7173
  %v7554 = vunpack.c.l.b16 %v7174
  %v7555 = vunpack.c.h.b16 %v7174
  %v7556 = vunpack.c.l.b16 %v7175
  %v7557 = vunpack.c.h.b16 %v7175
  %v7558 = vunpack.c.l.b16 %v7176
  %v7559 = vunpack.c.h.b16 %v7176
  %v7560 = vunpack.c.l.b16 %v7177
  %v7561 = vunpack.c.h.b16 %v7177
  %v7562 = vunpack.c.l.b16 %v7178
  %v7563 = vunpack.c.h.b16 %v7178
  %v7564 = vunpack.c.l.b16 %v7179
  %v7565 = vunpack.c.h.b16 %v7179
  %v7566 = vunpack.c.l.b16 %v7180
  %v7567 = vunpack.c.h.b16 %v7180
  %v7568 = vunpack.c.l.b16 %v7181
  %v7569 = vunpack.c.h.b16 %v7181
  %v7570 = vunpack.c.l.b16 %v7182
  %v7571 = vunpack.c.h.b16 %v7182
  %v7572 = vunpack.c.l.b16 %v7183
  %v7573 = vunpack.c.h.b16 %v7183
  %v7574 = vunpack.c.l.b16 %v7184
  %v7575 = vunpack.c.h.b16 %v7184
  %v7576 = vunpack.c.l.b16 %v7185
  %v7577 = vunpack.c.h.b16 %v7185
  %v7578 = vunpack.c.l.b16 %v7186
  %v7579 = vunpack.c.h.b16 %v7186
  %v7580 = vunpack.c.l.b16 %v7187
  %v7581 = vunpack.c.h.b16 %v7187
  %v7582 = vunpack.c.l.b16 %v7188
  %v7583 = vunpack.c.h.b16 %v7188
  %v7584 = vunpack.c.l.b16 %v7189
  %v7585 = vunpack.c.h.b16 %v7189
  %v7586 = vunpack.c.l.b16 %v7190
  %v7587 = vunpack.c.h.b16 %v7190
  %v7588 = vunpack.c.l.b16 %v7191
  %v7589 = vunpack.c.h.b16 %v7191
  %v7590 = vunpack.c.l.b16 %v7192
  %v7591 = vunpack.c.h.b16 %v7192
  %v7592 = vunpack.c.l.b16 %v7193
  %v7593 = vunpack.c.h.b16 %v7193
  %v7594 = vunpack.c.l.b16 %v7194
  %v7595 = vunpack.c.h.b16 %v7194
  %v7596 = vunpack.c.l.b16 %v7195
  %v7597 = vunpack.c.h.b16 %v7195
  %v7598 = vunpack.c.l.b16 %v7196
  %v7599 = vunpack.c.h.b16 %v7196
  %v7600 = vunpack.c.l.b16 %v7197
  %v7601 = vunpack.c.h.b16 %v7197
  %v7602 = vunpack.c.l.b16 %v7198
  %v7603 = vunpack.c.h.b16 %v7198
  %v7604 = vunpack.c.l.b16 %v7199
  %v7605 = vunpack.c.h.b16 %v7199
  %v7606 = vpack.c.b16 %v7354, %v7350
  %v7607 = vpack.c.b16 %v7355, %v7351
  %v7608 = vpack.c.b16 %v7356, %v7352
  %v7609 = vpack.c.b16 %v7357, %v7353
  %v7610 = vpack.c.b16 %v7362, %v7358
  %v7611 = vpack.c.b16 %v7363, %v7359
  %v7612 = vpack.c.b16 %v7364, %v7360
  %v7613 = vpack.c.b16 %v7365, %v7361
  %v7614 = vpack.c.b16 %v7370, %v7366
  %v7615 = vpack.c.b16 %v7371, %v7367
  %v7616 = vpack.c.b16 %v7372, %v7368
  %v7617 = vpack.c.b16 %v7373, %v7369
  %v7618 = vpack.c.b16 %v7378, %v7374
  %v7619 = vpack.c.b16 %v7379, %v7375
  %v7620 = vpack.c.b16 %v7380, %v7376
  %v7621 = vpack.c.b16 %v7381, %v7377
  %v7622 = vpack.c.b16 %v7386, %v7382
  %v7623 = vpack.c.b16 %v7387, %v7383
  %v7624 = vpack.c.b16 %v7388, %v7384
  %v7625 = vpack.c.b16 %v7389, %v7385
  %v7626 = vpack.c.b16 %v7394, %v7390
  %v7627 = vpack.c.b16 %v7395, %v7391
  %v7628 = vpack.c.b16 %v7396, %v7392
  %v7629 = vpack.c.b16 %v7397, %v7393
  %v7630 = vpack.c.b16 %v7402, %v7398
  %v7631 = vpack.c.b16 %v7403, %v7399
  %v7632 = vpack.c.b16 %v7404, %v7400
  %v7633 = vpack.c.b16 %v7405, %v7401
  %v7634 = vpack.c.b16 %v7410, %v7406
  %v7635 = vpack.c.b16 %v7411, %v7407
  %v7636 = vpack.c.b16 %v7412, %v7408
  %v7637 = vpack.c.b16 %v7413, %v7409
  %v7638 = vpack.c.b16 %v7418, %v7414
  %v7639 = vpack.c.b16 %v7419, %v7415
  %v7640 = vpack.c.b16 %v7420, %v7416
  %v7641 = vpack.c.b16 %v7421, %v7417
  %v7642 = vpack.c.b16 %v7426, %v7422
  %v7643 = vpack.c.b16 %v7427, %v7423
  %v7644 = vpack.c.b16 %v7428, %v7424
  %v7645 = vpack.c.b16 %v7429, %v7425
  %v7646 = vpack.c.b16 %v7434, %v7430
  %v7647 = vpack.c.b16 %v7435, %v7431
  %v7648 = vpack.c.b16 %v7436, %v7432
  %v7649 = vpack.c.b16 %v7437, %v7433
  %v7650 = vpack.c.b16 %v7442, %v7438
  %v7651 = vpack.c.b16 %v7443, %v7439
  %v7652 = vpack.c.b16 %v7444, %v7440
  %v7653 = vpack.c.b16 %v7445, %v7441
  %v7654 = vpack.c.b16 %v7450, %v7446
  %v7655 = vpack.c.b16 %v7451, %v7447
  %v7656 = vpack.c.b16 %v7452, %v7448
  %v7657 = vpack.c.b16 %v7453, %v7449
  %v7658 = vpack.c.b16 %v7458, %v7454
  %v7659 = vpack.c.b16 %v7459, %v7455
  %v7660 = vpack.c.b16 %v7460, %v7456
  %v7661 = vpack.c.b16 %v7461, %v7457
  %v7662 = vpack.c.b16 %v7466, %v7462
  %v7663 = vpack.c.b16 %v7467, %v7463
  %v7664 = vpack.c.b16 %v7468, %v7464
  %v7665 = vpack.c.b16 %v7469, %v7465
  %v7666 = vpack.c.b16 %v7474, %v7470
  %v7667 = vpack.c.b16 %v7475, %v7471
  %v7668 = vpack.c.b16 %v7476, %v7472
  %v7669 = vpack.c.b16 %v7477, %v7473
  %v7670 = vpack.c.b16 %v7482, %v7478
  %v7671 = vpack.c.b16 %v7483, %v7479
  %v7672 = vpack.c.b16 %v7484, %v7480
  %v7673 = vpack.c.b16 %v7485, %v7481
  %v7674 = vpack.c.b16 %v7490, %v7486
  %v7675 = vpack.c.b16 %v7491, %v7487
  %v7676 = vpack.c.b16 %v7492, %v7488
  %v7677 = vpack.c.b16 %v7493, %v7489
  %v7678 = vpack.c.b16 %v7498, %v7494
  %v7679 = vpack.c.b16 %v7499, %v7495
  %v7680 = vpack.c.b16 %v7500, %v7496
  %v7681 = vpack.c.b16 %v7501, %v7497
  %v7682 = vpack.c.b16 %v7506, %v7502
  %v7683 = vpack.c.b16 %v7507, %v7503
  %v7684 = vpack.c.b16 %v7508, %v7504
  %v7685 = vpack.c.b16 %v7509, %v7505
  %v7686 = vpack.c.b16 %v7514, %v7510
  %v7687 = vpack.c.b16 %v7515, %v7511
  %v7688 = vpack.c.b16 %v7516, %v7512
  %v7689 = vpack.c.b16 %v7517, %v7513
  %v7690 = vpack.c.b16 %v7522, %v7518
  %v7691 = vpack.c.b16 %v7523, %v7519
  %v7692 = vpack.c.b16 %v7524, %v7520
  %v7693 = vpack.c.b16 %v7525, %v7521
  %v7694 = vpack.c.b16 %v7530, %v7526
  %v7695 = vpack.c.b16 %v7531, %v7527
  %v7696 = vpack.c.b16 %v7532, %v7528
  %v7697 = vpack.c.b16 %v7533, %v7529
  %v7698 = vpack.c.b16 %v7538, %v7534
  %v7699 = vpack.c.b16 %v7539, %v7535
  %v7700 = vpack.c.b16 %v7540, %v7536
  %v7701 = vpack.c.b16 %v7541, %v7537
  %v7702 = vpack.c.b16 %v7546, %v7542
  %v7703 = vpack.c.b16 %v7547, %v7543
  %v7704 = vpack.c.b16 %v7548, %v7544
  %v7705 = vpack.c.b16 %v7549, %v7545
  %v7706 = vpack.c.b16 %v7554, %v7550
  %v7707 = vpack.c.b16 %v7555, %v7551
  %v7708 = vpack.c.b16 %v7556, %v7552
  %v7709 = vpack.c.b16 %v7557, %v7553
  %v7710 = vpack.c.b16 %v7562, %v7558
  %v7711 = vpack.c.b16 %v7563, %v7559
  %v7712 = vpack.c.b16 %v7564, %v7560
  %v7713 = vpack.c.b16 %v7565, %v7561
  %v7714 = vpack.c.b16 %v7570, %v7566
  %v7715 = vpack.c.b16 %v7571, %v7567
  %v7716 = vpack.c.b16 %v7572, %v7568
  %v7717 = vpack.c.b16 %v7573, %v7569
  %v7718 = vpack.c.b16 %v7578, %v7574
  %v7719 = vpack.c.b16 %v7579, %v7575
  %v7720 = vpack.c.b16 %v7580, %v7576
  %v7721 = vpack.c.b16 %v7581, %v7577
  %v7722 = vpack.c.b16 %v7586, %v7582
  %v7723 = vpack.c.b16 %v7587, %v7583
  %v7724 = vpack.c.b16 %v7588, %v7584
  %v7725 = vpack.c.b16 %v7589, %v7585
  %v7726 = vpack.c.b16 %v7594, %v7590
  %v7727 = vpack.c.b16 %v7595, %v7591
  %v7728 = vpack.c.b16 %v7596, %v7592
  %v7729 = vpack.c.b16 %v7597, %v7593
  %v7730 = vpack.c.b16 %v7602, %v7598
  %v7731 = vpack.c.b16 %v7603, %v7599
  %v7732 = vpack.c.b16 %v7604, %v7600
  %v7733 = vpack.c.b16 %v7605, %v7601
  %7862 = vmatprep.subr.bf16.mxu0 %v7607
  %7863 = vmatpush1.bf16.msra.mxu0 %v7606
  %7864 = vmatprep.subr.bf16.mxu0 %v7611
  %7865 = vmatpush1.bf16.msra.mxu0 %v7610
  %7866 = vmatprep.subr.bf16.mxu0 %v7615
  %7867 = vmatpush1.bf16.msra.mxu0 %v7614
  %7868 = vmatprep.subr.bf16.mxu0 %v7619
  %7869 = vmatpush1.bf16.msra.mxu0 %v7618
  %7870 = vmatprep.subr.bf16.mxu0 %v7623
  %7871 = vmatpush1.bf16.msra.mxu0 %v7622
  %7872 = vmatprep.subr.bf16.mxu0 %v7627
  %7873 = vmatpush1.bf16.msra.mxu0 %v7626
  %7874 = vmatprep.subr.bf16.mxu0 %v7631
  %7875 = vmatpush1.bf16.msra.mxu0 %v7630
  %7876 = vmatprep.subr.bf16.mxu0 %v7635
  %7877 = vmatpush1.bf16.msra.mxu0 %v7634
  %7878 = vmatprep.subr.bf16.mxu0 %v7639
  %7879 = vmatpush1.bf16.msra.mxu0 %v7638
  %7880 = vmatprep.subr.bf16.mxu0 %v7643
  %7881 = vmatpush1.bf16.msra.mxu0 %v7642
  %7882 = vmatprep.subr.bf16.mxu0 %v7647
  %7883 = vmatpush1.bf16.msra.mxu0 %v7646
  %7884 = vmatprep.subr.bf16.mxu0 %v7651
  %7885 = vmatpush1.bf16.msra.mxu0 %v7650
  %7886 = vmatprep.subr.bf16.mxu0 %v7655
  %7887 = vmatpush1.bf16.msra.mxu0 %v7654
  %7888 = vmatprep.subr.bf16.mxu0 %v7659
  %7889 = vmatpush1.bf16.msra.mxu0 %v7658
  %7890 = vmatprep.subr.bf16.mxu0 %v7663
  %7891 = vmatpush1.bf16.msra.mxu0 %v7662
  %7892 = vmatprep.subr.bf16.mxu0 %v7667
  %7893 = vmatpush1.bf16.msra.mxu0 %v7666
  %7894 = vmatprep.mubr.bf16.mxu0 %v7069
  %7895 = vmatmul.mubr.bf16.gmra.mrb[0].mxu0 %v7068
  %v7896 = vpop.f32.mrb[0].mxu0
  %v7897 = vadd.f32 %v7205, %v7896
  %v7898 = vpop.f32.mrb[0].mxu0
  %v7899 = vadd.f32 %v7209, %v7898
  %v7900 = vpop.f32.mrb[0].mxu0
  %v7901 = vpop.f32.mrb[0].mxu0
  %7902 = vdwg.mxu0
  %7903 = vmatprep.subr.bf16.mxu0 %v7671
  %7904 = vmatpush1.bf16.msra.mxu0 %v7670
  %7905 = vmatprep.subr.bf16.mxu0 %v7675
  %7906 = vmatpush1.bf16.msra.mxu0 %v7674
  %7907 = vmatprep.subr.bf16.mxu0 %v7679
  %7908 = vmatpush1.bf16.msra.mxu0 %v7678
  %7909 = vmatprep.subr.bf16.mxu0 %v7683
  %7910 = vmatpush1.bf16.msra.mxu0 %v7682
  %7911 = vmatprep.subr.bf16.mxu0 %v7687
  %7912 = vmatpush1.bf16.msra.mxu0 %v7686
  %7913 = vmatprep.subr.bf16.mxu0 %v7691
  %7914 = vmatpush1.bf16.msra.mxu0 %v7690
  %7915 = vmatprep.subr.bf16.mxu0 %v7695
  %7916 = vmatpush1.bf16.msra.mxu0 %v7694
  %7917 = vmatprep.subr.bf16.mxu0 %v7699
  %7918 = vmatpush1.bf16.msra.mxu0 %v7698
  %7919 = vmatprep.subr.bf16.mxu0 %v7703
  %7920 = vmatpush1.bf16.msra.mxu0 %v7702
  %7921 = vmatprep.subr.bf16.mxu0 %v7707
  %7922 = vmatpush1.bf16.msra.mxu0 %v7706
  %7923 = vmatprep.subr.bf16.mxu0 %v7711
  %7924 = vmatpush1.bf16.msra.mxu0 %v7710
  %7925 = vmatprep.subr.bf16.mxu0 %v7715
  %7926 = vmatpush1.bf16.msra.mxu0 %v7714
  %7927 = vmatprep.subr.bf16.mxu0 %v7719
  %7928 = vmatpush1.bf16.msra.mxu0 %v7718
  %7929 = vmatprep.subr.bf16.mxu0 %v7723
  %7930 = vmatpush1.bf16.msra.mxu0 %v7722
  %7931 = vmatprep.subr.bf16.mxu0 %v7727
  %7932 = vmatpush1.bf16.msra.mxu0 %v7726
  %7933 = vmatprep.subr.bf16.mxu0 %v7731
  %7934 = vmatpush1.bf16.msra.mxu0 %v7730
  %7935 = vmatprep.mubr.bf16.mxu0 %v7071
  %7936 = vmatmul.mubr.bf16.gmra.mrb[0].mxu0 %v7070
  %v7937 = vpop.f32.mrb[0].mxu0
  %v7938 = vadd.f32 %v7897, %v7937
  %v7939 = vpop.f32.mrb[0].mxu0
  %v7940 = vadd.f32 %v7899, %v7939
  %v7941 = vpop.f32.mrb[0].mxu0
  %v7942 = vpop.f32.mrb[0].mxu0
  %7943 = vdwg.mxu0
  %7944 = vmatprep.subr.bf16.mxu0 %v7609
  %7945 = vmatpush1.bf16.msra.mxu0 %v7608
  %7946 = vmatprep.subr.bf16.mxu0 %v7613
  %7947 = vmatpush1.bf16.msra.mxu0 %v7612
  %7948 = vmatprep.subr.bf16.mxu0 %v7617
  %7949 = vmatpush1.bf16.msra.mxu0 %v7616
  %7950 = vmatprep.subr.bf16.mxu0 %v7621
  %7951 = vmatpush1.bf16.msra.mxu0 %v7620
  %7952 = vmatprep.subr.bf16.mxu0 %v7625
  %7953 = vmatpush1.bf16.msra.mxu0 %v7624
  %7954 = vmatprep.subr.bf16.mxu0 %v7629
  %7955 = vmatpush1.bf16.msra.mxu0 %v7628
  %7956 = vmatprep.subr.bf16.mxu0 %v7633
  %7957 = vmatpush1.bf16.msra.mxu0 %v7632
  %7958 = vmatprep.subr.bf16.mxu0 %v7637
  %7959 = vmatpush1.bf16.msra.mxu0 %v7636
  %7960 = vmatprep.subr.bf16.mxu0 %v7641
  %7961 = vmatpush1.bf16.msra.mxu0 %v7640
  %7962 = vmatprep.subr.bf16.mxu0 %v7645
  %7963 = vmatpush1.bf16.msra.mxu0 %v7644
  %7964 = vmatprep.subr.bf16.mxu0 %v7649
  %7965 = vmatpush1.bf16.msra.mxu0 %v7648
  %7966 = vmatprep.subr.bf16.mxu0 %v7653
  %7967 = vmatpush1.bf16.msra.mxu0 %v7652
  %7968 = vmatprep.subr.bf16.mxu0 %v7657
  %7969 = vmatpush1.bf16.msra.mxu0 %v7656
  %7970 = vmatprep.subr.bf16.mxu0 %v7661
  %7971 = vmatpush1.bf16.msra.mxu0 %v7660
  %7972 = vmatprep.subr.bf16.mxu0 %v7665
  %7973 = vmatpush1.bf16.msra.mxu0 %v7664
  %7974 = vmatprep.subr.bf16.mxu0 %v7669
  %7975 = vmatpush1.bf16.msra.mxu0 %v7668
  %7976 = vmatprep.mubr.bf16.mxu0 %v7069
  %7977 = vmatmul.mubr.bf16.gmra.mrb[0].mxu0 %v7068
  %v7978 = vpop.f32.mrb[0].mxu0
  %v7979 = vadd.f32 %v7213, %v7978
  %v7980 = vpop.f32.mrb[0].mxu0
  %v7981 = vadd.f32 %v7217, %v7980
  %v7982 = vpop.f32.mrb[0].mxu0
  %v7983 = vpop.f32.mrb[0].mxu0
  %7984 = vdwg.mxu0
  %7985 = vmatprep.subr.bf16.mxu0 %v7673
  %7986 = vmatpush1.bf16.msra.mxu0 %v7672
  %7987 = vmatprep.subr.bf16.mxu0 %v7677
  %7988 = vmatpush1.bf16.msra.mxu0 %v7676
  %7989 = vmatprep.subr.bf16.mxu0 %v7681
  %7990 = vmatpush1.bf16.msra.mxu0 %v7680
  %7991 = vmatprep.subr.bf16.mxu0 %v7685
  %7992 = vmatpush1.bf16.msra.mxu0 %v7684
  %7993 = vmatprep.subr.bf16.mxu0 %v7689
  %7994 = vmatpush1.bf16.msra.mxu0 %v7688
  %7995 = vmatprep.subr.bf16.mxu0 %v7693
  %7996 = vmatpush1.bf16.msra.mxu0 %v7692
  %7997 = vmatprep.subr.bf16.mxu0 %v7697
  %7998 = vmatpush1.bf16.msra.mxu0 %v7696
  %7999 = vmatprep.subr.bf16.mxu0 %v7701
  %8000 = vmatpush1.bf16.msra.mxu0 %v7700
  %8001 = vmatprep.subr.bf16.mxu0 %v7705
  %8002 = vmatpush1.bf16.msra.mxu0 %v7704
  %8003 = vmatprep.subr.bf16.mxu0 %v7709
  %8004 = vmatpush1.bf16.msra.mxu0 %v7708
  %8005 = vmatprep.subr.bf16.mxu0 %v7713
  %8006 = vmatpush1.bf16.msra.mxu0 %v7712
  %8007 = vmatprep.subr.bf16.mxu0 %v7717
  %8008 = vmatpush1.bf16.msra.mxu0 %v7716
  %8009 = vmatprep.subr.bf16.mxu0 %v7721
  %8010 = vmatpush1.bf16.msra.mxu0 %v7720
  %8011 = vmatprep.subr.bf16.mxu0 %v7725
  %8012 = vmatpush1.bf16.msra.mxu0 %v7724
  %8013 = vmatprep.subr.bf16.mxu0 %v7729
  %8014 = vmatpush1.bf16.msra.mxu0 %v7728
  %8015 = vmatprep.subr.bf16.mxu0 %v7733
  %8016 = vmatpush1.bf16.msra.mxu0 %v7732
  %8017 = vmatprep.mubr.bf16.mxu0 %v7071
  %8018 = vmatmul.mubr.bf16.gmra.mrb[0].mxu0 %v7070
  %v8019 = vpop.f32.mrb[0].mxu0
  %v8020 = vadd.f32 %v7979, %v8019
  %v8021 = vpop.f32.mrb[0].mxu0
  %v8022 = vadd.f32 %v7981, %v8021
  %v8023 = vpop.f32.mrb[0].mxu0
  %v8024 = vpop.f32.mrb[0].mxu0
  %8025 = vdwg.mxu0
  %v8028 = vcombine.low %v7938, %v7940
  %v8030 = vunpack.c.l.s4 1966171168
  %v8031 = vunpack.c.0.s8 %v8030
  %v8032 = vlaneseq
  %v8033 = vshrl.u32 %v8032, 7
  %v8034 = vsub.s32 %v8031, %v8033
  %v8035 = vrot.slane %v8028, %v8034
  %v8036 = vcombine.high %v8035, %v8035
  %v8038 = vunpack.c.l.s4 1966171168
  %v8039 = vunpack.c.0.s8 %v8038
  %v8040 = vlaneseq
  %v8041 = vshrl.u32 %v8040, 7
  %v8042 = vsub.s32 %v8039, %v8041
  %v8043 = vrot.slane %v8035, %v8042
  %v8045 = vunpack.c.l.s4 1966171168
  %v8046 = vunpack.c.0.s8 %v8045
  %v8047 = vlaneseq
  %v8048 = vshrl.u32 %v8047, 7
  %v8049 = vsub.s32 %v8046, %v8048
  %v8050 = vrot.slane %v8036, %v8049
  %v8051 = vlaneseq
  %v8052 = vshrl.u32 %v8051, 7
  %v8053 = vsub.s32 0, %v8052
  %v8054 = vrot.slane %v8043, %v8053
  %v8055 = vlaneseq
  %v8056 = vshrl.u32 %v8055, 7
  %v8057 = vsub.s32 1, %v8056
  %v8058 = vrot.slane %v8043, %v8057
  %v8059 = vlaneseq
  %v8060 = vshrl.u32 %v8059, 7
  %v8061 = vsub.s32 0, %v8060
  %v8062 = vrot.slane %v8050, %v8061
  %v8063 = vlaneseq
  %v8064 = vshrl.u32 %v8063, 7
  %v8065 = vsub.s32 1, %v8064
  %v8066 = vrot.slane %v8050, %v8065
  %v8071 = vmul.f32 %v8054, %v6406
  %v8072 = vmul.f32 %v8058, %v6407
  %v8073 = vmul.f32 %v8054, %v6408
  %v8074 = vmul.f32 %v8058, %v6409
  %v8075 = vmul.f32 %v8054, %v6410
  %v8076 = vmul.f32 %v8058, %v6411
  %v8077 = vmul.f32 %v8054, %v6412
  %v8078 = vmul.f32 %v8058, %v6413
  %v8079 = vmul.f32 %v8054, %v6414
  %v8080 = vmul.f32 %v8058, %v6415
  %v8081 = vmul.f32 %v8054, %v6416
  %v8082 = vmul.f32 %v8058, %v6417
  %v8083 = vmul.f32 %v8054, %v6418
  %v8084 = vmul.f32 %v8058, %v6419
  %v8085 = vmul.f32 %v8054, %v6420
  %v8086 = vmul.f32 %v8058, %v6421
  %v8087 = vmul.f32 %v8054, %v6422
  %v8088 = vmul.f32 %v8058, %v6423
  %v8089 = vmul.f32 %v8054, %v6424
  %v8090 = vmul.f32 %v8058, %v6425
  %v8091 = vmul.f32 %v8054, %v6426
  %v8092 = vmul.f32 %v8058, %v6427
  %v8093 = vmul.f32 %v8054, %v6428
  %v8094 = vmul.f32 %v8058, %v6429
  %v8095 = vmul.f32 %v8054, %v6430
  %v8096 = vmul.f32 %v8058, %v6431
  %v8097 = vmul.f32 %v8054, %v6432
  %v8098 = vmul.f32 %v8058, %v6433
  %v8099 = vmul.f32 %v8054, %v6434
  %v8100 = vmul.f32 %v8058, %v6435
  %v8101 = vmul.f32 %v8054, %v6436
  %v8102 = vmul.f32 %v8058, %v6437
  %v8103 = vmul.f32 %v8062, %v6438
  %v8104 = vmul.f32 %v8066, %v6439
  %v8105 = vmul.f32 %v8062, %v6440
  %v8106 = vmul.f32 %v8066, %v6441
  %v8107 = vmul.f32 %v8062, %v6442
  %v8108 = vmul.f32 %v8066, %v6443
  %v8109 = vmul.f32 %v8062, %v6444
  %v8110 = vmul.f32 %v8066, %v6445
  %v8111 = vmul.f32 %v8062, %v6446
  %v8112 = vmul.f32 %v8066, %v6447
  %v8113 = vmul.f32 %v8062, %v6448
  %v8114 = vmul.f32 %v8066, %v6449
  %v8115 = vmul.f32 %v8062, %v6450
  %v8116 = vmul.f32 %v8066, %v6451
  %v8117 = vmul.f32 %v8062, %v6452
  %v8118 = vmul.f32 %v8066, %v6453
  %v8119 = vmul.f32 %v8062, %v6454
  %v8120 = vmul.f32 %v8066, %v6455
  %v8121 = vmul.f32 %v8062, %v6456
  %v8122 = vmul.f32 %v8066, %v6457
  %v8123 = vmul.f32 %v8062, %v6458
  %v8124 = vmul.f32 %v8066, %v6459
  %v8125 = vmul.f32 %v8062, %v6460
  %v8126 = vmul.f32 %v8066, %v6461
  %v8127 = vmul.f32 %v8062, %v6462
  %v8128 = vmul.f32 %v8066, %v6463
  %v8129 = vmul.f32 %v8062, %v6464
  %v8130 = vmul.f32 %v8066, %v6465
  %v8131 = vmul.f32 %v8062, %v6466
  %v8132 = vmul.f32 %v8066, %v6467
  %v8133 = vmul.f32 %v8062, %v6468
  %v8134 = vmul.f32 %v8066, %v6469
  %v8137 = vcombine.low %v8020, %v8022
  %v8139 = vunpack.c.l.s4 1966171168
  %v8140 = vunpack.c.0.s8 %v8139
  %v8141 = vlaneseq
  %v8142 = vshrl.u32 %v8141, 7
  %v8143 = vsub.s32 %v8140, %v8142
  %v8144 = vrot.slane %v8137, %v8143
  %v8145 = vcombine.high %v8144, %v8144
  %v8147 = vunpack.c.l.s4 1966171168
  %v8148 = vunpack.c.0.s8 %v8147
  %v8149 = vlaneseq
  %v8150 = vshrl.u32 %v8149, 7
  %v8151 = vsub.s32 %v8148, %v8150
  %v8152 = vrot.slane %v8144, %v8151
  %v8154 = vunpack.c.l.s4 1966171168
  %v8155 = vunpack.c.0.s8 %v8154
  %v8156 = vlaneseq
  %v8157 = vshrl.u32 %v8156, 7
  %v8158 = vsub.s32 %v8155, %v8157
  %v8159 = vrot.slane %v8145, %v8158
  %v8160 = vlaneseq
  %v8161 = vshrl.u32 %v8160, 7
  %v8162 = vsub.s32 0, %v8161
  %v8163 = vrot.slane %v8152, %v8162
  %v8164 = vlaneseq
  %v8165 = vshrl.u32 %v8164, 7
  %v8166 = vsub.s32 1, %v8165
  %v8167 = vrot.slane %v8152, %v8166
  %v8168 = vlaneseq
  %v8169 = vshrl.u32 %v8168, 7
  %v8170 = vsub.s32 0, %v8169
  %v8171 = vrot.slane %v8159, %v8170
  %v8172 = vlaneseq
  %v8173 = vshrl.u32 %v8172, 7
  %v8174 = vsub.s32 1, %v8173
  %v8175 = vrot.slane %v8159, %v8174
  %v8180 = vadd.f32 %v8071, %v8163
  %v8181 = vadd.f32 %v8072, %v8167
  %v8182 = vadd.f32 %v8073, %v8163
  %v8183 = vadd.f32 %v8074, %v8167
  %v8184 = vadd.f32 %v8075, %v8163
  %v8185 = vadd.f32 %v8076, %v8167
  %v8186 = vadd.f32 %v8077, %v8163
  %v8187 = vadd.f32 %v8078, %v8167
  %v8188 = vadd.f32 %v8079, %v8163
  %v8189 = vadd.f32 %v8080, %v8167
  %v8190 = vadd.f32 %v8081, %v8163
  %v8191 = vadd.f32 %v8082, %v8167
  %v8192 = vadd.f32 %v8083, %v8163
  %v8193 = vadd.f32 %v8084, %v8167
  %v8194 = vadd.f32 %v8085, %v8163
  %v8195 = vadd.f32 %v8086, %v8167
  %v8196 = vadd.f32 %v8087, %v8163
  %v8197 = vadd.f32 %v8088, %v8167
  %v8198 = vadd.f32 %v8089, %v8163
  %v8199 = vadd.f32 %v8090, %v8167
  %v8200 = vadd.f32 %v8091, %v8163
  %v8201 = vadd.f32 %v8092, %v8167
  %v8202 = vadd.f32 %v8093, %v8163
  %v8203 = vadd.f32 %v8094, %v8167
  %v8204 = vadd.f32 %v8095, %v8163
  %v8205 = vadd.f32 %v8096, %v8167
  %v8206 = vadd.f32 %v8097, %v8163
  %v8207 = vadd.f32 %v8098, %v8167
  %v8208 = vadd.f32 %v8099, %v8163
  %v8209 = vadd.f32 %v8100, %v8167
  %v8210 = vadd.f32 %v8101, %v8163
  %v8211 = vadd.f32 %v8102, %v8167
  %v8212 = vadd.f32 %v8103, %v8171
  %v8213 = vadd.f32 %v8104, %v8175
  %v8214 = vadd.f32 %v8105, %v8171
  %v8215 = vadd.f32 %v8106, %v8175
  %v8216 = vadd.f32 %v8107, %v8171
  %v8217 = vadd.f32 %v8108, %v8175
  %v8218 = vadd.f32 %v8109, %v8171
  %v8219 = vadd.f32 %v8110, %v8175
  %v8220 = vadd.f32 %v8111, %v8171
  %v8221 = vadd.f32 %v8112, %v8175
  %v8222 = vadd.f32 %v8113, %v8171
  %v8223 = vadd.f32 %v8114, %v8175
  %v8224 = vadd.f32 %v8115, %v8171
  %v8225 = vadd.f32 %v8116, %v8175
  %v8226 = vadd.f32 %v8117, %v8171
  %v8227 = vadd.f32 %v8118, %v8175
  %v8228 = vadd.f32 %v8119, %v8171
  %v8229 = vadd.f32 %v8120, %v8175
  %v8230 = vadd.f32 %v8121, %v8171
  %v8231 = vadd.f32 %v8122, %v8175
  %v8232 = vadd.f32 %v8123, %v8171
  %v8233 = vadd.f32 %v8124, %v8175
  %v8234 = vadd.f32 %v8125, %v8171
  %v8235 = vadd.f32 %v8126, %v8175
  %v8236 = vadd.f32 %v8127, %v8171
  %v8237 = vadd.f32 %v8128, %v8175
  %v8238 = vadd.f32 %v8129, %v8171
  %v8239 = vadd.f32 %v8130, %v8175
  %v8240 = vadd.f32 %v8131, %v8171
  %v8241 = vadd.f32 %v8132, %v8175
  %v8242 = vadd.f32 %v8133, %v8171
  %v8243 = vadd.f32 %v8134, %v8175
  %8244 = vmatprep.subr.mxu0 %v8181
  %8245 = vmatpush1.msra.mxu0 %v8180
  %8246 = vmatprep.subr.mxu0 %v8183
  %8247 = vmatpush1.msra.mxu0 %v8182
  %8248 = vmatprep.subr.mxu0 %v8185
  %8249 = vmatpush1.msra.mxu0 %v8184
  %8250 = vmatprep.subr.mxu0 %v8187
  %8251 = vmatpush1.msra.mxu0 %v8186
  %8252 = vmatprep.subr.mxu0 %v8189
  %8253 = vmatpush1.msra.mxu0 %v8188
  %8254 = vmatprep.subr.mxu0 %v8191
  %8255 = vmatpush1.msra.mxu0 %v8190
  %8256 = vmatprep.subr.mxu0 %v8193
  %8257 = vmatpush1.msra.mxu0 %v8192
  %8258 = vmatprep.subr.mxu0 %v8195
  %8259 = vmatpush1.msra.mxu0 %v8194
  %8260 = vmatprep.subr.mxu0 %v8197
  %8261 = vmatpush1.msra.mxu0 %v8196
  %8262 = vmatprep.subr.mxu0 %v8199
  %8263 = vmatpush1.msra.mxu0 %v8198
  %8264 = vmatprep.subr.mxu0 %v8201
  %8265 = vmatpush1.msra.mxu0 %v8200
  %8266 = vmatprep.subr.mxu0 %v8203
  %8267 = vmatpush1.msra.mxu0 %v8202
  %8268 = vmatprep.subr.mxu0 %v8205
  %8269 = vmatpush1.msra.mxu0 %v8204
  %8270 = vmatprep.subr.mxu0 %v8207
  %8271 = vmatpush1.msra.mxu0 %v8206
  %8272 = vmatprep.subr.mxu0 %v8209
  %8273 = vmatpush1.msra.mxu0 %v8208
  %8274 = vmatprep.subr.mxu0 %v8211
  %8275 = vmatpush1.msra.mxu0 %v8210
  %8276 = vmatprep.subr.mxu0 %v8213
  %8277 = vmatpush1.msra.mxu0 %v8212
  %8278 = vmatprep.subr.mxu0 %v8215
  %8279 = vmatpush1.msra.mxu0 %v8214
  %8280 = vmatprep.subr.mxu0 %v8217
  %8281 = vmatpush1.msra.mxu0 %v8216
  %8282 = vmatprep.subr.mxu0 %v8219
  %8283 = vmatpush1.msra.mxu0 %v8218
  %8284 = vmatprep.subr.mxu0 %v8221
  %8285 = vmatpush1.msra.mxu0 %v8220
  %8286 = vmatprep.subr.mxu0 %v8223
  %8287 = vmatpush1.msra.mxu0 %v8222
  %8288 = vmatprep.subr.mxu0 %v8225
  %8289 = vmatpush1.msra.mxu0 %v8224
  %8290 = vmatprep.subr.mxu0 %v8227
  %8291 = vmatpush1.msra.mxu0 %v8226
  %8292 = vmatprep.subr.mxu0 %v8229
  %8293 = vmatpush1.msra.mxu0 %v8228
  %8294 = vmatprep.subr.mxu0 %v8231
  %8295 = vmatpush1.msra.mxu0 %v8230
  %8296 = vmatprep.subr.mxu0 %v8233
  %8297 = vmatpush1.msra.mxu0 %v8232
  %8298 = vmatprep.subr.mxu0 %v8235
  %8299 = vmatpush1.msra.mxu0 %v8234
  %8300 = vmatprep.subr.mxu0 %v8237
  %8301 = vmatpush1.msra.mxu0 %v8236
  %8302 = vmatprep.subr.mxu0 %v8239
  %8303 = vmatpush1.msra.mxu0 %v8238
  %8304 = vmatprep.subr.mxu0 %v8241
  %8305 = vmatpush1.msra.mxu0 %v8240
  %8306 = vmatprep.subr.mxu0 %v8243
  %8307 = vmatpush1.msra.mxu0 %v8242
  %8308 = vmatprep.mubr.f32.mxu0 1.0
  %8309 = vmatmul.mubr.f32.gmra.mrb[0].mxu0 1.0
  %v8310 = vpop.f32.mrb[0].mxu0
  %v8311 = vadd.f32 0.0, %v8310
  %v8312 = vpop.f32.mrb[0].mxu0
  %v8313 = vadd.f32 0.0, %v8312
  %8314 = vdwg.mxu0
  %v8315 = vmul.f32 %v8180, %v8180
  %v8316 = vmul.f32 %v8181, %v8181
  %v8317 = vmul.f32 %v8182, %v8182
  %v8318 = vmul.f32 %v8183, %v8183
  %v8319 = vmul.f32 %v8184, %v8184
  %v8320 = vmul.f32 %v8185, %v8185
  %v8321 = vmul.f32 %v8186, %v8186
  %v8322 = vmul.f32 %v8187, %v8187
  %v8323 = vmul.f32 %v8188, %v8188
  %v8324 = vmul.f32 %v8189, %v8189
  %v8325 = vmul.f32 %v8190, %v8190
  %v8326 = vmul.f32 %v8191, %v8191
  %v8327 = vmul.f32 %v8192, %v8192
  %v8328 = vmul.f32 %v8193, %v8193
  %v8329 = vmul.f32 %v8194, %v8194
  %v8330 = vmul.f32 %v8195, %v8195
  %v8331 = vmul.f32 %v8196, %v8196
  %v8332 = vmul.f32 %v8197, %v8197
  %v8333 = vmul.f32 %v8198, %v8198
  %v8334 = vmul.f32 %v8199, %v8199
  %v8335 = vmul.f32 %v8200, %v8200
  %v8336 = vmul.f32 %v8201, %v8201
  %v8337 = vmul.f32 %v8202, %v8202
  %v8338 = vmul.f32 %v8203, %v8203
  %v8339 = vmul.f32 %v8204, %v8204
  %v8340 = vmul.f32 %v8205, %v8205
  %v8341 = vmul.f32 %v8206, %v8206
  %v8342 = vmul.f32 %v8207, %v8207
  %v8343 = vmul.f32 %v8208, %v8208
  %v8344 = vmul.f32 %v8209, %v8209
  %v8345 = vmul.f32 %v8210, %v8210
  %v8346 = vmul.f32 %v8211, %v8211
  %v8347 = vmul.f32 %v8212, %v8212
  %v8348 = vmul.f32 %v8213, %v8213
  %v8349 = vmul.f32 %v8214, %v8214
  %v8350 = vmul.f32 %v8215, %v8215
  %v8351 = vmul.f32 %v8216, %v8216
  %v8352 = vmul.f32 %v8217, %v8217
  %v8353 = vmul.f32 %v8218, %v8218
  %v8354 = vmul.f32 %v8219, %v8219
  %v8355 = vmul.f32 %v8220, %v8220
  %v8356 = vmul.f32 %v8221, %v8221
  %v8357 = vmul.f32 %v8222, %v8222
  %v8358 = vmul.f32 %v8223, %v8223
  %v8359 = vmul.f32 %v8224, %v8224
  %v8360 = vmul.f32 %v8225, %v8225
  %v8361 = vmul.f32 %v8226, %v8226
  %v8362 = vmul.f32 %v8227, %v8227
  %v8363 = vmul.f32 %v8228, %v8228
  %v8364 = vmul.f32 %v8229, %v8229
  %v8365 = vmul.f32 %v8230, %v8230
  %v8366 = vmul.f32 %v8231, %v8231
  %v8367 = vmul.f32 %v8232, %v8232
  %v8368 = vmul.f32 %v8233, %v8233
  %v8369 = vmul.f32 %v8234, %v8234
  %v8370 = vmul.f32 %v8235, %v8235
  %v8371 = vmul.f32 %v8236, %v8236
  %v8372 = vmul.f32 %v8237, %v8237
  %v8373 = vmul.f32 %v8238, %v8238
  %v8374 = vmul.f32 %v8239, %v8239
  %v8375 = vmul.f32 %v8240, %v8240
  %v8376 = vmul.f32 %v8241, %v8241
  %v8377 = vmul.f32 %v8242, %v8242
  %v8378 = vmul.f32 %v8243, %v8243
  %8379 = vmatprep.subr.mxu0 %v8316
  %8380 = vmatpush1.msra.mxu0 %v8315
  %8381 = vmatprep.subr.mxu0 %v8318
  %8382 = vmatpush1.msra.mxu0 %v8317
  %8383 = vmatprep.subr.mxu0 %v8320
  %8384 = vmatpush1.msra.mxu0 %v8319
  %8385 = vmatprep.subr.mxu0 %v8322
  %8386 = vmatpush1.msra.mxu0 %v8321
  %8387 = vmatprep.subr.mxu0 %v8324
  %8388 = vmatpush1.msra.mxu0 %v8323
  %8389 = vmatprep.subr.mxu0 %v8326
  %8390 = vmatpush1.msra.mxu0 %v8325
  %8391 = vmatprep.subr.mxu0 %v8328
  %8392 = vmatpush1.msra.mxu0 %v8327
  %8393 = vmatprep.subr.mxu0 %v8330
  %8394 = vmatpush1.msra.mxu0 %v8329
  %8395 = vmatprep.subr.mxu0 %v8332
  %8396 = vmatpush1.msra.mxu0 %v8331
  %8397 = vmatprep.subr.mxu0 %v8334
  %8398 = vmatpush1.msra.mxu0 %v8333
  %8399 = vmatprep.subr.mxu0 %v8336
  %8400 = vmatpush1.msra.mxu0 %v8335
  %8401 = vmatprep.subr.mxu0 %v8338
  %8402 = vmatpush1.msra.mxu0 %v8337
  %8403 = vmatprep.subr.mxu0 %v8340
  %8404 = vmatpush1.msra.mxu0 %v8339
  %8405 = vmatprep.subr.mxu0 %v8342
  %8406 = vmatpush1.msra.mxu0 %v8341
  %8407 = vmatprep.subr.mxu0 %v8344
  %8408 = vmatpush1.msra.mxu0 %v8343
  %8409 = vmatprep.subr.mxu0 %v8346
  %8410 = vmatpush1.msra.mxu0 %v8345
  %8411 = vmatprep.subr.mxu0 %v8348
  %8412 = vmatpush1.msra.mxu0 %v8347
  %8413 = vmatprep.subr.mxu0 %v8350
  %8414 = vmatpush1.msra.mxu0 %v8349
  %8415 = vmatprep.subr.mxu0 %v8352
  %8416 = vmatpush1.msra.mxu0 %v8351
  %8417 = vmatprep.subr.mxu0 %v8354
  %8418 = vmatpush1.msra.mxu0 %v8353
  %8419 = vmatprep.subr.mxu0 %v8356
  %8420 = vmatpush1.msra.mxu0 %v8355
  %8421 = vmatprep.subr.mxu0 %v8358
  %8422 = vmatpush1.msra.mxu0 %v8357
  %8423 = vmatprep.subr.mxu0 %v8360
  %8424 = vmatpush1.msra.mxu0 %v8359
  %8425 = vmatprep.subr.mxu0 %v8362
  %8426 = vmatpush1.msra.mxu0 %v8361
  %8427 = vmatprep.subr.mxu0 %v8364
  %8428 = vmatpush1.msra.mxu0 %v8363
  %8429 = vmatprep.subr.mxu0 %v8366
  %8430 = vmatpush1.msra.mxu0 %v8365
  %8431 = vmatprep.subr.mxu0 %v8368
  %8432 = vmatpush1.msra.mxu0 %v8367
  %8433 = vmatprep.subr.mxu0 %v8370
  %8434 = vmatpush1.msra.mxu0 %v8369
  %8435 = vmatprep.subr.mxu0 %v8372
  %8436 = vmatpush1.msra.mxu0 %v8371
  %8437 = vmatprep.subr.mxu0 %v8374
  %8438 = vmatpush1.msra.mxu0 %v8373
  %8439 = vmatprep.subr.mxu0 %v8376
  %8440 = vmatpush1.msra.mxu0 %v8375
  %8441 = vmatprep.subr.mxu0 %v8378
  %8442 = vmatpush1.msra.mxu0 %v8377
  %8443 = vmatprep.mubr.f32.mxu0 1.0
  %8444 = vmatmul.mubr.f32.gmra.mrb[0].mxu0 1.0
  %v8445 = vpop.f32.mrb[0].mxu0
  %v8446 = vadd.f32 0.0, %v8445
  %v8447 = vpop.f32.mrb[0].mxu0
  %v8448 = vadd.f32 0.0, %v8447
  %8449 = vdwg.mxu0
  %v8450 = vmul.f32 %v8311, 0.00390625
  %v8451 = vmul.f32 %v8313, 0.00390625
  %v8452 = vmul.f32 %v8446, 0.00390625
  %v8453 = vmul.f32 %v8448, 0.00390625
  %v8454 = vmul.f32 %v8450, %v8450
  %v8455 = vmul.f32 %v8451, %v8451
  %v8456 = vsub.f32 %v8452, %v8454
  %v8457 = vsub.f32 %v8453, %v8455
  %v8458 = vmax.f32 %v8456, 0.0
  %v8459 = vmax.f32 %v8457, 0.0
  %v8460 = vld [vmem:[%s55] sm:$0x3]
  %v8461 = vadd.f32 %v8458, 1e-05
  %v8462 = vadd.f32 %v8459, 1e-05
  %v8463 = vrsqrt.pop %v8461
  %v8464 = vrsqrt.pop %v8462
  %v8467 = vcombine.low %v8463, %v8464
  %v8469 = vunpack.c.l.s4 1966171168
  %v8470 = vunpack.c.0.s8 %v8469
  %v8471 = vlaneseq
  %v8472 = vshrl.u32 %v8471, 7
  %v8473 = vsub.s32 %v8470, %v8472
  %v8474 = vrot.slane %v8467, %v8473
  %v8476 = vunpack.c.l.s4 1966171168
  %v8477 = vunpack.c.0.s8 %v8476
  %v8478 = vlaneseq
  %v8479 = vshrl.u32 %v8478, 7
  %v8480 = vsub.s32 %v8477, %v8479
  %v8481 = vrot.slane %v8474, %v8480
  %v8483 = vmul.f32 %v8460, %v8481
  %v8484 = vld [vmem:[%s57] sm:$0x3]
  %v8486 = vlaneseq
  %v8487 = vshrl.u32 %v8486, 7
  %v8488 = vsub.s32 0, %v8487
  %v8489 = vrot.slane %v8483, %v8488
  %v8490 = vlaneseq
  %v8491 = vshrl.u32 %v8490, 7
  %v8492 = vsub.s32 1, %v8491
  %v8493 = vrot.slane %v8483, %v8492
  %v8496 = vmul.f32 %v8450, %v8489
  %v8497 = vmul.f32 %v8451, %v8493
  %v8500 = vcombine.low %v8496, %v8497
  %v8502 = vunpack.c.l.s4 1966171168
  %v8503 = vunpack.c.0.s8 %v8502
  %v8504 = vlaneseq
  %v8505 = vshrl.u32 %v8504, 7
  %v8506 = vsub.s32 %v8503, %v8505
  %v8507 = vrot.slane %v8500, %v8506
  %v8509 = vunpack.c.l.s4 1966171168
  %v8510 = vunpack.c.0.s8 %v8509
  %v8511 = vlaneseq
  %v8512 = vshrl.u32 %v8511, 7
  %v8513 = vsub.s32 %v8510, %v8512
  %v8514 = vrot.slane %v8507, %v8513
  %v8516 = vsub.f32 %v8484, %v8514
  %v8517 = vmul.f32 %v8180, %v8489
  %v8518 = vmul.f32 %v8181, %v8493
  %v8519 = vmul.f32 %v8182, %v8489
  %v8520 = vmul.f32 %v8183, %v8493
  %v8521 = vmul.f32 %v8184, %v8489
  %v8522 = vmul.f32 %v8185, %v8493
  %v8523 = vmul.f32 %v8186, %v8489
  %v8524 = vmul.f32 %v8187, %v8493
  %v8525 = vmul.f32 %v8188, %v8489
  %v8526 = vmul.f32 %v8189, %v8493
  %v8527 = vmul.f32 %v8190, %v8489
  %v8528 = vmul.f32 %v8191, %v8493
  %v8529 = vmul.f32 %v8192, %v8489
  %v8530 = vmul.f32 %v8193, %v8493
  %v8531 = vmul.f32 %v8194, %v8489
  %v8532 = vmul.f32 %v8195, %v8493
  %v8533 = vmul.f32 %v8196, %v8489
  %v8534 = vmul.f32 %v8197, %v8493
  %v8535 = vmul.f32 %v8198, %v8489
  %v8536 = vmul.f32 %v8199, %v8493
  %v8537 = vmul.f32 %v8200, %v8489
  %v8538 = vmul.f32 %v8201, %v8493
  %v8539 = vmul.f32 %v8202, %v8489
  %v8540 = vmul.f32 %v8203, %v8493
  %v8541 = vmul.f32 %v8204, %v8489
  %v8542 = vmul.f32 %v8205, %v8493
  %v8543 = vmul.f32 %v8206, %v8489
  %v8544 = vmul.f32 %v8207, %v8493
  %v8545 = vmul.f32 %v8208, %v8489
  %v8546 = vmul.f32 %v8209, %v8493
  %v8547 = vmul.f32 %v8210, %v8489
  %v8548 = vmul.f32 %v8211, %v8493
  %v8549 = vmul.f32 %v8212, %v8489
  %v8550 = vmul.f32 %v8213, %v8493
  %v8551 = vmul.f32 %v8214, %v8489
  %v8552 = vmul.f32 %v8215, %v8493
  %v8553 = vmul.f32 %v8216, %v8489
  %v8554 = vmul.f32 %v8217, %v8493
  %v8555 = vmul.f32 %v8218, %v8489
  %v8556 = vmul.f32 %v8219, %v8493
  %v8557 = vmul.f32 %v8220, %v8489
  %v8558 = vmul.f32 %v8221, %v8493
  %v8559 = vmul.f32 %v8222, %v8489
  %v8560 = vmul.f32 %v8223, %v8493
  %v8561 = vmul.f32 %v8224, %v8489
  %v8562 = vmul.f32 %v8225, %v8493
  %v8563 = vmul.f32 %v8226, %v8489
  %v8564 = vmul.f32 %v8227, %v8493
  %v8565 = vmul.f32 %v8228, %v8489
  %v8566 = vmul.f32 %v8229, %v8493
  %v8567 = vmul.f32 %v8230, %v8489
  %v8568 = vmul.f32 %v8231, %v8493
  %v8569 = vmul.f32 %v8232, %v8489
  %v8570 = vmul.f32 %v8233, %v8493
  %v8571 = vmul.f32 %v8234, %v8489
  %v8572 = vmul.f32 %v8235, %v8493
  %v8573 = vmul.f32 %v8236, %v8489
  %v8574 = vmul.f32 %v8237, %v8493
  %v8575 = vmul.f32 %v8238, %v8489
  %v8576 = vmul.f32 %v8239, %v8493
  %v8577 = vmul.f32 %v8240, %v8489
  %v8578 = vmul.f32 %v8241, %v8493
  %v8579 = vmul.f32 %v8242, %v8489
  %v8580 = vmul.f32 %v8243, %v8493
  %v8582 = vlaneseq
  %v8583 = vshrl.u32 %v8582, 7
  %v8584 = vsub.s32 0, %v8583
  %v8585 = vrot.slane %v8516, %v8584
  %v8586 = vlaneseq
  %v8587 = vshrl.u32 %v8586, 7
  %v8588 = vsub.s32 1, %v8587
  %v8589 = vrot.slane %v8516, %v8588
  %v8592 = vadd.f32 %v8517, %v8585
  %v8593 = vadd.f32 %v8518, %v8589
  %v8594 = vadd.f32 %v8519, %v8585
  %v8595 = vadd.f32 %v8520, %v8589
  %v8596 = vadd.f32 %v8521, %v8585
  %v8597 = vadd.f32 %v8522, %v8589
  %v8598 = vadd.f32 %v8523, %v8585
  %v8599 = vadd.f32 %v8524, %v8589
  %v8600 = vadd.f32 %v8525, %v8585
  %v8601 = vadd.f32 %v8526, %v8589
  %v8602 = vadd.f32 %v8527, %v8585
  %v8603 = vadd.f32 %v8528, %v8589
  %v8604 = vadd.f32 %v8529, %v8585
  %v8605 = vadd.f32 %v8530, %v8589
  %v8606 = vadd.f32 %v8531, %v8585
  %v8607 = vadd.f32 %v8532, %v8589
  %v8608 = vadd.f32 %v8533, %v8585
  %v8609 = vadd.f32 %v8534, %v8589
  %v8610 = vadd.f32 %v8535, %v8585
  %v8611 = vadd.f32 %v8536, %v8589
  %v8612 = vadd.f32 %v8537, %v8585
  %v8613 = vadd.f32 %v8538, %v8589
  %v8614 = vadd.f32 %v8539, %v8585
  %v8615 = vadd.f32 %v8540, %v8589
  %v8616 = vadd.f32 %v8541, %v8585
  %v8617 = vadd.f32 %v8542, %v8589
  %v8618 = vadd.f32 %v8543, %v8585
  %v8619 = vadd.f32 %v8544, %v8589
  %v8620 = vadd.f32 %v8545, %v8585
  %v8621 = vadd.f32 %v8546, %v8589
  %v8622 = vadd.f32 %v8547, %v8585
  %v8623 = vadd.f32 %v8548, %v8589
  %v8624 = vadd.f32 %v8549, %v8585
  %v8625 = vadd.f32 %v8550, %v8589
  %v8626 = vadd.f32 %v8551, %v8585
  %v8627 = vadd.f32 %v8552, %v8589
  %v8628 = vadd.f32 %v8553, %v8585
  %v8629 = vadd.f32 %v8554, %v8589
  %v8630 = vadd.f32 %v8555, %v8585
  %v8631 = vadd.f32 %v8556, %v8589
  %v8632 = vadd.f32 %v8557, %v8585
  %v8633 = vadd.f32 %v8558, %v8589
  %v8634 = vadd.f32 %v8559, %v8585
  %v8635 = vadd.f32 %v8560, %v8589
  %v8636 = vadd.f32 %v8561, %v8585
  %v8637 = vadd.f32 %v8562, %v8589
  %v8638 = vadd.f32 %v8563, %v8585
  %v8639 = vadd.f32 %v8564, %v8589
  %v8640 = vadd.f32 %v8565, %v8585
  %v8641 = vadd.f32 %v8566, %v8589
  %v8642 = vadd.f32 %v8567, %v8585
  %v8643 = vadd.f32 %v8568, %v8589
  %v8644 = vadd.f32 %v8569, %v8585
  %v8645 = vadd.f32 %v8570, %v8589
  %v8646 = vadd.f32 %v8571, %v8585
  %v8647 = vadd.f32 %v8572, %v8589
  %v8648 = vadd.f32 %v8573, %v8585
  %v8649 = vadd.f32 %v8574, %v8589
  %v8650 = vadd.f32 %v8575, %v8585
  %v8651 = vadd.f32 %v8576, %v8589
  %v8652 = vadd.f32 %v8577, %v8585
  %v8653 = vadd.f32 %v8578, %v8589
  %v8654 = vadd.f32 %v8579, %v8585
  %v8655 = vadd.f32 %v8580, %v8589
  %v8656 = vadd.f32 %v8592, %v4963
  %v8657 = vadd.f32 %v8593, %v4964
  %v8658 = vadd.f32 %v8594, %v4967
  %v8659 = vadd.f32 %v8595, %v4968
  %v8660 = vadd.f32 %v8596, %v4971
  %v8661 = vadd.f32 %v8597, %v4972
  %v8662 = vadd.f32 %v8598, %v4975
  %v8663 = vadd.f32 %v8599, %v4976
  %v8664 = vadd.f32 %v8600, %v4979
  %v8665 = vadd.f32 %v8601, %v4980
  %v8666 = vadd.f32 %v8602, %v4983
  %v8667 = vadd.f32 %v8603, %v4984
  %v8668 = vadd.f32 %v8604, %v4987
  %v8669 = vadd.f32 %v8605, %v4988
  %v8670 = vadd.f32 %v8606, %v4991
  %v8671 = vadd.f32 %v8607, %v4992
  %v8672 = vadd.f32 %v8608, %v4995
  %v8673 = vadd.f32 %v8609, %v4996
  %v8674 = vadd.f32 %v8610, %v4999
  %v8675 = vadd.f32 %v8611, %v5000
  %v8676 = vadd.f32 %v8612, %v5003
  %v8677 = vadd.f32 %v8613, %v5004
  %v8678 = vadd.f32 %v8614, %v5007
  %v8679 = vadd.f32 %v8615, %v5008
  %v8680 = vadd.f32 %v8616, %v5011
  %v8681 = vadd.f32 %v8617, %v5012
  %v8682 = vadd.f32 %v8618, %v5015
  %v8683 = vadd.f32 %v8619, %v5016
  %v8684 = vadd.f32 %v8620, %v5019
  %v8685 = vadd.f32 %v8621, %v5020
  %v8686 = vadd.f32 %v8622, %v5023
  %v8687 = vadd.f32 %v8623, %v5024
  %v8688 = vadd.f32 %v8624, %v5027
  %v8689 = vadd.f32 %v8625, %v5028
  %v8690 = vadd.f32 %v8626, %v5031
  %v8691 = vadd.f32 %v8627, %v5032
  %v8692 = vadd.f32 %v8628, %v5035
  %v8693 = vadd.f32 %v8629, %v5036
  %v8694 = vadd.f32 %v8630, %v5039
  %v8695 = vadd.f32 %v8631, %v5040
  %v8696 = vadd.f32 %v8632, %v5043
  %v8697 = vadd.f32 %v8633, %v5044
  %v8698 = vadd.f32 %v8634, %v5047
  %v8699 = vadd.f32 %v8635, %v5048
  %v8700 = vadd.f32 %v8636, %v5051
  %v8701 = vadd.f32 %v8637, %v5052
  %v8702 = vadd.f32 %v8638, %v5055
  %v8703 = vadd.f32 %v8639, %v5056
  %v8704 = vadd.f32 %v8640, %v5059
  %v8705 = vadd.f32 %v8641, %v5060
  %v8706 = vadd.f32 %v8642, %v5063
  %v8707 = vadd.f32 %v8643, %v5064
  %v8708 = vadd.f32 %v8644, %v5067
  %v8709 = vadd.f32 %v8645, %v5068
  %v8710 = vadd.f32 %v8646, %v5071
  %v8711 = vadd.f32 %v8647, %v5072
  %v8712 = vadd.f32 %v8648, %v5075
  %v8713 = vadd.f32 %v8649, %v5076
  %v8714 = vadd.f32 %v8650, %v5079
  %v8715 = vadd.f32 %v8651, %v5080
  %v8716 = vadd.f32 %v8652, %v5083
  %v8717 = vadd.f32 %v8653, %v5084
  %v8718 = vadd.f32 %v8654, %v5087
  %v8719 = vadd.f32 %v8655, %v5088
  %v8720 = vmax.f32 %v8656, 0.0
  %v8721 = vmax.f32 %v8657, 0.0
  %v8722 = vmax.f32 %v8658, 0.0
  %v8723 = vmax.f32 %v8659, 0.0
  %v8724 = vmax.f32 %v8660, 0.0
  %v8725 = vmax.f32 %v8661, 0.0
  %v8726 = vmax.f32 %v8662, 0.0
  %v8727 = vmax.f32 %v8663, 0.0
  %v8728 = vmax.f32 %v8664, 0.0
  %v8729 = vmax.f32 %v8665, 0.0
  %v8730 = vmax.f32 %v8666, 0.0
  %v8731 = vmax.f32 %v8667, 0.0
  %v8732 = vmax.f32 %v8668, 0.0
  %v8733 = vmax.f32 %v8669, 0.0
  %v8734 = vmax.f32 %v8670, 0.0
  %v8735 = vmax.f32 %v8671, 0.0
  %v8736 = vmax.f32 %v8672, 0.0
  %v8737 = vmax.f32 %v8673, 0.0
  %v8738 = vmax.f32 %v8674, 0.0
  %v8739 = vmax.f32 %v8675, 0.0
  %v8740 = vmax.f32 %v8676, 0.0
  %v8741 = vmax.f32 %v8677, 0.0
  %v8742 = vmax.f32 %v8678, 0.0
  %v8743 = vmax.f32 %v8679, 0.0
  %v8744 = vmax.f32 %v8680, 0.0
  %v8745 = vmax.f32 %v8681, 0.0
  %v8746 = vmax.f32 %v8682, 0.0
  %v8747 = vmax.f32 %v8683, 0.0
  %v8748 = vmax.f32 %v8684, 0.0
  %v8749 = vmax.f32 %v8685, 0.0
  %v8750 = vmax.f32 %v8686, 0.0
  %v8751 = vmax.f32 %v8687, 0.0
  %v8752 = vmax.f32 %v8688, 0.0
  %v8753 = vmax.f32 %v8689, 0.0
  %v8754 = vmax.f32 %v8690, 0.0
  %v8755 = vmax.f32 %v8691, 0.0
  %v8756 = vmax.f32 %v8692, 0.0
  %v8757 = vmax.f32 %v8693, 0.0
  %v8758 = vmax.f32 %v8694, 0.0
  %v8759 = vmax.f32 %v8695, 0.0
  %v8760 = vmax.f32 %v8696, 0.0
  %v8761 = vmax.f32 %v8697, 0.0
  %v8762 = vmax.f32 %v8698, 0.0
  %v8763 = vmax.f32 %v8699, 0.0
  %v8764 = vmax.f32 %v8700, 0.0
  %v8765 = vmax.f32 %v8701, 0.0
  %v8766 = vmax.f32 %v8702, 0.0
  %v8767 = vmax.f32 %v8703, 0.0
  %v8768 = vmax.f32 %v8704, 0.0
  %v8769 = vmax.f32 %v8705, 0.0
  %v8770 = vmax.f32 %v8706, 0.0
  %v8771 = vmax.f32 %v8707, 0.0
  %v8772 = vmax.f32 %v8708, 0.0
  %v8773 = vmax.f32 %v8709, 0.0
  %v8774 = vmax.f32 %v8710, 0.0
  %v8775 = vmax.f32 %v8711, 0.0
  %v8776 = vmax.f32 %v8712, 0.0
  %v8777 = vmax.f32 %v8713, 0.0
  %v8778 = vmax.f32 %v8714, 0.0
  %v8779 = vmax.f32 %v8715, 0.0
  %v8780 = vmax.f32 %v8716, 0.0
  %v8781 = vmax.f32 %v8717, 0.0
  %v8782 = vmax.f32 %v8718, 0.0
  %v8783 = vmax.f32 %v8719, 0.0
  %v8784 = vpack.c.bf16 %v8722, %v8720
  %v8785 = vpack.c.bf16 %v8726, %v8724
  %v8786 = vpack.c.bf16 %v8730, %v8728
  %v8787 = vpack.c.bf16 %v8734, %v8732
  %v8788 = vpack.c.bf16 %v8738, %v8736
  %v8789 = vpack.c.bf16 %v8742, %v8740
  %v8790 = vpack.c.bf16 %v8746, %v8744
  %v8791 = vpack.c.bf16 %v8750, %v8748
  %v8792 = vpack.c.bf16 %v8754, %v8752
  %v8793 = vpack.c.bf16 %v8758, %v8756
  %v8794 = vpack.c.bf16 %v8762, %v8760
  %v8795 = vpack.c.bf16 %v8766, %v8764
  %v8796 = vpack.c.bf16 %v8770, %v8768
  %v8797 = vpack.c.bf16 %v8774, %v8772
  %v8798 = vpack.c.bf16 %v8778, %v8776
  %v8799 = vpack.c.bf16 %v8782, %v8780
  %v8800 = vld [vmem:[%s59] sm:$0xff]
  %v8801 = vld [vmem:[%s59 + $0x8] sm:$0xff]
  %v8802 = vld [vmem:[%s59 + $0x10] sm:$0xff]
  %v8803 = vld [vmem:[%s59 + $0x18] sm:$0xff]
  %v8804 = vld [vmem:[%s59 + $0x20] sm:$0xff]
  %v8805 = vld [vmem:[%s59 + $0x28] sm:$0xff]
  %v8806 = vld [vmem:[%s59 + $0x30] sm:$0xff]
  %v8807 = vld [vmem:[%s59 + $0x38] sm:$0xff]
  %v8808 = vld [vmem:[%s59 + $0x40] sm:$0xff]
  %v8809 = vld [vmem:[%s59 + $0x48] sm:$0xff]
  %v8810 = vld [vmem:[%s59 + $0x50] sm:$0xff]
  %v8811 = vld [vmem:[%s59 + $0x58] sm:$0xff]
  %v8812 = vld [vmem:[%s59 + $0x60] sm:$0xff]
  %v8813 = vld [vmem:[%s59 + $0x68] sm:$0xff]
  %v8814 = vld [vmem:[%s59 + $0x70] sm:$0xff]
  %v8815 = vld [vmem:[%s59 + $0x78] sm:$0xff]
  %v8816 = vld [vmem:[%s59 + $0x80] sm:$0xff]
  %v8817 = vld [vmem:[%s59 + $0x88] sm:$0xff]
  %v8818 = vld [vmem:[%s59 + $0x90] sm:$0xff]
  %v8819 = vld [vmem:[%s59 + $0x98] sm:$0xff]
  %v8820 = vld [vmem:[%s59 + $0xa0] sm:$0xff]
  %v8821 = vld [vmem:[%s59 + $0xa8] sm:$0xff]
  %v8822 = vld [vmem:[%s59 + $0xb0] sm:$0xff]
  %v8823 = vld [vmem:[%s59 + $0xb8] sm:$0xff]
  %v8824 = vld [vmem:[%s59 + $0xc0] sm:$0xff]
  %v8825 = vld [vmem:[%s59 + $0xc8] sm:$0xff]
  %v8826 = vld [vmem:[%s59 + $0xd0] sm:$0xff]
  %v8827 = vld [vmem:[%s59 + $0xd8] sm:$0xff]
  %v8828 = vld [vmem:[%s59 + $0xe0] sm:$0xff]
  %v8829 = vld [vmem:[%s59 + $0xe8] sm:$0xff]
  %v8830 = vld [vmem:[%s59 + $0xf0] sm:$0xff]
  %v8831 = vld [vmem:[%s59 + $0xf8] sm:$0xff]
  %v8864 = vunpack.c.l.b16 %v8800
  %v8865 = vunpack.c.h.b16 %v8800
  %v8866 = vunpack.c.l.b16 %v8801
  %v8867 = vunpack.c.h.b16 %v8801
  %v8868 = vunpack.c.l.b16 %v8802
  %v8869 = vunpack.c.h.b16 %v8802
  %v8870 = vunpack.c.l.b16 %v8803
  %v8871 = vunpack.c.h.b16 %v8803
  %v8872 = vunpack.c.l.b16 %v8804
  %v8873 = vunpack.c.h.b16 %v8804
  %v8874 = vunpack.c.l.b16 %v8805
  %v8875 = vunpack.c.h.b16 %v8805
  %v8876 = vunpack.c.l.b16 %v8806
  %v8877 = vunpack.c.h.b16 %v8806
  %v8878 = vunpack.c.l.b16 %v8807
  %v8879 = vunpack.c.h.b16 %v8807
  %v8880 = vunpack.c.l.b16 %v8808
  %v8881 = vunpack.c.h.b16 %v8808
  %v8882 = vunpack.c.l.b16 %v8809
  %v8883 = vunpack.c.h.b16 %v8809
  %v8884 = vunpack.c.l.b16 %v8810
  %v8885 = vunpack.c.h.b16 %v8810
  %v8886 = vunpack.c.l.b16 %v8811
  %v8887 = vunpack.c.h.b16 %v8811
  %v8888 = vunpack.c.l.b16 %v8812
  %v8889 = vunpack.c.h.b16 %v8812
  %v8890 = vunpack.c.l.b16 %v8813
  %v8891 = vunpack.c.h.b16 %v8813
  %v8892 = vunpack.c.l.b16 %v8814
  %v8893 = vunpack.c.h.b16 %v8814
  %v8894 = vunpack.c.l.b16 %v8815
  %v8895 = vunpack.c.h.b16 %v8815
  %v8896 = vunpack.c.l.b16 %v8816
  %v8897 = vunpack.c.h.b16 %v8816
  %v8898 = vunpack.c.l.b16 %v8817
  %v8899 = vunpack.c.h.b16 %v8817
  %v8900 = vunpack.c.l.b16 %v8818
  %v8901 = vunpack.c.h.b16 %v8818
  %v8902 = vunpack.c.l.b16 %v8819
  %v8903 = vunpack.c.h.b16 %v8819
  %v8904 = vunpack.c.l.b16 %v8820
  %v8905 = vunpack.c.h.b16 %v8820
  %v8906 = vunpack.c.l.b16 %v8821
  %v8907 = vunpack.c.h.b16 %v8821
  %v8908 = vunpack.c.l.b16 %v8822
  %v8909 = vunpack.c.h.b16 %v8822
  %v8910 = vunpack.c.l.b16 %v8823
  %v8911 = vunpack.c.h.b16 %v8823
  %v8912 = vunpack.c.l.b16 %v8824
  %v8913 = vunpack.c.h.b16 %v8824
  %v8914 = vunpack.c.l.b16 %v8825
  %v8915 = vunpack.c.h.b16 %v8825
  %v8916 = vunpack.c.l.b16 %v8826
  %v8917 = vunpack.c.h.b16 %v8826
  %v8918 = vunpack.c.l.b16 %v8827
  %v8919 = vunpack.c.h.b16 %v8827
  %v8920 = vunpack.c.l.b16 %v8828
  %v8921 = vunpack.c.h.b16 %v8828
  %v8922 = vunpack.c.l.b16 %v8829
  %v8923 = vunpack.c.h.b16 %v8829
  %v8924 = vunpack.c.l.b16 %v8830
  %v8925 = vunpack.c.h.b16 %v8830
  %v8926 = vunpack.c.l.b16 %v8831
  %v8927 = vunpack.c.h.b16 %v8831
  %v8928 = vpack.c.b16 %v8868, %v8864
  %v8929 = vpack.c.b16 %v8869, %v8865
  %v8930 = vpack.c.b16 %v8870, %v8866
  %v8931 = vpack.c.b16 %v8871, %v8867
  %v8932 = vpack.c.b16 %v8876, %v8872
  %v8933 = vpack.c.b16 %v8877, %v8873
  %v8934 = vpack.c.b16 %v8878, %v8874
  %v8935 = vpack.c.b16 %v8879, %v8875
  %v8936 = vpack.c.b16 %v8884, %v8880
  %v8937 = vpack.c.b16 %v8885, %v8881
  %v8938 = vpack.c.b16 %v8886, %v8882
  %v8939 = vpack.c.b16 %v8887, %v8883
  %v8940 = vpack.c.b16 %v8892, %v8888
  %v8941 = vpack.c.b16 %v8893, %v8889
  %v8942 = vpack.c.b16 %v8894, %v8890
  %v8943 = vpack.c.b16 %v8895, %v8891
  %v8944 = vpack.c.b16 %v8900, %v8896
  %v8945 = vpack.c.b16 %v8901, %v8897
  %v8946 = vpack.c.b16 %v8902, %v8898
  %v8947 = vpack.c.b16 %v8903, %v8899
  %v8948 = vpack.c.b16 %v8908, %v8904
  %v8949 = vpack.c.b16 %v8909, %v8905
  %v8950 = vpack.c.b16 %v8910, %v8906
  %v8951 = vpack.c.b16 %v8911, %v8907
  %v8952 = vpack.c.b16 %v8916, %v8912
  %v8953 = vpack.c.b16 %v8917, %v8913
  %v8954 = vpack.c.b16 %v8918, %v8914
  %v8955 = vpack.c.b16 %v8919, %v8915
  %v8956 = vpack.c.b16 %v8924, %v8920
  %v8957 = vpack.c.b16 %v8925, %v8921
  %v8958 = vpack.c.b16 %v8926, %v8922
  %v8959 = vpack.c.b16 %v8927, %v8923
  %8992 = vmatprep.subr.bf16.mxu0 %v8929
  %8993 = vmatpush1.bf16.msra.mxu0 %v8928
  %8994 = vmatprep.subr.bf16.mxu0 %v8933
  %8995 = vmatpush1.bf16.msra.mxu0 %v8932
  %8996 = vmatprep.subr.bf16.mxu0 %v8937
  %8997 = vmatpush1.bf16.msra.mxu0 %v8936
  %8998 = vmatprep.subr.bf16.mxu0 %v8941
  %8999 = vmatpush1.bf16.msra.mxu0 %v8940
  %9000 = vmatprep.subr.bf16.mxu0 %v8945
  %9001 = vmatpush1.bf16.msra.mxu0 %v8944
  %9002 = vmatprep.subr.bf16.mxu0 %v8949
  %9003 = vmatpush1.bf16.msra.mxu0 %v8948
  %9004 = vmatprep.subr.bf16.mxu0 %v8953
  %9005 = vmatpush1.bf16.msra.mxu0 %v8952
  %9006 = vmatprep.subr.bf16.mxu0 %v8957
  %9007 = vmatpush1.bf16.msra.mxu0 %v8956
  %9008 = vmatprep.subr.bf16.mxu0 0
  %9009 = vmatpush1.bf16.msra.mxu0 0
  %9010 = vmatprep.subr.bf16.mxu0 0
  %9011 = vmatpush1.bf16.msra.mxu0 0
  %9012 = vmatprep.subr.bf16.mxu0 0
  %9013 = vmatpush1.bf16.msra.mxu0 0
  %9014 = vmatprep.subr.bf16.mxu0 0
  %9015 = vmatpush1.bf16.msra.mxu0 0
  %9016 = vmatprep.subr.bf16.mxu0 0
  %9017 = vmatpush1.bf16.msra.mxu0 0
  %9018 = vmatprep.subr.bf16.mxu0 0
  %9019 = vmatpush1.bf16.msra.mxu0 0
  %9020 = vmatprep.subr.bf16.mxu0 0
  %9021 = vmatpush1.bf16.msra.mxu0 0
  %9022 = vmatprep.subr.bf16.mxu0 0
  %9023 = vmatpush1.bf16.msra.mxu0 0
  %9024 = vmatprep.mubr.bf16.mxu0 0
  %9025 = vmatmul.mubr.bf16.gmra.mrb[0].mxu0 %v8784
  %v9026 = vpop.f32.mrb[0].mxu0
  %v9027 = vadd.f32 0.0, %v9026
  %v9028 = vpop.f32.mrb[0].mxu0
  %v9029 = vadd.f32 0.0, %v9028
  %v9030 = vpop.f32.mrb[0].mxu0
  %v9031 = vadd.f32 0.0, %v9030
  %v9032 = vpop.f32.mrb[0].mxu0
  %v9033 = vadd.f32 0.0, %v9032
  %9034 = vmatprep.mubr.bf16.mxu0 0
  %9035 = vmatmul.mubr.bf16.gmra.mrb[0].mxu0 %v8785
  %v9036 = vpop.f32.mrb[0].mxu0
  %v9037 = vadd.f32 0.0, %v9036
  %v9038 = vpop.f32.mrb[0].mxu0
  %v9039 = vadd.f32 0.0, %v9038
  %v9040 = vpop.f32.mrb[0].mxu0
  %v9041 = vadd.f32 0.0, %v9040
  %v9042 = vpop.f32.mrb[0].mxu0
  %v9043 = vadd.f32 0.0, %v9042
  %9044 = vmatprep.mubr.bf16.mxu0 0
  %9045 = vmatmul.mubr.bf16.gmra.mrb[0].mxu0 %v8786
  %v9046 = vpop.f32.mrb[0].mxu0
  %v9047 = vadd.f32 0.0, %v9046
  %v9048 = vpop.f32.mrb[0].mxu0
  %v9049 = vadd.f32 0.0, %v9048
  %v9050 = vpop.f32.mrb[0].mxu0
  %v9051 = vadd.f32 0.0, %v9050
  %v9052 = vpop.f32.mrb[0].mxu0
  %v9053 = vadd.f32 0.0, %v9052
  %9054 = vmatprep.mubr.bf16.mxu0 0
  %9055 = vmatmul.mubr.bf16.gmra.mrb[0].mxu0 %v8787
  %v9056 = vpop.f32.mrb[0].mxu0
  %v9057 = vadd.f32 0.0, %v9056
  %v9058 = vpop.f32.mrb[0].mxu0
  %v9059 = vadd.f32 0.0, %v9058
  %v9060 = vpop.f32.mrb[0].mxu0
  %v9061 = vadd.f32 0.0, %v9060
  %v9062 = vpop.f32.mrb[0].mxu0
  %v9063 = vadd.f32 0.0, %v9062
  %9064 = vmatprep.mubr.bf16.mxu0 0
  %9065 = vmatmul.mubr.bf16.gmra.mrb[0].mxu0 %v8788
  %v9066 = vpop.f32.mrb[0].mxu0
  %v9067 = vadd.f32 0.0, %v9066
  %v9068 = vpop.f32.mrb[0].mxu0
  %v9069 = vadd.f32 0.0, %v9068
  %v9070 = vpop.f32.mrb[0].mxu0
  %v9071 = vadd.f32 0.0, %v9070
  %v9072 = vpop.f32.mrb[0].mxu0
  %v9073 = vadd.f32 0.0, %v9072
  %9074 = vmatprep.mubr.bf16.mxu0 0
  %9075 = vmatmul.mubr.bf16.gmra.mrb[0].mxu0 %v8789
  %v9076 = vpop.f32.mrb[0].mxu0
  %v9077 = vadd.f32 0.0, %v9076
  %v9078 = vpop.f32.mrb[0].mxu0
  %v9079 = vadd.f32 0.0, %v9078
  %v9080 = vpop.f32.mrb[0].mxu0
  %v9081 = vadd.f32 0.0, %v9080
  %v9082 = vpop.f32.mrb[0].mxu0
  %v9083 = vadd.f32 0.0, %v9082
  %9084 = vmatprep.mubr.bf16.mxu0 0
  %9085 = vmatmul.mubr.bf16.gmra.mrb[0].mxu0 %v8790
  %v9086 = vpop.f32.mrb[0].mxu0
  %v9087 = vadd.f32 0.0, %v9086
  %v9088 = vpop.f32.mrb[0].mxu0
  %v9089 = vadd.f32 0.0, %v9088
  %v9090 = vpop.f32.mrb[0].mxu0
  %v9091 = vadd.f32 0.0, %v9090
  %v9092 = vpop.f32.mrb[0].mxu0
  %v9093 = vadd.f32 0.0, %v9092
  %9094 = vmatprep.mubr.bf16.mxu0 0
  %9095 = vmatmul.mubr.bf16.gmra.mrb[0].mxu0 %v8791
  %v9096 = vpop.f32.mrb[0].mxu0
  %v9097 = vadd.f32 0.0, %v9096
  %v9098 = vpop.f32.mrb[0].mxu0
  %v9099 = vadd.f32 0.0, %v9098
  %v9100 = vpop.f32.mrb[0].mxu0
  %v9101 = vadd.f32 0.0, %v9100
  %v9102 = vpop.f32.mrb[0].mxu0
  %v9103 = vadd.f32 0.0, %v9102
  %9104 = vmatprep.mubr.bf16.mxu0 0
  %9105 = vmatmul.mubr.bf16.gmra.mrb[0].mxu0 %v8792
  %v9106 = vpop.f32.mrb[0].mxu0
  %v9107 = vadd.f32 0.0, %v9106
  %v9108 = vpop.f32.mrb[0].mxu0
  %v9109 = vadd.f32 0.0, %v9108
  %v9110 = vpop.f32.mrb[0].mxu0
  %v9111 = vadd.f32 0.0, %v9110
  %v9112 = vpop.f32.mrb[0].mxu0
  %v9113 = vadd.f32 0.0, %v9112
  %9114 = vmatprep.mubr.bf16.mxu0 0
  %9115 = vmatmul.mubr.bf16.gmra.mrb[0].mxu0 %v8793
  %v9116 = vpop.f32.mrb[0].mxu0
  %v9117 = vadd.f32 0.0, %v9116
  %v9118 = vpop.f32.mrb[0].mxu0
  %v9119 = vadd.f32 0.0, %v9118
  %v9120 = vpop.f32.mrb[0].mxu0
  %v9121 = vadd.f32 0.0, %v9120
  %v9122 = vpop.f32.mrb[0].mxu0
  %v9123 = vadd.f32 0.0, %v9122
  %9124 = vmatprep.mubr.bf16.mxu0 0
  %9125 = vmatmul.mubr.bf16.gmra.mrb[0].mxu0 %v8794
  %v9126 = vpop.f32.mrb[0].mxu0
  %v9127 = vadd.f32 0.0, %v9126
  %v9128 = vpop.f32.mrb[0].mxu0
  %v9129 = vadd.f32 0.0, %v9128
  %v9130 = vpop.f32.mrb[0].mxu0
  %v9131 = vadd.f32 0.0, %v9130
  %v9132 = vpop.f32.mrb[0].mxu0
  %v9133 = vadd.f32 0.0, %v9132
  %9134 = vmatprep.mubr.bf16.mxu0 0
  %9135 = vmatmul.mubr.bf16.gmra.mrb[0].mxu0 %v8795
  %v9136 = vpop.f32.mrb[0].mxu0
  %v9137 = vadd.f32 0.0, %v9136
  %v9138 = vpop.f32.mrb[0].mxu0
  %v9139 = vadd.f32 0.0, %v9138
  %v9140 = vpop.f32.mrb[0].mxu0
  %v9141 = vadd.f32 0.0, %v9140
  %v9142 = vpop.f32.mrb[0].mxu0
  %v9143 = vadd.f32 0.0, %v9142
  %9144 = vmatprep.mubr.bf16.mxu0 0
  %9145 = vmatmul.mubr.bf16.gmra.mrb[0].mxu0 %v8796
  %v9146 = vpop.f32.mrb[0].mxu0
  %v9147 = vadd.f32 0.0, %v9146
  %v9148 = vpop.f32.mrb[0].mxu0
  %v9149 = vadd.f32 0.0, %v9148
  %v9150 = vpop.f32.mrb[0].mxu0
  %v9151 = vadd.f32 0.0, %v9150
  %v9152 = vpop.f32.mrb[0].mxu0
  %v9153 = vadd.f32 0.0, %v9152
  %9154 = vmatprep.mubr.bf16.mxu0 0
  %9155 = vmatmul.mubr.bf16.gmra.mrb[0].mxu0 %v8797
  %v9156 = vpop.f32.mrb[0].mxu0
  %v9157 = vadd.f32 0.0, %v9156
  %v9158 = vpop.f32.mrb[0].mxu0
  %v9159 = vadd.f32 0.0, %v9158
  %v9160 = vpop.f32.mrb[0].mxu0
  %v9161 = vadd.f32 0.0, %v9160
  %v9162 = vpop.f32.mrb[0].mxu0
  %v9163 = vadd.f32 0.0, %v9162
  %9164 = vmatprep.mubr.bf16.mxu0 0
  %9165 = vmatmul.mubr.bf16.gmra.mrb[0].mxu0 %v8798
  %v9166 = vpop.f32.mrb[0].mxu0
  %v9167 = vadd.f32 0.0, %v9166
  %v9168 = vpop.f32.mrb[0].mxu0
  %v9169 = vadd.f32 0.0, %v9168
  %v9170 = vpop.f32.mrb[0].mxu0
  %v9171 = vadd.f32 0.0, %v9170
  %v9172 = vpop.f32.mrb[0].mxu0
  %v9173 = vadd.f32 0.0, %v9172
  %9174 = vmatprep.mubr.bf16.mxu0 0
  %9175 = vmatmul.mubr.bf16.gmra.mrb[0].mxu0 %v8799
  %v9176 = vpop.f32.mrb[0].mxu0
  %v9177 = vadd.f32 0.0, %v9176
  %v9178 = vpop.f32.mrb[0].mxu0
  %v9179 = vadd.f32 0.0, %v9178
  %v9180 = vpop.f32.mrb[0].mxu0
  %v9181 = vadd.f32 0.0, %v9180
  %v9182 = vpop.f32.mrb[0].mxu0
  %v9183 = vadd.f32 0.0, %v9182
  %9184 = vdwg.mxu0
  %9185 = vmatprep.subr.bf16.mxu0 %v8931
  %9186 = vmatpush1.bf16.msra.mxu0 %v8930
  %9187 = vmatprep.subr.bf16.mxu0 %v8935
  %9188 = vmatpush1.bf16.msra.mxu0 %v8934
  %9189 = vmatprep.subr.bf16.mxu0 %v8939
  %9190 = vmatpush1.bf16.msra.mxu0 %v8938
  %9191 = vmatprep.subr.bf16.mxu0 %v8943
  %9192 = vmatpush1.bf16.msra.mxu0 %v8942
  %9193 = vmatprep.subr.bf16.mxu0 %v8947
  %9194 = vmatpush1.bf16.msra.mxu0 %v8946
  %9195 = vmatprep.subr.bf16.mxu0 %v8951
  %9196 = vmatpush1.bf16.msra.mxu0 %v8950
  %9197 = vmatprep.subr.bf16.mxu0 %v8955
  %9198 = vmatpush1.bf16.msra.mxu0 %v8954
  %9199 = vmatprep.subr.bf16.mxu0 %v8959
  %9200 = vmatpush1.bf16.msra.mxu0 %v8958
  %9201 = vmatprep.subr.bf16.mxu0 0
  %9202 = vmatpush1.bf16.msra.mxu0 0
  %9203 = vmatprep.subr.bf16.mxu0 0
  %9204 = vmatpush1.bf16.msra.mxu0 0
  %9205 = vmatprep.subr.bf16.mxu0 0
  %9206 = vmatpush1.bf16.msra.mxu0 0
  %9207 = vmatprep.subr.bf16.mxu0 0
  %9208 = vmatpush1.bf16.msra.mxu0 0
  %9209 = vmatprep.subr.bf16.mxu0 0
  %9210 = vmatpush1.bf16.msra.mxu0 0
  %9211 = vmatprep.subr.bf16.mxu0 0
  %9212 = vmatpush1.bf16.msra.mxu0 0
  %9213 = vmatprep.subr.bf16.mxu0 0
  %9214 = vmatpush1.bf16.msra.mxu0 0
  %9215 = vmatprep.subr.bf16.mxu0 0
  %9216 = vmatpush1.bf16.msra.mxu0 0
  %9217 = vmatprep.mubr.bf16.mxu0 0
  %9218 = vmatmul.mubr.bf16.gmra.mrb[0].mxu0 %v8784
  %v9219 = vpop.f32.mrb[0].mxu0
  %v9220 = vadd.f32 0.0, %v9219
  %v9221 = vpop.f32.mrb[0].mxu0
  %v9222 = vadd.f32 0.0, %v9221
  %v9223 = vpop.f32.mrb[0].mxu0
  %v9224 = vadd.f32 0.0, %v9223
  %v9225 = vpop.f32.mrb[0].mxu0
  %v9226 = vadd.f32 0.0, %v9225
  %9227 = vmatprep.mubr.bf16.mxu0 0
  %9228 = vmatmul.mubr.bf16.gmra.mrb[0].mxu0 %v8785
  %v9229 = vpop.f32.mrb[0].mxu0
  %v9230 = vadd.f32 0.0, %v9229
  %v9231 = vpop.f32.mrb[0].mxu0
  %v9232 = vadd.f32 0.0, %v9231
  %v9233 = vpop.f32.mrb[0].mxu0
  %v9234 = vadd.f32 0.0, %v9233
  %v9235 = vpop.f32.mrb[0].mxu0
  %v9236 = vadd.f32 0.0, %v9235
  %9237 = vmatprep.mubr.bf16.mxu0 0
  %9238 = vmatmul.mubr.bf16.gmra.mrb[0].mxu0 %v8786
  %v9239 = vpop.f32.mrb[0].mxu0
  %v9240 = vadd.f32 0.0, %v9239
  %v9241 = vpop.f32.mrb[0].mxu0
  %v9242 = vadd.f32 0.0, %v9241
  %v9243 = vpop.f32.mrb[0].mxu0
  %v9244 = vadd.f32 0.0, %v9243
  %v9245 = vpop.f32.mrb[0].mxu0
  %v9246 = vadd.f32 0.0, %v9245
  %9247 = vmatprep.mubr.bf16.mxu0 0
  %9248 = vmatmul.mubr.bf16.gmra.mrb[0].mxu0 %v8787
  %v9249 = vpop.f32.mrb[0].mxu0
  %v9250 = vadd.f32 0.0, %v9249
  %v9251 = vpop.f32.mrb[0].mxu0
  %v9252 = vadd.f32 0.0, %v9251
  %v9253 = vpop.f32.mrb[0].mxu0
  %v9254 = vadd.f32 0.0, %v9253
  %v9255 = vpop.f32.mrb[0].mxu0
  %v9256 = vadd.f32 0.0, %v9255
  %9257 = vmatprep.mubr.bf16.mxu0 0
  %9258 = vmatmul.mubr.bf16.gmra.mrb[0].mxu0 %v8788
  %v9259 = vpop.f32.mrb[0].mxu0
  %v9260 = vadd.f32 0.0, %v9259
  %v9261 = vpop.f32.mrb[0].mxu0
  %v9262 = vadd.f32 0.0, %v9261
  %v9263 = vpop.f32.mrb[0].mxu0
  %v9264 = vadd.f32 0.0, %v9263
  %v9265 = vpop.f32.mrb[0].mxu0
  %v9266 = vadd.f32 0.0, %v9265
  %9267 = vmatprep.mubr.bf16.mxu0 0
  %9268 = vmatmul.mubr.bf16.gmra.mrb[0].mxu0 %v8789
  %v9269 = vpop.f32.mrb[0].mxu0
  %v9270 = vadd.f32 0.0, %v9269
  %v9271 = vpop.f32.mrb[0].mxu0
  %v9272 = vadd.f32 0.0, %v9271
  %v9273 = vpop.f32.mrb[0].mxu0
  %v9274 = vadd.f32 0.0, %v9273
  %v9275 = vpop.f32.mrb[0].mxu0
  %v9276 = vadd.f32 0.0, %v9275
  %9277 = vmatprep.mubr.bf16.mxu0 0
  %9278 = vmatmul.mubr.bf16.gmra.mrb[0].mxu0 %v8790
  %v9279 = vpop.f32.mrb[0].mxu0
  %v9280 = vadd.f32 0.0, %v9279
  %v9281 = vpop.f32.mrb[0].mxu0
  %v9282 = vadd.f32 0.0, %v9281
  %v9283 = vpop.f32.mrb[0].mxu0
  %v9284 = vadd.f32 0.0, %v9283
  %v9285 = vpop.f32.mrb[0].mxu0
  %v9286 = vadd.f32 0.0, %v9285
  %9287 = vmatprep.mubr.bf16.mxu0 0
  %9288 = vmatmul.mubr.bf16.gmra.mrb[0].mxu0 %v8791
  %v9289 = vpop.f32.mrb[0].mxu0
  %v9290 = vadd.f32 0.0, %v9289
  %v9291 = vpop.f32.mrb[0].mxu0
  %v9292 = vadd.f32 0.0, %v9291
  %v9293 = vpop.f32.mrb[0].mxu0
  %v9294 = vadd.f32 0.0, %v9293
  %v9295 = vpop.f32.mrb[0].mxu0
  %v9296 = vadd.f32 0.0, %v9295
  %9297 = vmatprep.mubr.bf16.mxu0 0
  %9298 = vmatmul.mubr.bf16.gmra.mrb[0].mxu0 %v8792
  %v9299 = vpop.f32.mrb[0].mxu0
  %v9300 = vadd.f32 0.0, %v9299
  %v9301 = vpop.f32.mrb[0].mxu0
  %v9302 = vadd.f32 0.0, %v9301
  %v9303 = vpop.f32.mrb[0].mxu0
  %v9304 = vadd.f32 0.0, %v9303
  %v9305 = vpop.f32.mrb[0].mxu0
  %v9306 = vadd.f32 0.0, %v9305
  %9307 = vmatprep.mubr.bf16.mxu0 0
  %9308 = vmatmul.mubr.bf16.gmra.mrb[0].mxu0 %v8793
  %v9309 = vpop.f32.mrb[0].mxu0
  %v9310 = vadd.f32 0.0, %v9309
  %v9311 = vpop.f32.mrb[0].mxu0
  %v9312 = vadd.f32 0.0, %v9311
  %v9313 = vpop.f32.mrb[0].mxu0
  %v9314 = vadd.f32 0.0, %v9313
  %v9315 = vpop.f32.mrb[0].mxu0
  %v9316 = vadd.f32 0.0, %v9315
  %9317 = vmatprep.mubr.bf16.mxu0 0
  %9318 = vmatmul.mubr.bf16.gmra.mrb[0].mxu0 %v8794
  %v9319 = vpop.f32.mrb[0].mxu0
  %v9320 = vadd.f32 0.0, %v9319
  %v9321 = vpop.f32.mrb[0].mxu0
  %v9322 = vadd.f32 0.0, %v9321
  %v9323 = vpop.f32.mrb[0].mxu0
  %v9324 = vadd.f32 0.0, %v9323
  %v9325 = vpop.f32.mrb[0].mxu0
  %v9326 = vadd.f32 0.0, %v9325
  %9327 = vmatprep.mubr.bf16.mxu0 0
  %9328 = vmatmul.mubr.bf16.gmra.mrb[0].mxu0 %v8795
  %v9329 = vpop.f32.mrb[0].mxu0
  %v9330 = vadd.f32 0.0, %v9329
  %v9331 = vpop.f32.mrb[0].mxu0
  %v9332 = vadd.f32 0.0, %v9331
  %v9333 = vpop.f32.mrb[0].mxu0
  %v9334 = vadd.f32 0.0, %v9333
  %v9335 = vpop.f32.mrb[0].mxu0
  %v9336 = vadd.f32 0.0, %v9335
  %9337 = vmatprep.mubr.bf16.mxu0 0
  %9338 = vmatmul.mubr.bf16.gmra.mrb[0].mxu0 %v8796
  %v9339 = vpop.f32.mrb[0].mxu0
  %v9340 = vadd.f32 0.0, %v9339
  %v9341 = vpop.f32.mrb[0].mxu0
  %v9342 = vadd.f32 0.0, %v9341
  %v9343 = vpop.f32.mrb[0].mxu0
  %v9344 = vadd.f32 0.0, %v9343
  %v9345 = vpop.f32.mrb[0].mxu0
  %v9346 = vadd.f32 0.0, %v9345
  %9347 = vmatprep.mubr.bf16.mxu0 0
  %9348 = vmatmul.mubr.bf16.gmra.mrb[0].mxu0 %v8797
  %v9349 = vpop.f32.mrb[0].mxu0
  %v9350 = vadd.f32 0.0, %v9349
  %v9351 = vpop.f32.mrb[0].mxu0
  %v9352 = vadd.f32 0.0, %v9351
  %v9353 = vpop.f32.mrb[0].mxu0
  %v9354 = vadd.f32 0.0, %v9353
  %v9355 = vpop.f32.mrb[0].mxu0
  %v9356 = vadd.f32 0.0, %v9355
  %9357 = vmatprep.mubr.bf16.mxu0 0
  %9358 = vmatmul.mubr.bf16.gmra.mrb[0].mxu0 %v8798
  %v9359 = vpop.f32.mrb[0].mxu0
  %v9360 = vadd.f32 0.0, %v9359
  %v9361 = vpop.f32.mrb[0].mxu0
  %v9362 = vadd.f32 0.0, %v9361
  %v9363 = vpop.f32.mrb[0].mxu0
  %v9364 = vadd.f32 0.0, %v9363
  %v9365 = vpop.f32.mrb[0].mxu0
  %v9366 = vadd.f32 0.0, %v9365
  %9367 = vmatprep.mubr.bf16.mxu0 0
  %9368 = vmatmul.mubr.bf16.gmra.mrb[0].mxu0 %v8799
  %v9369 = vpop.f32.mrb[0].mxu0
  %v9370 = vadd.f32 0.0, %v9369
  %v9371 = vpop.f32.mrb[0].mxu0
  %v9372 = vadd.f32 0.0, %v9371
  %v9373 = vpop.f32.mrb[0].mxu0
  %v9374 = vadd.f32 0.0, %v9373
  %v9375 = vpop.f32.mrb[0].mxu0
  %v9376 = vadd.f32 0.0, %v9375
  %9377 = vdwg.mxu0
  %v9378 = vld [vmem:[%s61] sm:$0xf]
  %v9380 = vlaneseq
  %v9381 = vshrl.u32 %v9380, 7
  %v9382 = vsub.s32 0, %v9381
  %v9383 = vrot.slane %v9378, %v9382
  %v9384 = vlaneseq
  %v9385 = vshrl.u32 %v9384, 7
  %v9386 = vsub.s32 1, %v9385
  %v9387 = vrot.slane %v9378, %v9386
  %v9388 = vlaneseq
  %v9389 = vshrl.u32 %v9388, 7
  %v9390 = vsub.s32 2, %v9389
  %v9391 = vrot.slane %v9378, %v9390
  %v9392 = vlaneseq
  %v9393 = vshrl.u32 %v9392, 7
  %v9394 = vsub.s32 3, %v9393
  %v9395 = vrot.slane %v9378, %v9394
  %v9400 = vadd.f32 %v9027, %v9383
  %v9401 = vadd.f32 %v9029, %v9387
  %v9402 = vadd.f32 %v9220, %v9391
  %v9403 = vadd.f32 %v9222, %v9395
  %v9404 = vadd.f32 %v9031, %v9383
  %v9405 = vadd.f32 %v9033, %v9387
  %v9406 = vadd.f32 %v9224, %v9391
  %v9407 = vadd.f32 %v9226, %v9395
  %v9408 = vadd.f32 %v9037, %v9383
  %v9409 = vadd.f32 %v9039, %v9387
  %v9410 = vadd.f32 %v9230, %v9391
  %v9411 = vadd.f32 %v9232, %v9395
  %v9412 = vadd.f32 %v9041, %v9383
  %v9413 = vadd.f32 %v9043, %v9387
  %v9414 = vadd.f32 %v9234, %v9391
  %v9415 = vadd.f32 %v9236, %v9395
  %v9416 = vadd.f32 %v9047, %v9383
  %v9417 = vadd.f32 %v9049, %v9387
  %v9418 = vadd.f32 %v9240, %v9391
  %v9419 = vadd.f32 %v9242, %v9395
  %v9420 = vadd.f32 %v9051, %v9383
  %v9421 = vadd.f32 %v9053, %v9387
  %v9422 = vadd.f32 %v9244, %v9391
  %v9423 = vadd.f32 %v9246, %v9395
  %v9424 = vadd.f32 %v9057, %v9383
  %v9425 = vadd.f32 %v9059, %v9387
  %v9426 = vadd.f32 %v9250, %v9391
  %v9427 = vadd.f32 %v9252, %v9395
  %v9428 = vadd.f32 %v9061, %v9383
  %v9429 = vadd.f32 %v9063, %v9387
  %v9430 = vadd.f32 %v9254, %v9391
  %v9431 = vadd.f32 %v9256, %v9395
  %v9432 = vadd.f32 %v9067, %v9383
  %v9433 = vadd.f32 %v9069, %v9387
  %v9434 = vadd.f32 %v9260, %v9391
  %v9435 = vadd.f32 %v9262, %v9395
  %v9436 = vadd.f32 %v9071, %v9383
  %v9437 = vadd.f32 %v9073, %v9387
  %v9438 = vadd.f32 %v9264, %v9391
  %v9439 = vadd.f32 %v9266, %v9395
  %v9440 = vadd.f32 %v9077, %v9383
  %v9441 = vadd.f32 %v9079, %v9387
  %v9442 = vadd.f32 %v9270, %v9391
  %v9443 = vadd.f32 %v9272, %v9395
  %v9444 = vadd.f32 %v9081, %v9383
  %v9445 = vadd.f32 %v9083, %v9387
  %v9446 = vadd.f32 %v9274, %v9391
  %v9447 = vadd.f32 %v9276, %v9395
  %v9448 = vadd.f32 %v9087, %v9383
  %v9449 = vadd.f32 %v9089, %v9387
  %v9450 = vadd.f32 %v9280, %v9391
  %v9451 = vadd.f32 %v9282, %v9395
  %v9452 = vadd.f32 %v9091, %v9383
  %v9453 = vadd.f32 %v9093, %v9387
  %v9454 = vadd.f32 %v9284, %v9391
  %v9455 = vadd.f32 %v9286, %v9395
  %v9456 = vadd.f32 %v9097, %v9383
  %v9457 = vadd.f32 %v9099, %v9387
  %v9458 = vadd.f32 %v9290, %v9391
  %v9459 = vadd.f32 %v9292, %v9395
  %v9460 = vadd.f32 %v9101, %v9383
  %v9461 = vadd.f32 %v9103, %v9387
  %v9462 = vadd.f32 %v9294, %v9391
  %v9463 = vadd.f32 %v9296, %v9395
  %v9464 = vadd.f32 %v9107, %v9383
  %v9465 = vadd.f32 %v9109, %v9387
  %v9466 = vadd.f32 %v9300, %v9391
  %v9467 = vadd.f32 %v9302, %v9395
  %v9468 = vadd.f32 %v9111, %v9383
  %v9469 = vadd.f32 %v9113, %v9387
  %v9470 = vadd.f32 %v9304, %v9391
  %v9471 = vadd.f32 %v9306, %v9395
  %v9472 = vadd.f32 %v9117, %v9383
  %v9473 = vadd.f32 %v9119, %v9387
  %v9474 = vadd.f32 %v9310, %v9391
  %v9475 = vadd.f32 %v9312, %v9395
  %v9476 = vadd.f32 %v9121, %v9383
  %v9477 = vadd.f32 %v9123, %v9387
  %v9478 = vadd.f32 %v9314, %v9391
  %v9479 = vadd.f32 %v9316, %v9395
  %v9480 = vadd.f32 %v9127, %v9383
  %v9481 = vadd.f32 %v9129, %v9387
  %v9482 = vadd.f32 %v9320, %v9391
  %v9483 = vadd.f32 %v9322, %v9395
  %v9484 = vadd.f32 %v9131, %v9383
  %v9485 = vadd.f32 %v9133, %v9387
  %v9486 = vadd.f32 %v9324, %v9391
  %v9487 = vadd.f32 %v9326, %v9395
  %v9488 = vadd.f32 %v9137, %v9383
  %v9489 = vadd.f32 %v9139, %v9387
  %v9490 = vadd.f32 %v9330, %v9391
  %v9491 = vadd.f32 %v9332, %v9395
  %v9492 = vadd.f32 %v9141, %v9383
  %v9493 = vadd.f32 %v9143, %v9387
  %v9494 = vadd.f32 %v9334, %v9391
  %v9495 = vadd.f32 %v9336, %v9395
  %v9496 = vadd.f32 %v9147, %v9383
  %v9497 = vadd.f32 %v9149, %v9387
  %v9498 = vadd.f32 %v9340, %v9391
  %v9499 = vadd.f32 %v9342, %v9395
  %v9500 = vadd.f32 %v9151, %v9383
  %v9501 = vadd.f32 %v9153, %v9387
  %v9502 = vadd.f32 %v9344, %v9391
  %v9503 = vadd.f32 %v9346, %v9395
  %v9504 = vadd.f32 %v9157, %v9383
  %v9505 = vadd.f32 %v9159, %v9387
  %v9506 = vadd.f32 %v9350, %v9391
  %v9507 = vadd.f32 %v9352, %v9395
  %v9508 = vadd.f32 %v9161, %v9383
  %v9509 = vadd.f32 %v9163, %v9387
  %v9510 = vadd.f32 %v9354, %v9391
  %v9511 = vadd.f32 %v9356, %v9395
  %v9512 = vadd.f32 %v9167, %v9383
  %v9513 = vadd.f32 %v9169, %v9387
  %v9514 = vadd.f32 %v9360, %v9391
  %v9515 = vadd.f32 %v9362, %v9395
  %v9516 = vadd.f32 %v9171, %v9383
  %v9517 = vadd.f32 %v9173, %v9387
  %v9518 = vadd.f32 %v9364, %v9391
  %v9519 = vadd.f32 %v9366, %v9395
  %v9520 = vadd.f32 %v9177, %v9383
  %v9521 = vadd.f32 %v9179, %v9387
  %v9522 = vadd.f32 %v9370, %v9391
  %v9523 = vadd.f32 %v9372, %v9395
  %v9524 = vadd.f32 %v9181, %v9383
  %v9525 = vadd.f32 %v9183, %v9387
  %v9526 = vadd.f32 %v9374, %v9391
  %v9527 = vadd.f32 %v9376, %v9395
  %9528 = vmatprep.subr.mxu0 %v9401
  %9529 = vmatpush1.msra.mxu0 %v9400
  %9530 = vmatprep.subr.mxu0 %v9405
  %9531 = vmatpush1.msra.mxu0 %v9404
  %9532 = vmatprep.subr.mxu0 %v9409
  %9533 = vmatpush1.msra.mxu0 %v9408
  %9534 = vmatprep.subr.mxu0 %v9413
  %9535 = vmatpush1.msra.mxu0 %v9412
  %9536 = vmatprep.subr.mxu0 %v9417
  %9537 = vmatpush1.msra.mxu0 %v9416
  %9538 = vmatprep.subr.mxu0 %v9421
  %9539 = vmatpush1.msra.mxu0 %v9420
  %9540 = vmatprep.subr.mxu0 %v9425
  %9541 = vmatpush1.msra.mxu0 %v9424
  %9542 = vmatprep.subr.mxu0 %v9429
  %9543 = vmatpush1.msra.mxu0 %v9428
  %9544 = vmatprep.subr.mxu0 %v9433
  %9545 = vmatpush1.msra.mxu0 %v9432
  %9546 = vmatprep.subr.mxu0 %v9437
  %9547 = vmatpush1.msra.mxu0 %v9436
  %9548 = vmatprep.subr.mxu0 %v9441
  %9549 = vmatpush1.msra.mxu0 %v9440
  %9550 = vmatprep.subr.mxu0 %v9445
  %9551 = vmatpush1.msra.mxu0 %v9444
  %9552 = vmatprep.subr.mxu0 %v9449
  %9553 = vmatpush1.msra.mxu0 %v9448
  %9554 = vmatprep.subr.mxu0 %v9453
  %9555 = vmatpush1.msra.mxu0 %v9452
  %9556 = vmatprep.subr.mxu0 %v9457
  %9557 = vmatpush1.msra.mxu0 %v9456
  %9558 = vmatprep.subr.mxu0 %v9461
  %9559 = vmatpush1.msra.mxu0 %v9460
  %9560 = vmatprep.subr.mxu0 %v9465
  %9561 = vmatpush1.msra.mxu0 %v9464
  %9562 = vmatprep.subr.mxu0 %v9469
  %9563 = vmatpush1.msra.mxu0 %v9468
  %9564 = vmatprep.subr.mxu0 %v9473
  %9565 = vmatpush1.msra.mxu0 %v9472
  %9566 = vmatprep.subr.mxu0 %v9477
  %9567 = vmatpush1.msra.mxu0 %v9476
  %9568 = vmatprep.subr.mxu0 %v9481
  %9569 = vmatpush1.msra.mxu0 %v9480
  %9570 = vmatprep.subr.mxu0 %v9485
  %9571 = vmatpush1.msra.mxu0 %v9484
  %9572 = vmatprep.subr.mxu0 %v9489
  %9573 = vmatpush1.msra.mxu0 %v9488
  %9574 = vmatprep.subr.mxu0 %v9493
  %9575 = vmatpush1.msra.mxu0 %v9492
  %9576 = vmatprep.subr.mxu0 %v9497
  %9577 = vmatpush1.msra.mxu0 %v9496
  %9578 = vmatprep.subr.mxu0 %v9501
  %9579 = vmatpush1.msra.mxu0 %v9500
  %9580 = vmatprep.subr.mxu0 %v9505
  %9581 = vmatpush1.msra.mxu0 %v9504
  %9582 = vmatprep.subr.mxu0 %v9509
  %9583 = vmatpush1.msra.mxu0 %v9508
  %9584 = vmatprep.subr.mxu0 %v9513
  %9585 = vmatpush1.msra.mxu0 %v9512
  %9586 = vmatprep.subr.mxu0 %v9517
  %9587 = vmatpush1.msra.mxu0 %v9516
  %9588 = vmatprep.subr.mxu0 %v9521
  %9589 = vmatpush1.msra.mxu0 %v9520
  %9590 = vmatprep.subr.mxu0 %v9525
  %9591 = vmatpush1.msra.mxu0 %v9524
  %9592 = vmatprep.mubr.f32.mxu0 1.0
  %9593 = vmatmul.mubr.f32.gmra.mrb[0].mxu0 1.0
  %v9594 = vpop.f32.mrb[0].mxu0
  %v9595 = vadd.f32 0.0, %v9594
  %v9596 = vpop.f32.mrb[0].mxu0
  %v9597 = vadd.f32 0.0, %v9596
  %9598 = vdwg.mxu0
  %v9599 = vmul.f32 %v9400, %v9400
  %v9600 = vmul.f32 %v9401, %v9401
  %v9601 = vmul.f32 %v9404, %v9404
  %v9602 = vmul.f32 %v9405, %v9405
  %v9603 = vmul.f32 %v9408, %v9408
  %v9604 = vmul.f32 %v9409, %v9409
  %v9605 = vmul.f32 %v9412, %v9412
  %v9606 = vmul.f32 %v9413, %v9413
  %v9607 = vmul.f32 %v9416, %v9416
  %v9608 = vmul.f32 %v9417, %v9417
  %v9609 = vmul.f32 %v9420, %v9420
  %v9610 = vmul.f32 %v9421, %v9421
  %v9611 = vmul.f32 %v9424, %v9424
  %v9612 = vmul.f32 %v9425, %v9425
  %v9613 = vmul.f32 %v9428, %v9428
  %v9614 = vmul.f32 %v9429, %v9429
  %v9615 = vmul.f32 %v9432, %v9432
  %v9616 = vmul.f32 %v9433, %v9433
  %v9617 = vmul.f32 %v9436, %v9436
  %v9618 = vmul.f32 %v9437, %v9437
  %v9619 = vmul.f32 %v9440, %v9440
  %v9620 = vmul.f32 %v9441, %v9441
  %v9621 = vmul.f32 %v9444, %v9444
  %v9622 = vmul.f32 %v9445, %v9445
  %v9623 = vmul.f32 %v9448, %v9448
  %v9624 = vmul.f32 %v9449, %v9449
  %v9625 = vmul.f32 %v9452, %v9452
  %v9626 = vmul.f32 %v9453, %v9453
  %v9627 = vmul.f32 %v9456, %v9456
  %v9628 = vmul.f32 %v9457, %v9457
  %v9629 = vmul.f32 %v9460, %v9460
  %v9630 = vmul.f32 %v9461, %v9461
  %v9631 = vmul.f32 %v9464, %v9464
  %v9632 = vmul.f32 %v9465, %v9465
  %v9633 = vmul.f32 %v9468, %v9468
  %v9634 = vmul.f32 %v9469, %v9469
  %v9635 = vmul.f32 %v9472, %v9472
  %v9636 = vmul.f32 %v9473, %v9473
  %v9637 = vmul.f32 %v9476, %v9476
  %v9638 = vmul.f32 %v9477, %v9477
  %v9639 = vmul.f32 %v9480, %v9480
  %v9640 = vmul.f32 %v9481, %v9481
  %v9641 = vmul.f32 %v9484, %v9484
  %v9642 = vmul.f32 %v9485, %v9485
  %v9643 = vmul.f32 %v9488, %v9488
  %v9644 = vmul.f32 %v9489, %v9489
  %v9645 = vmul.f32 %v9492, %v9492
  %v9646 = vmul.f32 %v9493, %v9493
  %v9647 = vmul.f32 %v9496, %v9496
  %v9648 = vmul.f32 %v9497, %v9497
  %v9649 = vmul.f32 %v9500, %v9500
  %v9650 = vmul.f32 %v9501, %v9501
  %v9651 = vmul.f32 %v9504, %v9504
  %v9652 = vmul.f32 %v9505, %v9505
  %v9653 = vmul.f32 %v9508, %v9508
  %v9654 = vmul.f32 %v9509, %v9509
  %v9655 = vmul.f32 %v9512, %v9512
  %v9656 = vmul.f32 %v9513, %v9513
  %v9657 = vmul.f32 %v9516, %v9516
  %v9658 = vmul.f32 %v9517, %v9517
  %v9659 = vmul.f32 %v9520, %v9520
  %v9660 = vmul.f32 %v9521, %v9521
  %v9661 = vmul.f32 %v9524, %v9524
  %v9662 = vmul.f32 %v9525, %v9525
  %9663 = vmatprep.subr.mxu0 %v9600
  %9664 = vmatpush1.msra.mxu0 %v9599
  %9665 = vmatprep.subr.mxu0 %v9602
  %9666 = vmatpush1.msra.mxu0 %v9601
  %9667 = vmatprep.subr.mxu0 %v9604
  %9668 = vmatpush1.msra.mxu0 %v9603
  %9669 = vmatprep.subr.mxu0 %v9606
  %9670 = vmatpush1.msra.mxu0 %v9605
  %9671 = vmatprep.subr.mxu0 %v9608
  %9672 = vmatpush1.msra.mxu0 %v9607
  %9673 = vmatprep.subr.mxu0 %v9610
  %9674 = vmatpush1.msra.mxu0 %v9609
  %9675 = vmatprep.subr.mxu0 %v9612
  %9676 = vmatpush1.msra.mxu0 %v9611
  %9677 = vmatprep.subr.mxu0 %v9614
  %9678 = vmatpush1.msra.mxu0 %v9613
  %9679 = vmatprep.subr.mxu0 %v9616
  %9680 = vmatpush1.msra.mxu0 %v9615
  %9681 = vmatprep.subr.mxu0 %v9618
  %9682 = vmatpush1.msra.mxu0 %v9617
  %9683 = vmatprep.subr.mxu0 %v9620
  %9684 = vmatpush1.msra.mxu0 %v9619
  %9685 = vmatprep.subr.mxu0 %v9622
  %9686 = vmatpush1.msra.mxu0 %v9621
  %9687 = vmatprep.subr.mxu0 %v9624
  %9688 = vmatpush1.msra.mxu0 %v9623
  %9689 = vmatprep.subr.mxu0 %v9626
  %9690 = vmatpush1.msra.mxu0 %v9625
  %9691 = vmatprep.subr.mxu0 %v9628
  %9692 = vmatpush1.msra.mxu0 %v9627
  %9693 = vmatprep.subr.mxu0 %v9630
  %9694 = vmatpush1.msra.mxu0 %v9629
  %9695 = vmatprep.subr.mxu0 %v9632
  %9696 = vmatpush1.msra.mxu0 %v9631
  %9697 = vmatprep.subr.mxu0 %v9634
  %9698 = vmatpush1.msra.mxu0 %v9633
  %9699 = vmatprep.subr.mxu0 %v9636
  %9700 = vmatpush1.msra.mxu0 %v9635
  %9701 = vmatprep.subr.mxu0 %v9638
  %9702 = vmatpush1.msra.mxu0 %v9637
  %9703 = vmatprep.subr.mxu0 %v9640
  %9704 = vmatpush1.msra.mxu0 %v9639
  %9705 = vmatprep.subr.mxu0 %v9642
  %9706 = vmatpush1.msra.mxu0 %v9641
  %9707 = vmatprep.subr.mxu0 %v9644
  %9708 = vmatpush1.msra.mxu0 %v9643
  %9709 = vmatprep.subr.mxu0 %v9646
  %9710 = vmatpush1.msra.mxu0 %v9645
  %9711 = vmatprep.subr.mxu0 %v9648
  %9712 = vmatpush1.msra.mxu0 %v9647
  %9713 = vmatprep.subr.mxu0 %v9650
  %9714 = vmatpush1.msra.mxu0 %v9649
  %9715 = vmatprep.subr.mxu0 %v9652
  %9716 = vmatpush1.msra.mxu0 %v9651
  %9717 = vmatprep.subr.mxu0 %v9654
  %9718 = vmatpush1.msra.mxu0 %v9653
  %9719 = vmatprep.subr.mxu0 %v9656
  %9720 = vmatpush1.msra.mxu0 %v9655
  %9721 = vmatprep.subr.mxu0 %v9658
  %9722 = vmatpush1.msra.mxu0 %v9657
  %9723 = vmatprep.subr.mxu0 %v9660
  %9724 = vmatpush1.msra.mxu0 %v9659
  %9725 = vmatprep.subr.mxu0 %v9662
  %9726 = vmatpush1.msra.mxu0 %v9661
  %9727 = vmatprep.mubr.f32.mxu0 1.0
  %9728 = vmatmul.mubr.f32.gmra.mrb[0].mxu0 1.0
  %v9729 = vpop.f32.mrb[0].mxu0
  %v9730 = vadd.f32 0.0, %v9729
  %v9731 = vpop.f32.mrb[0].mxu0
  %v9732 = vadd.f32 0.0, %v9731
  %9733 = vdwg.mxu0
  %v9734 = vmul.f32 %v9595, 0.00390625
  %v9735 = vmul.f32 %v9597, 0.00390625
  %v9736 = vmul.f32 %v9730, 0.00390625
  %v9737 = vmul.f32 %v9732, 0.00390625
  %v9738 = vmul.f32 %v9734, %v9734
  %v9739 = vmul.f32 %v9735, %v9735
  %v9740 = vsub.f32 %v9736, %v9738
  %v9741 = vsub.f32 %v9737, %v9739
  %v9742 = vmax.f32 %v9740, 0.0
  %v9743 = vmax.f32 %v9741, 0.0
  %v9744 = vld [vmem:[%s63] sm:$0x3]
  %v9745 = vadd.f32 %v9742, 1e-05
  %v9746 = vadd.f32 %v9743, 1e-05
  %v9747 = vrsqrt.pop %v9745
  %v9748 = vrsqrt.pop %v9746
  %v9751 = vcombine.low %v9747, %v9748
  %v9753 = vunpack.c.l.s4 1966171168
  %v9754 = vunpack.c.0.s8 %v9753
  %v9755 = vlaneseq
  %v9756 = vshrl.u32 %v9755, 7
  %v9757 = vsub.s32 %v9754, %v9756
  %v9758 = vrot.slane %v9751, %v9757
  %v9760 = vunpack.c.l.s4 1966171168
  %v9761 = vunpack.c.0.s8 %v9760
  %v9762 = vlaneseq
  %v9763 = vshrl.u32 %v9762, 7
  %v9764 = vsub.s32 %v9761, %v9763
  %v9765 = vrot.slane %v9758, %v9764
  %v9767 = vmul.f32 %v9744, %v9765
  %v9768 = vld [vmem:[%s65] sm:$0x3]
  %v9770 = vlaneseq
  %v9771 = vshrl.u32 %v9770, 7
  %v9772 = vsub.s32 0, %v9771
  %v9773 = vrot.slane %v9767, %v9772
  %v9774 = vlaneseq
  %v9775 = vshrl.u32 %v9774, 7
  %v9776 = vsub.s32 1, %v9775
  %v9777 = vrot.slane %v9767, %v9776
  %v9780 = vmul.f32 %v9734, %v9773
  %v9781 = vmul.f32 %v9735, %v9777
  %v9784 = vcombine.low %v9780, %v9781
  %v9786 = vunpack.c.l.s4 1966171168
  %v9787 = vunpack.c.0.s8 %v9786
  %v9788 = vlaneseq
  %v9789 = vshrl.u32 %v9788, 7
  %v9790 = vsub.s32 %v9787, %v9789
  %v9791 = vrot.slane %v9784, %v9790
  %v9793 = vunpack.c.l.s4 1966171168
  %v9794 = vunpack.c.0.s8 %v9793
  %v9795 = vlaneseq
  %v9796 = vshrl.u32 %v9795, 7
  %v9797 = vsub.s32 %v9794, %v9796
  %v9798 = vrot.slane %v9791, %v9797
  %v9800 = vsub.f32 %v9768, %v9798
  %v9801 = vmul.f32 %v9400, %v9773
  %v9802 = vmul.f32 %v9401, %v9777
  %v9803 = vmul.f32 %v9404, %v9773
  %v9804 = vmul.f32 %v9405, %v9777
  %v9805 = vmul.f32 %v9408, %v9773
  %v9806 = vmul.f32 %v9409, %v9777
  %v9807 = vmul.f32 %v9412, %v9773
  %v9808 = vmul.f32 %v9413, %v9777
  %v9809 = vmul.f32 %v9416, %v9773
  %v9810 = vmul.f32 %v9417, %v9777
  %v9811 = vmul.f32 %v9420, %v9773
  %v9812 = vmul.f32 %v9421, %v9777
  %v9813 = vmul.f32 %v9424, %v9773
  %v9814 = vmul.f32 %v9425, %v9777
  %v9815 = vmul.f32 %v9428, %v9773
  %v9816 = vmul.f32 %v9429, %v9777
  %v9817 = vmul.f32 %v9432, %v9773
  %v9818 = vmul.f32 %v9433, %v9777
  %v9819 = vmul.f32 %v9436, %v9773
  %v9820 = vmul.f32 %v9437, %v9777
  %v9821 = vmul.f32 %v9440, %v9773
  %v9822 = vmul.f32 %v9441, %v9777
  %v9823 = vmul.f32 %v9444, %v9773
  %v9824 = vmul.f32 %v9445, %v9777
  %v9825 = vmul.f32 %v9448, %v9773
  %v9826 = vmul.f32 %v9449, %v9777
  %v9827 = vmul.f32 %v9452, %v9773
  %v9828 = vmul.f32 %v9453, %v9777
  %v9829 = vmul.f32 %v9456, %v9773
  %v9830 = vmul.f32 %v9457, %v9777
  %v9831 = vmul.f32 %v9460, %v9773
  %v9832 = vmul.f32 %v9461, %v9777
  %v9833 = vmul.f32 %v9464, %v9773
  %v9834 = vmul.f32 %v9465, %v9777
  %v9835 = vmul.f32 %v9468, %v9773
  %v9836 = vmul.f32 %v9469, %v9777
  %v9837 = vmul.f32 %v9472, %v9773
  %v9838 = vmul.f32 %v9473, %v9777
  %v9839 = vmul.f32 %v9476, %v9773
  %v9840 = vmul.f32 %v9477, %v9777
  %v9841 = vmul.f32 %v9480, %v9773
  %v9842 = vmul.f32 %v9481, %v9777
  %v9843 = vmul.f32 %v9484, %v9773
  %v9844 = vmul.f32 %v9485, %v9777
  %v9845 = vmul.f32 %v9488, %v9773
  %v9846 = vmul.f32 %v9489, %v9777
  %v9847 = vmul.f32 %v9492, %v9773
  %v9848 = vmul.f32 %v9493, %v9777
  %v9849 = vmul.f32 %v9496, %v9773
  %v9850 = vmul.f32 %v9497, %v9777
  %v9851 = vmul.f32 %v9500, %v9773
  %v9852 = vmul.f32 %v9501, %v9777
  %v9853 = vmul.f32 %v9504, %v9773
  %v9854 = vmul.f32 %v9505, %v9777
  %v9855 = vmul.f32 %v9508, %v9773
  %v9856 = vmul.f32 %v9509, %v9777
  %v9857 = vmul.f32 %v9512, %v9773
  %v9858 = vmul.f32 %v9513, %v9777
  %v9859 = vmul.f32 %v9516, %v9773
  %v9860 = vmul.f32 %v9517, %v9777
  %v9861 = vmul.f32 %v9520, %v9773
  %v9862 = vmul.f32 %v9521, %v9777
  %v9863 = vmul.f32 %v9524, %v9773
  %v9864 = vmul.f32 %v9525, %v9777
  %v9866 = vlaneseq
  %v9867 = vshrl.u32 %v9866, 7
  %v9868 = vsub.s32 0, %v9867
  %v9869 = vrot.slane %v9800, %v9868
  %v9870 = vlaneseq
  %v9871 = vshrl.u32 %v9870, 7
  %v9872 = vsub.s32 1, %v9871
  %v9873 = vrot.slane %v9800, %v9872
  %v9876 = vadd.f32 %v9801, %v9869
  %v9877 = vadd.f32 %v9802, %v9873
  %v9878 = vadd.f32 %v9803, %v9869
  %v9879 = vadd.f32 %v9804, %v9873
  %v9880 = vadd.f32 %v9805, %v9869
  %v9881 = vadd.f32 %v9806, %v9873
  %v9882 = vadd.f32 %v9807, %v9869
  %v9883 = vadd.f32 %v9808, %v9873
  %v9884 = vadd.f32 %v9809, %v9869
  %v9885 = vadd.f32 %v9810, %v9873
  %v9886 = vadd.f32 %v9811, %v9869
  %v9887 = vadd.f32 %v9812, %v9873
  %v9888 = vadd.f32 %v9813, %v9869
  %v9889 = vadd.f32 %v9814, %v9873
  %v9890 = vadd.f32 %v9815, %v9869
  %v9891 = vadd.f32 %v9816, %v9873
  %v9892 = vadd.f32 %v9817, %v9869
  %v9893 = vadd.f32 %v9818, %v9873
  %v9894 = vadd.f32 %v9819, %v9869
  %v9895 = vadd.f32 %v9820, %v9873
  %v9896 = vadd.f32 %v9821, %v9869
  %v9897 = vadd.f32 %v9822, %v9873
  %v9898 = vadd.f32 %v9823, %v9869
  %v9899 = vadd.f32 %v9824, %v9873
  %v9900 = vadd.f32 %v9825, %v9869
  %v9901 = vadd.f32 %v9826, %v9873
  %v9902 = vadd.f32 %v9827, %v9869
  %v9903 = vadd.f32 %v9828, %v9873
  %v9904 = vadd.f32 %v9829, %v9869
  %v9905 = vadd.f32 %v9830, %v9873
  %v9906 = vadd.f32 %v9831, %v9869
  %v9907 = vadd.f32 %v9832, %v9873
  %v9908 = vadd.f32 %v9833, %v9869
  %v9909 = vadd.f32 %v9834, %v9873
  %v9910 = vadd.f32 %v9835, %v9869
  %v9911 = vadd.f32 %v9836, %v9873
  %v9912 = vadd.f32 %v9837, %v9869
  %v9913 = vadd.f32 %v9838, %v9873
  %v9914 = vadd.f32 %v9839, %v9869
  %v9915 = vadd.f32 %v9840, %v9873
  %v9916 = vadd.f32 %v9841, %v9869
  %v9917 = vadd.f32 %v9842, %v9873
  %v9918 = vadd.f32 %v9843, %v9869
  %v9919 = vadd.f32 %v9844, %v9873
  %v9920 = vadd.f32 %v9845, %v9869
  %v9921 = vadd.f32 %v9846, %v9873
  %v9922 = vadd.f32 %v9847, %v9869
  %v9923 = vadd.f32 %v9848, %v9873
  %v9924 = vadd.f32 %v9849, %v9869
  %v9925 = vadd.f32 %v9850, %v9873
  %v9926 = vadd.f32 %v9851, %v9869
  %v9927 = vadd.f32 %v9852, %v9873
  %v9928 = vadd.f32 %v9853, %v9869
  %v9929 = vadd.f32 %v9854, %v9873
  %v9930 = vadd.f32 %v9855, %v9869
  %v9931 = vadd.f32 %v9856, %v9873
  %v9932 = vadd.f32 %v9857, %v9869
  %v9933 = vadd.f32 %v9858, %v9873
  %v9934 = vadd.f32 %v9859, %v9869
  %v9935 = vadd.f32 %v9860, %v9873
  %v9936 = vadd.f32 %v9861, %v9869
  %v9937 = vadd.f32 %v9862, %v9873
  %v9938 = vadd.f32 %v9863, %v9869
  %v9939 = vadd.f32 %v9864, %v9873
  %v9940 = vmax.f32 %v9876, 0.0
  %v9941 = vmax.f32 %v9877, 0.0
  %v9942 = vmax.f32 %v9878, 0.0
  %v9943 = vmax.f32 %v9879, 0.0
  %v9944 = vmax.f32 %v9880, 0.0
  %v9945 = vmax.f32 %v9881, 0.0
  %v9946 = vmax.f32 %v9882, 0.0
  %v9947 = vmax.f32 %v9883, 0.0
  %v9948 = vmax.f32 %v9884, 0.0
  %v9949 = vmax.f32 %v9885, 0.0
  %v9950 = vmax.f32 %v9886, 0.0
  %v9951 = vmax.f32 %v9887, 0.0
  %v9952 = vmax.f32 %v9888, 0.0
  %v9953 = vmax.f32 %v9889, 0.0
  %v9954 = vmax.f32 %v9890, 0.0
  %v9955 = vmax.f32 %v9891, 0.0
  %v9956 = vmax.f32 %v9892, 0.0
  %v9957 = vmax.f32 %v9893, 0.0
  %v9958 = vmax.f32 %v9894, 0.0
  %v9959 = vmax.f32 %v9895, 0.0
  %v9960 = vmax.f32 %v9896, 0.0
  %v9961 = vmax.f32 %v9897, 0.0
  %v9962 = vmax.f32 %v9898, 0.0
  %v9963 = vmax.f32 %v9899, 0.0
  %v9964 = vmax.f32 %v9900, 0.0
  %v9965 = vmax.f32 %v9901, 0.0
  %v9966 = vmax.f32 %v9902, 0.0
  %v9967 = vmax.f32 %v9903, 0.0
  %v9968 = vmax.f32 %v9904, 0.0
  %v9969 = vmax.f32 %v9905, 0.0
  %v9970 = vmax.f32 %v9906, 0.0
  %v9971 = vmax.f32 %v9907, 0.0
  %v9972 = vmax.f32 %v9908, 0.0
  %v9973 = vmax.f32 %v9909, 0.0
  %v9974 = vmax.f32 %v9910, 0.0
  %v9975 = vmax.f32 %v9911, 0.0
  %v9976 = vmax.f32 %v9912, 0.0
  %v9977 = vmax.f32 %v9913, 0.0
  %v9978 = vmax.f32 %v9914, 0.0
  %v9979 = vmax.f32 %v9915, 0.0
  %v9980 = vmax.f32 %v9916, 0.0
  %v9981 = vmax.f32 %v9917, 0.0
  %v9982 = vmax.f32 %v9918, 0.0
  %v9983 = vmax.f32 %v9919, 0.0
  %v9984 = vmax.f32 %v9920, 0.0
  %v9985 = vmax.f32 %v9921, 0.0
  %v9986 = vmax.f32 %v9922, 0.0
  %v9987 = vmax.f32 %v9923, 0.0
  %v9988 = vmax.f32 %v9924, 0.0
  %v9989 = vmax.f32 %v9925, 0.0
  %v9990 = vmax.f32 %v9926, 0.0
  %v9991 = vmax.f32 %v9927, 0.0
  %v9992 = vmax.f32 %v9928, 0.0
  %v9993 = vmax.f32 %v9929, 0.0
  %v9994 = vmax.f32 %v9930, 0.0
  %v9995 = vmax.f32 %v9931, 0.0
  %v9996 = vmax.f32 %v9932, 0.0
  %v9997 = vmax.f32 %v9933, 0.0
  %v9998 = vmax.f32 %v9934, 0.0
  %v9999 = vmax.f32 %v9935, 0.0
  %v10000 = vmax.f32 %v9936, 0.0
  %v10001 = vmax.f32 %v9937, 0.0
  %v10002 = vmax.f32 %v9938, 0.0
  %v10003 = vmax.f32 %v9939, 0.0
  %v10004 = vpack.c.bf16 %v9942, %v9940
  %v10005 = vpack.c.bf16 %v9943, %v9941
  %v10006 = vpack.c.bf16 %v9946, %v9944
  %v10007 = vpack.c.bf16 %v9947, %v9945
  %v10008 = vpack.c.bf16 %v9950, %v9948
  %v10009 = vpack.c.bf16 %v9951, %v9949
  %v10010 = vpack.c.bf16 %v9954, %v9952
  %v10011 = vpack.c.bf16 %v9955, %v9953
  %v10012 = vpack.c.bf16 %v9958, %v9956
  %v10013 = vpack.c.bf16 %v9959, %v9957
  %v10014 = vpack.c.bf16 %v9962, %v9960
  %v10015 = vpack.c.bf16 %v9963, %v9961
  %v10016 = vpack.c.bf16 %v9966, %v9964
  %v10017 = vpack.c.bf16 %v9967, %v9965
  %v10018 = vpack.c.bf16 %v9970, %v9968
  %v10019 = vpack.c.bf16 %v9971, %v9969
  %v10020 = vpack.c.bf16 %v9974, %v9972
  %v10021 = vpack.c.bf16 %v9975, %v9973
  %v10022 = vpack.c.bf16 %v9978, %v9976
  %v10023 = vpack.c.bf16 %v9979, %v9977
  %v10024 = vpack.c.bf16 %v9982, %v9980
  %v10025 = vpack.c.bf16 %v9983, %v9981
  %v10026 = vpack.c.bf16 %v9986, %v9984
  %v10027 = vpack.c.bf16 %v9987, %v9985
  %v10028 = vpack.c.bf16 %v9990, %v9988
  %v10029 = vpack.c.bf16 %v9991, %v9989
  %v10030 = vpack.c.bf16 %v9994, %v9992
  %v10031 = vpack.c.bf16 %v9995, %v9993
  %v10032 = vpack.c.bf16 %v9998, %v9996
  %v10033 = vpack.c.bf16 %v9999, %v9997
  %v10034 = vpack.c.bf16 %v10002, %v10000
  %v10035 = vpack.c.bf16 %v10003, %v10001
  %v10036 = vld [vmem:[%s67] sm:$0xff]
  %v10037 = vld [vmem:[%s67 + $0x8] sm:$0xff]
  %v10038 = vld [vmem:[%s67 + $0x10] sm:$0xff]
  %v10039 = vld [vmem:[%s67 + $0x18] sm:$0xff]
  %v10040 = vld [vmem:[%s67 + $0x20] sm:$0xff]
  %v10041 = vld [vmem:[%s67 + $0x28] sm:$0xff]
  %v10042 = vld [vmem:[%s67 + $0x30] sm:$0xff]
  %v10043 = vld [vmem:[%s67 + $0x38] sm:$0xff]
  %v10044 = vld [vmem:[%s67 + $0x40] sm:$0xff]
  %v10045 = vld [vmem:[%s67 + $0x48] sm:$0xff]
  %v10046 = vld [vmem:[%s67 + $0x50] sm:$0xff]
  %v10047 = vld [vmem:[%s67 + $0x58] sm:$0xff]
  %v10048 = vld [vmem:[%s67 + $0x60] sm:$0xff]
  %v10049 = vld [vmem:[%s67 + $0x68] sm:$0xff]
  %v10050 = vld [vmem:[%s67 + $0x70] sm:$0xff]
  %v10051 = vld [vmem:[%s67 + $0x78] sm:$0xff]
  %v10052 = vld [vmem:[%s67 + $0x80] sm:$0xff]
  %v10053 = vld [vmem:[%s67 + $0x88] sm:$0xff]
  %v10054 = vld [vmem:[%s67 + $0x90] sm:$0xff]
  %v10055 = vld [vmem:[%s67 + $0x98] sm:$0xff]
  %v10056 = vld [vmem:[%s67 + $0xa0] sm:$0xff]
  %v10057 = vld [vmem:[%s67 + $0xa8] sm:$0xff]
  %v10058 = vld [vmem:[%s67 + $0xb0] sm:$0xff]
  %v10059 = vld [vmem:[%s67 + $0xb8] sm:$0xff]
  %v10060 = vld [vmem:[%s67 + $0xc0] sm:$0xff]
  %v10061 = vld [vmem:[%s67 + $0xc8] sm:$0xff]
  %v10062 = vld [vmem:[%s67 + $0xd0] sm:$0xff]
  %v10063 = vld [vmem:[%s67 + $0xd8] sm:$0xff]
  %v10064 = vld [vmem:[%s67 + $0xe0] sm:$0xff]
  %v10065 = vld [vmem:[%s67 + $0xe8] sm:$0xff]
  %v10066 = vld [vmem:[%s67 + $0xf0] sm:$0xff]
  %v10067 = vld [vmem:[%s67 + $0xf8] sm:$0xff]
  %v10100 = vunpack.c.l.b16 %v10036
  %v10101 = vunpack.c.h.b16 %v10036
  %v10102 = vunpack.c.l.b16 %v10037
  %v10103 = vunpack.c.h.b16 %v10037
  %v10104 = vunpack.c.l.b16 %v10038
  %v10105 = vunpack.c.h.b16 %v10038
  %v10106 = vunpack.c.l.b16 %v10039
  %v10107 = vunpack.c.h.b16 %v10039
  %v10108 = vunpack.c.l.b16 %v10040
  %v10109 = vunpack.c.h.b16 %v10040
  %v10110 = vunpack.c.l.b16 %v10041
  %v10111 = vunpack.c.h.b16 %v10041
  %v10112 = vunpack.c.l.b16 %v10042
  %v10113 = vunpack.c.h.b16 %v10042
  %v10114 = vunpack.c.l.b16 %v10043
  %v10115 = vunpack.c.h.b16 %v10043
  %v10116 = vunpack.c.l.b16 %v10044
  %v10117 = vunpack.c.h.b16 %v10044
  %v10118 = vunpack.c.l.b16 %v10045
  %v10119 = vunpack.c.h.b16 %v10045
  %v10120 = vunpack.c.l.b16 %v10046
  %v10121 = vunpack.c.h.b16 %v10046
  %v10122 = vunpack.c.l.b16 %v10047
  %v10123 = vunpack.c.h.b16 %v10047
  %v10124 = vunpack.c.l.b16 %v10048
  %v10125 = vunpack.c.h.b16 %v10048
  %v10126 = vunpack.c.l.b16 %v10049
  %v10127 = vunpack.c.h.b16 %v10049
  %v10128 = vunpack.c.l.b16 %v10050
  %v10129 = vunpack.c.h.b16 %v10050
  %v10130 = vunpack.c.l.b16 %v10051
  %v10131 = vunpack.c.h.b16 %v10051
  %v10132 = vunpack.c.l.b16 %v10052
  %v10133 = vunpack.c.h.b16 %v10052
  %v10134 = vunpack.c.l.b16 %v10053
  %v10135 = vunpack.c.h.b16 %v10053
  %v10136 = vunpack.c.l.b16 %v10054
  %v10137 = vunpack.c.h.b16 %v10054
  %v10138 = vunpack.c.l.b16 %v10055
  %v10139 = vunpack.c.h.b16 %v10055
  %v10140 = vunpack.c.l.b16 %v10056
  %v10141 = vunpack.c.h.b16 %v10056
  %v10142 = vunpack.c.l.b16 %v10057
  %v10143 = vunpack.c.h.b16 %v10057
  %v10144 = vunpack.c.l.b16 %v10058
  %v10145 = vunpack.c.h.b16 %v10058
  %v10146 = vunpack.c.l.b16 %v10059
  %v10147 = vunpack.c.h.b16 %v10059
  %v10148 = vunpack.c.l.b16 %v10060
  %v10149 = vunpack.c.h.b16 %v10060
  %v10150 = vunpack.c.l.b16 %v10061
  %v10151 = vunpack.c.h.b16 %v10061
  %v10152 = vunpack.c.l.b16 %v10062
  %v10153 = vunpack.c.h.b16 %v10062
  %v10154 = vunpack.c.l.b16 %v10063
  %v10155 = vunpack.c.h.b16 %v10063
  %v10156 = vunpack.c.l.b16 %v10064
  %v10157 = vunpack.c.h.b16 %v10064
  %v10158 = vunpack.c.l.b16 %v10065
  %v10159 = vunpack.c.h.b16 %v10065
  %v10160 = vunpack.c.l.b16 %v10066
  %v10161 = vunpack.c.h.b16 %v10066
  %v10162 = vunpack.c.l.b16 %v10067
  %v10163 = vunpack.c.h.b16 %v10067
  %v10164 = vpack.c.b16 %v10102, %v10100
  %v10165 = vpack.c.b16 %v10103, %v10101
  %v10166 = vpack.c.b16 %v10106, %v10104
  %v10167 = vpack.c.b16 %v10107, %v10105
  %v10168 = vpack.c.b16 %v10110, %v10108
  %v10169 = vpack.c.b16 %v10111, %v10109
  %v10170 = vpack.c.b16 %v10114, %v10112
  %v10171 = vpack.c.b16 %v10115, %v10113
  %v10172 = vpack.c.b16 %v10118, %v10116
  %v10173 = vpack.c.b16 %v10119, %v10117
  %v10174 = vpack.c.b16 %v10122, %v10120
  %v10175 = vpack.c.b16 %v10123, %v10121
  %v10176 = vpack.c.b16 %v10126, %v10124
  %v10177 = vpack.c.b16 %v10127, %v10125
  %v10178 = vpack.c.b16 %v10130, %v10128
  %v10179 = vpack.c.b16 %v10131, %v10129
  %v10180 = vpack.c.b16 %v10134, %v10132
  %v10181 = vpack.c.b16 %v10135, %v10133
  %v10182 = vpack.c.b16 %v10138, %v10136
  %v10183 = vpack.c.b16 %v10139, %v10137
  %v10184 = vpack.c.b16 %v10142, %v10140
  %v10185 = vpack.c.b16 %v10143, %v10141
  %v10186 = vpack.c.b16 %v10146, %v10144
  %v10187 = vpack.c.b16 %v10147, %v10145
  %v10188 = vpack.c.b16 %v10150, %v10148
  %v10189 = vpack.c.b16 %v10151, %v10149
  %v10190 = vpack.c.b16 %v10154, %v10152
  %v10191 = vpack.c.b16 %v10155, %v10153
  %v10192 = vpack.c.b16 %v10158, %v10156
  %v10193 = vpack.c.b16 %v10159, %v10157
  %v10194 = vpack.c.b16 %v10162, %v10160
  %v10195 = vpack.c.b16 %v10163, %v10161
  %10228 = vmatprep.subr.bf16.mxu0 %v10165
  %10229 = vmatpush1.bf16.msra.mxu0 %v10164
  %10230 = vmatprep.subr.bf16.mxu0 %v10167
  %10231 = vmatpush1.bf16.msra.mxu0 %v10166
  %10232 = vmatprep.subr.bf16.mxu0 %v10169
  %10233 = vmatpush1.bf16.msra.mxu0 %v10168
  %10234 = vmatprep.subr.bf16.mxu0 %v10171
  %10235 = vmatpush1.bf16.msra.mxu0 %v10170
  %10236 = vmatprep.subr.bf16.mxu0 %v10173
  %10237 = vmatpush1.bf16.msra.mxu0 %v10172
  %10238 = vmatprep.subr.bf16.mxu0 %v10175
  %10239 = vmatpush1.bf16.msra.mxu0 %v10174
  %10240 = vmatprep.subr.bf16.mxu0 %v10177
  %10241 = vmatpush1.bf16.msra.mxu0 %v10176
  %10242 = vmatprep.subr.bf16.mxu0 %v10179
  %10243 = vmatpush1.bf16.msra.mxu0 %v10178
  %10244 = vmatprep.subr.bf16.mxu0 %v10181
  %10245 = vmatpush1.bf16.msra.mxu0 %v10180
  %10246 = vmatprep.subr.bf16.mxu0 %v10183
  %10247 = vmatpush1.bf16.msra.mxu0 %v10182
  %10248 = vmatprep.subr.bf16.mxu0 %v10185
  %10249 = vmatpush1.bf16.msra.mxu0 %v10184
  %10250 = vmatprep.subr.bf16.mxu0 %v10187
  %10251 = vmatpush1.bf16.msra.mxu0 %v10186
  %10252 = vmatprep.subr.bf16.mxu0 %v10189
  %10253 = vmatpush1.bf16.msra.mxu0 %v10188
  %10254 = vmatprep.subr.bf16.mxu0 %v10191
  %10255 = vmatpush1.bf16.msra.mxu0 %v10190
  %10256 = vmatprep.subr.bf16.mxu0 %v10193
  %10257 = vmatpush1.bf16.msra.mxu0 %v10192
  %10258 = vmatprep.subr.bf16.mxu0 %v10195
  %10259 = vmatpush1.bf16.msra.mxu0 %v10194
  %10260 = vmatprep.mubr.bf16.mxu0 %v10005
  %10261 = vmatmul.mubr.bf16.gmra.mrb[0].mxu0 %v10004
  %v10262 = vpop.f32.mrb[0].mxu0
  %v10263 = vadd.f32 0.0, %v10262
  %v10264 = vpop.f32.mrb[0].mxu0
  %v10265 = vadd.f32 0.0, %v10264
  %v10266 = vpop.f32.mrb[0].mxu0
  %v10267 = vadd.f32 0.0, %v10266
  %v10268 = vpop.f32.mrb[0].mxu0
  %v10269 = vadd.f32 0.0, %v10268
  %10270 = vmatprep.mubr.bf16.mxu0 %v10007
  %10271 = vmatmul.mubr.bf16.gmra.mrb[0].mxu0 %v10006
  %v10272 = vpop.f32.mrb[0].mxu0
  %v10273 = vadd.f32 0.0, %v10272
  %v10274 = vpop.f32.mrb[0].mxu0
  %v10275 = vadd.f32 0.0, %v10274
  %v10276 = vpop.f32.mrb[0].mxu0
  %v10277 = vadd.f32 0.0, %v10276
  %v10278 = vpop.f32.mrb[0].mxu0
  %v10279 = vadd.f32 0.0, %v10278
  %10280 = vmatprep.mubr.bf16.mxu0 %v10009
  %10281 = vmatmul.mubr.bf16.gmra.mrb[0].mxu0 %v10008
  %v10282 = vpop.f32.mrb[0].mxu0
  %v10283 = vadd.f32 0.0, %v10282
  %v10284 = vpop.f32.mrb[0].mxu0
  %v10285 = vadd.f32 0.0, %v10284
  %v10286 = vpop.f32.mrb[0].mxu0
  %v10287 = vadd.f32 0.0, %v10286
  %v10288 = vpop.f32.mrb[0].mxu0
  %v10289 = vadd.f32 0.0, %v10288
  %10290 = vmatprep.mubr.bf16.mxu0 %v10011
  %10291 = vmatmul.mubr.bf16.gmra.mrb[0].mxu0 %v10010
  %v10292 = vpop.f32.mrb[0].mxu0
  %v10293 = vadd.f32 0.0, %v10292
  %v10294 = vpop.f32.mrb[0].mxu0
  %v10295 = vadd.f32 0.0, %v10294
  %v10296 = vpop.f32.mrb[0].mxu0
  %v10297 = vadd.f32 0.0, %v10296
  %v10298 = vpop.f32.mrb[0].mxu0
  %v10299 = vadd.f32 0.0, %v10298
  %10300 = vmatprep.mubr.bf16.mxu0 %v10013
  %10301 = vmatmul.mubr.bf16.gmra.mrb[0].mxu0 %v10012
  %v10302 = vpop.f32.mrb[0].mxu0
  %v10303 = vadd.f32 0.0, %v10302
  %v10304 = vpop.f32.mrb[0].mxu0
  %v10305 = vadd.f32 0.0, %v10304
  %v10306 = vpop.f32.mrb[0].mxu0
  %v10307 = vadd.f32 0.0, %v10306
  %v10308 = vpop.f32.mrb[0].mxu0
  %v10309 = vadd.f32 0.0, %v10308
  %10310 = vmatprep.mubr.bf16.mxu0 %v10015
  %10311 = vmatmul.mubr.bf16.gmra.mrb[0].mxu0 %v10014
  %v10312 = vpop.f32.mrb[0].mxu0
  %v10313 = vadd.f32 0.0, %v10312
  %v10314 = vpop.f32.mrb[0].mxu0
  %v10315 = vadd.f32 0.0, %v10314
  %v10316 = vpop.f32.mrb[0].mxu0
  %v10317 = vadd.f32 0.0, %v10316
  %v10318 = vpop.f32.mrb[0].mxu0
  %v10319 = vadd.f32 0.0, %v10318
  %10320 = vmatprep.mubr.bf16.mxu0 %v10017
  %10321 = vmatmul.mubr.bf16.gmra.mrb[0].mxu0 %v10016
  %v10322 = vpop.f32.mrb[0].mxu0
  %v10323 = vadd.f32 0.0, %v10322
  %v10324 = vpop.f32.mrb[0].mxu0
  %v10325 = vadd.f32 0.0, %v10324
  %v10326 = vpop.f32.mrb[0].mxu0
  %v10327 = vadd.f32 0.0, %v10326
  %v10328 = vpop.f32.mrb[0].mxu0
  %v10329 = vadd.f32 0.0, %v10328
  %10330 = vmatprep.mubr.bf16.mxu0 %v10019
  %10331 = vmatmul.mubr.bf16.gmra.mrb[0].mxu0 %v10018
  %v10332 = vpop.f32.mrb[0].mxu0
  %v10333 = vadd.f32 0.0, %v10332
  %v10334 = vpop.f32.mrb[0].mxu0
  %v10335 = vadd.f32 0.0, %v10334
  %v10336 = vpop.f32.mrb[0].mxu0
  %v10337 = vadd.f32 0.0, %v10336
  %v10338 = vpop.f32.mrb[0].mxu0
  %v10339 = vadd.f32 0.0, %v10338
  %10340 = vmatprep.mubr.bf16.mxu0 %v10021
  %10341 = vmatmul.mubr.bf16.gmra.mrb[0].mxu0 %v10020
  %v10342 = vpop.f32.mrb[0].mxu0
  %v10343 = vadd.f32 0.0, %v10342
  %v10344 = vpop.f32.mrb[0].mxu0
  %v10345 = vadd.f32 0.0, %v10344
  %v10346 = vpop.f32.mrb[0].mxu0
  %v10347 = vadd.f32 0.0, %v10346
  %v10348 = vpop.f32.mrb[0].mxu0
  %v10349 = vadd.f32 0.0, %v10348
  %10350 = vmatprep.mubr.bf16.mxu0 %v10023
  %10351 = vmatmul.mubr.bf16.gmra.mrb[0].mxu0 %v10022
  %v10352 = vpop.f32.mrb[0].mxu0
  %v10353 = vadd.f32 0.0, %v10352
  %v10354 = vpop.f32.mrb[0].mxu0
  %v10355 = vadd.f32 0.0, %v10354
  %v10356 = vpop.f32.mrb[0].mxu0
  %v10357 = vadd.f32 0.0, %v10356
  %v10358 = vpop.f32.mrb[0].mxu0
  %v10359 = vadd.f32 0.0, %v10358
  %10360 = vmatprep.mubr.bf16.mxu0 %v10025
  %10361 = vmatmul.mubr.bf16.gmra.mrb[0].mxu0 %v10024
  %v10362 = vpop.f32.mrb[0].mxu0
  %v10363 = vadd.f32 0.0, %v10362
  %v10364 = vpop.f32.mrb[0].mxu0
  %v10365 = vadd.f32 0.0, %v10364
  %v10366 = vpop.f32.mrb[0].mxu0
  %v10367 = vadd.f32 0.0, %v10366
  %v10368 = vpop.f32.mrb[0].mxu0
  %v10369 = vadd.f32 0.0, %v10368
  %10370 = vmatprep.mubr.bf16.mxu0 %v10027
  %10371 = vmatmul.mubr.bf16.gmra.mrb[0].mxu0 %v10026
  %v10372 = vpop.f32.mrb[0].mxu0
  %v10373 = vadd.f32 0.0, %v10372
  %v10374 = vpop.f32.mrb[0].mxu0
  %v10375 = vadd.f32 0.0, %v10374
  %v10376 = vpop.f32.mrb[0].mxu0
  %v10377 = vadd.f32 0.0, %v10376
  %v10378 = vpop.f32.mrb[0].mxu0
  %v10379 = vadd.f32 0.0, %v10378
  %10380 = vmatprep.mubr.bf16.mxu0 %v10029
  %10381 = vmatmul.mubr.bf16.gmra.mrb[0].mxu0 %v10028
  %v10382 = vpop.f32.mrb[0].mxu0
  %v10383 = vadd.f32 0.0, %v10382
  %v10384 = vpop.f32.mrb[0].mxu0
  %v10385 = vadd.f32 0.0, %v10384
  %v10386 = vpop.f32.mrb[0].mxu0
  %v10387 = vadd.f32 0.0, %v10386
  %v10388 = vpop.f32.mrb[0].mxu0
  %v10389 = vadd.f32 0.0, %v10388
  %10390 = vmatprep.mubr.bf16.mxu0 %v10031
  %10391 = vmatmul.mubr.bf16.gmra.mrb[0].mxu0 %v10030
  %v10392 = vpop.f32.mrb[0].mxu0
  %v10393 = vadd.f32 0.0, %v10392
  %v10394 = vpop.f32.mrb[0].mxu0
  %v10395 = vadd.f32 0.0, %v10394
  %v10396 = vpop.f32.mrb[0].mxu0
  %v10397 = vadd.f32 0.0, %v10396
  %v10398 = vpop.f32.mrb[0].mxu0
  %v10399 = vadd.f32 0.0, %v10398
  %10400 = vmatprep.mubr.bf16.mxu0 %v10033
  %10401 = vmatmul.mubr.bf16.gmra.mrb[0].mxu0 %v10032
  %v10402 = vpop.f32.mrb[0].mxu0
  %v10403 = vadd.f32 0.0, %v10402
  %v10404 = vpop.f32.mrb[0].mxu0
  %v10405 = vadd.f32 0.0, %v10404
  %v10406 = vpop.f32.mrb[0].mxu0
  %v10407 = vadd.f32 0.0, %v10406
  %v10408 = vpop.f32.mrb[0].mxu0
  %v10409 = vadd.f32 0.0, %v10408
  %10410 = vmatprep.mubr.bf16.mxu0 %v10035
  %10411 = vmatmul.mubr.bf16.gmra.mrb[0].mxu0 %v10034
  %v10412 = vpop.f32.mrb[0].mxu0
  %v10413 = vadd.f32 0.0, %v10412
  %v10414 = vpop.f32.mrb[0].mxu0
  %v10415 = vadd.f32 0.0, %v10414
  %v10416 = vpop.f32.mrb[0].mxu0
  %v10417 = vadd.f32 0.0, %v10416
  %v10418 = vpop.f32.mrb[0].mxu0
  %v10419 = vadd.f32 0.0, %v10418
  %10420 = vdwg.mxu0
  %v10421 = vld [vmem:[%s69] sm:$0x3]
  %v10423 = vlaneseq
  %v10424 = vshrl.u32 %v10423, 7
  %v10425 = vsub.s32 0, %v10424
  %v10426 = vrot.slane %v10421, %v10425
  %v10427 = vlaneseq
  %v10428 = vshrl.u32 %v10427, 7
  %v10429 = vsub.s32 1, %v10428
  %v10430 = vrot.slane %v10421, %v10429
  %v10433 = vadd.f32 %v10263, %v10426
  %v10434 = vadd.f32 %v10265, %v10430
  %v10435 = vadd.f32 %v10267, %v10426
  %v10436 = vadd.f32 %v10269, %v10430
  %v10437 = vadd.f32 %v10273, %v10426
  %v10438 = vadd.f32 %v10275, %v10430
  %v10439 = vadd.f32 %v10277, %v10426
  %v10440 = vadd.f32 %v10279, %v10430
  %v10441 = vadd.f32 %v10283, %v10426
  %v10442 = vadd.f32 %v10285, %v10430
  %v10443 = vadd.f32 %v10287, %v10426
  %v10444 = vadd.f32 %v10289, %v10430
  %v10445 = vadd.f32 %v10293, %v10426
  %v10446 = vadd.f32 %v10295, %v10430
  %v10447 = vadd.f32 %v10297, %v10426
  %v10448 = vadd.f32 %v10299, %v10430
  %v10449 = vadd.f32 %v10303, %v10426
  %v10450 = vadd.f32 %v10305, %v10430
  %v10451 = vadd.f32 %v10307, %v10426
  %v10452 = vadd.f32 %v10309, %v10430
  %v10453 = vadd.f32 %v10313, %v10426
  %v10454 = vadd.f32 %v10315, %v10430
  %v10455 = vadd.f32 %v10317, %v10426
  %v10456 = vadd.f32 %v10319, %v10430
  %v10457 = vadd.f32 %v10323, %v10426
  %v10458 = vadd.f32 %v10325, %v10430
  %v10459 = vadd.f32 %v10327, %v10426
  %v10460 = vadd.f32 %v10329, %v10430
  %v10461 = vadd.f32 %v10333, %v10426
  %v10462 = vadd.f32 %v10335, %v10430
  %v10463 = vadd.f32 %v10337, %v10426
  %v10464 = vadd.f32 %v10339, %v10430
  %v10465 = vadd.f32 %v10343, %v10426
  %v10466 = vadd.f32 %v10345, %v10430
  %v10467 = vadd.f32 %v10347, %v10426
  %v10468 = vadd.f32 %v10349, %v10430
  %v10469 = vadd.f32 %v10353, %v10426
  %v10470 = vadd.f32 %v10355, %v10430
  %v10471 = vadd.f32 %v10357, %v10426
  %v10472 = vadd.f32 %v10359, %v10430
  %v10473 = vadd.f32 %v10363, %v10426
  %v10474 = vadd.f32 %v10365, %v10430
  %v10475 = vadd.f32 %v10367, %v10426
  %v10476 = vadd.f32 %v10369, %v10430
  %v10477 = vadd.f32 %v10373, %v10426
  %v10478 = vadd.f32 %v10375, %v10430
  %v10479 = vadd.f32 %v10377, %v10426
  %v10480 = vadd.f32 %v10379, %v10430
  %v10481 = vadd.f32 %v10383, %v10426
  %v10482 = vadd.f32 %v10385, %v10430
  %v10483 = vadd.f32 %v10387, %v10426
  %v10484 = vadd.f32 %v10389, %v10430
  %v10485 = vadd.f32 %v10393, %v10426
  %v10486 = vadd.f32 %v10395, %v10430
  %v10487 = vadd.f32 %v10397, %v10426
  %v10488 = vadd.f32 %v10399, %v10430
  %v10489 = vadd.f32 %v10403, %v10426
  %v10490 = vadd.f32 %v10405, %v10430
  %v10491 = vadd.f32 %v10407, %v10426
  %v10492 = vadd.f32 %v10409, %v10430
  %v10493 = vadd.f32 %v10413, %v10426
  %v10494 = vadd.f32 %v10415, %v10430
  %v10495 = vadd.f32 %v10417, %v10426
  %v10496 = vadd.f32 %v10419, %v10430
  %10497 = vmatprep.subr.mxu0 %v10434
  %10498 = vmatpush1.msra.mxu0 %v10433
  %10499 = vmatprep.subr.mxu0 %v10436
  %10500 = vmatpush1.msra.mxu0 %v10435
  %10501 = vmatprep.subr.mxu0 %v10438
  %10502 = vmatpush1.msra.mxu0 %v10437
  %10503 = vmatprep.subr.mxu0 %v10440
  %10504 = vmatpush1.msra.mxu0 %v10439
  %10505 = vmatprep.subr.mxu0 %v10442
  %10506 = vmatpush1.msra.mxu0 %v10441
  %10507 = vmatprep.subr.mxu0 %v10444
  %10508 = vmatpush1.msra.mxu0 %v10443
  %10509 = vmatprep.subr.mxu0 %v10446
  %10510 = vmatpush1.msra.mxu0 %v10445
  %10511 = vmatprep.subr.mxu0 %v10448
  %10512 = vmatpush1.msra.mxu0 %v10447
  %10513 = vmatprep.subr.mxu0 %v10450
  %10514 = vmatpush1.msra.mxu0 %v10449
  %10515 = vmatprep.subr.mxu0 %v10452
  %10516 = vmatpush1.msra.mxu0 %v10451
  %10517 = vmatprep.subr.mxu0 %v10454
  %10518 = vmatpush1.msra.mxu0 %v10453
  %10519 = vmatprep.subr.mxu0 %v10456
  %10520 = vmatpush1.msra.mxu0 %v10455
  %10521 = vmatprep.subr.mxu0 %v10458
  %10522 = vmatpush1.msra.mxu0 %v10457
  %10523 = vmatprep.subr.mxu0 %v10460
  %10524 = vmatpush1.msra.mxu0 %v10459
  %10525 = vmatprep.subr.mxu0 %v10462
  %10526 = vmatpush1.msra.mxu0 %v10461
  %10527 = vmatprep.subr.mxu0 %v10464
  %10528 = vmatpush1.msra.mxu0 %v10463
  %10529 = vmatprep.subr.mxu0 %v10466
  %10530 = vmatpush1.msra.mxu0 %v10465
  %10531 = vmatprep.subr.mxu0 %v10468
  %10532 = vmatpush1.msra.mxu0 %v10467
  %10533 = vmatprep.subr.mxu0 %v10470
  %10534 = vmatpush1.msra.mxu0 %v10469
  %10535 = vmatprep.subr.mxu0 %v10472
  %10536 = vmatpush1.msra.mxu0 %v10471
  %10537 = vmatprep.subr.mxu0 %v10474
  %10538 = vmatpush1.msra.mxu0 %v10473
  %10539 = vmatprep.subr.mxu0 %v10476
  %10540 = vmatpush1.msra.mxu0 %v10475
  %10541 = vmatprep.subr.mxu0 %v10478
  %10542 = vmatpush1.msra.mxu0 %v10477
  %10543 = vmatprep.subr.mxu0 %v10480
  %10544 = vmatpush1.msra.mxu0 %v10479
  %10545 = vmatprep.subr.mxu0 %v10482
  %10546 = vmatpush1.msra.mxu0 %v10481
  %10547 = vmatprep.subr.mxu0 %v10484
  %10548 = vmatpush1.msra.mxu0 %v10483
  %10549 = vmatprep.subr.mxu0 %v10486
  %10550 = vmatpush1.msra.mxu0 %v10485
  %10551 = vmatprep.subr.mxu0 %v10488
  %10552 = vmatpush1.msra.mxu0 %v10487
  %10553 = vmatprep.subr.mxu0 %v10490
  %10554 = vmatpush1.msra.mxu0 %v10489
  %10555 = vmatprep.subr.mxu0 %v10492
  %10556 = vmatpush1.msra.mxu0 %v10491
  %10557 = vmatprep.subr.mxu0 %v10494
  %10558 = vmatpush1.msra.mxu0 %v10493
  %10559 = vmatprep.subr.mxu0 %v10496
  %10560 = vmatpush1.msra.mxu0 %v10495
  %10561 = vmatprep.mubr.f32.mxu0 1.0
  %10562 = vmatmul.mubr.f32.gmra.mrb[0].mxu0 1.0
  %v10563 = vpop.f32.mrb[0].mxu0
  %v10564 = vadd.f32 0.0, %v10563
  %v10565 = vpop.f32.mrb[0].mxu0
  %v10566 = vadd.f32 0.0, %v10565
  %10567 = vdwg.mxu0
  %v10568 = vmul.f32 %v10433, %v10433
  %v10569 = vmul.f32 %v10434, %v10434
  %v10570 = vmul.f32 %v10435, %v10435
  %v10571 = vmul.f32 %v10436, %v10436
  %v10572 = vmul.f32 %v10437, %v10437
  %v10573 = vmul.f32 %v10438, %v10438
  %v10574 = vmul.f32 %v10439, %v10439
  %v10575 = vmul.f32 %v10440, %v10440
  %v10576 = vmul.f32 %v10441, %v10441
  %v10577 = vmul.f32 %v10442, %v10442
  %v10578 = vmul.f32 %v10443, %v10443
  %v10579 = vmul.f32 %v10444, %v10444
  %v10580 = vmul.f32 %v10445, %v10445
  %v10581 = vmul.f32 %v10446, %v10446
  %v10582 = vmul.f32 %v10447, %v10447
  %v10583 = vmul.f32 %v10448, %v10448
  %v10584 = vmul.f32 %v10449, %v10449
  %v10585 = vmul.f32 %v10450, %v10450
  %v10586 = vmul.f32 %v10451, %v10451
  %v10587 = vmul.f32 %v10452, %v10452
  %v10588 = vmul.f32 %v10453, %v10453
  %v10589 = vmul.f32 %v10454, %v10454
  %v10590 = vmul.f32 %v10455, %v10455
  %v10591 = vmul.f32 %v10456, %v10456
  %v10592 = vmul.f32 %v10457, %v10457
  %v10593 = vmul.f32 %v10458, %v10458
  %v10594 = vmul.f32 %v10459, %v10459
  %v10595 = vmul.f32 %v10460, %v10460
  %v10596 = vmul.f32 %v10461, %v10461
  %v10597 = vmul.f32 %v10462, %v10462
  %v10598 = vmul.f32 %v10463, %v10463
  %v10599 = vmul.f32 %v10464, %v10464
  %v10600 = vmul.f32 %v10465, %v10465
  %v10601 = vmul.f32 %v10466, %v10466
  %v10602 = vmul.f32 %v10467, %v10467
  %v10603 = vmul.f32 %v10468, %v10468
  %v10604 = vmul.f32 %v10469, %v10469
  %v10605 = vmul.f32 %v10470, %v10470
  %v10606 = vmul.f32 %v10471, %v10471
  %v10607 = vmul.f32 %v10472, %v10472
  %v10608 = vmul.f32 %v10473, %v10473
  %v10609 = vmul.f32 %v10474, %v10474
  %v10610 = vmul.f32 %v10475, %v10475
  %v10611 = vmul.f32 %v10476, %v10476
  %v10612 = vmul.f32 %v10477, %v10477
  %v10613 = vmul.f32 %v10478, %v10478
  %v10614 = vmul.f32 %v10479, %v10479
  %v10615 = vmul.f32 %v10480, %v10480
  %v10616 = vmul.f32 %v10481, %v10481
  %v10617 = vmul.f32 %v10482, %v10482
  %v10618 = vmul.f32 %v10483, %v10483
  %v10619 = vmul.f32 %v10484, %v10484
  %v10620 = vmul.f32 %v10485, %v10485
  %v10621 = vmul.f32 %v10486, %v10486
  %v10622 = vmul.f32 %v10487, %v10487
  %v10623 = vmul.f32 %v10488, %v10488
  %v10624 = vmul.f32 %v10489, %v10489
  %v10625 = vmul.f32 %v10490, %v10490
  %v10626 = vmul.f32 %v10491, %v10491
  %v10627 = vmul.f32 %v10492, %v10492
  %v10628 = vmul.f32 %v10493, %v10493
  %v10629 = vmul.f32 %v10494, %v10494
  %v10630 = vmul.f32 %v10495, %v10495
  %v10631 = vmul.f32 %v10496, %v10496
  %10632 = vmatprep.subr.mxu0 %v10569
  %10633 = vmatpush1.msra.mxu0 %v10568
  %10634 = vmatprep.subr.mxu0 %v10571
  %10635 = vmatpush1.msra.mxu0 %v10570
  %10636 = vmatprep.subr.mxu0 %v10573
  %10637 = vmatpush1.msra.mxu0 %v10572
  %10638 = vmatprep.subr.mxu0 %v10575
  %10639 = vmatpush1.msra.mxu0 %v10574
  %10640 = vmatprep.subr.mxu0 %v10577
  %10641 = vmatpush1.msra.mxu0 %v10576
  %10642 = vmatprep.subr.mxu0 %v10579
  %10643 = vmatpush1.msra.mxu0 %v10578
  %10644 = vmatprep.subr.mxu0 %v10581
  %10645 = vmatpush1.msra.mxu0 %v10580
  %10646 = vmatprep.subr.mxu0 %v10583
  %10647 = vmatpush1.msra.mxu0 %v10582
  %10648 = vmatprep.subr.mxu0 %v10585
  %10649 = vmatpush1.msra.mxu0 %v10584
  %10650 = vmatprep.subr.mxu0 %v10587
  %10651 = vmatpush1.msra.mxu0 %v10586
  %10652 = vmatprep.subr.mxu0 %v10589
  %10653 = vmatpush1.msra.mxu0 %v10588
  %10654 = vmatprep.subr.mxu0 %v10591
  %10655 = vmatpush1.msra.mxu0 %v10590
  %10656 = vmatprep.subr.mxu0 %v10593
  %10657 = vmatpush1.msra.mxu0 %v10592
  %10658 = vmatprep.subr.mxu0 %v10595
  %10659 = vmatpush1.msra.mxu0 %v10594
  %10660 = vmatprep.subr.mxu0 %v10597
  %10661 = vmatpush1.msra.mxu0 %v10596
  %10662 = vmatprep.subr.mxu0 %v10599
  %10663 = vmatpush1.msra.mxu0 %v10598
  %10664 = vmatprep.subr.mxu0 %v10601
  %10665 = vmatpush1.msra.mxu0 %v10600
  %10666 = vmatprep.subr.mxu0 %v10603
  %10667 = vmatpush1.msra.mxu0 %v10602
  %10668 = vmatprep.subr.mxu0 %v10605
  %10669 = vmatpush1.msra.mxu0 %v10604
  %10670 = vmatprep.subr.mxu0 %v10607
  %10671 = vmatpush1.msra.mxu0 %v10606
  %10672 = vmatprep.subr.mxu0 %v10609
  %10673 = vmatpush1.msra.mxu0 %v10608
  %10674 = vmatprep.subr.mxu0 %v10611
  %10675 = vmatpush1.msra.mxu0 %v10610
  %10676 = vmatprep.subr.mxu0 %v10613
  %10677 = vmatpush1.msra.mxu0 %v10612
  %10678 = vmatprep.subr.mxu0 %v10615
  %10679 = vmatpush1.msra.mxu0 %v10614
  %10680 = vmatprep.subr.mxu0 %v10617
  %10681 = vmatpush1.msra.mxu0 %v10616
  %10682 = vmatprep.subr.mxu0 %v10619
  %10683 = vmatpush1.msra.mxu0 %v10618
  %10684 = vmatprep.subr.mxu0 %v10621
  %10685 = vmatpush1.msra.mxu0 %v10620
  %10686 = vmatprep.subr.mxu0 %v10623
  %10687 = vmatpush1.msra.mxu0 %v10622
  %10688 = vmatprep.subr.mxu0 %v10625
  %10689 = vmatpush1.msra.mxu0 %v10624
  %10690 = vmatprep.subr.mxu0 %v10627
  %10691 = vmatpush1.msra.mxu0 %v10626
  %10692 = vmatprep.subr.mxu0 %v10629
  %10693 = vmatpush1.msra.mxu0 %v10628
  %10694 = vmatprep.subr.mxu0 %v10631
  %10695 = vmatpush1.msra.mxu0 %v10630
  %10696 = vmatprep.mubr.f32.mxu0 1.0
  %10697 = vmatmul.mubr.f32.gmra.mrb[0].mxu0 1.0
  %v10698 = vpop.f32.mrb[0].mxu0
  %v10699 = vadd.f32 0.0, %v10698
  %v10700 = vpop.f32.mrb[0].mxu0
  %v10701 = vadd.f32 0.0, %v10700
  %10702 = vdwg.mxu0
  %v10703 = vmul.f32 %v10564, 0.00390625
  %v10704 = vmul.f32 %v10566, 0.00390625
  %v10705 = vmul.f32 %v10699, 0.00390625
  %v10706 = vmul.f32 %v10701, 0.00390625
  %v10707 = vmul.f32 %v10703, %v10703
  %v10708 = vmul.f32 %v10704, %v10704
  %v10709 = vsub.f32 %v10705, %v10707
  %v10710 = vsub.f32 %v10706, %v10708
  %v10711 = vmax.f32 %v10709, 0.0
  %v10712 = vmax.f32 %v10710, 0.0
  %v10713 = vld [vmem:[%s71] sm:$0x3]
  %v10714 = vadd.f32 %v10711, 1e-05
  %v10715 = vadd.f32 %v10712, 1e-05
  %v10716 = vrsqrt.pop %v10714
  %v10717 = vrsqrt.pop %v10715
  %v10720 = vcombine.low %v10716, %v10717
  %v10722 = vunpack.c.l.s4 1966171168
  %v10723 = vunpack.c.0.s8 %v10722
  %v10724 = vlaneseq
  %v10725 = vshrl.u32 %v10724, 7
  %v10726 = vsub.s32 %v10723, %v10725
  %v10727 = vrot.slane %v10720, %v10726
  %v10729 = vunpack.c.l.s4 1966171168
  %v10730 = vunpack.c.0.s8 %v10729
  %v10731 = vlaneseq
  %v10732 = vshrl.u32 %v10731, 7
  %v10733 = vsub.s32 %v10730, %v10732
  %v10734 = vrot.slane %v10727, %v10733
  %v10736 = vmul.f32 %v10713, %v10734
  %v10737 = vld [vmem:[%s73] sm:$0x3]
  %v10739 = vlaneseq
  %v10740 = vshrl.u32 %v10739, 7
  %v10741 = vsub.s32 0, %v10740
  %v10742 = vrot.slane %v10736, %v10741
  %v10743 = vlaneseq
  %v10744 = vshrl.u32 %v10743, 7
  %v10745 = vsub.s32 1, %v10744
  %v10746 = vrot.slane %v10736, %v10745
  %v10749 = vmul.f32 %v10703, %v10742
  %v10750 = vmul.f32 %v10704, %v10746
  %v10753 = vcombine.low %v10749, %v10750
  %v10755 = vunpack.c.l.s4 1966171168
  %v10756 = vunpack.c.0.s8 %v10755
  %v10757 = vlaneseq
  %v10758 = vshrl.u32 %v10757, 7
  %v10759 = vsub.s32 %v10756, %v10758
  %v10760 = vrot.slane %v10753, %v10759
  %v10762 = vunpack.c.l.s4 1966171168
  %v10763 = vunpack.c.0.s8 %v10762
  %v10764 = vlaneseq
  %v10765 = vshrl.u32 %v10764, 7
  %v10766 = vsub.s32 %v10763, %v10765
  %v10767 = vrot.slane %v10760, %v10766
  %v10769 = vsub.f32 %v10737, %v10767
  %v10770 = vmul.f32 %v10433, %v10742
  %v10771 = vmul.f32 %v10434, %v10746
  %v10772 = vmul.f32 %v10435, %v10742
  %v10773 = vmul.f32 %v10436, %v10746
  %v10774 = vmul.f32 %v10437, %v10742
  %v10775 = vmul.f32 %v10438, %v10746
  %v10776 = vmul.f32 %v10439, %v10742
  %v10777 = vmul.f32 %v10440, %v10746
  %v10778 = vmul.f32 %v10441, %v10742
  %v10779 = vmul.f32 %v10442, %v10746
  %v10780 = vmul.f32 %v10443, %v10742
  %v10781 = vmul.f32 %v10444, %v10746
  %v10782 = vmul.f32 %v10445, %v10742
  %v10783 = vmul.f32 %v10446, %v10746
  %v10784 = vmul.f32 %v10447, %v10742
  %v10785 = vmul.f32 %v10448, %v10746
  %v10786 = vmul.f32 %v10449, %v10742
  %v10787 = vmul.f32 %v10450, %v10746
  %v10788 = vmul.f32 %v10451, %v10742
  %v10789 = vmul.f32 %v10452, %v10746
  %v10790 = vmul.f32 %v10453, %v10742
  %v10791 = vmul.f32 %v10454, %v10746
  %v10792 = vmul.f32 %v10455, %v10742
  %v10793 = vmul.f32 %v10456, %v10746
  %v10794 = vmul.f32 %v10457, %v10742
  %v10795 = vmul.f32 %v10458, %v10746
  %v10796 = vmul.f32 %v10459, %v10742
  %v10797 = vmul.f32 %v10460, %v10746
  %v10798 = vmul.f32 %v10461, %v10742
  %v10799 = vmul.f32 %v10462, %v10746
  %v10800 = vmul.f32 %v10463, %v10742
  %v10801 = vmul.f32 %v10464, %v10746
  %v10802 = vmul.f32 %v10465, %v10742
  %v10803 = vmul.f32 %v10466, %v10746
  %v10804 = vmul.f32 %v10467, %v10742
  %v10805 = vmul.f32 %v10468, %v10746
  %v10806 = vmul.f32 %v10469, %v10742
  %v10807 = vmul.f32 %v10470, %v10746
  %v10808 = vmul.f32 %v10471, %v10742
  %v10809 = vmul.f32 %v10472, %v10746
  %v10810 = vmul.f32 %v10473, %v10742
  %v10811 = vmul.f32 %v10474, %v10746
  %v10812 = vmul.f32 %v10475, %v10742
  %v10813 = vmul.f32 %v10476, %v10746
  %v10814 = vmul.f32 %v10477, %v10742
  %v10815 = vmul.f32 %v10478, %v10746
  %v10816 = vmul.f32 %v10479, %v10742
  %v10817 = vmul.f32 %v10480, %v10746
  %v10818 = vmul.f32 %v10481, %v10742
  %v10819 = vmul.f32 %v10482, %v10746
  %v10820 = vmul.f32 %v10483, %v10742
  %v10821 = vmul.f32 %v10484, %v10746
  %v10822 = vmul.f32 %v10485, %v10742
  %v10823 = vmul.f32 %v10486, %v10746
  %v10824 = vmul.f32 %v10487, %v10742
  %v10825 = vmul.f32 %v10488, %v10746
  %v10826 = vmul.f32 %v10489, %v10742
  %v10827 = vmul.f32 %v10490, %v10746
  %v10828 = vmul.f32 %v10491, %v10742
  %v10829 = vmul.f32 %v10492, %v10746
  %v10830 = vmul.f32 %v10493, %v10742
  %v10831 = vmul.f32 %v10494, %v10746
  %v10832 = vmul.f32 %v10495, %v10742
  %v10833 = vmul.f32 %v10496, %v10746
  %v10835 = vlaneseq
  %v10836 = vshrl.u32 %v10835, 7
  %v10837 = vsub.s32 0, %v10836
  %v10838 = vrot.slane %v10769, %v10837
  %v10839 = vlaneseq
  %v10840 = vshrl.u32 %v10839, 7
  %v10841 = vsub.s32 1, %v10840
  %v10842 = vrot.slane %v10769, %v10841
  %v10845 = vadd.f32 %v10770, %v10838
  %v10846 = vadd.f32 %v10771, %v10842
  %v10847 = vadd.f32 %v10772, %v10838
  %v10848 = vadd.f32 %v10773, %v10842
  %v10849 = vadd.f32 %v10774, %v10838
  %v10850 = vadd.f32 %v10775, %v10842
  %v10851 = vadd.f32 %v10776, %v10838
  %v10852 = vadd.f32 %v10777, %v10842
  %v10853 = vadd.f32 %v10778, %v10838
  %v10854 = vadd.f32 %v10779, %v10842
  %v10855 = vadd.f32 %v10780, %v10838
  %v10856 = vadd.f32 %v10781, %v10842
  %v10857 = vadd.f32 %v10782, %v10838
  %v10858 = vadd.f32 %v10783, %v10842
  %v10859 = vadd.f32 %v10784, %v10838
  %v10860 = vadd.f32 %v10785, %v10842
  %v10861 = vadd.f32 %v10786, %v10838
  %v10862 = vadd.f32 %v10787, %v10842
  %v10863 = vadd.f32 %v10788, %v10838
  %v10864 = vadd.f32 %v10789, %v10842
  %v10865 = vadd.f32 %v10790, %v10838
  %v10866 = vadd.f32 %v10791, %v10842
  %v10867 = vadd.f32 %v10792, %v10838
  %v10868 = vadd.f32 %v10793, %v10842
  %v10869 = vadd.f32 %v10794, %v10838
  %v10870 = vadd.f32 %v10795, %v10842
  %v10871 = vadd.f32 %v10796, %v10838
  %v10872 = vadd.f32 %v10797, %v10842
  %v10873 = vadd.f32 %v10798, %v10838
  %v10874 = vadd.f32 %v10799, %v10842
  %v10875 = vadd.f32 %v10800, %v10838
  %v10876 = vadd.f32 %v10801, %v10842
  %v10877 = vadd.f32 %v10802, %v10838
  %v10878 = vadd.f32 %v10803, %v10842
  %v10879 = vadd.f32 %v10804, %v10838
  %v10880 = vadd.f32 %v10805, %v10842
  %v10881 = vadd.f32 %v10806, %v10838
  %v10882 = vadd.f32 %v10807, %v10842
  %v10883 = vadd.f32 %v10808, %v10838
  %v10884 = vadd.f32 %v10809, %v10842
  %v10885 = vadd.f32 %v10810, %v10838
  %v10886 = vadd.f32 %v10811, %v10842
  %v10887 = vadd.f32 %v10812, %v10838
  %v10888 = vadd.f32 %v10813, %v10842
  %v10889 = vadd.f32 %v10814, %v10838
  %v10890 = vadd.f32 %v10815, %v10842
  %v10891 = vadd.f32 %v10816, %v10838
  %v10892 = vadd.f32 %v10817, %v10842
  %v10893 = vadd.f32 %v10818, %v10838
  %v10894 = vadd.f32 %v10819, %v10842
  %v10895 = vadd.f32 %v10820, %v10838
  %v10896 = vadd.f32 %v10821, %v10842
  %v10897 = vadd.f32 %v10822, %v10838
  %v10898 = vadd.f32 %v10823, %v10842
  %v10899 = vadd.f32 %v10824, %v10838
  %v10900 = vadd.f32 %v10825, %v10842
  %v10901 = vadd.f32 %v10826, %v10838
  %v10902 = vadd.f32 %v10827, %v10842
  %v10903 = vadd.f32 %v10828, %v10838
  %v10904 = vadd.f32 %v10829, %v10842
  %v10905 = vadd.f32 %v10830, %v10838
  %v10906 = vadd.f32 %v10831, %v10842
  %v10907 = vadd.f32 %v10832, %v10838
  %v10908 = vadd.f32 %v10833, %v10842
  %v10909 = vadd.f32 %v10845, %v10847
  %v10910 = vadd.f32 %v10909, %v10849
  %v10911 = vadd.f32 %v10910, %v10851
  %v10912 = vadd.f32 %v10911, %v10853
  %v10913 = vadd.f32 %v10912, %v10855
  %v10914 = vadd.f32 %v10913, %v10857
  %v10915 = vadd.f32 %v10914, %v10859
  %v10916 = vadd.f32 %v10915, %v10861
  %v10917 = vadd.f32 %v10916, %v10863
  %v10918 = vadd.f32 %v10917, %v10865
  %v10919 = vadd.f32 %v10918, %v10867
  %v10920 = vadd.f32 %v10919, %v10869
  %v10921 = vadd.f32 %v10920, %v10871
  %v10922 = vadd.f32 %v10921, %v10873
  %v10923 = vadd.f32 %v10922, %v10875
  %v10924 = vrot.slane %v10923, 4
  %v10925 = vadd.f32 %v10923, %v10924
  %v10926 = vrot.slane %v10925, 2
  %v10927 = vadd.f32 %v10925, %v10926
  %v10928 = vrot.slane %v10927, 1
  %v10929 = vadd.f32 %v10927, %v10928
  %v10930 = vadd.f32 %v10846, %v10848
  %v10931 = vadd.f32 %v10930, %v10850
  %v10932 = vadd.f32 %v10931, %v10852
  %v10933 = vadd.f32 %v10932, %v10854
  %v10934 = vadd.f32 %v10933, %v10856
  %v10935 = vadd.f32 %v10934, %v10858
  %v10936 = vadd.f32 %v10935, %v10860
  %v10937 = vadd.f32 %v10936, %v10862
  %v10938 = vadd.f32 %v10937, %v10864
  %v10939 = vadd.f32 %v10938, %v10866
  %v10940 = vadd.f32 %v10939, %v10868
  %v10941 = vadd.f32 %v10940, %v10870
  %v10942 = vadd.f32 %v10941, %v10872
  %v10943 = vadd.f32 %v10942, %v10874
  %v10944 = vadd.f32 %v10943, %v10876
  %v10945 = vrot.slane %v10944, 4
  %v10946 = vadd.f32 %v10944, %v10945
  %v10947 = vrot.slane %v10946, 2
  %v10948 = vadd.f32 %v10946, %v10947
  %v10949 = vrot.slane %v10948, 1
  %v10950 = vadd.f32 %v10948, %v10949
  %v10951 = vadd.f32 %v10877, %v10879
  %v10952 = vadd.f32 %v10951, %v10881
  %v10953 = vadd.f32 %v10952, %v10883
  %v10954 = vadd.f32 %v10953, %v10885
  %v10955 = vadd.f32 %v10954, %v10887
  %v10956 = vadd.f32 %v10955, %v10889
  %v10957 = vadd.f32 %v10956, %v10891
  %v10958 = vadd.f32 %v10957, %v10893
  %v10959 = vadd.f32 %v10958, %v10895
  %v10960 = vadd.f32 %v10959, %v10897
  %v10961 = vadd.f32 %v10960, %v10899
  %v10962 = vadd.f32 %v10961, %v10901
  %v10963 = vadd.f32 %v10962, %v10903
  %v10964 = vadd.f32 %v10963, %v10905
  %v10965 = vadd.f32 %v10964, %v10907
  %v10966 = vrot.slane %v10965, 4
  %v10967 = vadd.f32 %v10965, %v10966
  %v10968 = vrot.slane %v10967, 2
  %v10969 = vadd.f32 %v10967, %v10968
  %v10970 = vrot.slane %v10969, 1
  %v10971 = vadd.f32 %v10969, %v10970
  %v10972 = vadd.f32 %v10878, %v10880
  %v10973 = vadd.f32 %v10972, %v10882
  %v10974 = vadd.f32 %v10973, %v10884
  %v10975 = vadd.f32 %v10974, %v10886
  %v10976 = vadd.f32 %v10975, %v10888
  %v10977 = vadd.f32 %v10976, %v10890
  %v10978 = vadd.f32 %v10977, %v10892
  %v10979 = vadd.f32 %v10978, %v10894
  %v10980 = vadd.f32 %v10979, %v10896
  %v10981 = vadd.f32 %v10980, %v10898
  %v10982 = vadd.f32 %v10981, %v10900
  %v10983 = vadd.f32 %v10982, %v10902
  %v10984 = vadd.f32 %v10983, %v10904
  %v10985 = vadd.f32 %v10984, %v10906
  %v10986 = vadd.f32 %v10985, %v10908
  %v10987 = vrot.slane %v10986, 4
  %v10988 = vadd.f32 %v10986, %v10987
  %v10989 = vrot.slane %v10988, 2
  %v10990 = vadd.f32 %v10988, %v10989
  %v10991 = vrot.slane %v10990, 1
  %v10992 = vadd.f32 %v10990, %v10991
  %v10993 = vmul.f32 %v10929, %v2261
  %v10994 = vmul.f32 %v10950, %v2261
  %v10995 = vmul.f32 %v10971, %v2261
  %v10996 = vmul.f32 %v10992, %v2261
  %v10997 = vpack.c.bf16 %v10993, %v10993
  %v10998 = vpack.c.bf16 %v10994, %v10994
  %v10999 = vpack.c.bf16 %v10995, %v10995
  %v11000 = vpack.c.bf16 %v10996, %v10996
  %v11001 = vld [vmem:[%s75] sm:$0xff]
  %v11002 = vld [vmem:[%s75 + $0x8] sm:$0xff]
  %v11003 = vld [vmem:[%s75 + $0x10] sm:$0xff]
  %v11004 = vld [vmem:[%s75 + $0x18] sm:$0xff]
  %v11005 = vld [vmem:[%s75 + $0x20] sm:$0xff]
  %v11006 = vld [vmem:[%s75 + $0x28] sm:$0xff]
  %v11007 = vld [vmem:[%s75 + $0x30] sm:$0xff]
  %v11008 = vld [vmem:[%s75 + $0x38] sm:$0xff]
  %v11009 = vld [vmem:[%s75 + $0x40] sm:$0xff]
  %v11010 = vld [vmem:[%s75 + $0x48] sm:$0xff]
  %v11011 = vld [vmem:[%s75 + $0x50] sm:$0xff]
  %v11012 = vld [vmem:[%s75 + $0x58] sm:$0xff]
  %v11013 = vld [vmem:[%s75 + $0x60] sm:$0xff]
  %v11014 = vld [vmem:[%s75 + $0x68] sm:$0xff]
  %v11015 = vld [vmem:[%s75 + $0x70] sm:$0xff]
  %v11016 = vld [vmem:[%s75 + $0x78] sm:$0xff]
  %v11017 = vld [vmem:[%s75 + $0x80] sm:$0xff]
  %v11018 = vld [vmem:[%s75 + $0x88] sm:$0xff]
  %v11019 = vld [vmem:[%s75 + $0x90] sm:$0xff]
  %v11020 = vld [vmem:[%s75 + $0x98] sm:$0xff]
  %v11021 = vld [vmem:[%s75 + $0xa0] sm:$0xff]
  %v11022 = vld [vmem:[%s75 + $0xa8] sm:$0xff]
  %v11023 = vld [vmem:[%s75 + $0xb0] sm:$0xff]
  %v11024 = vld [vmem:[%s75 + $0xb8] sm:$0xff]
  %v11025 = vld [vmem:[%s75 + $0xc0] sm:$0xff]
  %v11026 = vld [vmem:[%s75 + $0xc8] sm:$0xff]
  %v11027 = vld [vmem:[%s75 + $0xd0] sm:$0xff]
  %v11028 = vld [vmem:[%s75 + $0xd8] sm:$0xff]
  %v11029 = vld [vmem:[%s75 + $0xe0] sm:$0xff]
  %v11030 = vld [vmem:[%s75 + $0xe8] sm:$0xff]
  %v11031 = vld [vmem:[%s75 + $0xf0] sm:$0xff]
  %v11032 = vld [vmem:[%s75 + $0xf8] sm:$0xff]
  %v11033 = vld [vmem:[%s75 + $0x100] sm:$0xff]
  %v11034 = vld [vmem:[%s75 + $0x108] sm:$0xff]
  %v11035 = vld [vmem:[%s75 + $0x110] sm:$0xff]
  %v11036 = vld [vmem:[%s75 + $0x118] sm:$0xff]
  %v11037 = vld [vmem:[%s75 + $0x120] sm:$0xff]
  %v11038 = vld [vmem:[%s75 + $0x128] sm:$0xff]
  %v11039 = vld [vmem:[%s75 + $0x130] sm:$0xff]
  %v11040 = vld [vmem:[%s75 + $0x138] sm:$0xff]
  %v11041 = vld [vmem:[%s75 + $0x140] sm:$0xff]
  %v11042 = vld [vmem:[%s75 + $0x148] sm:$0xff]
  %v11043 = vld [vmem:[%s75 + $0x150] sm:$0xff]
  %v11044 = vld [vmem:[%s75 + $0x158] sm:$0xff]
  %v11045 = vld [vmem:[%s75 + $0x160] sm:$0xff]
  %v11046 = vld [vmem:[%s75 + $0x168] sm:$0xff]
  %v11047 = vld [vmem:[%s75 + $0x170] sm:$0xff]
  %v11048 = vld [vmem:[%s75 + $0x178] sm:$0xff]
  %v11049 = vld [vmem:[%s75 + $0x180] sm:$0xff]
  %v11050 = vld [vmem:[%s75 + $0x188] sm:$0xff]
  %v11051 = vld [vmem:[%s75 + $0x190] sm:$0xff]
  %v11052 = vld [vmem:[%s75 + $0x198] sm:$0xff]
  %v11053 = vld [vmem:[%s75 + $0x1a0] sm:$0xff]
  %v11054 = vld [vmem:[%s75 + $0x1a8] sm:$0xff]
  %v11055 = vld [vmem:[%s75 + $0x1b0] sm:$0xff]
  %v11056 = vld [vmem:[%s75 + $0x1b8] sm:$0xff]
  %v11057 = vld [vmem:[%s75 + $0x1c0] sm:$0xff]
  %v11058 = vld [vmem:[%s75 + $0x1c8] sm:$0xff]
  %v11059 = vld [vmem:[%s75 + $0x1d0] sm:$0xff]
  %v11060 = vld [vmem:[%s75 + $0x1d8] sm:$0xff]
  %v11061 = vld [vmem:[%s75 + $0x1e0] sm:$0xff]
  %v11062 = vld [vmem:[%s75 + $0x1e8] sm:$0xff]
  %v11063 = vld [vmem:[%s75 + $0x1f0] sm:$0xff]
  %v11064 = vld [vmem:[%s75 + $0x1f8] sm:$0xff]
  %v11065 = vld [vmem:[%s77] sm:$0xf]
  %v11067 = vlaneseq
  %v11068 = vshrl.u32 %v11067, 7
  %v11069 = vsub.s32 0, %v11068
  %v11070 = vrot.slane %v11065, %v11069
  %v11071 = vlaneseq
  %v11072 = vshrl.u32 %v11071, 7
  %v11073 = vsub.s32 1, %v11072
  %v11074 = vrot.slane %v11065, %v11073
  %v11075 = vlaneseq
  %v11076 = vshrl.u32 %v11075, 7
  %v11077 = vsub.s32 2, %v11076
  %v11078 = vrot.slane %v11065, %v11077
  %v11079 = vlaneseq
  %v11080 = vshrl.u32 %v11079, 7
  %v11081 = vsub.s32 3, %v11080
  %v11082 = vrot.slane %v11065, %v11081
  %v11091 = vunpack.c.l.b16 %v10997
  %v11092 = vunpack.c.l.b16 %v10998
  %v11093 = vunpack.c.l.b16 %v10999
  %v11094 = vunpack.c.l.b16 %v11000
  %v11095 = vsel %vm2343, %v11093, %v11091
  %v11096 = vsel %vm2343, %v11094, %v11092
  %v11097 = vpack.c.b16 %v11095, %v11095
  %v11098 = vpack.c.b16 %v11096, %v11096
  %v11165 = vunpack.c.l.b16 %v11001
  %v11166 = vunpack.c.h.b16 %v11001
  %v11167 = vunpack.c.l.b16 %v11002
  %v11168 = vunpack.c.h.b16 %v11002
  %v11169 = vunpack.c.l.b16 %v11003
  %v11170 = vunpack.c.h.b16 %v11003
  %v11171 = vunpack.c.l.b16 %v11004
  %v11172 = vunpack.c.h.b16 %v11004
  %v11173 = vunpack.c.l.b16 %v11005
  %v11174 = vunpack.c.h.b16 %v11005
  %v11175 = vunpack.c.l.b16 %v11006
  %v11176 = vunpack.c.h.b16 %v11006
  %v11177 = vunpack.c.l.b16 %v11007
  %v11178 = vunpack.c.h.b16 %v11007
  %v11179 = vunpack.c.l.b16 %v11008
  %v11180 = vunpack.c.h.b16 %v11008
  %v11181 = vunpack.c.l.b16 %v11009
  %v11182 = vunpack.c.h.b16 %v11009
  %v11183 = vunpack.c.l.b16 %v11010
  %v11184 = vunpack.c.h.b16 %v11010
  %v11185 = vunpack.c.l.b16 %v11011
  %v11186 = vunpack.c.h.b16 %v11011
  %v11187 = vunpack.c.l.b16 %v11012
  %v11188 = vunpack.c.h.b16 %v11012
  %v11189 = vunpack.c.l.b16 %v11013
  %v11190 = vunpack.c.h.b16 %v11013
  %v11191 = vunpack.c.l.b16 %v11014
  %v11192 = vunpack.c.h.b16 %v11014
  %v11193 = vunpack.c.l.b16 %v11015
  %v11194 = vunpack.c.h.b16 %v11015
  %v11195 = vunpack.c.l.b16 %v11016
  %v11196 = vunpack.c.h.b16 %v11016
  %v11197 = vunpack.c.l.b16 %v11017
  %v11198 = vunpack.c.h.b16 %v11017
  %v11199 = vunpack.c.l.b16 %v11018
  %v11200 = vunpack.c.h.b16 %v11018
  %v11201 = vunpack.c.l.b16 %v11019
  %v11202 = vunpack.c.h.b16 %v11019
  %v11203 = vunpack.c.l.b16 %v11020
  %v11204 = vunpack.c.h.b16 %v11020
  %v11205 = vunpack.c.l.b16 %v11021
  %v11206 = vunpack.c.h.b16 %v11021
  %v11207 = vunpack.c.l.b16 %v11022
  %v11208 = vunpack.c.h.b16 %v11022
  %v11209 = vunpack.c.l.b16 %v11023
  %v11210 = vunpack.c.h.b16 %v11023
  %v11211 = vunpack.c.l.b16 %v11024
  %v11212 = vunpack.c.h.b16 %v11024
  %v11213 = vunpack.c.l.b16 %v11025
  %v11214 = vunpack.c.h.b16 %v11025
  %v11215 = vunpack.c.l.b16 %v11026
  %v11216 = vunpack.c.h.b16 %v11026
  %v11217 = vunpack.c.l.b16 %v11027
  %v11218 = vunpack.c.h.b16 %v11027
  %v11219 = vunpack.c.l.b16 %v11028
  %v11220 = vunpack.c.h.b16 %v11028
  %v11221 = vunpack.c.l.b16 %v11029
  %v11222 = vunpack.c.h.b16 %v11029
  %v11223 = vunpack.c.l.b16 %v11030
  %v11224 = vunpack.c.h.b16 %v11030
  %v11225 = vunpack.c.l.b16 %v11031
  %v11226 = vunpack.c.h.b16 %v11031
  %v11227 = vunpack.c.l.b16 %v11032
  %v11228 = vunpack.c.h.b16 %v11032
  %v11229 = vunpack.c.l.b16 %v11033
  %v11230 = vunpack.c.h.b16 %v11033
  %v11231 = vunpack.c.l.b16 %v11034
  %v11232 = vunpack.c.h.b16 %v11034
  %v11233 = vunpack.c.l.b16 %v11035
  %v11234 = vunpack.c.h.b16 %v11035
  %v11235 = vunpack.c.l.b16 %v11036
  %v11236 = vunpack.c.h.b16 %v11036
  %v11237 = vunpack.c.l.b16 %v11037
  %v11238 = vunpack.c.h.b16 %v11037
  %v11239 = vunpack.c.l.b16 %v11038
  %v11240 = vunpack.c.h.b16 %v11038
  %v11241 = vunpack.c.l.b16 %v11039
  %v11242 = vunpack.c.h.b16 %v11039
  %v11243 = vunpack.c.l.b16 %v11040
  %v11244 = vunpack.c.h.b16 %v11040
  %v11245 = vunpack.c.l.b16 %v11041
  %v11246 = vunpack.c.h.b16 %v11041
  %v11247 = vunpack.c.l.b16 %v11042
  %v11248 = vunpack.c.h.b16 %v11042
  %v11249 = vunpack.c.l.b16 %v11043
  %v11250 = vunpack.c.h.b16 %v11043
  %v11251 = vunpack.c.l.b16 %v11044
  %v11252 = vunpack.c.h.b16 %v11044
  %v11253 = vunpack.c.l.b16 %v11045
  %v11254 = vunpack.c.h.b16 %v11045
  %v11255 = vunpack.c.l.b16 %v11046
  %v11256 = vunpack.c.h.b16 %v11046
  %v11257 = vunpack.c.l.b16 %v11047
  %v11258 = vunpack.c.h.b16 %v11047
  %v11259 = vunpack.c.l.b16 %v11048
  %v11260 = vunpack.c.h.b16 %v11048
  %v11261 = vunpack.c.l.b16 %v11049
  %v11262 = vunpack.c.h.b16 %v11049
  %v11263 = vunpack.c.l.b16 %v11050
  %v11264 = vunpack.c.h.b16 %v11050
  %v11265 = vunpack.c.l.b16 %v11051
  %v11266 = vunpack.c.h.b16 %v11051
  %v11267 = vunpack.c.l.b16 %v11052
  %v11268 = vunpack.c.h.b16 %v11052
  %v11269 = vunpack.c.l.b16 %v11053
  %v11270 = vunpack.c.h.b16 %v11053
  %v11271 = vunpack.c.l.b16 %v11054
  %v11272 = vunpack.c.h.b16 %v11054
  %v11273 = vunpack.c.l.b16 %v11055
  %v11274 = vunpack.c.h.b16 %v11055
  %v11275 = vunpack.c.l.b16 %v11056
  %v11276 = vunpack.c.h.b16 %v11056
  %v11277 = vunpack.c.l.b16 %v11057
  %v11278 = vunpack.c.h.b16 %v11057
  %v11279 = vunpack.c.l.b16 %v11058
  %v11280 = vunpack.c.h.b16 %v11058
  %v11281 = vunpack.c.l.b16 %v11059
  %v11282 = vunpack.c.h.b16 %v11059
  %v11283 = vunpack.c.l.b16 %v11060
  %v11284 = vunpack.c.h.b16 %v11060
  %v11285 = vunpack.c.l.b16 %v11061
  %v11286 = vunpack.c.h.b16 %v11061
  %v11287 = vunpack.c.l.b16 %v11062
  %v11288 = vunpack.c.h.b16 %v11062
  %v11289 = vunpack.c.l.b16 %v11063
  %v11290 = vunpack.c.h.b16 %v11063
  %v11291 = vunpack.c.l.b16 %v11064
  %v11292 = vunpack.c.h.b16 %v11064
  %v11293 = vpack.c.b16 %v11169, %v11165
  %v11294 = vpack.c.b16 %v11170, %v11166
  %v11295 = vpack.c.b16 %v11171, %v11167
  %v11296 = vpack.c.b16 %v11172, %v11168
  %v11297 = vpack.c.b16 %v11177, %v11173
  %v11298 = vpack.c.b16 %v11178, %v11174
  %v11299 = vpack.c.b16 %v11179, %v11175
  %v11300 = vpack.c.b16 %v11180, %v11176
  %v11301 = vpack.c.b16 %v11185, %v11181
  %v11302 = vpack.c.b16 %v11186, %v11182
  %v11303 = vpack.c.b16 %v11187, %v11183
  %v11304 = vpack.c.b16 %v11188, %v11184
  %v11305 = vpack.c.b16 %v11193, %v11189
  %v11306 = vpack.c.b16 %v11194, %v11190
  %v11307 = vpack.c.b16 %v11195, %v11191
  %v11308 = vpack.c.b16 %v11196, %v11192
  %v11309 = vpack.c.b16 %v11201, %v11197
  %v11310 = vpack.c.b16 %v11202, %v11198
  %v11311 = vpack.c.b16 %v11203, %v11199
  %v11312 = vpack.c.b16 %v11204, %v11200
  %v11313 = vpack.c.b16 %v11209, %v11205
  %v11314 = vpack.c.b16 %v11210, %v11206
  %v11315 = vpack.c.b16 %v11211, %v11207
  %v11316 = vpack.c.b16 %v11212, %v11208
  %v11317 = vpack.c.b16 %v11217, %v11213
  %v11318 = vpack.c.b16 %v11218, %v11214
  %v11319 = vpack.c.b16 %v11219, %v11215
  %v11320 = vpack.c.b16 %v11220, %v11216
  %v11321 = vpack.c.b16 %v11225, %v11221
  %v11322 = vpack.c.b16 %v11226, %v11222
  %v11323 = vpack.c.b16 %v11227, %v11223
  %v11324 = vpack.c.b16 %v11228, %v11224
  %v11325 = vpack.c.b16 %v11233, %v11229
  %v11326 = vpack.c.b16 %v11234, %v11230
  %v11327 = vpack.c.b16 %v11235, %v11231
  %v11328 = vpack.c.b16 %v11236, %v11232
  %v11329 = vpack.c.b16 %v11241, %v11237
  %v11330 = vpack.c.b16 %v11242, %v11238
  %v11331 = vpack.c.b16 %v11243, %v11239
  %v11332 = vpack.c.b16 %v11244, %v11240
  %v11333 = vpack.c.b16 %v11249, %v11245
  %v11334 = vpack.c.b16 %v11250, %v11246
  %v11335 = vpack.c.b16 %v11251, %v11247
  %v11336 = vpack.c.b16 %v11252, %v11248
  %v11337 = vpack.c.b16 %v11257, %v11253
  %v11338 = vpack.c.b16 %v11258, %v11254
  %v11339 = vpack.c.b16 %v11259, %v11255
  %v11340 = vpack.c.b16 %v11260, %v11256
  %v11341 = vpack.c.b16 %v11265, %v11261
  %v11342 = vpack.c.b16 %v11266, %v11262
  %v11343 = vpack.c.b16 %v11267, %v11263
  %v11344 = vpack.c.b16 %v11268, %v11264
  %v11345 = vpack.c.b16 %v11273, %v11269
  %v11346 = vpack.c.b16 %v11274, %v11270
  %v11347 = vpack.c.b16 %v11275, %v11271
  %v11348 = vpack.c.b16 %v11276, %v11272
  %v11349 = vpack.c.b16 %v11281, %v11277
  %v11350 = vpack.c.b16 %v11282, %v11278
  %v11351 = vpack.c.b16 %v11283, %v11279
  %v11352 = vpack.c.b16 %v11284, %v11280
  %v11353 = vpack.c.b16 %v11289, %v11285
  %v11354 = vpack.c.b16 %v11290, %v11286
  %v11355 = vpack.c.b16 %v11291, %v11287
  %v11356 = vpack.c.b16 %v11292, %v11288
  %11421 = vmatprep.subr.bf16.mxu0 %v11294
  %11422 = vmatpush1.bf16.msra.mxu0 %v11293
  %11423 = vmatprep.subr.bf16.mxu0 %v11298
  %11424 = vmatpush1.bf16.msra.mxu0 %v11297
  %11425 = vmatprep.subr.bf16.mxu0 %v11302
  %11426 = vmatpush1.bf16.msra.mxu0 %v11301
  %11427 = vmatprep.subr.bf16.mxu0 %v11306
  %11428 = vmatpush1.bf16.msra.mxu0 %v11305
  %11429 = vmatprep.subr.bf16.mxu0 %v11310
  %11430 = vmatpush1.bf16.msra.mxu0 %v11309
  %11431 = vmatprep.subr.bf16.mxu0 %v11314
  %11432 = vmatpush1.bf16.msra.mxu0 %v11313
  %11433 = vmatprep.subr.bf16.mxu0 %v11318
  %11434 = vmatpush1.bf16.msra.mxu0 %v11317
  %11435 = vmatprep.subr.bf16.mxu0 %v11322
  %11436 = vmatpush1.bf16.msra.mxu0 %v11321
  %11437 = vmatprep.subr.bf16.mxu0 %v11326
  %11438 = vmatpush1.bf16.msra.mxu0 %v11325
  %11439 = vmatprep.subr.bf16.mxu0 %v11330
  %11440 = vmatpush1.bf16.msra.mxu0 %v11329
  %11441 = vmatprep.subr.bf16.mxu0 %v11334
  %11442 = vmatpush1.bf16.msra.mxu0 %v11333
  %11443 = vmatprep.subr.bf16.mxu0 %v11338
  %11444 = vmatpush1.bf16.msra.mxu0 %v11337
  %11445 = vmatprep.subr.bf16.mxu0 %v11342
  %11446 = vmatpush1.bf16.msra.mxu0 %v11341
  %11447 = vmatprep.subr.bf16.mxu0 %v11346
  %11448 = vmatpush1.bf16.msra.mxu0 %v11345
  %11449 = vmatprep.subr.bf16.mxu0 %v11350
  %11450 = vmatpush1.bf16.msra.mxu0 %v11349
  %11451 = vmatprep.subr.bf16.mxu0 %v11354
  %11452 = vmatpush1.bf16.msra.mxu0 %v11353
  %11453 = vmatprep.mubr.bf16.mxu0 %v11098
  %11454 = vmatmul.mubr.bf16.gmra.mrb[0].mxu0 %v11097
  %v11455 = vpop.f32.mrb[0].mxu0
  %v11456 = vadd.f32 %v11070, %v11455
  %v11457 = vpop.f32.mrb[0].mxu0
  %v11458 = vadd.f32 %v11074, %v11457
  %v11459 = vpop.f32.mrb[0].mxu0
  %v11460 = vpop.f32.mrb[0].mxu0
  %11461 = vdwg.mxu0
  %11462 = vmatprep.subr.bf16.mxu0 %v11296
  %11463 = vmatpush1.bf16.msra.mxu0 %v11295
  %11464 = vmatprep.subr.bf16.mxu0 %v11300
  %11465 = vmatpush1.bf16.msra.mxu0 %v11299
  %11466 = vmatprep.subr.bf16.mxu0 %v11304
  %11467 = vmatpush1.bf16.msra.mxu0 %v11303
  %11468 = vmatprep.subr.bf16.mxu0 %v11308
  %11469 = vmatpush1.bf16.msra.mxu0 %v11307
  %11470 = vmatprep.subr.bf16.mxu0 %v11312
  %11471 = vmatpush1.bf16.msra.mxu0 %v11311
  %11472 = vmatprep.subr.bf16.mxu0 %v11316
  %11473 = vmatpush1.bf16.msra.mxu0 %v11315
  %11474 = vmatprep.subr.bf16.mxu0 %v11320
  %11475 = vmatpush1.bf16.msra.mxu0 %v11319
  %11476 = vmatprep.subr.bf16.mxu0 %v11324
  %11477 = vmatpush1.bf16.msra.mxu0 %v11323
  %11478 = vmatprep.subr.bf16.mxu0 %v11328
  %11479 = vmatpush1.bf16.msra.mxu0 %v11327
  %11480 = vmatprep.subr.bf16.mxu0 %v11332
  %11481 = vmatpush1.bf16.msra.mxu0 %v11331
  %11482 = vmatprep.subr.bf16.mxu0 %v11336
  %11483 = vmatpush1.bf16.msra.mxu0 %v11335
  %11484 = vmatprep.subr.bf16.mxu0 %v11340
  %11485 = vmatpush1.bf16.msra.mxu0 %v11339
  %11486 = vmatprep.subr.bf16.mxu0 %v11344
  %11487 = vmatpush1.bf16.msra.mxu0 %v11343
  %11488 = vmatprep.subr.bf16.mxu0 %v11348
  %11489 = vmatpush1.bf16.msra.mxu0 %v11347
  %11490 = vmatprep.subr.bf16.mxu0 %v11352
  %11491 = vmatpush1.bf16.msra.mxu0 %v11351
  %11492 = vmatprep.subr.bf16.mxu0 %v11356
  %11493 = vmatpush1.bf16.msra.mxu0 %v11355
  %11494 = vmatprep.mubr.bf16.mxu0 %v11098
  %11495 = vmatmul.mubr.bf16.gmra.mrb[0].mxu0 %v11097
  %v11496 = vpop.f32.mrb[0].mxu0
  %v11497 = vadd.f32 %v11078, %v11496
  %v11498 = vpop.f32.mrb[0].mxu0
  %v11499 = vadd.f32 %v11082, %v11498
  %v11500 = vpop.f32.mrb[0].mxu0
  %v11501 = vpop.f32.mrb[0].mxu0
  %11502 = vdwg.mxu0
  %v11503 = vmax.f32 %v11456, 0.0
  %v11504 = vmax.f32 %v11458, 0.0
  %v11505 = vmax.f32 %v11497, 0.0
  %v11506 = vmax.f32 %v11499, 0.0
  %v11507 = vpack.c.bf16 %v11503, %v11503
  %v11508 = vpack.c.bf16 %v11504, %v11504
  %v11509 = vpack.c.bf16 %v11505, %v11505
  %v11510 = vpack.c.bf16 %v11506, %v11506
  %v11511 = vld [vmem:[%s79] sm:$0xff]
  %v11512 = vld [vmem:[%s79 + $0x8] sm:$0xff]
  %v11513 = vld [vmem:[%s79 + $0x10] sm:$0xff]
  %v11514 = vld [vmem:[%s79 + $0x18] sm:$0xff]
  %v11515 = vld [vmem:[%s79 + $0x20] sm:$0xff]
  %v11516 = vld [vmem:[%s79 + $0x28] sm:$0xff]
  %v11517 = vld [vmem:[%s79 + $0x30] sm:$0xff]
  %v11518 = vld [vmem:[%s79 + $0x38] sm:$0xff]
  %v11519 = vld [vmem:[%s79 + $0x40] sm:$0xff]
  %v11520 = vld [vmem:[%s79 + $0x48] sm:$0xff]
  %v11521 = vld [vmem:[%s79 + $0x50] sm:$0xff]
  %v11522 = vld [vmem:[%s79 + $0x58] sm:$0xff]
  %v11523 = vld [vmem:[%s79 + $0x60] sm:$0xff]
  %v11524 = vld [vmem:[%s79 + $0x68] sm:$0xff]
  %v11525 = vld [vmem:[%s79 + $0x70] sm:$0xff]
  %v11526 = vld [vmem:[%s79 + $0x78] sm:$0xff]
  %v11527 = vld [vmem:[%s79 + $0x80] sm:$0xff]
  %v11528 = vld [vmem:[%s79 + $0x88] sm:$0xff]
  %v11529 = vld [vmem:[%s79 + $0x90] sm:$0xff]
  %v11530 = vld [vmem:[%s79 + $0x98] sm:$0xff]
  %v11531 = vld [vmem:[%s79 + $0xa0] sm:$0xff]
  %v11532 = vld [vmem:[%s79 + $0xa8] sm:$0xff]
  %v11533 = vld [vmem:[%s79 + $0xb0] sm:$0xff]
  %v11534 = vld [vmem:[%s79 + $0xb8] sm:$0xff]
  %v11535 = vld [vmem:[%s79 + $0xc0] sm:$0xff]
  %v11536 = vld [vmem:[%s79 + $0xc8] sm:$0xff]
  %v11537 = vld [vmem:[%s79 + $0xd0] sm:$0xff]
  %v11538 = vld [vmem:[%s79 + $0xd8] sm:$0xff]
  %v11539 = vld [vmem:[%s79 + $0xe0] sm:$0xff]
  %v11540 = vld [vmem:[%s79 + $0xe8] sm:$0xff]
  %v11541 = vld [vmem:[%s79 + $0xf0] sm:$0xff]
  %v11542 = vld [vmem:[%s79 + $0xf8] sm:$0xff]
  %v11543 = vld [vmem:[%s79 + $0x100] sm:$0xff]
  %v11544 = vld [vmem:[%s79 + $0x108] sm:$0xff]
  %v11545 = vld [vmem:[%s79 + $0x110] sm:$0xff]
  %v11546 = vld [vmem:[%s79 + $0x118] sm:$0xff]
  %v11547 = vld [vmem:[%s79 + $0x120] sm:$0xff]
  %v11548 = vld [vmem:[%s79 + $0x128] sm:$0xff]
  %v11549 = vld [vmem:[%s79 + $0x130] sm:$0xff]
  %v11550 = vld [vmem:[%s79 + $0x138] sm:$0xff]
  %v11551 = vld [vmem:[%s79 + $0x140] sm:$0xff]
  %v11552 = vld [vmem:[%s79 + $0x148] sm:$0xff]
  %v11553 = vld [vmem:[%s79 + $0x150] sm:$0xff]
  %v11554 = vld [vmem:[%s79 + $0x158] sm:$0xff]
  %v11555 = vld [vmem:[%s79 + $0x160] sm:$0xff]
  %v11556 = vld [vmem:[%s79 + $0x168] sm:$0xff]
  %v11557 = vld [vmem:[%s79 + $0x170] sm:$0xff]
  %v11558 = vld [vmem:[%s79 + $0x178] sm:$0xff]
  %v11559 = vld [vmem:[%s79 + $0x180] sm:$0xff]
  %v11560 = vld [vmem:[%s79 + $0x188] sm:$0xff]
  %v11561 = vld [vmem:[%s79 + $0x190] sm:$0xff]
  %v11562 = vld [vmem:[%s79 + $0x198] sm:$0xff]
  %v11563 = vld [vmem:[%s79 + $0x1a0] sm:$0xff]
  %v11564 = vld [vmem:[%s79 + $0x1a8] sm:$0xff]
  %v11565 = vld [vmem:[%s79 + $0x1b0] sm:$0xff]
  %v11566 = vld [vmem:[%s79 + $0x1b8] sm:$0xff]
  %v11567 = vld [vmem:[%s79 + $0x1c0] sm:$0xff]
  %v11568 = vld [vmem:[%s79 + $0x1c8] sm:$0xff]
  %v11569 = vld [vmem:[%s79 + $0x1d0] sm:$0xff]
  %v11570 = vld [vmem:[%s79 + $0x1d8] sm:$0xff]
  %v11571 = vld [vmem:[%s79 + $0x1e0] sm:$0xff]
  %v11572 = vld [vmem:[%s79 + $0x1e8] sm:$0xff]
  %v11573 = vld [vmem:[%s79 + $0x1f0] sm:$0xff]
  %v11574 = vld [vmem:[%s79 + $0x1f8] sm:$0xff]
  %v11575 = vld [vmem:[%s79 + $0x200] sm:$0xff]
  %v11576 = vld [vmem:[%s79 + $0x208] sm:$0xff]
  %v11577 = vld [vmem:[%s79 + $0x210] sm:$0xff]
  %v11578 = vld [vmem:[%s79 + $0x218] sm:$0xff]
  %v11579 = vld [vmem:[%s79 + $0x220] sm:$0xff]
  %v11580 = vld [vmem:[%s79 + $0x228] sm:$0xff]
  %v11581 = vld [vmem:[%s79 + $0x230] sm:$0xff]
  %v11582 = vld [vmem:[%s79 + $0x238] sm:$0xff]
  %v11583 = vld [vmem:[%s79 + $0x240] sm:$0xff]
  %v11584 = vld [vmem:[%s79 + $0x248] sm:$0xff]
  %v11585 = vld [vmem:[%s79 + $0x250] sm:$0xff]
  %v11586 = vld [vmem:[%s79 + $0x258] sm:$0xff]
  %v11587 = vld [vmem:[%s79 + $0x260] sm:$0xff]
  %v11588 = vld [vmem:[%s79 + $0x268] sm:$0xff]
  %v11589 = vld [vmem:[%s79 + $0x270] sm:$0xff]
  %v11590 = vld [vmem:[%s79 + $0x278] sm:$0xff]
  %v11591 = vld [vmem:[%s79 + $0x280] sm:$0xff]
  %v11592 = vld [vmem:[%s79 + $0x288] sm:$0xff]
  %v11593 = vld [vmem:[%s79 + $0x290] sm:$0xff]
  %v11594 = vld [vmem:[%s79 + $0x298] sm:$0xff]
  %v11595 = vld [vmem:[%s79 + $0x2a0] sm:$0xff]
  %v11596 = vld [vmem:[%s79 + $0x2a8] sm:$0xff]
  %v11597 = vld [vmem:[%s79 + $0x2b0] sm:$0xff]
  %v11598 = vld [vmem:[%s79 + $0x2b8] sm:$0xff]
  %v11599 = vld [vmem:[%s79 + $0x2c0] sm:$0xff]
  %v11600 = vld [vmem:[%s79 + $0x2c8] sm:$0xff]
  %v11601 = vld [vmem:[%s79 + $0x2d0] sm:$0xff]
  %v11602 = vld [vmem:[%s79 + $0x2d8] sm:$0xff]
  %v11603 = vld [vmem:[%s79 + $0x2e0] sm:$0xff]
  %v11604 = vld [vmem:[%s79 + $0x2e8] sm:$0xff]
  %v11605 = vld [vmem:[%s79 + $0x2f0] sm:$0xff]
  %v11606 = vld [vmem:[%s79 + $0x2f8] sm:$0xff]
  %v11607 = vld [vmem:[%s79 + $0x300] sm:$0xff]
  %v11608 = vld [vmem:[%s79 + $0x308] sm:$0xff]
  %v11609 = vld [vmem:[%s79 + $0x310] sm:$0xff]
  %v11610 = vld [vmem:[%s79 + $0x318] sm:$0xff]
  %v11611 = vld [vmem:[%s79 + $0x320] sm:$0xff]
  %v11612 = vld [vmem:[%s79 + $0x328] sm:$0xff]
  %v11613 = vld [vmem:[%s79 + $0x330] sm:$0xff]
  %v11614 = vld [vmem:[%s79 + $0x338] sm:$0xff]
  %v11615 = vld [vmem:[%s79 + $0x340] sm:$0xff]
  %v11616 = vld [vmem:[%s79 + $0x348] sm:$0xff]
  %v11617 = vld [vmem:[%s79 + $0x350] sm:$0xff]
  %v11618 = vld [vmem:[%s79 + $0x358] sm:$0xff]
  %v11619 = vld [vmem:[%s79 + $0x360] sm:$0xff]
  %v11620 = vld [vmem:[%s79 + $0x368] sm:$0xff]
  %v11621 = vld [vmem:[%s79 + $0x370] sm:$0xff]
  %v11622 = vld [vmem:[%s79 + $0x378] sm:$0xff]
  %v11623 = vld [vmem:[%s79 + $0x380] sm:$0xff]
  %v11624 = vld [vmem:[%s79 + $0x388] sm:$0xff]
  %v11625 = vld [vmem:[%s79 + $0x390] sm:$0xff]
  %v11626 = vld [vmem:[%s79 + $0x398] sm:$0xff]
  %v11627 = vld [vmem:[%s79 + $0x3a0] sm:$0xff]
  %v11628 = vld [vmem:[%s79 + $0x3a8] sm:$0xff]
  %v11629 = vld [vmem:[%s79 + $0x3b0] sm:$0xff]
  %v11630 = vld [vmem:[%s79 + $0x3b8] sm:$0xff]
  %v11631 = vld [vmem:[%s79 + $0x3c0] sm:$0xff]
  %v11632 = vld [vmem:[%s79 + $0x3c8] sm:$0xff]
  %v11633 = vld [vmem:[%s79 + $0x3d0] sm:$0xff]
  %v11634 = vld [vmem:[%s79 + $0x3d8] sm:$0xff]
  %v11635 = vld [vmem:[%s79 + $0x3e0] sm:$0xff]
  %v11636 = vld [vmem:[%s79 + $0x3e8] sm:$0xff]
  %v11637 = vld [vmem:[%s79 + $0x3f0] sm:$0xff]
  %v11638 = vld [vmem:[%s79 + $0x3f8] sm:$0xff]
  %v11639 = vld [vmem:[%s81] sm:$0xf]
  %v11641 = vlaneseq
  %v11642 = vshrl.u32 %v11641, 7
  %v11643 = vsub.s32 0, %v11642
  %v11644 = vrot.slane %v11639, %v11643
  %v11645 = vlaneseq
  %v11646 = vshrl.u32 %v11645, 7
  %v11647 = vsub.s32 1, %v11646
  %v11648 = vrot.slane %v11639, %v11647
  %v11649 = vlaneseq
  %v11650 = vshrl.u32 %v11649, 7
  %v11651 = vsub.s32 2, %v11650
  %v11652 = vrot.slane %v11639, %v11651
  %v11653 = vlaneseq
  %v11654 = vshrl.u32 %v11653, 7
  %v11655 = vsub.s32 3, %v11654
  %v11656 = vrot.slane %v11639, %v11655
  %v11789 = vunpack.c.l.b16 %v11511
  %v11790 = vunpack.c.h.b16 %v11511
  %v11791 = vunpack.c.l.b16 %v11512
  %v11792 = vunpack.c.h.b16 %v11512
  %v11793 = vunpack.c.l.b16 %v11513
  %v11794 = vunpack.c.h.b16 %v11513
  %v11795 = vunpack.c.l.b16 %v11514
  %v11796 = vunpack.c.h.b16 %v11514
  %v11797 = vunpack.c.l.b16 %v11515
  %v11798 = vunpack.c.h.b16 %v11515
  %v11799 = vunpack.c.l.b16 %v11516
  %v11800 = vunpack.c.h.b16 %v11516
  %v11801 = vunpack.c.l.b16 %v11517
  %v11802 = vunpack.c.h.b16 %v11517
  %v11803 = vunpack.c.l.b16 %v11518
  %v11804 = vunpack.c.h.b16 %v11518
  %v11805 = vunpack.c.l.b16 %v11519
  %v11806 = vunpack.c.h.b16 %v11519
  %v11807 = vunpack.c.l.b16 %v11520
  %v11808 = vunpack.c.h.b16 %v11520
  %v11809 = vunpack.c.l.b16 %v11521
  %v11810 = vunpack.c.h.b16 %v11521
  %v11811 = vunpack.c.l.b16 %v11522
  %v11812 = vunpack.c.h.b16 %v11522
  %v11813 = vunpack.c.l.b16 %v11523
  %v11814 = vunpack.c.h.b16 %v11523
  %v11815 = vunpack.c.l.b16 %v11524
  %v11816 = vunpack.c.h.b16 %v11524
  %v11817 = vunpack.c.l.b16 %v11525
  %v11818 = vunpack.c.h.b16 %v11525
  %v11819 = vunpack.c.l.b16 %v11526
  %v11820 = vunpack.c.h.b16 %v11526
  %v11821 = vunpack.c.l.b16 %v11527
  %v11822 = vunpack.c.h.b16 %v11527
  %v11823 = vunpack.c.l.b16 %v11528
  %v11824 = vunpack.c.h.b16 %v11528
  %v11825 = vunpack.c.l.b16 %v11529
  %v11826 = vunpack.c.h.b16 %v11529
  %v11827 = vunpack.c.l.b16 %v11530
  %v11828 = vunpack.c.h.b16 %v11530
  %v11829 = vunpack.c.l.b16 %v11531
  %v11830 = vunpack.c.h.b16 %v11531
  %v11831 = vunpack.c.l.b16 %v11532
  %v11832 = vunpack.c.h.b16 %v11532
  %v11833 = vunpack.c.l.b16 %v11533
  %v11834 = vunpack.c.h.b16 %v11533
  %v11835 = vunpack.c.l.b16 %v11534
  %v11836 = vunpack.c.h.b16 %v11534
  %v11837 = vunpack.c.l.b16 %v11535
  %v11838 = vunpack.c.h.b16 %v11535
  %v11839 = vunpack.c.l.b16 %v11536
  %v11840 = vunpack.c.h.b16 %v11536
  %v11841 = vunpack.c.l.b16 %v11537
  %v11842 = vunpack.c.h.b16 %v11537
  %v11843 = vunpack.c.l.b16 %v11538
  %v11844 = vunpack.c.h.b16 %v11538
  %v11845 = vunpack.c.l.b16 %v11539
  %v11846 = vunpack.c.h.b16 %v11539
  %v11847 = vunpack.c.l.b16 %v11540
  %v11848 = vunpack.c.h.b16 %v11540
  %v11849 = vunpack.c.l.b16 %v11541
  %v11850 = vunpack.c.h.b16 %v11541
  %v11851 = vunpack.c.l.b16 %v11542
  %v11852 = vunpack.c.h.b16 %v11542
  %v11853 = vunpack.c.l.b16 %v11543
  %v11854 = vunpack.c.h.b16 %v11543
  %v11855 = vunpack.c.l.b16 %v11544
  %v11856 = vunpack.c.h.b16 %v11544
  %v11857 = vunpack.c.l.b16 %v11545
  %v11858 = vunpack.c.h.b16 %v11545
  %v11859 = vunpack.c.l.b16 %v11546
  %v11860 = vunpack.c.h.b16 %v11546
  %v11861 = vunpack.c.l.b16 %v11547
  %v11862 = vunpack.c.h.b16 %v11547
  %v11863 = vunpack.c.l.b16 %v11548
  %v11864 = vunpack.c.h.b16 %v11548
  %v11865 = vunpack.c.l.b16 %v11549
  %v11866 = vunpack.c.h.b16 %v11549
  %v11867 = vunpack.c.l.b16 %v11550
  %v11868 = vunpack.c.h.b16 %v11550
  %v11869 = vunpack.c.l.b16 %v11551
  %v11870 = vunpack.c.h.b16 %v11551
  %v11871 = vunpack.c.l.b16 %v11552
  %v11872 = vunpack.c.h.b16 %v11552
  %v11873 = vunpack.c.l.b16 %v11553
  %v11874 = vunpack.c.h.b16 %v11553
  %v11875 = vunpack.c.l.b16 %v11554
  %v11876 = vunpack.c.h.b16 %v11554
  %v11877 = vunpack.c.l.b16 %v11555
  %v11878 = vunpack.c.h.b16 %v11555
  %v11879 = vunpack.c.l.b16 %v11556
  %v11880 = vunpack.c.h.b16 %v11556
  %v11881 = vunpack.c.l.b16 %v11557
  %v11882 = vunpack.c.h.b16 %v11557
  %v11883 = vunpack.c.l.b16 %v11558
  %v11884 = vunpack.c.h.b16 %v11558
  %v11885 = vunpack.c.l.b16 %v11559
  %v11886 = vunpack.c.h.b16 %v11559
  %v11887 = vunpack.c.l.b16 %v11560
  %v11888 = vunpack.c.h.b16 %v11560
  %v11889 = vunpack.c.l.b16 %v11561
  %v11890 = vunpack.c.h.b16 %v11561
  %v11891 = vunpack.c.l.b16 %v11562
  %v11892 = vunpack.c.h.b16 %v11562
  %v11893 = vunpack.c.l.b16 %v11563
  %v11894 = vunpack.c.h.b16 %v11563
  %v11895 = vunpack.c.l.b16 %v11564
  %v11896 = vunpack.c.h.b16 %v11564
  %v11897 = vunpack.c.l.b16 %v11565
  %v11898 = vunpack.c.h.b16 %v11565
  %v11899 = vunpack.c.l.b16 %v11566
  %v11900 = vunpack.c.h.b16 %v11566
  %v11901 = vunpack.c.l.b16 %v11567
  %v11902 = vunpack.c.h.b16 %v11567
  %v11903 = vunpack.c.l.b16 %v11568
  %v11904 = vunpack.c.h.b16 %v11568
  %v11905 = vunpack.c.l.b16 %v11569
  %v11906 = vunpack.c.h.b16 %v11569
  %v11907 = vunpack.c.l.b16 %v11570
  %v11908 = vunpack.c.h.b16 %v11570
  %v11909 = vunpack.c.l.b16 %v11571
  %v11910 = vunpack.c.h.b16 %v11571
  %v11911 = vunpack.c.l.b16 %v11572
  %v11912 = vunpack.c.h.b16 %v11572
  %v11913 = vunpack.c.l.b16 %v11573
  %v11914 = vunpack.c.h.b16 %v11573
  %v11915 = vunpack.c.l.b16 %v11574
  %v11916 = vunpack.c.h.b16 %v11574
  %v11917 = vunpack.c.l.b16 %v11575
  %v11918 = vunpack.c.h.b16 %v11575
  %v11919 = vunpack.c.l.b16 %v11576
  %v11920 = vunpack.c.h.b16 %v11576
  %v11921 = vunpack.c.l.b16 %v11577
  %v11922 = vunpack.c.h.b16 %v11577
  %v11923 = vunpack.c.l.b16 %v11578
  %v11924 = vunpack.c.h.b16 %v11578
  %v11925 = vunpack.c.l.b16 %v11579
  %v11926 = vunpack.c.h.b16 %v11579
  %v11927 = vunpack.c.l.b16 %v11580
  %v11928 = vunpack.c.h.b16 %v11580
  %v11929 = vunpack.c.l.b16 %v11581
  %v11930 = vunpack.c.h.b16 %v11581
  %v11931 = vunpack.c.l.b16 %v11582
  %v11932 = vunpack.c.h.b16 %v11582
  %v11933 = vunpack.c.l.b16 %v11583
  %v11934 = vunpack.c.h.b16 %v11583
  %v11935 = vunpack.c.l.b16 %v11584
  %v11936 = vunpack.c.h.b16 %v11584
  %v11937 = vunpack.c.l.b16 %v11585
  %v11938 = vunpack.c.h.b16 %v11585
  %v11939 = vunpack.c.l.b16 %v11586
  %v11940 = vunpack.c.h.b16 %v11586
  %v11941 = vunpack.c.l.b16 %v11587
  %v11942 = vunpack.c.h.b16 %v11587
  %v11943 = vunpack.c.l.b16 %v11588
  %v11944 = vunpack.c.h.b16 %v11588
  %v11945 = vunpack.c.l.b16 %v11589
  %v11946 = vunpack.c.h.b16 %v11589
  %v11947 = vunpack.c.l.b16 %v11590
  %v11948 = vunpack.c.h.b16 %v11590
  %v11949 = vunpack.c.l.b16 %v11591
  %v11950 = vunpack.c.h.b16 %v11591
  %v11951 = vunpack.c.l.b16 %v11592
  %v11952 = vunpack.c.h.b16 %v11592
  %v11953 = vunpack.c.l.b16 %v11593
  %v11954 = vunpack.c.h.b16 %v11593
  %v11955 = vunpack.c.l.b16 %v11594
  %v11956 = vunpack.c.h.b16 %v11594
  %v11957 = vunpack.c.l.b16 %v11595
  %v11958 = vunpack.c.h.b16 %v11595
  %v11959 = vunpack.c.l.b16 %v11596
  %v11960 = vunpack.c.h.b16 %v11596
  %v11961 = vunpack.c.l.b16 %v11597
  %v11962 = vunpack.c.h.b16 %v11597
  %v11963 = vunpack.c.l.b16 %v11598
  %v11964 = vunpack.c.h.b16 %v11598
  %v11965 = vunpack.c.l.b16 %v11599
  %v11966 = vunpack.c.h.b16 %v11599
  %v11967 = vunpack.c.l.b16 %v11600
  %v11968 = vunpack.c.h.b16 %v11600
  %v11969 = vunpack.c.l.b16 %v11601
  %v11970 = vunpack.c.h.b16 %v11601
  %v11971 = vunpack.c.l.b16 %v11602
  %v11972 = vunpack.c.h.b16 %v11602
  %v11973 = vunpack.c.l.b16 %v11603
  %v11974 = vunpack.c.h.b16 %v11603
  %v11975 = vunpack.c.l.b16 %v11604
  %v11976 = vunpack.c.h.b16 %v11604
  %v11977 = vunpack.c.l.b16 %v11605
  %v11978 = vunpack.c.h.b16 %v11605
  %v11979 = vunpack.c.l.b16 %v11606
  %v11980 = vunpack.c.h.b16 %v11606
  %v11981 = vunpack.c.l.b16 %v11607
  %v11982 = vunpack.c.h.b16 %v11607
  %v11983 = vunpack.c.l.b16 %v11608
  %v11984 = vunpack.c.h.b16 %v11608
  %v11985 = vunpack.c.l.b16 %v11609
  %v11986 = vunpack.c.h.b16 %v11609
  %v11987 = vunpack.c.l.b16 %v11610
  %v11988 = vunpack.c.h.b16 %v11610
  %v11989 = vunpack.c.l.b16 %v11611
  %v11990 = vunpack.c.h.b16 %v11611
  %v11991 = vunpack.c.l.b16 %v11612
  %v11992 = vunpack.c.h.b16 %v11612
  %v11993 = vunpack.c.l.b16 %v11613
  %v11994 = vunpack.c.h.b16 %v11613
  %v11995 = vunpack.c.l.b16 %v11614
  %v11996 = vunpack.c.h.b16 %v11614
  %v11997 = vunpack.c.l.b16 %v11615
  %v11998 = vunpack.c.h.b16 %v11615
  %v11999 = vunpack.c.l.b16 %v11616
  %v12000 = vunpack.c.h.b16 %v11616
  %v12001 = vunpack.c.l.b16 %v11617
  %v12002 = vunpack.c.h.b16 %v11617
  %v12003 = vunpack.c.l.b16 %v11618
  %v12004 = vunpack.c.h.b16 %v11618
  %v12005 = vunpack.c.l.b16 %v11619
  %v12006 = vunpack.c.h.b16 %v11619
  %v12007 = vunpack.c.l.b16 %v11620
  %v12008 = vunpack.c.h.b16 %v11620
  %v12009 = vunpack.c.l.b16 %v11621
  %v12010 = vunpack.c.h.b16 %v11621
  %v12011 = vunpack.c.l.b16 %v11622
  %v12012 = vunpack.c.h.b16 %v11622
  %v12013 = vunpack.c.l.b16 %v11623
  %v12014 = vunpack.c.h.b16 %v11623
  %v12015 = vunpack.c.l.b16 %v11624
  %v12016 = vunpack.c.h.b16 %v11624
  %v12017 = vunpack.c.l.b16 %v11625
  %v12018 = vunpack.c.h.b16 %v11625
  %v12019 = vunpack.c.l.b16 %v11626
  %v12020 = vunpack.c.h.b16 %v11626
  %v12021 = vunpack.c.l.b16 %v11627
  %v12022 = vunpack.c.h.b16 %v11627
  %v12023 = vunpack.c.l.b16 %v11628
  %v12024 = vunpack.c.h.b16 %v11628
  %v12025 = vunpack.c.l.b16 %v11629
  %v12026 = vunpack.c.h.b16 %v11629
  %v12027 = vunpack.c.l.b16 %v11630
  %v12028 = vunpack.c.h.b16 %v11630
  %v12029 = vunpack.c.l.b16 %v11631
  %v12030 = vunpack.c.h.b16 %v11631
  %v12031 = vunpack.c.l.b16 %v11632
  %v12032 = vunpack.c.h.b16 %v11632
  %v12033 = vunpack.c.l.b16 %v11633
  %v12034 = vunpack.c.h.b16 %v11633
  %v12035 = vunpack.c.l.b16 %v11634
  %v12036 = vunpack.c.h.b16 %v11634
  %v12037 = vunpack.c.l.b16 %v11635
  %v12038 = vunpack.c.h.b16 %v11635
  %v12039 = vunpack.c.l.b16 %v11636
  %v12040 = vunpack.c.h.b16 %v11636
  %v12041 = vunpack.c.l.b16 %v11637
  %v12042 = vunpack.c.h.b16 %v11637
  %v12043 = vunpack.c.l.b16 %v11638
  %v12044 = vunpack.c.h.b16 %v11638
  %v12045 = vpack.c.b16 %v11793, %v11789
  %v12046 = vpack.c.b16 %v11794, %v11790
  %v12047 = vpack.c.b16 %v11795, %v11791
  %v12048 = vpack.c.b16 %v11796, %v11792
  %v12049 = vpack.c.b16 %v11801, %v11797
  %v12050 = vpack.c.b16 %v11802, %v11798
  %v12051 = vpack.c.b16 %v11803, %v11799
  %v12052 = vpack.c.b16 %v11804, %v11800
  %v12053 = vpack.c.b16 %v11809, %v11805
  %v12054 = vpack.c.b16 %v11810, %v11806
  %v12055 = vpack.c.b16 %v11811, %v11807
  %v12056 = vpack.c.b16 %v11812, %v11808
  %v12057 = vpack.c.b16 %v11817, %v11813
  %v12058 = vpack.c.b16 %v11818, %v11814
  %v12059 = vpack.c.b16 %v11819, %v11815
  %v12060 = vpack.c.b16 %v11820, %v11816
  %v12061 = vpack.c.b16 %v11825, %v11821
  %v12062 = vpack.c.b16 %v11826, %v11822
  %v12063 = vpack.c.b16 %v11827, %v11823
  %v12064 = vpack.c.b16 %v11828, %v11824
  %v12065 = vpack.c.b16 %v11833, %v11829
  %v12066 = vpack.c.b16 %v11834, %v11830
  %v12067 = vpack.c.b16 %v11835, %v11831
  %v12068 = vpack.c.b16 %v11836, %v11832
  %v12069 = vpack.c.b16 %v11841, %v11837
  %v12070 = vpack.c.b16 %v11842, %v11838
  %v12071 = vpack.c.b16 %v11843, %v11839
  %v12072 = vpack.c.b16 %v11844, %v11840
  %v12073 = vpack.c.b16 %v11849, %v11845
  %v12074 = vpack.c.b16 %v11850, %v11846
  %v12075 = vpack.c.b16 %v11851, %v11847
  %v12076 = vpack.c.b16 %v11852, %v11848
  %v12077 = vpack.c.b16 %v11857, %v11853
  %v12078 = vpack.c.b16 %v11858, %v11854
  %v12079 = vpack.c.b16 %v11859, %v11855
  %v12080 = vpack.c.b16 %v11860, %v11856
  %v12081 = vpack.c.b16 %v11865, %v11861
  %v12082 = vpack.c.b16 %v11866, %v11862
  %v12083 = vpack.c.b16 %v11867, %v11863
  %v12084 = vpack.c.b16 %v11868, %v11864
  %v12085 = vpack.c.b16 %v11873, %v11869
  %v12086 = vpack.c.b16 %v11874, %v11870
  %v12087 = vpack.c.b16 %v11875, %v11871
  %v12088 = vpack.c.b16 %v11876, %v11872
  %v12089 = vpack.c.b16 %v11881, %v11877
  %v12090 = vpack.c.b16 %v11882, %v11878
  %v12091 = vpack.c.b16 %v11883, %v11879
  %v12092 = vpack.c.b16 %v11884, %v11880
  %v12093 = vpack.c.b16 %v11889, %v11885
  %v12094 = vpack.c.b16 %v11890, %v11886
  %v12095 = vpack.c.b16 %v11891, %v11887
  %v12096 = vpack.c.b16 %v11892, %v11888
  %v12097 = vpack.c.b16 %v11897, %v11893
  %v12098 = vpack.c.b16 %v11898, %v11894
  %v12099 = vpack.c.b16 %v11899, %v11895
  %v12100 = vpack.c.b16 %v11900, %v11896
  %v12101 = vpack.c.b16 %v11905, %v11901
  %v12102 = vpack.c.b16 %v11906, %v11902
  %v12103 = vpack.c.b16 %v11907, %v11903
  %v12104 = vpack.c.b16 %v11908, %v11904
  %v12105 = vpack.c.b16 %v11913, %v11909
  %v12106 = vpack.c.b16 %v11914, %v11910
  %v12107 = vpack.c.b16 %v11915, %v11911
  %v12108 = vpack.c.b16 %v11916, %v11912
  %v12109 = vpack.c.b16 %v11921, %v11917
  %v12110 = vpack.c.b16 %v11922, %v11918
  %v12111 = vpack.c.b16 %v11923, %v11919
  %v12112 = vpack.c.b16 %v11924, %v11920
  %v12113 = vpack.c.b16 %v11929, %v11925
  %v12114 = vpack.c.b16 %v11930, %v11926
  %v12115 = vpack.c.b16 %v11931, %v11927
  %v12116 = vpack.c.b16 %v11932, %v11928
  %v12117 = vpack.c.b16 %v11937, %v11933
  %v12118 = vpack.c.b16 %v11938, %v11934
  %v12119 = vpack.c.b16 %v11939, %v11935
  %v12120 = vpack.c.b16 %v11940, %v11936
  %v12121 = vpack.c.b16 %v11945, %v11941
  %v12122 = vpack.c.b16 %v11946, %v11942
  %v12123 = vpack.c.b16 %v11947, %v11943
  %v12124 = vpack.c.b16 %v11948, %v11944
  %v12125 = vpack.c.b16 %v11953, %v11949
  %v12126 = vpack.c.b16 %v11954, %v11950
  %v12127 = vpack.c.b16 %v11955, %v11951
  %v12128 = vpack.c.b16 %v11956, %v11952
  %v12129 = vpack.c.b16 %v11961, %v11957
  %v12130 = vpack.c.b16 %v11962, %v11958
  %v12131 = vpack.c.b16 %v11963, %v11959
  %v12132 = vpack.c.b16 %v11964, %v11960
  %v12133 = vpack.c.b16 %v11969, %v11965
  %v12134 = vpack.c.b16 %v11970, %v11966
  %v12135 = vpack.c.b16 %v11971, %v11967
  %v12136 = vpack.c.b16 %v11972, %v11968
  %v12137 = vpack.c.b16 %v11977, %v11973
  %v12138 = vpack.c.b16 %v11978, %v11974
  %v12139 = vpack.c.b16 %v11979, %v11975
  %v12140 = vpack.c.b16 %v11980, %v11976
  %v12141 = vpack.c.b16 %v11985, %v11981
  %v12142 = vpack.c.b16 %v11986, %v11982
  %v12143 = vpack.c.b16 %v11987, %v11983
  %v12144 = vpack.c.b16 %v11988, %v11984
  %v12145 = vpack.c.b16 %v11993, %v11989
  %v12146 = vpack.c.b16 %v11994, %v11990
  %v12147 = vpack.c.b16 %v11995, %v11991
  %v12148 = vpack.c.b16 %v11996, %v11992
  %v12149 = vpack.c.b16 %v12001, %v11997
  %v12150 = vpack.c.b16 %v12002, %v11998
  %v12151 = vpack.c.b16 %v12003, %v11999
  %v12152 = vpack.c.b16 %v12004, %v12000
  %v12153 = vpack.c.b16 %v12009, %v12005
  %v12154 = vpack.c.b16 %v12010, %v12006
  %v12155 = vpack.c.b16 %v12011, %v12007
  %v12156 = vpack.c.b16 %v12012, %v12008
  %v12157 = vpack.c.b16 %v12017, %v12013
  %v12158 = vpack.c.b16 %v12018, %v12014
  %v12159 = vpack.c.b16 %v12019, %v12015
  %v12160 = vpack.c.b16 %v12020, %v12016
  %v12161 = vpack.c.b16 %v12025, %v12021
  %v12162 = vpack.c.b16 %v12026, %v12022
  %v12163 = vpack.c.b16 %v12027, %v12023
  %v12164 = vpack.c.b16 %v12028, %v12024
  %v12165 = vpack.c.b16 %v12033, %v12029
  %v12166 = vpack.c.b16 %v12034, %v12030
  %v12167 = vpack.c.b16 %v12035, %v12031
  %v12168 = vpack.c.b16 %v12036, %v12032
  %v12169 = vpack.c.b16 %v12041, %v12037
  %v12170 = vpack.c.b16 %v12042, %v12038
  %v12171 = vpack.c.b16 %v12043, %v12039
  %v12172 = vpack.c.b16 %v12044, %v12040
  %12301 = vmatprep.subr.bf16.mxu0 %v12046
  %12302 = vmatpush1.bf16.msra.mxu0 %v12045
  %12303 = vmatprep.subr.bf16.mxu0 %v12050
  %12304 = vmatpush1.bf16.msra.mxu0 %v12049
  %12305 = vmatprep.subr.bf16.mxu0 %v12054
  %12306 = vmatpush1.bf16.msra.mxu0 %v12053
  %12307 = vmatprep.subr.bf16.mxu0 %v12058
  %12308 = vmatpush1.bf16.msra.mxu0 %v12057
  %12309 = vmatprep.subr.bf16.mxu0 %v12062
  %12310 = vmatpush1.bf16.msra.mxu0 %v12061
  %12311 = vmatprep.subr.bf16.mxu0 %v12066
  %12312 = vmatpush1.bf16.msra.mxu0 %v12065
  %12313 = vmatprep.subr.bf16.mxu0 %v12070
  %12314 = vmatpush1.bf16.msra.mxu0 %v12069
  %12315 = vmatprep.subr.bf16.mxu0 %v12074
  %12316 = vmatpush1.bf16.msra.mxu0 %v12073
  %12317 = vmatprep.subr.bf16.mxu0 %v12078
  %12318 = vmatpush1.bf16.msra.mxu0 %v12077
  %12319 = vmatprep.subr.bf16.mxu0 %v12082
  %12320 = vmatpush1.bf16.msra.mxu0 %v12081
  %12321 = vmatprep.subr.bf16.mxu0 %v12086
  %12322 = vmatpush1.bf16.msra.mxu0 %v12085
  %12323 = vmatprep.subr.bf16.mxu0 %v12090
  %12324 = vmatpush1.bf16.msra.mxu0 %v12089
  %12325 = vmatprep.subr.bf16.mxu0 %v12094
  %12326 = vmatpush1.bf16.msra.mxu0 %v12093
  %12327 = vmatprep.subr.bf16.mxu0 %v12098
  %12328 = vmatpush1.bf16.msra.mxu0 %v12097
  %12329 = vmatprep.subr.bf16.mxu0 %v12102
  %12330 = vmatpush1.bf16.msra.mxu0 %v12101
  %12331 = vmatprep.subr.bf16.mxu0 %v12106
  %12332 = vmatpush1.bf16.msra.mxu0 %v12105
  %12333 = vmatprep.mubr.bf16.mxu0 %v11508
  %12334 = vmatmul.mubr.bf16.gmra.mrb[0].mxu0 %v11507
  %v12335 = vpop.f32.mrb[0].mxu0
  %v12336 = vadd.f32 %v11644, %v12335
  %v12337 = vpop.f32.mrb[0].mxu0
  %v12338 = vadd.f32 %v11648, %v12337
  %v12339 = vpop.f32.mrb[0].mxu0
  %v12340 = vpop.f32.mrb[0].mxu0
  %12341 = vdwg.mxu0
  %12342 = vmatprep.subr.bf16.mxu0 %v12110
  %12343 = vmatpush1.bf16.msra.mxu0 %v12109
  %12344 = vmatprep.subr.bf16.mxu0 %v12114
  %12345 = vmatpush1.bf16.msra.mxu0 %v12113
  %12346 = vmatprep.subr.bf16.mxu0 %v12118
  %12347 = vmatpush1.bf16.msra.mxu0 %v12117
  %12348 = vmatprep.subr.bf16.mxu0 %v12122
  %12349 = vmatpush1.bf16.msra.mxu0 %v12121
  %12350 = vmatprep.subr.bf16.mxu0 %v12126
  %12351 = vmatpush1.bf16.msra.mxu0 %v12125
  %12352 = vmatprep.subr.bf16.mxu0 %v12130
  %12353 = vmatpush1.bf16.msra.mxu0 %v12129
  %12354 = vmatprep.subr.bf16.mxu0 %v12134
  %12355 = vmatpush1.bf16.msra.mxu0 %v12133
  %12356 = vmatprep.subr.bf16.mxu0 %v12138
  %12357 = vmatpush1.bf16.msra.mxu0 %v12137
  %12358 = vmatprep.subr.bf16.mxu0 %v12142
  %12359 = vmatpush1.bf16.msra.mxu0 %v12141
  %12360 = vmatprep.subr.bf16.mxu0 %v12146
  %12361 = vmatpush1.bf16.msra.mxu0 %v12145
  %12362 = vmatprep.subr.bf16.mxu0 %v12150
  %12363 = vmatpush1.bf16.msra.mxu0 %v12149
  %12364 = vmatprep.subr.bf16.mxu0 %v12154
  %12365 = vmatpush1.bf16.msra.mxu0 %v12153
  %12366 = vmatprep.subr.bf16.mxu0 %v12158
  %12367 = vmatpush1.bf16.msra.mxu0 %v12157
  %12368 = vmatprep.subr.bf16.mxu0 %v12162
  %12369 = vmatpush1.bf16.msra.mxu0 %v12161
  %12370 = vmatprep.subr.bf16.mxu0 %v12166
  %12371 = vmatpush1.bf16.msra.mxu0 %v12165
  %12372 = vmatprep.subr.bf16.mxu0 %v12170
  %12373 = vmatpush1.bf16.msra.mxu0 %v12169
  %12374 = vmatprep.mubr.bf16.mxu0 %v11510
  %12375 = vmatmul.mubr.bf16.gmra.mrb[0].mxu0 %v11509
  %v12376 = vpop.f32.mrb[0].mxu0
  %v12377 = vadd.f32 %v12336, %v12376
  %v12378 = vpop.f32.mrb[0].mxu0
  %v12379 = vadd.f32 %v12338, %v12378
  %v12380 = vpop.f32.mrb[0].mxu0
  %v12381 = vpop.f32.mrb[0].mxu0
  %12382 = vdwg.mxu0
  %12383 = vmatprep.subr.bf16.mxu0 %v12048
  %12384 = vmatpush1.bf16.msra.mxu0 %v12047
  %12385 = vmatprep.subr.bf16.mxu0 %v12052
  %12386 = vmatpush1.bf16.msra.mxu0 %v12051
  %12387 = vmatprep.subr.bf16.mxu0 %v12056
  %12388 = vmatpush1.bf16.msra.mxu0 %v12055
  %12389 = vmatprep.subr.bf16.mxu0 %v12060
  %12390 = vmatpush1.bf16.msra.mxu0 %v12059
  %12391 = vmatprep.subr.bf16.mxu0 %v12064
  %12392 = vmatpush1.bf16.msra.mxu0 %v12063
  %12393 = vmatprep.subr.bf16.mxu0 %v12068
  %12394 = vmatpush1.bf16.msra.mxu0 %v12067
  %12395 = vmatprep.subr.bf16.mxu0 %v12072
  %12396 = vmatpush1.bf16.msra.mxu0 %v12071
  %12397 = vmatprep.subr.bf16.mxu0 %v12076
  %12398 = vmatpush1.bf16.msra.mxu0 %v12075
  %12399 = vmatprep.subr.bf16.mxu0 %v12080
  %12400 = vmatpush1.bf16.msra.mxu0 %v12079
  %12401 = vmatprep.subr.bf16.mxu0 %v12084
  %12402 = vmatpush1.bf16.msra.mxu0 %v12083
  %12403 = vmatprep.subr.bf16.mxu0 %v12088
  %12404 = vmatpush1.bf16.msra.mxu0 %v12087
  %12405 = vmatprep.subr.bf16.mxu0 %v12092
  %12406 = vmatpush1.bf16.msra.mxu0 %v12091
  %12407 = vmatprep.subr.bf16.mxu0 %v12096
  %12408 = vmatpush1.bf16.msra.mxu0 %v12095
  %12409 = vmatprep.subr.bf16.mxu0 %v12100
  %12410 = vmatpush1.bf16.msra.mxu0 %v12099
  %12411 = vmatprep.subr.bf16.mxu0 %v12104
  %12412 = vmatpush1.bf16.msra.mxu0 %v12103
  %12413 = vmatprep.subr.bf16.mxu0 %v12108
  %12414 = vmatpush1.bf16.msra.mxu0 %v12107
  %12415 = vmatprep.mubr.bf16.mxu0 %v11508
  %12416 = vmatmul.mubr.bf16.gmra.mrb[0].mxu0 %v11507
  %v12417 = vpop.f32.mrb[0].mxu0
  %v12418 = vadd.f32 %v11652, %v12417
  %v12419 = vpop.f32.mrb[0].mxu0
  %v12420 = vadd.f32 %v11656, %v12419
  %v12421 = vpop.f32.mrb[0].mxu0
  %v12422 = vpop.f32.mrb[0].mxu0
  %12423 = vdwg.mxu0
  %12424 = vmatprep.subr.bf16.mxu0 %v12112
  %12425 = vmatpush1.bf16.msra.mxu0 %v12111
  %12426 = vmatprep.subr.bf16.mxu0 %v12116
  %12427 = vmatpush1.bf16.msra.mxu0 %v12115
  %12428 = vmatprep.subr.bf16.mxu0 %v12120
  %12429 = vmatpush1.bf16.msra.mxu0 %v12119
  %12430 = vmatprep.subr.bf16.mxu0 %v12124
  %12431 = vmatpush1.bf16.msra.mxu0 %v12123
  %12432 = vmatprep.subr.bf16.mxu0 %v12128
  %12433 = vmatpush1.bf16.msra.mxu0 %v12127
  %12434 = vmatprep.subr.bf16.mxu0 %v12132
  %12435 = vmatpush1.bf16.msra.mxu0 %v12131
  %12436 = vmatprep.subr.bf16.mxu0 %v12136
  %12437 = vmatpush1.bf16.msra.mxu0 %v12135
  %12438 = vmatprep.subr.bf16.mxu0 %v12140
  %12439 = vmatpush1.bf16.msra.mxu0 %v12139
  %12440 = vmatprep.subr.bf16.mxu0 %v12144
  %12441 = vmatpush1.bf16.msra.mxu0 %v12143
  %12442 = vmatprep.subr.bf16.mxu0 %v12148
  %12443 = vmatpush1.bf16.msra.mxu0 %v12147
  %12444 = vmatprep.subr.bf16.mxu0 %v12152
  %12445 = vmatpush1.bf16.msra.mxu0 %v12151
  %12446 = vmatprep.subr.bf16.mxu0 %v12156
  %12447 = vmatpush1.bf16.msra.mxu0 %v12155
  %12448 = vmatprep.subr.bf16.mxu0 %v12160
  %12449 = vmatpush1.bf16.msra.mxu0 %v12159
  %12450 = vmatprep.subr.bf16.mxu0 %v12164
  %12451 = vmatpush1.bf16.msra.mxu0 %v12163
  %12452 = vmatprep.subr.bf16.mxu0 %v12168
  %12453 = vmatpush1.bf16.msra.mxu0 %v12167
  %12454 = vmatprep.subr.bf16.mxu0 %v12172
  %12455 = vmatpush1.bf16.msra.mxu0 %v12171
  %12456 = vmatprep.mubr.bf16.mxu0 %v11510
  %12457 = vmatmul.mubr.bf16.gmra.mrb[0].mxu0 %v11509
  %v12458 = vpop.f32.mrb[0].mxu0
  %v12459 = vadd.f32 %v12418, %v12458
  %v12460 = vpop.f32.mrb[0].mxu0
  %v12461 = vadd.f32 %v12420, %v12460
  %v12462 = vpop.f32.mrb[0].mxu0
  %v12463 = vpop.f32.mrb[0].mxu0
  %12464 = vdwg.mxu0
  %v12467 = vcombine.low %v12377, %v12379
  %v12469 = vunpack.c.l.s4 1966171168
  %v12470 = vunpack.c.0.s8 %v12469
  %v12471 = vlaneseq
  %v12472 = vshrl.u32 %v12471, 7
  %v12473 = vsub.s32 %v12470, %v12472
  %v12474 = vrot.slane %v12467, %v12473
  %v12475 = vcombine.high %v12474, %v12474
  %v12477 = vunpack.c.l.s4 1966171168
  %v12478 = vunpack.c.0.s8 %v12477
  %v12479 = vlaneseq
  %v12480 = vshrl.u32 %v12479, 7
  %v12481 = vsub.s32 %v12478, %v12480
  %v12482 = vrot.slane %v12474, %v12481
  %v12484 = vunpack.c.l.s4 1966171168
  %v12485 = vunpack.c.0.s8 %v12484
  %v12486 = vlaneseq
  %v12487 = vshrl.u32 %v12486, 7
  %v12488 = vsub.s32 %v12485, %v12487
  %v12489 = vrot.slane %v12475, %v12488
  %v12490 = vlaneseq
  %v12491 = vshrl.u32 %v12490, 7
  %v12492 = vsub.s32 0, %v12491
  %v12493 = vrot.slane %v12482, %v12492
  %v12494 = vlaneseq
  %v12495 = vshrl.u32 %v12494, 7
  %v12496 = vsub.s32 1, %v12495
  %v12497 = vrot.slane %v12482, %v12496
  %v12498 = vlaneseq
  %v12499 = vshrl.u32 %v12498, 7
  %v12500 = vsub.s32 0, %v12499
  %v12501 = vrot.slane %v12489, %v12500
  %v12502 = vlaneseq
  %v12503 = vshrl.u32 %v12502, 7
  %v12504 = vsub.s32 1, %v12503
  %v12505 = vrot.slane %v12489, %v12504
  %v12510 = vmul.f32 %v12493, %v10845
  %v12511 = vmul.f32 %v12497, %v10846
  %v12512 = vmul.f32 %v12493, %v10847
  %v12513 = vmul.f32 %v12497, %v10848
  %v12514 = vmul.f32 %v12493, %v10849
  %v12515 = vmul.f32 %v12497, %v10850
  %v12516 = vmul.f32 %v12493, %v10851
  %v12517 = vmul.f32 %v12497, %v10852
  %v12518 = vmul.f32 %v12493, %v10853
  %v12519 = vmul.f32 %v12497, %v10854
  %v12520 = vmul.f32 %v12493, %v10855
  %v12521 = vmul.f32 %v12497, %v10856
  %v12522 = vmul.f32 %v12493, %v10857
  %v12523 = vmul.f32 %v12497, %v10858
  %v12524 = vmul.f32 %v12493, %v10859
  %v12525 = vmul.f32 %v12497, %v10860
  %v12526 = vmul.f32 %v12493, %v10861
  %v12527 = vmul.f32 %v12497, %v10862
  %v12528 = vmul.f32 %v12493, %v10863
  %v12529 = vmul.f32 %v12497, %v10864
  %v12530 = vmul.f32 %v12493, %v10865
  %v12531 = vmul.f32 %v12497, %v10866
  %v12532 = vmul.f32 %v12493, %v10867
  %v12533 = vmul.f32 %v12497, %v10868
  %v12534 = vmul.f32 %v12493, %v10869
  %v12535 = vmul.f32 %v12497, %v10870
  %v12536 = vmul.f32 %v12493, %v10871
  %v12537 = vmul.f32 %v12497, %v10872
  %v12538 = vmul.f32 %v12493, %v10873
  %v12539 = vmul.f32 %v12497, %v10874
  %v12540 = vmul.f32 %v12493, %v10875
  %v12541 = vmul.f32 %v12497, %v10876
  %v12542 = vmul.f32 %v12501, %v10877
  %v12543 = vmul.f32 %v12505, %v10878
  %v12544 = vmul.f32 %v12501, %v10879
  %v12545 = vmul.f32 %v12505, %v10880
  %v12546 = vmul.f32 %v12501, %v10881
  %v12547 = vmul.f32 %v12505, %v10882
  %v12548 = vmul.f32 %v12501, %v10883
  %v12549 = vmul.f32 %v12505, %v10884
  %v12550 = vmul.f32 %v12501, %v10885
  %v12551 = vmul.f32 %v12505, %v10886
  %v12552 = vmul.f32 %v12501, %v10887
  %v12553 = vmul.f32 %v12505, %v10888
  %v12554 = vmul.f32 %v12501, %v10889
  %v12555 = vmul.f32 %v12505, %v10890
  %v12556 = vmul.f32 %v12501, %v10891
  %v12557 = vmul.f32 %v12505, %v10892
  %v12558 = vmul.f32 %v12501, %v10893
  %v12559 = vmul.f32 %v12505, %v10894
  %v12560 = vmul.f32 %v12501, %v10895
  %v12561 = vmul.f32 %v12505, %v10896
  %v12562 = vmul.f32 %v12501, %v10897
  %v12563 = vmul.f32 %v12505, %v10898
  %v12564 = vmul.f32 %v12501, %v10899
  %v12565 = vmul.f32 %v12505, %v10900
  %v12566 = vmul.f32 %v12501, %v10901
  %v12567 = vmul.f32 %v12505, %v10902
  %v12568 = vmul.f32 %v12501, %v10903
  %v12569 = vmul.f32 %v12505, %v10904
  %v12570 = vmul.f32 %v12501, %v10905
  %v12571 = vmul.f32 %v12505, %v10906
  %v12572 = vmul.f32 %v12501, %v10907
  %v12573 = vmul.f32 %v12505, %v10908
  %v12576 = vcombine.low %v12459, %v12461
  %v12578 = vunpack.c.l.s4 1966171168
  %v12579 = vunpack.c.0.s8 %v12578
  %v12580 = vlaneseq
  %v12581 = vshrl.u32 %v12580, 7
  %v12582 = vsub.s32 %v12579, %v12581
  %v12583 = vrot.slane %v12576, %v12582
  %v12584 = vcombine.high %v12583, %v12583
  %v12586 = vunpack.c.l.s4 1966171168
  %v12587 = vunpack.c.0.s8 %v12586
  %v12588 = vlaneseq
  %v12589 = vshrl.u32 %v12588, 7
  %v12590 = vsub.s32 %v12587, %v12589
  %v12591 = vrot.slane %v12583, %v12590
  %v12593 = vunpack.c.l.s4 1966171168
  %v12594 = vunpack.c.0.s8 %v12593
  %v12595 = vlaneseq
  %v12596 = vshrl.u32 %v12595, 7
  %v12597 = vsub.s32 %v12594, %v12596
  %v12598 = vrot.slane %v12584, %v12597
  %v12599 = vlaneseq
  %v12600 = vshrl.u32 %v12599, 7
  %v12601 = vsub.s32 0, %v12600
  %v12602 = vrot.slane %v12591, %v12601
  %v12603 = vlaneseq
  %v12604 = vshrl.u32 %v12603, 7
  %v12605 = vsub.s32 1, %v12604
  %v12606 = vrot.slane %v12591, %v12605
  %v12607 = vlaneseq
  %v12608 = vshrl.u32 %v12607, 7
  %v12609 = vsub.s32 0, %v12608
  %v12610 = vrot.slane %v12598, %v12609
  %v12611 = vlaneseq
  %v12612 = vshrl.u32 %v12611, 7
  %v12613 = vsub.s32 1, %v12612
  %v12614 = vrot.slane %v12598, %v12613
  %v12619 = vadd.f32 %v12510, %v12602
  %v12620 = vadd.f32 %v12511, %v12606
  %v12621 = vadd.f32 %v12512, %v12602
  %v12622 = vadd.f32 %v12513, %v12606
  %v12623 = vadd.f32 %v12514, %v12602
  %v12624 = vadd.f32 %v12515, %v12606
  %v12625 = vadd.f32 %v12516, %v12602
  %v12626 = vadd.f32 %v12517, %v12606
  %v12627 = vadd.f32 %v12518, %v12602
  %v12628 = vadd.f32 %v12519, %v12606
  %v12629 = vadd.f32 %v12520, %v12602
  %v12630 = vadd.f32 %v12521, %v12606
  %v12631 = vadd.f32 %v12522, %v12602
  %v12632 = vadd.f32 %v12523, %v12606
  %v12633 = vadd.f32 %v12524, %v12602
  %v12634 = vadd.f32 %v12525, %v12606
  %v12635 = vadd.f32 %v12526, %v12602
  %v12636 = vadd.f32 %v12527, %v12606
  %v12637 = vadd.f32 %v12528, %v12602
  %v12638 = vadd.f32 %v12529, %v12606
  %v12639 = vadd.f32 %v12530, %v12602
  %v12640 = vadd.f32 %v12531, %v12606
  %v12641 = vadd.f32 %v12532, %v12602
  %v12642 = vadd.f32 %v12533, %v12606
  %v12643 = vadd.f32 %v12534, %v12602
  %v12644 = vadd.f32 %v12535, %v12606
  %v12645 = vadd.f32 %v12536, %v12602
  %v12646 = vadd.f32 %v12537, %v12606
  %v12647 = vadd.f32 %v12538, %v12602
  %v12648 = vadd.f32 %v12539, %v12606
  %v12649 = vadd.f32 %v12540, %v12602
  %v12650 = vadd.f32 %v12541, %v12606
  %v12651 = vadd.f32 %v12542, %v12610
  %v12652 = vadd.f32 %v12543, %v12614
  %v12653 = vadd.f32 %v12544, %v12610
  %v12654 = vadd.f32 %v12545, %v12614
  %v12655 = vadd.f32 %v12546, %v12610
  %v12656 = vadd.f32 %v12547, %v12614
  %v12657 = vadd.f32 %v12548, %v12610
  %v12658 = vadd.f32 %v12549, %v12614
  %v12659 = vadd.f32 %v12550, %v12610
  %v12660 = vadd.f32 %v12551, %v12614
  %v12661 = vadd.f32 %v12552, %v12610
  %v12662 = vadd.f32 %v12553, %v12614
  %v12663 = vadd.f32 %v12554, %v12610
  %v12664 = vadd.f32 %v12555, %v12614
  %v12665 = vadd.f32 %v12556, %v12610
  %v12666 = vadd.f32 %v12557, %v12614
  %v12667 = vadd.f32 %v12558, %v12610
  %v12668 = vadd.f32 %v12559, %v12614
  %v12669 = vadd.f32 %v12560, %v12610
  %v12670 = vadd.f32 %v12561, %v12614
  %v12671 = vadd.f32 %v12562, %v12610
  %v12672 = vadd.f32 %v12563, %v12614
  %v12673 = vadd.f32 %v12564, %v12610
  %v12674 = vadd.f32 %v12565, %v12614
  %v12675 = vadd.f32 %v12566, %v12610
  %v12676 = vadd.f32 %v12567, %v12614
  %v12677 = vadd.f32 %v12568, %v12610
  %v12678 = vadd.f32 %v12569, %v12614
  %v12679 = vadd.f32 %v12570, %v12610
  %v12680 = vadd.f32 %v12571, %v12614
  %v12681 = vadd.f32 %v12572, %v12610
  %v12682 = vadd.f32 %v12573, %v12614
  %12683 = vmatprep.subr.mxu0 %v12620
  %12684 = vmatpush1.msra.mxu0 %v12619
  %12685 = vmatprep.subr.mxu0 %v12622
  %12686 = vmatpush1.msra.mxu0 %v12621
  %12687 = vmatprep.subr.mxu0 %v12624
  %12688 = vmatpush1.msra.mxu0 %v12623
  %12689 = vmatprep.subr.mxu0 %v12626
  %12690 = vmatpush1.msra.mxu0 %v12625
  %12691 = vmatprep.subr.mxu0 %v12628
  %12692 = vmatpush1.msra.mxu0 %v12627
  %12693 = vmatprep.subr.mxu0 %v12630
  %12694 = vmatpush1.msra.mxu0 %v12629
  %12695 = vmatprep.subr.mxu0 %v12632
  %12696 = vmatpush1.msra.mxu0 %v12631
  %12697 = vmatprep.subr.mxu0 %v12634
  %12698 = vmatpush1.msra.mxu0 %v12633
  %12699 = vmatprep.subr.mxu0 %v12636
  %12700 = vmatpush1.msra.mxu0 %v12635
  %12701 = vmatprep.subr.mxu0 %v12638
  %12702 = vmatpush1.msra.mxu0 %v12637
  %12703 = vmatprep.subr.mxu0 %v12640
  %12704 = vmatpush1.msra.mxu0 %v12639
  %12705 = vmatprep.subr.mxu0 %v12642
  %12706 = vmatpush1.msra.mxu0 %v12641
  %12707 = vmatprep.subr.mxu0 %v12644
  %12708 = vmatpush1.msra.mxu0 %v12643
  %12709 = vmatprep.subr.mxu0 %v12646
  %12710 = vmatpush1.msra.mxu0 %v12645
  %12711 = vmatprep.subr.mxu0 %v12648
  %12712 = vmatpush1.msra.mxu0 %v12647
  %12713 = vmatprep.subr.mxu0 %v12650
  %12714 = vmatpush1.msra.mxu0 %v12649
  %12715 = vmatprep.subr.mxu0 %v12652
  %12716 = vmatpush1.msra.mxu0 %v12651
  %12717 = vmatprep.subr.mxu0 %v12654
  %12718 = vmatpush1.msra.mxu0 %v12653
  %12719 = vmatprep.subr.mxu0 %v12656
  %12720 = vmatpush1.msra.mxu0 %v12655
  %12721 = vmatprep.subr.mxu0 %v12658
  %12722 = vmatpush1.msra.mxu0 %v12657
  %12723 = vmatprep.subr.mxu0 %v12660
  %12724 = vmatpush1.msra.mxu0 %v12659
  %12725 = vmatprep.subr.mxu0 %v12662
  %12726 = vmatpush1.msra.mxu0 %v12661
  %12727 = vmatprep.subr.mxu0 %v12664
  %12728 = vmatpush1.msra.mxu0 %v12663
  %12729 = vmatprep.subr.mxu0 %v12666
  %12730 = vmatpush1.msra.mxu0 %v12665
  %12731 = vmatprep.subr.mxu0 %v12668
  %12732 = vmatpush1.msra.mxu0 %v12667
  %12733 = vmatprep.subr.mxu0 %v12670
  %12734 = vmatpush1.msra.mxu0 %v12669
  %12735 = vmatprep.subr.mxu0 %v12672
  %12736 = vmatpush1.msra.mxu0 %v12671
  %12737 = vmatprep.subr.mxu0 %v12674
  %12738 = vmatpush1.msra.mxu0 %v12673
  %12739 = vmatprep.subr.mxu0 %v12676
  %12740 = vmatpush1.msra.mxu0 %v12675
  %12741 = vmatprep.subr.mxu0 %v12678
  %12742 = vmatpush1.msra.mxu0 %v12677
  %12743 = vmatprep.subr.mxu0 %v12680
  %12744 = vmatpush1.msra.mxu0 %v12679
  %12745 = vmatprep.subr.mxu0 %v12682
  %12746 = vmatpush1.msra.mxu0 %v12681
  %12747 = vmatprep.mubr.f32.mxu0 1.0
  %12748 = vmatmul.mubr.f32.gmra.mrb[0].mxu0 1.0
  %v12749 = vpop.f32.mrb[0].mxu0
  %v12750 = vadd.f32 0.0, %v12749
  %v12751 = vpop.f32.mrb[0].mxu0
  %v12752 = vadd.f32 0.0, %v12751
  %12753 = vdwg.mxu0
  %v12754 = vmul.f32 %v12619, %v12619
  %v12755 = vmul.f32 %v12620, %v12620
  %v12756 = vmul.f32 %v12621, %v12621
  %v12757 = vmul.f32 %v12622, %v12622
  %v12758 = vmul.f32 %v12623, %v12623
  %v12759 = vmul.f32 %v12624, %v12624
  %v12760 = vmul.f32 %v12625, %v12625
  %v12761 = vmul.f32 %v12626, %v12626
  %v12762 = vmul.f32 %v12627, %v12627
  %v12763 = vmul.f32 %v12628, %v12628
  %v12764 = vmul.f32 %v12629, %v12629
  %v12765 = vmul.f32 %v12630, %v12630
  %v12766 = vmul.f32 %v12631, %v12631
  %v12767 = vmul.f32 %v12632, %v12632
  %v12768 = vmul.f32 %v12633, %v12633
  %v12769 = vmul.f32 %v12634, %v12634
  %v12770 = vmul.f32 %v12635, %v12635
  %v12771 = vmul.f32 %v12636, %v12636
  %v12772 = vmul.f32 %v12637, %v12637
  %v12773 = vmul.f32 %v12638, %v12638
  %v12774 = vmul.f32 %v12639, %v12639
  %v12775 = vmul.f32 %v12640, %v12640
  %v12776 = vmul.f32 %v12641, %v12641
  %v12777 = vmul.f32 %v12642, %v12642
  %v12778 = vmul.f32 %v12643, %v12643
  %v12779 = vmul.f32 %v12644, %v12644
  %v12780 = vmul.f32 %v12645, %v12645
  %v12781 = vmul.f32 %v12646, %v12646
  %v12782 = vmul.f32 %v12647, %v12647
  %v12783 = vmul.f32 %v12648, %v12648
  %v12784 = vmul.f32 %v12649, %v12649
  %v12785 = vmul.f32 %v12650, %v12650
  %v12786 = vmul.f32 %v12651, %v12651
  %v12787 = vmul.f32 %v12652, %v12652
  %v12788 = vmul.f32 %v12653, %v12653
  %v12789 = vmul.f32 %v12654, %v12654
  %v12790 = vmul.f32 %v12655, %v12655
  %v12791 = vmul.f32 %v12656, %v12656
  %v12792 = vmul.f32 %v12657, %v12657
  %v12793 = vmul.f32 %v12658, %v12658
  %v12794 = vmul.f32 %v12659, %v12659
  %v12795 = vmul.f32 %v12660, %v12660
  %v12796 = vmul.f32 %v12661, %v12661
  %v12797 = vmul.f32 %v12662, %v12662
  %v12798 = vmul.f32 %v12663, %v12663
  %v12799 = vmul.f32 %v12664, %v12664
  %v12800 = vmul.f32 %v12665, %v12665
  %v12801 = vmul.f32 %v12666, %v12666
  %v12802 = vmul.f32 %v12667, %v12667
  %v12803 = vmul.f32 %v12668, %v12668
  %v12804 = vmul.f32 %v12669, %v12669
  %v12805 = vmul.f32 %v12670, %v12670
  %v12806 = vmul.f32 %v12671, %v12671
  %v12807 = vmul.f32 %v12672, %v12672
  %v12808 = vmul.f32 %v12673, %v12673
  %v12809 = vmul.f32 %v12674, %v12674
  %v12810 = vmul.f32 %v12675, %v12675
  %v12811 = vmul.f32 %v12676, %v12676
  %v12812 = vmul.f32 %v12677, %v12677
  %v12813 = vmul.f32 %v12678, %v12678
  %v12814 = vmul.f32 %v12679, %v12679
  %v12815 = vmul.f32 %v12680, %v12680
  %v12816 = vmul.f32 %v12681, %v12681
  %v12817 = vmul.f32 %v12682, %v12682
  %12818 = vmatprep.subr.mxu0 %v12755
  %12819 = vmatpush1.msra.mxu0 %v12754
  %12820 = vmatprep.subr.mxu0 %v12757
  %12821 = vmatpush1.msra.mxu0 %v12756
  %12822 = vmatprep.subr.mxu0 %v12759
  %12823 = vmatpush1.msra.mxu0 %v12758
  %12824 = vmatprep.subr.mxu0 %v12761
  %12825 = vmatpush1.msra.mxu0 %v12760
  %12826 = vmatprep.subr.mxu0 %v12763
  %12827 = vmatpush1.msra.mxu0 %v12762
  %12828 = vmatprep.subr.mxu0 %v12765
  %12829 = vmatpush1.msra.mxu0 %v12764
  %12830 = vmatprep.subr.mxu0 %v12767
  %12831 = vmatpush1.msra.mxu0 %v12766
  %12832 = vmatprep.subr.mxu0 %v12769
  %12833 = vmatpush1.msra.mxu0 %v12768
  %12834 = vmatprep.subr.mxu0 %v12771
  %12835 = vmatpush1.msra.mxu0 %v12770
  %12836 = vmatprep.subr.mxu0 %v12773
  %12837 = vmatpush1.msra.mxu0 %v12772
  %12838 = vmatprep.subr.mxu0 %v12775
  %12839 = vmatpush1.msra.mxu0 %v12774
  %12840 = vmatprep.subr.mxu0 %v12777
  %12841 = vmatpush1.msra.mxu0 %v12776
  %12842 = vmatprep.subr.mxu0 %v12779
  %12843 = vmatpush1.msra.mxu0 %v12778
  %12844 = vmatprep.subr.mxu0 %v12781
  %12845 = vmatpush1.msra.mxu0 %v12780
  %12846 = vmatprep.subr.mxu0 %v12783
  %12847 = vmatpush1.msra.mxu0 %v12782
  %12848 = vmatprep.subr.mxu0 %v12785
  %12849 = vmatpush1.msra.mxu0 %v12784
  %12850 = vmatprep.subr.mxu0 %v12787
  %12851 = vmatpush1.msra.mxu0 %v12786
  %12852 = vmatprep.subr.mxu0 %v12789
  %12853 = vmatpush1.msra.mxu0 %v12788
  %12854 = vmatprep.subr.mxu0 %v12791
  %12855 = vmatpush1.msra.mxu0 %v12790
  %12856 = vmatprep.subr.mxu0 %v12793
  %12857 = vmatpush1.msra.mxu0 %v12792
  %12858 = vmatprep.subr.mxu0 %v12795
  %12859 = vmatpush1.msra.mxu0 %v12794
  %12860 = vmatprep.subr.mxu0 %v12797
  %12861 = vmatpush1.msra.mxu0 %v12796
  %12862 = vmatprep.subr.mxu0 %v12799
  %12863 = vmatpush1.msra.mxu0 %v12798
  %12864 = vmatprep.subr.mxu0 %v12801
  %12865 = vmatpush1.msra.mxu0 %v12800
  %12866 = vmatprep.subr.mxu0 %v12803
  %12867 = vmatpush1.msra.mxu0 %v12802
  %12868 = vmatprep.subr.mxu0 %v12805
  %12869 = vmatpush1.msra.mxu0 %v12804
  %12870 = vmatprep.subr.mxu0 %v12807
  %12871 = vmatpush1.msra.mxu0 %v12806
  %12872 = vmatprep.subr.mxu0 %v12809
  %12873 = vmatpush1.msra.mxu0 %v12808
  %12874 = vmatprep.subr.mxu0 %v12811
  %12875 = vmatpush1.msra.mxu0 %v12810
  %12876 = vmatprep.subr.mxu0 %v12813
  %12877 = vmatpush1.msra.mxu0 %v12812
  %12878 = vmatprep.subr.mxu0 %v12815
  %12879 = vmatpush1.msra.mxu0 %v12814
  %12880 = vmatprep.subr.mxu0 %v12817
  %12881 = vmatpush1.msra.mxu0 %v12816
  %12882 = vmatprep.mubr.f32.mxu0 1.0
  %12883 = vmatmul.mubr.f32.gmra.mrb[0].mxu0 1.0
  %v12884 = vpop.f32.mrb[0].mxu0
  %v12885 = vadd.f32 0.0, %v12884
  %v12886 = vpop.f32.mrb[0].mxu0
  %v12887 = vadd.f32 0.0, %v12886
  %12888 = vdwg.mxu0
  %v12889 = vmul.f32 %v12750, 0.00390625
  %v12890 = vmul.f32 %v12752, 0.00390625
  %v12891 = vmul.f32 %v12885, 0.00390625
  %v12892 = vmul.f32 %v12887, 0.00390625
  %v12893 = vmul.f32 %v12889, %v12889
  %v12894 = vmul.f32 %v12890, %v12890
  %v12895 = vsub.f32 %v12891, %v12893
  %v12896 = vsub.f32 %v12892, %v12894
  %v12897 = vmax.f32 %v12895, 0.0
  %v12898 = vmax.f32 %v12896, 0.0
  %v12899 = vld [vmem:[%s83] sm:$0x3]
  %v12900 = vadd.f32 %v12897, 1e-05
  %v12901 = vadd.f32 %v12898, 1e-05
  %v12902 = vrsqrt.pop %v12900
  %v12903 = vrsqrt.pop %v12901
  %v12906 = vcombine.low %v12902, %v12903
  %v12908 = vunpack.c.l.s4 1966171168
  %v12909 = vunpack.c.0.s8 %v12908
  %v12910 = vlaneseq
  %v12911 = vshrl.u32 %v12910, 7
  %v12912 = vsub.s32 %v12909, %v12911
  %v12913 = vrot.slane %v12906, %v12912
  %v12915 = vunpack.c.l.s4 1966171168
  %v12916 = vunpack.c.0.s8 %v12915
  %v12917 = vlaneseq
  %v12918 = vshrl.u32 %v12917, 7
  %v12919 = vsub.s32 %v12916, %v12918
  %v12920 = vrot.slane %v12913, %v12919
  %v12922 = vmul.f32 %v12899, %v12920
  %v12923 = vld [vmem:[%s85] sm:$0x3]
  %v12925 = vlaneseq
  %v12926 = vshrl.u32 %v12925, 7
  %v12927 = vsub.s32 0, %v12926
  %v12928 = vrot.slane %v12922, %v12927
  %v12929 = vlaneseq
  %v12930 = vshrl.u32 %v12929, 7
  %v12931 = vsub.s32 1, %v12930
  %v12932 = vrot.slane %v12922, %v12931
  %v12935 = vmul.f32 %v12889, %v12928
  %v12936 = vmul.f32 %v12890, %v12932
  %v12939 = vcombine.low %v12935, %v12936
  %v12941 = vunpack.c.l.s4 1966171168
  %v12942 = vunpack.c.0.s8 %v12941
  %v12943 = vlaneseq
  %v12944 = vshrl.u32 %v12943, 7
  %v12945 = vsub.s32 %v12942, %v12944
  %v12946 = vrot.slane %v12939, %v12945
  %v12948 = vunpack.c.l.s4 1966171168
  %v12949 = vunpack.c.0.s8 %v12948
  %v12950 = vlaneseq
  %v12951 = vshrl.u32 %v12950, 7
  %v12952 = vsub.s32 %v12949, %v12951
  %v12953 = vrot.slane %v12946, %v12952
  %v12955 = vsub.f32 %v12923, %v12953
  %v12956 = vmul.f32 %v12619, %v12928
  %v12957 = vmul.f32 %v12620, %v12932
  %v12958 = vmul.f32 %v12621, %v12928
  %v12959 = vmul.f32 %v12622, %v12932
  %v12960 = vmul.f32 %v12623, %v12928
  %v12961 = vmul.f32 %v12624, %v12932
  %v12962 = vmul.f32 %v12625, %v12928
  %v12963 = vmul.f32 %v12626, %v12932
  %v12964 = vmul.f32 %v12627, %v12928
  %v12965 = vmul.f32 %v12628, %v12932
  %v12966 = vmul.f32 %v12629, %v12928
  %v12967 = vmul.f32 %v12630, %v12932
  %v12968 = vmul.f32 %v12631, %v12928
  %v12969 = vmul.f32 %v12632, %v12932
  %v12970 = vmul.f32 %v12633, %v12928
  %v12971 = vmul.f32 %v12634, %v12932
  %v12972 = vmul.f32 %v12635, %v12928
  %v12973 = vmul.f32 %v12636, %v12932
  %v12974 = vmul.f32 %v12637, %v12928
  %v12975 = vmul.f32 %v12638, %v12932
  %v12976 = vmul.f32 %v12639, %v12928
  %v12977 = vmul.f32 %v12640, %v12932
  %v12978 = vmul.f32 %v12641, %v12928
  %v12979 = vmul.f32 %v12642, %v12932
  %v12980 = vmul.f32 %v12643, %v12928
  %v12981 = vmul.f32 %v12644, %v12932
  %v12982 = vmul.f32 %v12645, %v12928
  %v12983 = vmul.f32 %v12646, %v12932
  %v12984 = vmul.f32 %v12647, %v12928
  %v12985 = vmul.f32 %v12648, %v12932
  %v12986 = vmul.f32 %v12649, %v12928
  %v12987 = vmul.f32 %v12650, %v12932
  %v12988 = vmul.f32 %v12651, %v12928
  %v12989 = vmul.f32 %v12652, %v12932
  %v12990 = vmul.f32 %v12653, %v12928
  %v12991 = vmul.f32 %v12654, %v12932
  %v12992 = vmul.f32 %v12655, %v12928
  %v12993 = vmul.f32 %v12656, %v12932
  %v12994 = vmul.f32 %v12657, %v12928
  %v12995 = vmul.f32 %v12658, %v12932
  %v12996 = vmul.f32 %v12659, %v12928
  %v12997 = vmul.f32 %v12660, %v12932
  %v12998 = vmul.f32 %v12661, %v12928
  %v12999 = vmul.f32 %v12662, %v12932
  %v13000 = vmul.f32 %v12663, %v12928
  %v13001 = vmul.f32 %v12664, %v12932
  %v13002 = vmul.f32 %v12665, %v12928
  %v13003 = vmul.f32 %v12666, %v12932
  %v13004 = vmul.f32 %v12667, %v12928
  %v13005 = vmul.f32 %v12668, %v12932
  %v13006 = vmul.f32 %v12669, %v12928
  %v13007 = vmul.f32 %v12670, %v12932
  %v13008 = vmul.f32 %v12671, %v12928
  %v13009 = vmul.f32 %v12672, %v12932
  %v13010 = vmul.f32 %v12673, %v12928
  %v13011 = vmul.f32 %v12674, %v12932
  %v13012 = vmul.f32 %v12675, %v12928
  %v13013 = vmul.f32 %v12676, %v12932
  %v13014 = vmul.f32 %v12677, %v12928
  %v13015 = vmul.f32 %v12678, %v12932
  %v13016 = vmul.f32 %v12679, %v12928
  %v13017 = vmul.f32 %v12680, %v12932
  %v13018 = vmul.f32 %v12681, %v12928
  %v13019 = vmul.f32 %v12682, %v12932
  %v13021 = vlaneseq
  %v13022 = vshrl.u32 %v13021, 7
  %v13023 = vsub.s32 0, %v13022
  %v13024 = vrot.slane %v12955, %v13023
  %v13025 = vlaneseq
  %v13026 = vshrl.u32 %v13025, 7
  %v13027 = vsub.s32 1, %v13026
  %v13028 = vrot.slane %v12955, %v13027
  %v13031 = vadd.f32 %v12956, %v13024
  %v13032 = vadd.f32 %v12957, %v13028
  %v13033 = vadd.f32 %v12958, %v13024
  %v13034 = vadd.f32 %v12959, %v13028
  %v13035 = vadd.f32 %v12960, %v13024
  %v13036 = vadd.f32 %v12961, %v13028
  %v13037 = vadd.f32 %v12962, %v13024
  %v13038 = vadd.f32 %v12963, %v13028
  %v13039 = vadd.f32 %v12964, %v13024
  %v13040 = vadd.f32 %v12965, %v13028
  %v13041 = vadd.f32 %v12966, %v13024
  %v13042 = vadd.f32 %v12967, %v13028
  %v13043 = vadd.f32 %v12968, %v13024
  %v13044 = vadd.f32 %v12969, %v13028
  %v13045 = vadd.f32 %v12970, %v13024
  %v13046 = vadd.f32 %v12971, %v13028
  %v13047 = vadd.f32 %v12972, %v13024
  %v13048 = vadd.f32 %v12973, %v13028
  %v13049 = vadd.f32 %v12974, %v13024
  %v13050 = vadd.f32 %v12975, %v13028
  %v13051 = vadd.f32 %v12976, %v13024
  %v13052 = vadd.f32 %v12977, %v13028
  %v13053 = vadd.f32 %v12978, %v13024
  %v13054 = vadd.f32 %v12979, %v13028
  %v13055 = vadd.f32 %v12980, %v13024
  %v13056 = vadd.f32 %v12981, %v13028
  %v13057 = vadd.f32 %v12982, %v13024
  %v13058 = vadd.f32 %v12983, %v13028
  %v13059 = vadd.f32 %v12984, %v13024
  %v13060 = vadd.f32 %v12985, %v13028
  %v13061 = vadd.f32 %v12986, %v13024
  %v13062 = vadd.f32 %v12987, %v13028
  %v13063 = vadd.f32 %v12988, %v13024
  %v13064 = vadd.f32 %v12989, %v13028
  %v13065 = vadd.f32 %v12990, %v13024
  %v13066 = vadd.f32 %v12991, %v13028
  %v13067 = vadd.f32 %v12992, %v13024
  %v13068 = vadd.f32 %v12993, %v13028
  %v13069 = vadd.f32 %v12994, %v13024
  %v13070 = vadd.f32 %v12995, %v13028
  %v13071 = vadd.f32 %v12996, %v13024
  %v13072 = vadd.f32 %v12997, %v13028
  %v13073 = vadd.f32 %v12998, %v13024
  %v13074 = vadd.f32 %v12999, %v13028
  %v13075 = vadd.f32 %v13000, %v13024
  %v13076 = vadd.f32 %v13001, %v13028
  %v13077 = vadd.f32 %v13002, %v13024
  %v13078 = vadd.f32 %v13003, %v13028
  %v13079 = vadd.f32 %v13004, %v13024
  %v13080 = vadd.f32 %v13005, %v13028
  %v13081 = vadd.f32 %v13006, %v13024
  %v13082 = vadd.f32 %v13007, %v13028
  %v13083 = vadd.f32 %v13008, %v13024
  %v13084 = vadd.f32 %v13009, %v13028
  %v13085 = vadd.f32 %v13010, %v13024
  %v13086 = vadd.f32 %v13011, %v13028
  %v13087 = vadd.f32 %v13012, %v13024
  %v13088 = vadd.f32 %v13013, %v13028
  %v13089 = vadd.f32 %v13014, %v13024
  %v13090 = vadd.f32 %v13015, %v13028
  %v13091 = vadd.f32 %v13016, %v13024
  %v13092 = vadd.f32 %v13017, %v13028
  %v13093 = vadd.f32 %v13018, %v13024
  %v13094 = vadd.f32 %v13019, %v13028
  %v13095 = vadd.f32 %v13031, %v9402
  %v13096 = vadd.f32 %v13032, %v9403
  %v13097 = vadd.f32 %v13033, %v9406
  %v13098 = vadd.f32 %v13034, %v9407
  %v13099 = vadd.f32 %v13035, %v9410
  %v13100 = vadd.f32 %v13036, %v9411
  %v13101 = vadd.f32 %v13037, %v9414
  %v13102 = vadd.f32 %v13038, %v9415
  %v13103 = vadd.f32 %v13039, %v9418
  %v13104 = vadd.f32 %v13040, %v9419
  %v13105 = vadd.f32 %v13041, %v9422
  %v13106 = vadd.f32 %v13042, %v9423
  %v13107 = vadd.f32 %v13043, %v9426
  %v13108 = vadd.f32 %v13044, %v9427
  %v13109 = vadd.f32 %v13045, %v9430
  %v13110 = vadd.f32 %v13046, %v9431
  %v13111 = vadd.f32 %v13047, %v9434
  %v13112 = vadd.f32 %v13048, %v9435
  %v13113 = vadd.f32 %v13049, %v9438
  %v13114 = vadd.f32 %v13050, %v9439
  %v13115 = vadd.f32 %v13051, %v9442
  %v13116 = vadd.f32 %v13052, %v9443
  %v13117 = vadd.f32 %v13053, %v9446
  %v13118 = vadd.f32 %v13054, %v9447
  %v13119 = vadd.f32 %v13055, %v9450
  %v13120 = vadd.f32 %v13056, %v9451
  %v13121 = vadd.f32 %v13057, %v9454
  %v13122 = vadd.f32 %v13058, %v9455
  %v13123 = vadd.f32 %v13059, %v9458
  %v13124 = vadd.f32 %v13060, %v9459
  %v13125 = vadd.f32 %v13061, %v9462
  %v13126 = vadd.f32 %v13062, %v9463
  %v13127 = vadd.f32 %v13063, %v9466
  %v13128 = vadd.f32 %v13064, %v9467
  %v13129 = vadd.f32 %v13065, %v9470
  %v13130 = vadd.f32 %v13066, %v9471
  %v13131 = vadd.f32 %v13067, %v9474
  %v13132 = vadd.f32 %v13068, %v9475
  %v13133 = vadd.f32 %v13069, %v9478
  %v13134 = vadd.f32 %v13070, %v9479
  %v13135 = vadd.f32 %v13071, %v9482
  %v13136 = vadd.f32 %v13072, %v9483
  %v13137 = vadd.f32 %v13073, %v9486
  %v13138 = vadd.f32 %v13074, %v9487
  %v13139 = vadd.f32 %v13075, %v9490
  %v13140 = vadd.f32 %v13076, %v9491
  %v13141 = vadd.f32 %v13077, %v9494
  %v13142 = vadd.f32 %v13078, %v9495
  %v13143 = vadd.f32 %v13079, %v9498
  %v13144 = vadd.f32 %v13080, %v9499
  %v13145 = vadd.f32 %v13081, %v9502
  %v13146 = vadd.f32 %v13082, %v9503
  %v13147 = vadd.f32 %v13083, %v9506
  %v13148 = vadd.f32 %v13084, %v9507
  %v13149 = vadd.f32 %v13085, %v9510
  %v13150 = vadd.f32 %v13086, %v9511
  %v13151 = vadd.f32 %v13087, %v9514
  %v13152 = vadd.f32 %v13088, %v9515
  %v13153 = vadd.f32 %v13089, %v9518
  %v13154 = vadd.f32 %v13090, %v9519
  %v13155 = vadd.f32 %v13091, %v9522
  %v13156 = vadd.f32 %v13092, %v9523
  %v13157 = vadd.f32 %v13093, %v9526
  %v13158 = vadd.f32 %v13094, %v9527
  %v13159 = vmax.f32 %v13095, 0.0
  %v13160 = vmax.f32 %v13096, 0.0
  %v13161 = vmax.f32 %v13097, 0.0
  %v13162 = vmax.f32 %v13098, 0.0
  %v13163 = vmax.f32 %v13099, 0.0
  %v13164 = vmax.f32 %v13100, 0.0
  %v13165 = vmax.f32 %v13101, 0.0
  %v13166 = vmax.f32 %v13102, 0.0
  %v13167 = vmax.f32 %v13103, 0.0
  %v13168 = vmax.f32 %v13104, 0.0
  %v13169 = vmax.f32 %v13105, 0.0
  %v13170 = vmax.f32 %v13106, 0.0
  %v13171 = vmax.f32 %v13107, 0.0
  %v13172 = vmax.f32 %v13108, 0.0
  %v13173 = vmax.f32 %v13109, 0.0
  %v13174 = vmax.f32 %v13110, 0.0
  %v13175 = vmax.f32 %v13111, 0.0
  %v13176 = vmax.f32 %v13112, 0.0
  %v13177 = vmax.f32 %v13113, 0.0
  %v13178 = vmax.f32 %v13114, 0.0
  %v13179 = vmax.f32 %v13115, 0.0
  %v13180 = vmax.f32 %v13116, 0.0
  %v13181 = vmax.f32 %v13117, 0.0
  %v13182 = vmax.f32 %v13118, 0.0
  %v13183 = vmax.f32 %v13119, 0.0
  %v13184 = vmax.f32 %v13120, 0.0
  %v13185 = vmax.f32 %v13121, 0.0
  %v13186 = vmax.f32 %v13122, 0.0
  %v13187 = vmax.f32 %v13123, 0.0
  %v13188 = vmax.f32 %v13124, 0.0
  %v13189 = vmax.f32 %v13125, 0.0
  %v13190 = vmax.f32 %v13126, 0.0
  %v13191 = vmax.f32 %v13127, 0.0
  %v13192 = vmax.f32 %v13128, 0.0
  %v13193 = vmax.f32 %v13129, 0.0
  %v13194 = vmax.f32 %v13130, 0.0
  %v13195 = vmax.f32 %v13131, 0.0
  %v13196 = vmax.f32 %v13132, 0.0
  %v13197 = vmax.f32 %v13133, 0.0
  %v13198 = vmax.f32 %v13134, 0.0
  %v13199 = vmax.f32 %v13135, 0.0
  %v13200 = vmax.f32 %v13136, 0.0
  %v13201 = vmax.f32 %v13137, 0.0
  %v13202 = vmax.f32 %v13138, 0.0
  %v13203 = vmax.f32 %v13139, 0.0
  %v13204 = vmax.f32 %v13140, 0.0
  %v13205 = vmax.f32 %v13141, 0.0
  %v13206 = vmax.f32 %v13142, 0.0
  %v13207 = vmax.f32 %v13143, 0.0
  %v13208 = vmax.f32 %v13144, 0.0
  %v13209 = vmax.f32 %v13145, 0.0
  %v13210 = vmax.f32 %v13146, 0.0
  %v13211 = vmax.f32 %v13147, 0.0
  %v13212 = vmax.f32 %v13148, 0.0
  %v13213 = vmax.f32 %v13149, 0.0
  %v13214 = vmax.f32 %v13150, 0.0
  %v13215 = vmax.f32 %v13151, 0.0
  %v13216 = vmax.f32 %v13152, 0.0
  %v13217 = vmax.f32 %v13153, 0.0
  %v13218 = vmax.f32 %v13154, 0.0
  %v13219 = vmax.f32 %v13155, 0.0
  %v13220 = vmax.f32 %v13156, 0.0
  %v13221 = vmax.f32 %v13157, 0.0
  %v13222 = vmax.f32 %v13158, 0.0
  %v13223 = vmax.f32 %v13159, %v13161
  %v13224 = vmax.f32 %v13223, %v13163
  %v13225 = vmax.f32 %v13224, %v13165
  %v13226 = vmax.f32 %v13225, %v13167
  %v13227 = vmax.f32 %v13226, %v13169
  %v13228 = vmax.f32 %v13227, %v13171
  %v13229 = vmax.f32 %v13228, %v13173
  %v13230 = vmax.f32 %v13229, %v13175
  %v13231 = vmax.f32 %v13230, %v13177
  %v13232 = vmax.f32 %v13231, %v13179
  %v13233 = vmax.f32 %v13232, %v13181
  %v13234 = vmax.f32 %v13233, %v13183
  %v13235 = vmax.f32 %v13234, %v13185
  %v13236 = vmax.f32 %v13235, %v13187
  %v13237 = vmax.f32 %v13236, %v13189
  %v13238 = vrot.slane %v13237, 4
  %v13239 = vmax.f32 %v13237, %v13238
  %v13240 = vrot.slane %v13239, 2
  %v13241 = vmax.f32 %v13239, %v13240
  %v13242 = vrot.slane %v13241, 1
  %v13243 = vmax.f32 %v13241, %v13242
  %v13244 = vmax.f32 %v13160, %v13162
  %v13245 = vmax.f32 %v13244, %v13164
  %v13246 = vmax.f32 %v13245, %v13166
  %v13247 = vmax.f32 %v13246, %v13168
  %v13248 = vmax.f32 %v13247, %v13170
  %v13249 = vmax.f32 %v13248, %v13172
  %v13250 = vmax.f32 %v13249, %v13174
  %v13251 = vmax.f32 %v13250, %v13176
  %v13252 = vmax.f32 %v13251, %v13178
  %v13253 = vmax.f32 %v13252, %v13180
  %v13254 = vmax.f32 %v13253, %v13182
  %v13255 = vmax.f32 %v13254, %v13184
  %v13256 = vmax.f32 %v13255, %v13186
  %v13257 = vmax.f32 %v13256, %v13188
  %v13258 = vmax.f32 %v13257, %v13190
  %v13259 = vrot.slane %v13258, 4
  %v13260 = vmax.f32 %v13258, %v13259
  %v13261 = vrot.slane %v13260, 2
  %v13262 = vmax.f32 %v13260, %v13261
  %v13263 = vrot.slane %v13262, 1
  %v13264 = vmax.f32 %v13262, %v13263
  %v13265 = vmax.f32 %v13191, %v13193
  %v13266 = vmax.f32 %v13265, %v13195
  %v13267 = vmax.f32 %v13266, %v13197
  %v13268 = vmax.f32 %v13267, %v13199
  %v13269 = vmax.f32 %v13268, %v13201
  %v13270 = vmax.f32 %v13269, %v13203
  %v13271 = vmax.f32 %v13270, %v13205
  %v13272 = vmax.f32 %v13271, %v13207
  %v13273 = vmax.f32 %v13272, %v13209
  %v13274 = vmax.f32 %v13273, %v13211
  %v13275 = vmax.f32 %v13274, %v13213
  %v13276 = vmax.f32 %v13275, %v13215
  %v13277 = vmax.f32 %v13276, %v13217
  %v13278 = vmax.f32 %v13277, %v13219
  %v13279 = vmax.f32 %v13278, %v13221
  %v13280 = vrot.slane %v13279, 4
  %v13281 = vmax.f32 %v13279, %v13280
  %v13282 = vrot.slane %v13281, 2
  %v13283 = vmax.f32 %v13281, %v13282
  %v13284 = vrot.slane %v13283, 1
  %v13285 = vmax.f32 %v13283, %v13284
  %v13286 = vmax.f32 %v13192, %v13194
  %v13287 = vmax.f32 %v13286, %v13196
  %v13288 = vmax.f32 %v13287, %v13198
  %v13289 = vmax.f32 %v13288, %v13200
  %v13290 = vmax.f32 %v13289, %v13202
  %v13291 = vmax.f32 %v13290, %v13204
  %v13292 = vmax.f32 %v13291, %v13206
  %v13293 = vmax.f32 %v13292, %v13208
  %v13294 = vmax.f32 %v13293, %v13210
  %v13295 = vmax.f32 %v13294, %v13212
  %v13296 = vmax.f32 %v13295, %v13214
  %v13297 = vmax.f32 %v13296, %v13216
  %v13298 = vmax.f32 %v13297, %v13218
  %v13299 = vmax.f32 %v13298, %v13220
  %v13300 = vmax.f32 %v13299, %v13222
  %v13301 = vrot.slane %v13300, 4
  %v13302 = vmax.f32 %v13300, %v13301
  %v13303 = vrot.slane %v13302, 2
  %v13304 = vmax.f32 %v13302, %v13303
  %v13305 = vrot.slane %v13304, 1
  %v13306 = vmax.f32 %v13304, %v13305
  %v13307 = vmax.f32 %v8721, %v8725
  %v13308 = vmax.f32 %v8723, %v8727
  %v13309 = vmax.f32 %v13307, %v8729
  %v13310 = vmax.f32 %v13308, %v8731
  %v13311 = vmax.f32 %v13309, %v8733
  %v13312 = vmax.f32 %v13310, %v8735
  %v13313 = vmax.f32 %v13311, %v8737
  %v13314 = vmax.f32 %v13312, %v8739
  %v13315 = vmax.f32 %v13313, %v8741
  %v13316 = vmax.f32 %v13314, %v8743
  %v13317 = vmax.f32 %v13315, %v8745
  %v13318 = vmax.f32 %v13316, %v8747
  %v13319 = vmax.f32 %v13317, %v8749
  %v13320 = vmax.f32 %v13318, %v8751
  %v13321 = vmax.f32 %v13319, %v13320
  %v13322 = vrot.slane %v13321, 4
  %v13323 = vmax.f32 %v13321, %v13322
  %v13324 = vrot.slane %v13323, 2
  %v13325 = vmax.f32 %v13323, %v13324
  %v13326 = vrot.slane %v13325, 1
  %v13327 = vmax.f32 %v13325, %v13326
  %v13328 = vmax.f32 %v8753, %v8757
  %v13329 = vmax.f32 %v8755, %v8759
  %v13330 = vmax.f32 %v13328, %v8761
  %v13331 = vmax.f32 %v13329, %v8763
  %v13332 = vmax.f32 %v13330, %v8765
  %v13333 = vmax.f32 %v13331, %v8767
  %v13334 = vmax.f32 %v13332, %v8769
  %v13335 = vmax.f32 %v13333, %v8771
  %v13336 = vmax.f32 %v13334, %v8773
  %v13337 = vmax.f32 %v13335, %v8775
  %v13338 = vmax.f32 %v13336, %v8777
  %v13339 = vmax.f32 %v13337, %v8779
  %v13340 = vmax.f32 %v13338, %v8781
  %v13341 = vmax.f32 %v13339, %v8783
  %v13342 = vmax.f32 %v13340, %v13341
  %v13343 = vrot.slane %v13342, 4
  %v13344 = vmax.f32 %v13342, %v13343
  %v13345 = vrot.slane %v13344, 2
  %v13346 = vmax.f32 %v13344, %v13345
  %v13347 = vrot.slane %v13346, 1
  %v13348 = vmax.f32 %v13346, %v13347
  %v13349 = vsel %vm1415, %v4282, -inf
  %v13350 = vsel %vm1415, %v4284, -inf
  %v13351 = vsel %vm1415, %v4286, -inf
  %v13352 = vmax.f32 %v13349, %v13351
  %v13353 = vsel %vm1415, %v4288, -inf
  %v13354 = vmax.f32 %v13350, %v13353
  %v13355 = vsel %vm1415, %v4290, -inf
  %v13356 = vmax.f32 %v13352, %v13355
  %v13357 = vsel %vm1415, %v4292, -inf
  %v13358 = vmax.f32 %v13354, %v13357
  %v13359 = vsel %vm1415, %v4294, -inf
  %v13360 = vmax.f32 %v13356, %v13359
  %v13361 = vsel %vm1415, %v4296, -inf
  %v13362 = vmax.f32 %v13358, %v13361
  %v13363 = vsel %vm1415, %v4298, -inf
  %v13364 = vmax.f32 %v13360, %v13363
  %v13365 = vsel %vm1415, %v4300, -inf
  %v13366 = vmax.f32 %v13362, %v13365
  %v13367 = vsel %vm1415, %v4302, -inf
  %v13368 = vmax.f32 %v13364, %v13367
  %v13369 = vsel %vm1415, %v4304, -inf
  %v13370 = vmax.f32 %v13366, %v13369
  %v13371 = vsel %vm1415, %v4306, -inf
  %v13372 = vmax.f32 %v13368, %v13371
  %v13373 = vsel %vm1415, %v4308, -inf
  %v13374 = vmax.f32 %v13370, %v13373
  %v13375 = vsel %vm1415, %v4310, -inf
  %v13376 = vmax.f32 %v13372, %v13375
  %v13377 = vsel %vm1415, %v4312, -inf
  %v13378 = vmax.f32 %v13374, %v13377
  %v13379 = vmax.f32 %v13376, %v13378
  %v13380 = vrot.slane %v13379, 4
  %v13381 = vmax.f32 %v13379, %v13380
  %v13382 = vrot.slane %v13381, 2
  %v13383 = vmax.f32 %v13381, %v13382
  %v13384 = vrot.slane %v13383, 1
  %v13385 = vmax.f32 %v13383, %v13384
  %v13386 = vsel %vm1415, %v4314, -inf
  %v13387 = vsel %vm1415, %v4316, -inf
  %v13388 = vsel %vm1415, %v4318, -inf
  %v13389 = vmax.f32 %v13386, %v13388
  %v13390 = vsel %vm1415, %v4320, -inf
  %v13391 = vmax.f32 %v13387, %v13390
  %v13392 = vsel %vm1415, %v4322, -inf
  %v13393 = vmax.f32 %v13389, %v13392
  %v13394 = vsel %vm1415, %v4324, -inf
  %v13395 = vmax.f32 %v13391, %v13394
  %v13396 = vsel %vm1415, %v4326, -inf
  %v13397 = vmax.f32 %v13393, %v13396
  %v13398 = vsel %vm1415, %v4328, -inf
  %v13399 = vmax.f32 %v13395, %v13398
  %v13400 = vsel %vm1415, %v4330, -inf
  %v13401 = vmax.f32 %v13397, %v13400
  %v13402 = vsel %vm1415, %v4332, -inf
  %v13403 = vmax.f32 %v13399, %v13402
  %v13404 = vsel %vm1415, %v4334, -inf
  %v13405 = vmax.f32 %v13401, %v13404
  %v13406 = vsel %vm1415, %v4336, -inf
  %v13407 = vmax.f32 %v13403, %v13406
  %v13408 = vsel %vm1415, %v4338, -inf
  %v13409 = vmax.f32 %v13405, %v13408
  %v13410 = vsel %vm1415, %v4340, -inf
  %v13411 = vmax.f32 %v13407, %v13410
  %v13412 = vsel %vm1415, %v4342, -inf
  %v13413 = vmax.f32 %v13409, %v13412
  %v13414 = vsel %vm1415, %v4344, -inf
  %v13415 = vmax.f32 %v13411, %v13414
  %v13416 = vmax.f32 %v13413, %v13415
  %v13417 = vrot.slane %v13416, 4
  %v13418 = vmax.f32 %v13416, %v13417
  %v13419 = vrot.slane %v13418, 2
  %v13420 = vmax.f32 %v13418, %v13419
  %v13421 = vrot.slane %v13420, 1
  %v13422 = vmax.f32 %v13420, %v13421
  %v13427 = vsel %vm2343, %v13285, %v13243
  %v13428 = vsel %vm2343, %v13306, %v13264
  %v13431 = vsel %vm2343, %v13348, %v13327
  %v13434 = vsel %vm2343, %v13422, %v13385
  %v13436 = vsel %vm1415, %v13434, 0.0
  %v13438 = vcombine.low %v13427, %v13428
  %v13439 = vcombine.low %v13431, %v13436
  %v13441 = vunpack.c.l.s4 1983009808
  %v13442 = vunpack.c.0.s8 %v13441
  %v13443 = vlaneseq
  %v13444 = vshrl.u32 %v13443, 7
  %v13445 = vsub.s32 %v13442, %v13444
  %v13446 = vrot.slane %v13438, %v13445
  %v13448 = vunpack.c.l.s4 1983009808
  %v13449 = vunpack.c.0.s8 %v13448
  %v13450 = vlaneseq
  %v13451 = vshrl.u32 %v13450, 7
  %v13452 = vsub.s32 %v13449, %v13451
  %v13453 = vrot.slane %v13439, %v13452
  %v13454 = vcombine.low %v13446, %v13453
  %13456 = vst [vmem:[%s87] sm:$0xff] %v13454
  // Predicated region
  $region174: #{multi_scale_feature.1} parent=0 // pred_check
    _
  $region175: #{multi_scale_feature.1} parent=0 // pred_check_branch
    %13458 = sbr.rel (0) target = $region177
  $region176: #{multi_scale_feature.1} parent=0 // pred_region
    _
  $region177: #{multi_scale_feature.1} parent=0 // pred_fallthru
    _
  // Predicated region
  $region178: #{multi_scale_feature.1} parent=0 // pred_check
    _
  $region179: #{multi_scale_feature.1} parent=0 // pred_check_branch
    %13460 = sbr.rel (0) target = $region181
  $region180: #{multi_scale_feature.1} parent=0 // pred_region
    _
  $region181: #{multi_scale_feature.1} parent=0 // pred_fallthru
    _

</llo_original>
